<compile_context>
chip_gen: v7x
topology: tpu7x:2x2x1
jax: 0.10.0
libtpu: 0.0.40
codegen_flags: <defaults>
</compile_context>

<pallas_src>
import functools

import jax
import jax.numpy as jnp
from jax.experimental import pallas as pl
from jax.experimental.pallas import tpu as pltpu


LANE = 128          # padded (lane-dense) hidden channel width inside the MLP
TILE_EDGES = 1024   # edges per grid step (sweep 1024-2048 for large graphs)


# ----------------------------------------------------------------------------
# Fused Pallas kernel: edge_net MLP (hidden Linear+LN+ReLU blocks, final
# Linear(C,1)) + sigmoid, for one tile of pre-multiplied edge features.
# ----------------------------------------------------------------------------
def _edge_mlp_kernel(ef_ref, w0_ref, wh_ref, bh_ref, gh_ref, beth_ref,
                     wl_ref, bl_ref, o_ref, *, n_hidden, true_c, eps, dot_dtype):
    inv_c = 1.0 / float(true_c)

    def ln_relu(z, g, bt):
        # Pad lanes of z are exactly 0 (zero-padded W / bias), so plain lane
        # sums divided by the TRUE channel count give the right statistics.
        mean = jnp.sum(z, axis=-1, keepdims=True) * inv_c
        ez2 = jnp.sum(z * z, axis=-1, keepdims=True) * inv_c
        var = ez2 - mean * mean                       # E[z^2] - E[z]^2
        norm = (z - mean) * jax.lax.rsqrt(var + eps)
        # gamma/beta pad lanes are 0 -> pad lanes re-zero; ReLU keeps them 0.
        return jnp.maximum(norm * g + bt, 0.0)

    h = ef_ref[...]                                   # (tile, C)  dot_dtype
    if n_hidden >= 1:
        # First hidden layer: (tile, C) @ (C, Cp); lane padding happens here.
        z = jnp.dot(h, w0_ref[...], preferred_element_type=jnp.float32) + bh_ref[0]
        h = ln_relu(z, gh_ref[0], beth_ref[0])
        for i in range(1, n_hidden):                  # static unroll, params in VMEM
            z = jnp.dot(h.astype(dot_dtype), wh_ref[i - 1],
                        preferred_element_type=jnp.float32) + bh_ref[i]
            h = ln_relu(z, gh_ref[i], beth_ref[i])
        h = h.astype(dot_dtype)

    # Final Linear(C, 1) as a (1, K) x (tile, K)^T contraction -> (1, tile)
    # logits: lane-dense, sigmoid only on real elements, full-width store.
    logits = jax.lax.dot_general(
        wl_ref[...], h, (((1,), (1,)), ((), ())),
        preferred_element_type=jnp.float32) + bl_ref[...]
    score = pl.reciprocal(1.0 + jnp.exp(-logits), approx=True)
    o_ref[...] = score.astype(o_ref.dtype)


# ----------------------------------------------------------------------------
# Parameters of ParsingNet_GPU.edge_net
#   MLP(channel, channel, 1, layer_parsingnet, dropout, norm_mode='insert',
#       act_final=False)
# ----------------------------------------------------------------------------
class ParsingNetEdgeNet:
    def __init__(self, channel, layer_parsingnet, key=jax.random.PRNGKey(0)):
        assert layer_parsingnet >= 1
        self.channel = channel
        self.num_layers = layer_parsingnet
        self.hidden = []
        scale = (2.0 / (channel + channel)) ** 0.5
        for _ in range(layer_parsingnet - 1):
            key, kw, kb = jax.random.split(key, 3)
            w = scale * jax.random.normal(kw, (channel, channel), dtype=jnp.float32)
            b = 0.05 * jax.random.normal(kb, (channel,), dtype=jnp.float32)
            g = jnp.ones((channel,), dtype=jnp.float32)     # LayerNorm weight
            bt = jnp.zeros((channel,), dtype=jnp.float32)   # LayerNorm bias
            self.hidden.append((w, b, g, bt))
        key, kw, kb = jax.random.split(key, 3)
        self.w_last = ((2.0 / (channel + 1)) ** 0.5) * jax.random.normal(
            kw, (channel, 1), dtype=jnp.float32)
        self.b_last = 0.05 * jax.random.normal(kb, (1,), dtype=jnp.float32)


# ----------------------------------------------------------------------------
# Wrapper: f32 gather + hadamard (XLA glue), padded / stacked parameters,
# single pallas_call for the whole edge_net.
# ----------------------------------------------------------------------------
def _pad2(a, rows, cols):
    out = jnp.zeros((rows, cols), a.dtype)
    return out.at[:a.shape[0], :a.shape[1]].set(a)


def edge_scores_pallas(x, row, col, net, *, tile_edges=TILE_EDGES,
                       dot_dtype=jnp.bfloat16, eps=1e-5):
    n, c = x.shape
    cp = LANE * pl.cdiv(c, LANE)
    n_hidden = net.num_layers - 1                    # may be 0

    # XLA glue: data-dependent endpoint gather + f32 hadamard (fuse together).
    # Single true-width (E_pad, C) edge-feature stream; cast once to dot dtype.
    e = int(row.shape[0])
    ep = tile_edges * pl.cdiv(max(e, 1), tile_edges)
    row_p = jnp.zeros((ep,), jnp.int32).at[:e].set(row.astype(jnp.int32))
    col_p = jnp.zeros((ep,), jnp.int32).at[:e].set(col.astype(jnp.int32))
    ef = (jnp.take(x, row_p, axis=0) * jnp.take(x, col_p, axis=0)).astype(dot_dtype)

    # Zero-padded parameters (matmul operands in dot_dtype, epilogue params f32).
    if n_hidden >= 1:
        w0 = _pad2(net.hidden[0][0], c, cp).astype(dot_dtype)          # (C, Cp)
        wh_list = [_pad2(w, cp, cp) for (w, _, _, _) in net.hidden[1:]]
        if not wh_list:                                                # n_hidden == 1
            wh_list = [jnp.zeros((cp, cp), jnp.float32)]               # dummy, unread
        wh = jnp.stack(wh_list).astype(dot_dtype)
        bh = jnp.stack([_pad2(b[None, :], 1, cp) for (_, b, _, _) in net.hidden])
        gh = jnp.stack([_pad2(g[None, :], 1, cp) for (_, _, g, _) in net.hidden])
        beth = jnp.stack([_pad2(bt[None, :], 1, cp) for (_, _, _, bt) in net.hidden])
        k_last = cp
    else:  # layer_parsingnet == 1: single Linear(C, 1); hidden params unread.
        w0 = jnp.zeros((c, cp), dot_dtype)
        wh = jnp.zeros((1, cp, cp), dot_dtype)
        bh = gh = beth = jnp.zeros((1, 1, cp), jnp.float32)
        k_last = c
    wl = _pad2(net.w_last.T, 1, k_last).astype(dot_dtype)              # (1, K)
    bl = net.b_last.reshape(1, 1).astype(jnp.float32)                  # (1, 1)

    kern = functools.partial(_edge_mlp_kernel, n_hidden=n_hidden, true_c=c,
                             eps=eps, dot_dtype=dot_dtype)
    # NOTE: the parameter inputs are grid-invariant (constant index_map), so the
    # runtime never re-DMAs them; for very large channel/depth configs on v7x
    # consider pipeline_mode=pl.Buffered(1) on these specs to halve their VMEM.
    out = pl.pallas_call(
        kern,
        out_shape=jax.ShapeDtypeStruct((1, ep), jnp.float32),
        grid_spec=pltpu.PrefetchScalarGridSpec(
            num_scalar_prefetch=0,
            grid=(ep // tile_edges,),
            in_specs=[
                pl.BlockSpec((tile_edges, c), lambda i: (i, 0)),   # edge features
                pl.BlockSpec(w0.shape, lambda i: (0, 0)),          # first hidden W
                pl.BlockSpec(wh.shape, lambda i: (0, 0, 0)),       # other hidden W
                pl.BlockSpec(bh.shape, lambda i: (0, 0, 0)),       # hidden bias
                pl.BlockSpec(gh.shape, lambda i: (0, 0, 0)),       # LN gamma
                pl.BlockSpec(beth.shape, lambda i: (0, 0, 0)),     # LN beta
                pl.BlockSpec(wl.shape, lambda i: (0, 0)),          # final W row
                pl.BlockSpec(bl.shape, lambda i: (0, 0)),          # final bias
            ],
            out_specs=pl.BlockSpec((1, tile_edges), lambda i: (0, i)),
        ),
        compiler_params=pltpu.CompilerParams(
            dimension_semantics=("parallel",),       # edge tiles -> both TCs on v7x
            vmem_limit_bytes=32 << 20),
    )(ef, w0, wh, bh, gh, beth, wl, bl)

    return out[0, :e]


# ----------------------------------------------------------------------------
# Pure-JAX reference (edge_net at true channel width, f32 highest precision)
# ----------------------------------------------------------------------------
def edge_scores_ref(x, row, col, net, eps=1e-5):
    hp = jax.lax.Precision.HIGHEST
    h = x[row] * x[col]
    for (w, b, g, bt) in net.hidden:
        z = jnp.dot(h, w, precision=hp) + b
        mean = jnp.mean(z, axis=-1, keepdims=True)
        var = jnp.mean((z - mean) ** 2, axis=-1, keepdims=True)
        h = jnp.maximum((z - mean) / jnp.sqrt(var + eps) * g + bt, 0.0)
    logits = jnp.dot(h, net.w_last, precision=hp) + net.b_last
    return jax.nn.sigmoid(logits)[:, 0]


if __name__ == "__main__":
    CHANNEL = 32               # node feature channels
    LAYER_PARSINGNET = 3       # edge_net depth
    N_NODES = 64
    LINK_IGNORE_SELF_LOOP = True    # -> no self-loops added (wrapper-side glue)
    # dropout_network / dropout_parsing -> identity at inference.

    key = jax.random.PRNGKey(0)
    kx, ka, kp = jax.random.split(key, 3)

    x = jax.random.normal(kx, (N_NODES, CHANNEL), dtype=jnp.float32)

    # Random symmetric adjacency; remove self loops (glue for remove_self_loops).
    a = (jax.random.uniform(ka, (N_NODES, N_NODES)) < 0.1).astype(jnp.float32)
    a = jnp.maximum(a, a.T) * (1.0 - jnp.eye(N_NODES, dtype=jnp.float32))
    row, col = jnp.nonzero(a)
    row = row.astype(jnp.int32)
    col = col.astype(jnp.int32)

    net = ParsingNetEdgeNet(CHANNEL, LAYER_PARSINGNET, key=kp)
    ref = edge_scores_ref(x, row, col, net)

    # f32 matmul operands.
    score_f32 = jax.block_until_ready(
        edge_scores_pallas(x, row, col, net, dot_dtype=jnp.float32))
    assert score_f32.shape == ref.shape == (row.shape[0],)
    assert jnp.allclose(score_f32, ref, atol=5e-3, rtol=5e-3), "f32 mismatch vs reference"

    # Default path: bf16 matmul operands (all generations), f32 epilogue.
    score_bf16 = jax.block_until_ready(edge_scores_pallas(x, row, col, net))
    assert jnp.allclose(score_bf16, ref, atol=5e-2, rtol=5e-2), "bf16 mismatch vs reference"

    # Degenerate layer_parsingnet == 1 (single Linear(C,1) + sigmoid).
    net1 = ParsingNetEdgeNet(CHANNEL, 1, key=kp)
    ref1 = edge_scores_ref(x, row, col, net1)
    score1 = jax.block_until_ready(
        edge_scores_pallas(x, row, col, net1, dot_dtype=jnp.float32))
    assert jnp.allclose(score1, ref1, atol=5e-3, rtol=5e-3), "L=1 mismatch vs reference"

    print("KERNEL_OK")
</pallas_src>

<mosaic_0001>
module attributes {stable_mosaic.version = 11 : i64} {
  func.func @_edge_mlp_kernel(%arg0: i32, %arg1: memref<1024x32xf32, #tpu.memory_space<vmem>>, %arg2: memref<32x128xf32, #tpu.memory_space<vmem>>, %arg3: memref<1x128x128xf32, #tpu.memory_space<vmem>>, %arg4: memref<2x1x128xf32, #tpu.memory_space<vmem>>, %arg5: memref<2x1x128xf32, #tpu.memory_space<vmem>>, %arg6: memref<2x1x128xf32, #tpu.memory_space<vmem>>, %arg7: memref<1x128xf32, #tpu.memory_space<vmem>>, %arg8: memref<1x1xf32, #tpu.memory_space<vmem>>, %arg9: memref<1x1024xf32, #tpu.memory_space<vmem>>) attributes {dimension_semantics = [#tpu.dimension_semantics<parallel>], iteration_bounds = array<i64: 1>, scalar_prefetch = 0 : i64, scratch_operands = 0 : i64, tpu.core_type = #tpu.core_type<tc>, window_params = [{transform_indices = @transform_0, window_bounds = array<i64: 1024, 32>}, {pipeline_mode = #tpu.pipeline_mode<synchronous>, transform_indices = @transform_1, window_bounds = array<i64: 32, 128>}, {pipeline_mode = #tpu.pipeline_mode<synchronous>, transform_indices = @transform_2, window_bounds = array<i64: 1, 128, 128>}, {pipeline_mode = #tpu.pipeline_mode<synchronous>, transform_indices = @transform_3, window_bounds = array<i64: 2, 1, 128>}, {pipeline_mode = #tpu.pipeline_mode<synchronous>, transform_indices = @transform_4, window_bounds = array<i64: 2, 1, 128>}, {pipeline_mode = #tpu.pipeline_mode<synchronous>, transform_indices = @transform_5, window_bounds = array<i64: 2, 1, 128>}, {pipeline_mode = #tpu.pipeline_mode<synchronous>, transform_indices = @transform_6, window_bounds = array<i64: 1, 128>}, {pipeline_mode = #tpu.pipeline_mode<synchronous>, transform_indices = @transform_7, window_bounds = array<i64: 1, 1>}, {transform_indices = @transform_8, window_bounds = array<i64: 1, 1024>}]} {
    %c0 = arith.constant 0 : index
    %c0_0 = arith.constant 0 : index
    %0 = vector.load %arg1[%c0, %c0_0] : memref<1024x32xf32, #tpu.memory_space<vmem>>, vector<1024x32xf32>
    %c0_1 = arith.constant 0 : index
    %c0_2 = arith.constant 0 : index
    %1 = vector.load %arg2[%c0_1, %c0_2] : memref<32x128xf32, #tpu.memory_space<vmem>>, vector<32x128xf32>
    %cst = arith.constant dense<0.000000e+00> : vector<1024x128xf32>
    %2 = tpu.matmul %0, %1, %cst {dimension_numbers = #tpu.dot_dimension_numbers<[1], [0], [0], [1], [0, 0, 1, 1], [], []>} : vector<1024x32xf32>, vector<32x128xf32>, vector<1024x128xf32> -> vector<1024x128xf32>
    %c0_3 = arith.constant 0 : index
    %c0_4 = arith.constant 0 : index
    %c0_5 = arith.constant 0 : index
    %3 = vector.load %arg4[%c0_3, %c0_4, %c0_5] : memref<2x1x128xf32, #tpu.memory_space<vmem>>, vector<1x1x128xf32>
    %4 = vector.shape_cast %3 : vector<1x1x128xf32> to vector<1x128xf32>
    %5 = vector.broadcast %4 : vector<1x128xf32> to vector<1024x128xf32>
    %6 = arith.addf %2, %5 : vector<1024x128xf32>
    %c0_6 = arith.constant 0 : index
    %c0_7 = arith.constant 0 : index
    %c0_8 = arith.constant 0 : index
    %7 = vector.load %arg5[%c0_6, %c0_7, %c0_8] : memref<2x1x128xf32, #tpu.memory_space<vmem>>, vector<1x1x128xf32>
    %8 = vector.shape_cast %7 : vector<1x1x128xf32> to vector<1x128xf32>
    %c0_9 = arith.constant 0 : index
    %c0_10 = arith.constant 0 : index
    %c0_11 = arith.constant 0 : index
    %9 = vector.load %arg6[%c0_9, %c0_10, %c0_11] : memref<2x1x128xf32, #tpu.memory_space<vmem>>, vector<1x1x128xf32>
    %10 = vector.shape_cast %9 : vector<1x1x128xf32> to vector<1x128xf32>
    %cst_12 = arith.constant dense<0.000000e+00> : vector<1024xf32>
    %11 = vector.multi_reduction <add>, %6, %cst_12 [1] : vector<1024x128xf32> to vector<1024xf32>
    %12 = vector.shape_cast %11 : vector<1024xf32> to vector<1024x1xf32>
    %cst_13 = arith.constant 3.125000e-02 : f32
    %13 = vector.broadcast %cst_13 : f32 to vector<1024x1xf32>
    %14 = arith.mulf %12, %13 : vector<1024x1xf32>
    %15 = arith.mulf %6, %6 : vector<1024x128xf32>
    %cst_14 = arith.constant dense<0.000000e+00> : vector<1024xf32>
    %16 = vector.multi_reduction <add>, %15, %cst_14 [1] : vector<1024x128xf32> to vector<1024xf32>
    %17 = vector.shape_cast %16 : vector<1024xf32> to vector<1024x1xf32>
    %cst_15 = arith.constant 3.125000e-02 : f32
    %18 = vector.broadcast %cst_15 : f32 to vector<1024x1xf32>
    %19 = arith.mulf %17, %18 : vector<1024x1xf32>
    %20 = arith.mulf %14, %14 : vector<1024x1xf32>
    %21 = arith.subf %19, %20 : vector<1024x1xf32>
    %22 = vector.broadcast %14 : vector<1024x1xf32> to vector<1024x128xf32>
    %23 = arith.subf %6, %22 : vector<1024x128xf32>
    %cst_16 = arith.constant 9.99999974E-6 : f32
    %24 = vector.broadcast %cst_16 : f32 to vector<1024x1xf32>
    %25 = arith.addf %21, %24 : vector<1024x1xf32>
    %26 = math.rsqrt %25 : vector<1024x1xf32>
    %27 = vector.broadcast %26 : vector<1024x1xf32> to vector<1024x128xf32>
    %28 = arith.mulf %23, %27 : vector<1024x128xf32>
    %29 = vector.broadcast %8 : vector<1x128xf32> to vector<1024x128xf32>
    %30 = arith.mulf %28, %29 : vector<1024x128xf32>
    %31 = vector.broadcast %10 : vector<1x128xf32> to vector<1024x128xf32>
    %32 = arith.addf %30, %31 : vector<1024x128xf32>
    %cst_17 = arith.constant 0.000000e+00 : f32
    %33 = vector.broadcast %cst_17 : f32 to vector<1024x128xf32>
    %34 = arith.maximumf %32, %33 : vector<1024x128xf32>
    %c0_18 = arith.constant 0 : index
    %c0_19 = arith.constant 0 : index
    %c0_20 = arith.constant 0 : index
    %35 = vector.load %arg3[%c0_18, %c0_19, %c0_20] : memref<1x128x128xf32, #tpu.memory_space<vmem>>, vector<1x128x128xf32>
    %36 = vector.shape_cast %35 : vector<1x128x128xf32> to vector<128x128xf32>
    %cst_21 = arith.constant dense<0.000000e+00> : vector<1024x128xf32>
    %37 = tpu.matmul %34, %36, %cst_21 {dimension_numbers = #tpu.dot_dimension_numbers<[1], [0], [0], [1], [0, 0, 1, 1], [], []>} : vector<1024x128xf32>, vector<128x128xf32>, vector<1024x128xf32> -> vector<1024x128xf32>
    %c1 = arith.constant 1 : index
    %c0_22 = arith.constant 0 : index
    %c0_23 = arith.constant 0 : index
    %38 = vector.load %arg4[%c1, %c0_22, %c0_23] : memref<2x1x128xf32, #tpu.memory_space<vmem>>, vector<1x1x128xf32>
    %39 = vector.shape_cast %38 : vector<1x1x128xf32> to vector<1x128xf32>
    %40 = vector.broadcast %39 : vector<1x128xf32> to vector<1024x128xf32>
    %41 = arith.addf %37, %40 : vector<1024x128xf32>
    %c1_24 = arith.constant 1 : index
    %c0_25 = arith.constant 0 : index
    %c0_26 = arith.constant 0 : index
    %42 = vector.load %arg5[%c1_24, %c0_25, %c0_26] : memref<2x1x128xf32, #tpu.memory_space<vmem>>, vector<1x1x128xf32>
    %43 = vector.shape_cast %42 : vector<1x1x128xf32> to vector<1x128xf32>
    %c1_27 = arith.constant 1 : index
    %c0_28 = arith.constant 0 : index
    %c0_29 = arith.constant 0 : index
    %44 = vector.load %arg6[%c1_27, %c0_28, %c0_29] : memref<2x1x128xf32, #tpu.memory_space<vmem>>, vector<1x1x128xf32>
    %45 = vector.shape_cast %44 : vector<1x1x128xf32> to vector<1x128xf32>
    %cst_30 = arith.constant dense<0.000000e+00> : vector<1024xf32>
    %46 = vector.multi_reduction <add>, %41, %cst_30 [1] : vector<1024x128xf32> to vector<1024xf32>
    %47 = vector.shape_cast %46 : vector<1024xf32> to vector<1024x1xf32>
    %cst_31 = arith.constant 3.125000e-02 : f32
    %48 = vector.broadcast %cst_31 : f32 to vector<1024x1xf32>
    %49 = arith.mulf %47, %48 : vector<1024x1xf32>
    %50 = arith.mulf %41, %41 : vector<1024x128xf32>
    %cst_32 = arith.constant dense<0.000000e+00> : vector<1024xf32>
    %51 = vector.multi_reduction <add>, %50, %cst_32 [1] : vector<1024x128xf32> to vector<1024xf32>
    %52 = vector.shape_cast %51 : vector<1024xf32> to vector<1024x1xf32>
    %cst_33 = arith.constant 3.125000e-02 : f32
    %53 = vector.broadcast %cst_33 : f32 to vector<1024x1xf32>
    %54 = arith.mulf %52, %53 : vector<1024x1xf32>
    %55 = arith.mulf %49, %49 : vector<1024x1xf32>
    %56 = arith.subf %54, %55 : vector<1024x1xf32>
    %57 = vector.broadcast %49 : vector<1024x1xf32> to vector<1024x128xf32>
    %58 = arith.subf %41, %57 : vector<1024x128xf32>
    %cst_34 = arith.constant 9.99999974E-6 : f32
    %59 = vector.broadcast %cst_34 : f32 to vector<1024x1xf32>
    %60 = arith.addf %56, %59 : vector<1024x1xf32>
    %61 = math.rsqrt %60 : vector<1024x1xf32>
    %62 = vector.broadcast %61 : vector<1024x1xf32> to vector<1024x128xf32>
    %63 = arith.mulf %58, %62 : vector<1024x128xf32>
    %64 = vector.broadcast %43 : vector<1x128xf32> to vector<1024x128xf32>
    %65 = arith.mulf %63, %64 : vector<1024x128xf32>
    %66 = vector.broadcast %45 : vector<1x128xf32> to vector<1024x128xf32>
    %67 = arith.addf %65, %66 : vector<1024x128xf32>
    %cst_35 = arith.constant 0.000000e+00 : f32
    %68 = vector.broadcast %cst_35 : f32 to vector<1024x128xf32>
    %69 = arith.maximumf %67, %68 : vector<1024x128xf32>
    %c0_36 = arith.constant 0 : index
    %c0_37 = arith.constant 0 : index
    %70 = vector.load %arg7[%c0_36, %c0_37] : memref<1x128xf32, #tpu.memory_space<vmem>>, vector<1x128xf32>
    %cst_38 = arith.constant dense<0.000000e+00> : vector<1x1024xf32>
    %71 = tpu.matmul %70, %69, %cst_38 {dimension_numbers = #tpu.dot_dimension_numbers<[1], [1], [0], [0], [0, 0, 1, 0], [], []>} : vector<1x128xf32>, vector<1024x128xf32>, vector<1x1024xf32> -> vector<1x1024xf32>
    %c0_39 = arith.constant 0 : index
    %c0_40 = arith.constant 0 : index
    %72 = vector.load %arg8[%c0_39, %c0_40] : memref<1x1xf32, #tpu.memory_space<vmem>>, vector<1x1xf32>
    %73 = vector.broadcast %72 : vector<1x1xf32> to vector<1x1024xf32>
    %74 = arith.addf %71, %73 : vector<1x1024xf32>
    %cst_41 = arith.constant 0.000000e+00 : f32
    %75 = vector.broadcast %cst_41 : f32 to vector<1x1024xf32>
    %76 = arith.subf %75, %74 : vector<1x1024xf32>
    %77 = math.exp %76 : vector<1x1024xf32>
    %cst_42 = arith.constant 1.000000e+00 : f32
    %78 = vector.broadcast %cst_42 : f32 to vector<1x1024xf32>
    %79 = arith.addf %78, %77 : vector<1x1024xf32>
    %80 = tpu.reciprocal %79 {approx = true} : vector<1x1024xf32> -> vector<1x1024xf32>
    %c0_43 = arith.constant 0 : index
    %c0_44 = arith.constant 0 : index
    %81 = vector.load %arg9[%c0_43, %c0_44] : memref<1x1024xf32, #tpu.memory_space<vmem>>, vector<1x1024xf32>
    tpu.vector_store %arg9[%c0_43, %c0_44], %80 {strides = array<i32>} : memref<1x1024xf32, #tpu.memory_space<vmem>>, vector<1x1024xf32>,
    return
  }
  func.func @transform_0(%arg0: i32) -> (i32, i32) {
    %c0_i32 = arith.constant 0 : i32
    %c0_i32_0 = arith.constant 0 : i32
    return %arg0, %c0_i32 : i32, i32
  }
  func.func @transform_1(%arg0: i32) -> (i32, i32) {
    %c0_i32 = arith.constant 0 : i32
    %c0_i32_0 = arith.constant 0 : i32
    %c0_i32_1 = arith.constant 0 : i32
    return %c0_i32, %c0_i32_0 : i32, i32
  }
  func.func @transform_2(%arg0: i32) -> (i32, i32, i32) {
    %c0_i32 = arith.constant 0 : i32
    %c0_i32_0 = arith.constant 0 : i32
    %c0_i32_1 = arith.constant 0 : i32
    %c0_i32_2 = arith.constant 0 : i32
    return %c0_i32, %c0_i32_0, %c0_i32_1 : i32, i32, i32
  }
  func.func @transform_3(%arg0: i32) -> (i32, i32, i32) {
    %c0_i32 = arith.constant 0 : i32
    %c0_i32_0 = arith.constant 0 : i32
    %c0_i32_1 = arith.constant 0 : i32
    %c0_i32_2 = arith.constant 0 : i32
    return %c0_i32, %c0_i32_0, %c0_i32_1 : i32, i32, i32
  }
  func.func @transform_4(%arg0: i32) -> (i32, i32, i32) {
    %c0_i32 = arith.constant 0 : i32
    %c0_i32_0 = arith.constant 0 : i32
    %c0_i32_1 = arith.constant 0 : i32
    %c0_i32_2 = arith.constant 0 : i32
    return %c0_i32, %c0_i32_0, %c0_i32_1 : i32, i32, i32
  }
  func.func @transform_5(%arg0: i32) -> (i32, i32, i32) {
    %c0_i32 = arith.constant 0 : i32
    %c0_i32_0 = arith.constant 0 : i32
    %c0_i32_1 = arith.constant 0 : i32
    %c0_i32_2 = arith.constant 0 : i32
    return %c0_i32, %c0_i32_0, %c0_i32_1 : i32, i32, i32
  }
  func.func @transform_6(%arg0: i32) -> (i32, i32) {
    %c0_i32 = arith.constant 0 : i32
    %c0_i32_0 = arith.constant 0 : i32
    %c0_i32_1 = arith.constant 0 : i32
    return %c0_i32, %c0_i32_0 : i32, i32
  }
  func.func @transform_7(%arg0: i32) -> (i32, i32) {
    %c0_i32 = arith.constant 0 : i32
    %c0_i32_0 = arith.constant 0 : i32
    %c0_i32_1 = arith.constant 0 : i32
    return %c0_i32, %c0_i32_0 : i32, i32
  }
  func.func @transform_8(%arg0: i32) -> (i32, i32) {
    %c0_i32 = arith.constant 0 : i32
    %c0_i32_0 = arith.constant 0 : i32
    return %c0_i32, %arg0 : i32, i32
  }
}

</mosaic_0001>

<llo_original>
// kernel: tpu_custom_call.1
$region0: #{tpu_custom_call.1}
  #allocation0 [shape = 'u32[]', space=smem, size = 0x4, offset = 0x4, fixed_abs, tag = 'smem constant byte address 0x4 - core index']
  #allocation1 [shape = 'u32[144,128]{1,0:T(1,128)}', space=vmem, size = 0x12000, scoped, tag = 'internal scratch']
  #allocation2 [shape = 'f32[1,1]{1,0:T(1,128)S(1)}', space=vmem, size = 0x200, scoped, tag = 'scoped memory for tpu_custom_call.1']
  %s0 = inlined_call_operand.vmem [shape: f32[1024,32], index: 0, kind: input, shape index: {}]
  %s1 = inlined_call_operand.vmem [shape: f32[32,128], index: 1, kind: input, shape index: {}]
  %s2 = inlined_call_operand.vmem [shape: f32[1,128,128], index: 2, kind: input, shape index: {}]
  %s3 = inlined_call_operand.vmem [shape: f32[2,1,128], index: 3, kind: input, shape index: {}]
  %s4 = inlined_call_operand.vmem [shape: f32[2,1,128], index: 4, kind: input, shape index: {}]
  %s5 = inlined_call_operand.vmem [shape: f32[2,1,128], index: 5, kind: input, shape index: {}]
  %s6 = inlined_call_operand.vmem [shape: f32[1,128], index: 6, kind: input, shape index: {}]
  %s7 = inlined_call_operand.<no memory space> [shape: f32[1,1], index: 7, kind: input, shape index: {}]
  %s8 = inlined_call_operand.hbm [shape: f32[1,1024], index: 8, kind: output, shape index: {}]
  %s9 = sld [smem:[#allocation0]]
  $region42: #{tpu_custom_call.1} parent=0
    _
  %s11 = ssub.s32 1, %s9
  %s12 = scalar_select 0, %s11, %s9
  %v13 = vstv %s7
  %14 = vst [vmem:[#allocation2] sm:$0x1] %v13
  $region1: #{tpu_custom_call.1} parent=0
    #allocation3 [shape = 'u8[4096]{0}', space=vmem, size = 0x1000, scoped, tag = 'output window, operand 0, single buffered']
    #allocation4 [shape = 's32[1]{0}', space=sflag, size = 0x4, scoped, tag = 'scoped memory for tpu_custom_call.1']
    %15 = vsyncpa [#allocation4], 0
    // Predicated region
    $region2: #{tpu_custom_call.1} parent=1 // pred_check
      _
    $region3: #{tpu_custom_call.1} parent=1 // pred_check_branch
      %17 = sbr.rel (0) target = $region5
    $region4: #{tpu_custom_call.1} parent=1 // pred_region
      _
    $region5: #{tpu_custom_call.1} parent=1 // pred_fallthru
      _
    // Predicated region
    $region6: #{tpu_custom_call.1} parent=1 // pred_check
      _
    $region7: #{tpu_custom_call.1} parent=1 // pred_check_branch
      %19 = sbr.rel (0) target = $region9
    $region8: #{tpu_custom_call.1} parent=1 // pred_region
      _
    $region9: #{tpu_custom_call.1} parent=1 // pred_fallthru
      _
    // Predicated region
    $region10: #{tpu_custom_call.1} parent=1 // pred_check
      _
    $region11: #{tpu_custom_call.1} parent=1 // pred_check_branch
      %21 = sbr.rel (0) target = $region13
    $region12: #{tpu_custom_call.1} parent=1 // pred_region
      _
    $region13: #{tpu_custom_call.1} parent=1 // pred_fallthru
      _
    // Predicated region
    $region14: #{tpu_custom_call.1} parent=1 // pred_check
      _
    $region15: #{tpu_custom_call.1} parent=1 // pred_check_branch
      %23 = sbr.rel (0) target = $region17
    $region16: #{tpu_custom_call.1} parent=1 // pred_region
      _
    $region17: #{tpu_custom_call.1} parent=1 // pred_fallthru
      _
    // Predicated region
    $region18: #{tpu_custom_call.1} parent=1 // pred_check
      _
    $region19: #{tpu_custom_call.1} parent=1 // pred_check_branch
      %25 = sbr.rel (0) target = $region21
    $region20: #{tpu_custom_call.1} parent=1 // pred_region
      _
    $region21: #{tpu_custom_call.1} parent=1 // pred_fallthru
      _
    // Predicated region
    $region22: #{tpu_custom_call.1} parent=1 // pred_check
      _
    $region23: #{tpu_custom_call.1} parent=1 // pred_check_branch
      %27 = sbr.rel (0) target = $region25
    $region24: #{tpu_custom_call.1} parent=1 // pred_region
      _
    $region25: #{tpu_custom_call.1} parent=1 // pred_fallthru
      _
    // Predicated region
    $region26: #{tpu_custom_call.1} parent=1 // pred_check
      _
    $region27: #{tpu_custom_call.1} parent=1 // pred_check_branch
      %29 = sbr.rel (0) target = $region29
    $region28: #{tpu_custom_call.1} parent=1 // pred_region
      _
    $region29: #{tpu_custom_call.1} parent=1 // pred_fallthru
      _
    // Predicated region
    $region30: #{tpu_custom_call.1} parent=1 // pred_check
      _
    $region31: #{tpu_custom_call.1} parent=1 // pred_check_branch
      %31 = sbr.rel (0) target = $region33
    $region32: #{tpu_custom_call.1} parent=1 // pred_region
      _
    $region33: #{tpu_custom_call.1} parent=1 // pred_fallthru
      _
    %v32 = vld [vmem:[%s0] sm:$0xff]
    %v33 = vld [vmem:[%s0 + $0x8] sm:$0xff]
    %v34 = vld [vmem:[%s0 + $0x10] sm:$0xff]
    %v35 = vld [vmem:[%s0 + $0x18] sm:$0xff]
    %v36 = vld [vmem:[%s0 + $0x20] sm:$0xff]
    %v37 = vld [vmem:[%s0 + $0x28] sm:$0xff]
    %v38 = vld [vmem:[%s0 + $0x30] sm:$0xff]
    %v39 = vld [vmem:[%s0 + $0x38] sm:$0xff]
    %v40 = vld [vmem:[%s0 + $0x40] sm:$0xff]
    %v41 = vld [vmem:[%s0 + $0x48] sm:$0xff]
    %v42 = vld [vmem:[%s0 + $0x50] sm:$0xff]
    %v43 = vld [vmem:[%s0 + $0x58] sm:$0xff]
    %v44 = vld [vmem:[%s0 + $0x60] sm:$0xff]
    %v45 = vld [vmem:[%s0 + $0x68] sm:$0xff]
    %v46 = vld [vmem:[%s0 + $0x70] sm:$0xff]
    %v47 = vld [vmem:[%s0 + $0x78] sm:$0xff]
    %v48 = vld [vmem:[%s0 + $0x80] sm:$0xff]
    %v49 = vld [vmem:[%s0 + $0x88] sm:$0xff]
    %v50 = vld [vmem:[%s0 + $0x90] sm:$0xff]
    %v51 = vld [vmem:[%s0 + $0x98] sm:$0xff]
    %v52 = vld [vmem:[%s0 + $0xa0] sm:$0xff]
    %v53 = vld [vmem:[%s0 + $0xa8] sm:$0xff]
    %v54 = vld [vmem:[%s0 + $0xb0] sm:$0xff]
    %v55 = vld [vmem:[%s0 + $0xb8] sm:$0xff]
    %v56 = vld [vmem:[%s0 + $0xc0] sm:$0xff]
    %v57 = vld [vmem:[%s0 + $0xc8] sm:$0xff]
    %v58 = vld [vmem:[%s0 + $0xd0] sm:$0xff]
    %v59 = vld [vmem:[%s0 + $0xd8] sm:$0xff]
    %v60 = vld [vmem:[%s0 + $0xe0] sm:$0xff]
    %v61 = vld [vmem:[%s0 + $0xe8] sm:$0xff]
    %v62 = vld [vmem:[%s0 + $0xf0] sm:$0xff]
    %v63 = vld [vmem:[%s0 + $0xf8] sm:$0xff]
    %v64 = vld [vmem:[%s0 + $0x100] sm:$0xff]
    %v65 = vld [vmem:[%s0 + $0x108] sm:$0xff]
    %v66 = vld [vmem:[%s0 + $0x110] sm:$0xff]
    %v67 = vld [vmem:[%s0 + $0x118] sm:$0xff]
    %v68 = vld [vmem:[%s0 + $0x120] sm:$0xff]
    %v69 = vld [vmem:[%s0 + $0x128] sm:$0xff]
    %v70 = vld [vmem:[%s0 + $0x130] sm:$0xff]
    %v71 = vld [vmem:[%s0 + $0x138] sm:$0xff]
    %v72 = vld [vmem:[%s0 + $0x140] sm:$0xff]
    %v73 = vld [vmem:[%s0 + $0x148] sm:$0xff]
    %v74 = vld [vmem:[%s0 + $0x150] sm:$0xff]
    %v75 = vld [vmem:[%s0 + $0x158] sm:$0xff]
    %v76 = vld [vmem:[%s0 + $0x160] sm:$0xff]
    %v77 = vld [vmem:[%s0 + $0x168] sm:$0xff]
    %v78 = vld [vmem:[%s0 + $0x170] sm:$0xff]
    %v79 = vld [vmem:[%s0 + $0x178] sm:$0xff]
    %v80 = vld [vmem:[%s0 + $0x180] sm:$0xff]
    %v81 = vld [vmem:[%s0 + $0x188] sm:$0xff]
    %v82 = vld [vmem:[%s0 + $0x190] sm:$0xff]
    %v83 = vld [vmem:[%s0 + $0x198] sm:$0xff]
    %v84 = vld [vmem:[%s0 + $0x1a0] sm:$0xff]
    %v85 = vld [vmem:[%s0 + $0x1a8] sm:$0xff]
    %v86 = vld [vmem:[%s0 + $0x1b0] sm:$0xff]
    %v87 = vld [vmem:[%s0 + $0x1b8] sm:$0xff]
    %v88 = vld [vmem:[%s0 + $0x1c0] sm:$0xff]
    %v89 = vld [vmem:[%s0 + $0x1c8] sm:$0xff]
    %v90 = vld [vmem:[%s0 + $0x1d0] sm:$0xff]
    %v91 = vld [vmem:[%s0 + $0x1d8] sm:$0xff]
    %v92 = vld [vmem:[%s0 + $0x1e0] sm:$0xff]
    %v93 = vld [vmem:[%s0 + $0x1e8] sm:$0xff]
    %v94 = vld [vmem:[%s0 + $0x1f0] sm:$0xff]
    %v95 = vld [vmem:[%s0 + $0x1f8] sm:$0xff]
    %v96 = vld [vmem:[%s0 + $0x200] sm:$0xff]
    %v97 = vld [vmem:[%s0 + $0x208] sm:$0xff]
    %v98 = vld [vmem:[%s0 + $0x210] sm:$0xff]
    %v99 = vld [vmem:[%s0 + $0x218] sm:$0xff]
    %v100 = vld [vmem:[%s0 + $0x220] sm:$0xff]
    %v101 = vld [vmem:[%s0 + $0x228] sm:$0xff]
    %v102 = vld [vmem:[%s0 + $0x230] sm:$0xff]
    %v103 = vld [vmem:[%s0 + $0x238] sm:$0xff]
    %v104 = vld [vmem:[%s0 + $0x240] sm:$0xff]
    %v105 = vld [vmem:[%s0 + $0x248] sm:$0xff]
    %v106 = vld [vmem:[%s0 + $0x250] sm:$0xff]
    %v107 = vld [vmem:[%s0 + $0x258] sm:$0xff]
    %v108 = vld [vmem:[%s0 + $0x260] sm:$0xff]
    %v109 = vld [vmem:[%s0 + $0x268] sm:$0xff]
    %v110 = vld [vmem:[%s0 + $0x270] sm:$0xff]
    %v111 = vld [vmem:[%s0 + $0x278] sm:$0xff]
    %v112 = vld [vmem:[%s0 + $0x280] sm:$0xff]
    %v113 = vld [vmem:[%s0 + $0x288] sm:$0xff]
    %v114 = vld [vmem:[%s0 + $0x290] sm:$0xff]
    %v115 = vld [vmem:[%s0 + $0x298] sm:$0xff]
    %v116 = vld [vmem:[%s0 + $0x2a0] sm:$0xff]
    %v117 = vld [vmem:[%s0 + $0x2a8] sm:$0xff]
    %v118 = vld [vmem:[%s0 + $0x2b0] sm:$0xff]
    %v119 = vld [vmem:[%s0 + $0x2b8] sm:$0xff]
    %v120 = vld [vmem:[%s0 + $0x2c0] sm:$0xff]
    %v121 = vld [vmem:[%s0 + $0x2c8] sm:$0xff]
    %v122 = vld [vmem:[%s0 + $0x2d0] sm:$0xff]
    %v123 = vld [vmem:[%s0 + $0x2d8] sm:$0xff]
    %v124 = vld [vmem:[%s0 + $0x2e0] sm:$0xff]
    %v125 = vld [vmem:[%s0 + $0x2e8] sm:$0xff]
    %v126 = vld [vmem:[%s0 + $0x2f0] sm:$0xff]
    %v127 = vld [vmem:[%s0 + $0x2f8] sm:$0xff]
    %v128 = vld [vmem:[%s0 + $0x300] sm:$0xff]
    %v129 = vld [vmem:[%s0 + $0x308] sm:$0xff]
    %v130 = vld [vmem:[%s0 + $0x310] sm:$0xff]
    %v131 = vld [vmem:[%s0 + $0x318] sm:$0xff]
    %v132 = vld [vmem:[%s0 + $0x320] sm:$0xff]
    %v133 = vld [vmem:[%s0 + $0x328] sm:$0xff]
    %v134 = vld [vmem:[%s0 + $0x330] sm:$0xff]
    %v135 = vld [vmem:[%s0 + $0x338] sm:$0xff]
    %v136 = vld [vmem:[%s0 + $0x340] sm:$0xff]
    %v137 = vld [vmem:[%s0 + $0x348] sm:$0xff]
    %v138 = vld [vmem:[%s0 + $0x350] sm:$0xff]
    %v139 = vld [vmem:[%s0 + $0x358] sm:$0xff]
    %v140 = vld [vmem:[%s0 + $0x360] sm:$0xff]
    %v141 = vld [vmem:[%s0 + $0x368] sm:$0xff]
    %v142 = vld [vmem:[%s0 + $0x370] sm:$0xff]
    %v143 = vld [vmem:[%s0 + $0x378] sm:$0xff]
    %v144 = vld [vmem:[%s0 + $0x380] sm:$0xff]
    %v145 = vld [vmem:[%s0 + $0x388] sm:$0xff]
    %v146 = vld [vmem:[%s0 + $0x390] sm:$0xff]
    %v147 = vld [vmem:[%s0 + $0x398] sm:$0xff]
    %v148 = vld [vmem:[%s0 + $0x3a0] sm:$0xff]
    %v149 = vld [vmem:[%s0 + $0x3a8] sm:$0xff]
    %v150 = vld [vmem:[%s0 + $0x3b0] sm:$0xff]
    %v151 = vld [vmem:[%s0 + $0x3b8] sm:$0xff]
    %v152 = vld [vmem:[%s0 + $0x3c0] sm:$0xff]
    %v153 = vld [vmem:[%s0 + $0x3c8] sm:$0xff]
    %v154 = vld [vmem:[%s0 + $0x3d0] sm:$0xff]
    %v155 = vld [vmem:[%s0 + $0x3d8] sm:$0xff]
    %v156 = vld [vmem:[%s0 + $0x3e0] sm:$0xff]
    %v157 = vld [vmem:[%s0 + $0x3e8] sm:$0xff]
    %v158 = vld [vmem:[%s0 + $0x3f0] sm:$0xff]
    %v159 = vld [vmem:[%s0 + $0x3f8] sm:$0xff]
    %v160 = vld [vmem:[%s1] sm:$0xff]
    %v161 = vld [vmem:[%s1 + $0x8] sm:$0xff]
    %v162 = vld [vmem:[%s1 + $0x10] sm:$0xff]
    %v163 = vld [vmem:[%s1 + $0x18] sm:$0xff]
    %v164 = vld [vmem:[%s3] sm:$0x1]
    %v166 = vlaneseq
    %v167 = vshrl.u32 %v166, 7
    %v168 = vsub.s32 0, %v167
    %v169 = vrot.slane %v164, %v168
    %vm171 = vcmask 261120
    %v173 = vsel %vm171, %v32, 0
    %v176 = vsel %vm171, %v33, 0
    %v179 = vsel %vm171, %v34, 0
    %v182 = vsel %vm171, %v35, 0
    %v185 = vsel %vm171, %v36, 0
    %v188 = vsel %vm171, %v37, 0
    %v191 = vsel %vm171, %v38, 0
    %v194 = vsel %vm171, %v39, 0
    %v197 = vsel %vm171, %v40, 0
    %v200 = vsel %vm171, %v41, 0
    %v203 = vsel %vm171, %v42, 0
    %v206 = vsel %vm171, %v43, 0
    %v209 = vsel %vm171, %v44, 0
    %v212 = vsel %vm171, %v45, 0
    %v215 = vsel %vm171, %v46, 0
    %v218 = vsel %vm171, %v47, 0
    %v221 = vsel %vm171, %v48, 0
    %v224 = vsel %vm171, %v49, 0
    %v227 = vsel %vm171, %v50, 0
    %v230 = vsel %vm171, %v51, 0
    %v233 = vsel %vm171, %v52, 0
    %v236 = vsel %vm171, %v53, 0
    %v239 = vsel %vm171, %v54, 0
    %v242 = vsel %vm171, %v55, 0
    %v245 = vsel %vm171, %v56, 0
    %v248 = vsel %vm171, %v57, 0
    %v251 = vsel %vm171, %v58, 0
    %v254 = vsel %vm171, %v59, 0
    %v257 = vsel %vm171, %v60, 0
    %v260 = vsel %vm171, %v61, 0
    %v263 = vsel %vm171, %v62, 0
    %v266 = vsel %vm171, %v63, 0
    %v269 = vsel %vm171, %v64, 0
    %v272 = vsel %vm171, %v65, 0
    %v275 = vsel %vm171, %v66, 0
    %v278 = vsel %vm171, %v67, 0
    %v281 = vsel %vm171, %v68, 0
    %v284 = vsel %vm171, %v69, 0
    %v287 = vsel %vm171, %v70, 0
    %v290 = vsel %vm171, %v71, 0
    %v293 = vsel %vm171, %v72, 0
    %v296 = vsel %vm171, %v73, 0
    %v299 = vsel %vm171, %v74, 0
    %v302 = vsel %vm171, %v75, 0
    %v305 = vsel %vm171, %v76, 0
    %v308 = vsel %vm171, %v77, 0
    %v311 = vsel %vm171, %v78, 0
    %v314 = vsel %vm171, %v79, 0
    %v317 = vsel %vm171, %v80, 0
    %v320 = vsel %vm171, %v81, 0
    %v323 = vsel %vm171, %v82, 0
    %v326 = vsel %vm171, %v83, 0
    %v329 = vsel %vm171, %v84, 0
    %v332 = vsel %vm171, %v85, 0
    %v335 = vsel %vm171, %v86, 0
    %v338 = vsel %vm171, %v87, 0
    %v341 = vsel %vm171, %v88, 0
    %v344 = vsel %vm171, %v89, 0
    %v347 = vsel %vm171, %v90, 0
    %v350 = vsel %vm171, %v91, 0
    %v353 = vsel %vm171, %v92, 0
    %v356 = vsel %vm171, %v93, 0
    %v359 = vsel %vm171, %v94, 0
    %v362 = vsel %vm171, %v95, 0
    %v365 = vsel %vm171, %v96, 0
    %v368 = vsel %vm171, %v97, 0
    %v371 = vsel %vm171, %v98, 0
    %v374 = vsel %vm171, %v99, 0
    %v377 = vsel %vm171, %v100, 0
    %v380 = vsel %vm171, %v101, 0
    %v383 = vsel %vm171, %v102, 0
    %v386 = vsel %vm171, %v103, 0
    %v389 = vsel %vm171, %v104, 0
    %v392 = vsel %vm171, %v105, 0
    %v395 = vsel %vm171, %v106, 0
    %v398 = vsel %vm171, %v107, 0
    %v401 = vsel %vm171, %v108, 0
    %v404 = vsel %vm171, %v109, 0
    %v407 = vsel %vm171, %v110, 0
    %v410 = vsel %vm171, %v111, 0
    %v413 = vsel %vm171, %v112, 0
    %v416 = vsel %vm171, %v113, 0
    %v419 = vsel %vm171, %v114, 0
    %v422 = vsel %vm171, %v115, 0
    %v425 = vsel %vm171, %v116, 0
    %v428 = vsel %vm171, %v117, 0
    %v431 = vsel %vm171, %v118, 0
    %v434 = vsel %vm171, %v119, 0
    %v437 = vsel %vm171, %v120, 0
    %v440 = vsel %vm171, %v121, 0
    %v443 = vsel %vm171, %v122, 0
    %v446 = vsel %vm171, %v123, 0
    %v449 = vsel %vm171, %v124, 0
    %v452 = vsel %vm171, %v125, 0
    %v455 = vsel %vm171, %v126, 0
    %v458 = vsel %vm171, %v127, 0
    %v461 = vsel %vm171, %v128, 0
    %v464 = vsel %vm171, %v129, 0
    %v467 = vsel %vm171, %v130, 0
    %v470 = vsel %vm171, %v131, 0
    %v473 = vsel %vm171, %v132, 0
    %v476 = vsel %vm171, %v133, 0
    %v479 = vsel %vm171, %v134, 0
    %v482 = vsel %vm171, %v135, 0
    %v485 = vsel %vm171, %v136, 0
    %v488 = vsel %vm171, %v137, 0
    %v491 = vsel %vm171, %v138, 0
    %v494 = vsel %vm171, %v139, 0
    %v497 = vsel %vm171, %v140, 0
    %v500 = vsel %vm171, %v141, 0
    %v503 = vsel %vm171, %v142, 0
    %v506 = vsel %vm171, %v143, 0
    %v509 = vsel %vm171, %v144, 0
    %v512 = vsel %vm171, %v145, 0
    %v515 = vsel %vm171, %v146, 0
    %v518 = vsel %vm171, %v147, 0
    %v521 = vsel %vm171, %v148, 0
    %v524 = vsel %vm171, %v149, 0
    %v527 = vsel %vm171, %v150, 0
    %v530 = vsel %vm171, %v151, 0
    %v533 = vsel %vm171, %v152, 0
    %v536 = vsel %vm171, %v153, 0
    %v539 = vsel %vm171, %v154, 0
    %v542 = vsel %vm171, %v155, 0
    %v545 = vsel %vm171, %v156, 0
    %v548 = vsel %vm171, %v157, 0
    %v551 = vsel %vm171, %v158, 0
    %v554 = vsel %vm171, %v159, 0
    %556 = vmatprep.subr.mxu0 0.0
    %557 = vmatpush1.msra.mxu0 %v160
    %558 = vmatprep.subr.mxu0 0.0
    %559 = vmatpush1.msra.mxu0 %v161
    %560 = vmatprep.subr.mxu0 0.0
    %561 = vmatpush1.msra.mxu0 %v162
    %562 = vmatprep.subr.mxu0 0.0
    %563 = vmatpush1.msra.mxu0 %v163
    %564 = vmatprep.subr.mxu0 0.0
    %565 = vmatpush1.msra.mxu0 0.0
    %566 = vmatprep.subr.mxu0 0.0
    %567 = vmatpush1.msra.mxu0 0.0
    %568 = vmatprep.subr.mxu0 0.0
    %569 = vmatpush1.msra.mxu0 0.0
    %570 = vmatprep.subr.mxu0 0.0
    %571 = vmatpush1.msra.mxu0 0.0
    %572 = vmatprep.subr.mxu0 0.0
    %573 = vmatpush1.msra.mxu0 0.0
    %574 = vmatprep.subr.mxu0 0.0
    %575 = vmatpush1.msra.mxu0 0.0
    %576 = vmatprep.subr.mxu0 0.0
    %577 = vmatpush1.msra.mxu0 0.0
    %578 = vmatprep.subr.mxu0 0.0
    %579 = vmatpush1.msra.mxu0 0.0
    %580 = vmatprep.subr.mxu0 0.0
    %581 = vmatpush1.msra.mxu0 0.0
    %582 = vmatprep.subr.mxu0 0.0
    %583 = vmatpush1.msra.mxu0 0.0
    %584 = vmatprep.subr.mxu0 0.0
    %585 = vmatpush1.msra.mxu0 0.0
    %586 = vmatprep.subr.mxu0 0.0
    %587 = vmatpush1.msra.mxu0 0.0
    %588 = vmatprep.subr.mxu0 0.0
    %589 = vmatpush1.msra.mxu0 0.0
    %590 = vmatprep.subr.mxu0 0.0
    %591 = vmatpush1.msra.mxu0 0.0
    %592 = vmatprep.subr.mxu0 0.0
    %593 = vmatpush1.msra.mxu0 0.0
    %594 = vmatprep.subr.mxu0 0.0
    %595 = vmatpush1.msra.mxu0 0.0
    %596 = vmatprep.subr.mxu0 0.0
    %597 = vmatpush1.msra.mxu0 0.0
    %598 = vmatprep.subr.mxu0 0.0
    %599 = vmatpush1.msra.mxu0 0.0
    %600 = vmatprep.subr.mxu0 0.0
    %601 = vmatpush1.msra.mxu0 0.0
    %602 = vmatprep.subr.mxu0 0.0
    %603 = vmatpush1.msra.mxu0 0.0
    %604 = vmatprep.subr.mxu0 0.0
    %605 = vmatpush1.msra.mxu0 0.0
    %606 = vmatprep.subr.mxu0 0.0
    %607 = vmatpush1.msra.mxu0 0.0
    %608 = vmatprep.subr.mxu0 0.0
    %609 = vmatpush1.msra.mxu0 0.0
    %610 = vmatprep.subr.mxu0 0.0
    %611 = vmatpush1.msra.mxu0 0.0
    %612 = vmatprep.subr.mxu0 0.0
    %613 = vmatpush1.msra.mxu0 0.0
    %614 = vmatprep.subr.mxu0 0.0
    %615 = vmatpush1.msra.mxu0 0.0
    %616 = vmatprep.subr.mxu0 0.0
    %617 = vmatpush1.msra.mxu0 0.0
    %618 = vmatprep.subr.mxu0 0.0
    %619 = vmatpush1.msra.mxu0 0.0
    %620 = vmatprep.mubr.f32.mxu0 0.0
    %621 = vmatmul.mubr.f32.gmra.mrb[0].mxu0 %v173
    %v622 = vpop.f32.mrb[0].mxu0
    %v623 = vadd.f32 %v169, %v622
    %v624 = vpop.f32.mrb[0].mxu0
    %625 = vmatprep.mubr.f32.mxu0 0.0
    %626 = vmatmul.mubr.f32.gmra.mrb[0].mxu0 %v176
    %v627 = vpop.f32.mrb[0].mxu0
    %v628 = vadd.f32 %v169, %v627
    %v629 = vpop.f32.mrb[0].mxu0
    %630 = vmatprep.mubr.f32.mxu0 0.0
    %631 = vmatmul.mubr.f32.gmra.mrb[0].mxu0 %v179
    %v632 = vpop.f32.mrb[0].mxu0
    %v633 = vadd.f32 %v169, %v632
    %v634 = vpop.f32.mrb[0].mxu0
    %635 = vmatprep.mubr.f32.mxu0 0.0
    %636 = vmatmul.mubr.f32.gmra.mrb[0].mxu0 %v182
    %v637 = vpop.f32.mrb[0].mxu0
    %v638 = vadd.f32 %v169, %v637
    %v639 = vpop.f32.mrb[0].mxu0
    %640 = vmatprep.mubr.f32.mxu0 0.0
    %641 = vmatmul.mubr.f32.gmra.mrb[0].mxu0 %v185
    %v642 = vpop.f32.mrb[0].mxu0
    %v643 = vadd.f32 %v169, %v642
    %v644 = vpop.f32.mrb[0].mxu0
    %645 = vmatprep.mubr.f32.mxu0 0.0
    %646 = vmatmul.mubr.f32.gmra.mrb[0].mxu0 %v188
    %v647 = vpop.f32.mrb[0].mxu0
    %v648 = vadd.f32 %v169, %v647
    %v649 = vpop.f32.mrb[0].mxu0
    %650 = vmatprep.mubr.f32.mxu0 0.0
    %651 = vmatmul.mubr.f32.gmra.mrb[0].mxu0 %v191
    %v652 = vpop.f32.mrb[0].mxu0
    %v653 = vadd.f32 %v169, %v652
    %v654 = vpop.f32.mrb[0].mxu0
    %655 = vmatprep.mubr.f32.mxu0 0.0
    %656 = vmatmul.mubr.f32.gmra.mrb[0].mxu0 %v194
    %v657 = vpop.f32.mrb[0].mxu0
    %v658 = vadd.f32 %v169, %v657
    %v659 = vpop.f32.mrb[0].mxu0
    %660 = vmatprep.mubr.f32.mxu0 0.0
    %661 = vmatmul.mubr.f32.gmra.mrb[0].mxu0 %v197
    %v662 = vpop.f32.mrb[0].mxu0
    %v663 = vadd.f32 %v169, %v662
    %v664 = vpop.f32.mrb[0].mxu0
    %665 = vmatprep.mubr.f32.mxu0 0.0
    %666 = vmatmul.mubr.f32.gmra.mrb[0].mxu0 %v200
    %v667 = vpop.f32.mrb[0].mxu0
    %v668 = vadd.f32 %v169, %v667
    %v669 = vpop.f32.mrb[0].mxu0
    %670 = vmatprep.mubr.f32.mxu0 0.0
    %671 = vmatmul.mubr.f32.gmra.mrb[0].mxu0 %v203
    %v672 = vpop.f32.mrb[0].mxu0
    %v673 = vadd.f32 %v169, %v672
    %v674 = vpop.f32.mrb[0].mxu0
    %675 = vmatprep.mubr.f32.mxu0 0.0
    %676 = vmatmul.mubr.f32.gmra.mrb[0].mxu0 %v206
    %v677 = vpop.f32.mrb[0].mxu0
    %v678 = vadd.f32 %v169, %v677
    %v679 = vpop.f32.mrb[0].mxu0
    %680 = vmatprep.mubr.f32.mxu0 0.0
    %681 = vmatmul.mubr.f32.gmra.mrb[0].mxu0 %v209
    %v682 = vpop.f32.mrb[0].mxu0
    %v683 = vadd.f32 %v169, %v682
    %v684 = vpop.f32.mrb[0].mxu0
    %685 = vmatprep.mubr.f32.mxu0 0.0
    %686 = vmatmul.mubr.f32.gmra.mrb[0].mxu0 %v212
    %v687 = vpop.f32.mrb[0].mxu0
    %v688 = vadd.f32 %v169, %v687
    %v689 = vpop.f32.mrb[0].mxu0
    %690 = vmatprep.mubr.f32.mxu0 0.0
    %691 = vmatmul.mubr.f32.gmra.mrb[0].mxu0 %v215
    %v692 = vpop.f32.mrb[0].mxu0
    %v693 = vadd.f32 %v169, %v692
    %v694 = vpop.f32.mrb[0].mxu0
    %695 = vmatprep.mubr.f32.mxu0 0.0
    %696 = vmatmul.mubr.f32.gmra.mrb[0].mxu0 %v218
    %v697 = vpop.f32.mrb[0].mxu0
    %v698 = vadd.f32 %v169, %v697
    %v699 = vpop.f32.mrb[0].mxu0
    %700 = vmatprep.mubr.f32.mxu0 0.0
    %701 = vmatmul.mubr.f32.gmra.mrb[0].mxu0 %v221
    %v702 = vpop.f32.mrb[0].mxu0
    %v703 = vadd.f32 %v169, %v702
    %v704 = vpop.f32.mrb[0].mxu0
    %705 = vmatprep.mubr.f32.mxu0 0.0
    %706 = vmatmul.mubr.f32.gmra.mrb[0].mxu0 %v224
    %v707 = vpop.f32.mrb[0].mxu0
    %v708 = vadd.f32 %v169, %v707
    %v709 = vpop.f32.mrb[0].mxu0
    %710 = vmatprep.mubr.f32.mxu0 0.0
    %711 = vmatmul.mubr.f32.gmra.mrb[0].mxu0 %v227
    %v712 = vpop.f32.mrb[0].mxu0
    %v713 = vadd.f32 %v169, %v712
    %v714 = vpop.f32.mrb[0].mxu0
    %715 = vmatprep.mubr.f32.mxu0 0.0
    %716 = vmatmul.mubr.f32.gmra.mrb[0].mxu0 %v230
    %v717 = vpop.f32.mrb[0].mxu0
    %v718 = vadd.f32 %v169, %v717
    %v719 = vpop.f32.mrb[0].mxu0
    %720 = vmatprep.mubr.f32.mxu0 0.0
    %721 = vmatmul.mubr.f32.gmra.mrb[0].mxu0 %v233
    %v722 = vpop.f32.mrb[0].mxu0
    %v723 = vadd.f32 %v169, %v722
    %v724 = vpop.f32.mrb[0].mxu0
    %725 = vmatprep.mubr.f32.mxu0 0.0
    %726 = vmatmul.mubr.f32.gmra.mrb[0].mxu0 %v236
    %v727 = vpop.f32.mrb[0].mxu0
    %v728 = vadd.f32 %v169, %v727
    %v729 = vpop.f32.mrb[0].mxu0
    %730 = vmatprep.mubr.f32.mxu0 0.0
    %731 = vmatmul.mubr.f32.gmra.mrb[0].mxu0 %v239
    %v732 = vpop.f32.mrb[0].mxu0
    %v733 = vadd.f32 %v169, %v732
    %v734 = vpop.f32.mrb[0].mxu0
    %735 = vmatprep.mubr.f32.mxu0 0.0
    %736 = vmatmul.mubr.f32.gmra.mrb[0].mxu0 %v242
    %v737 = vpop.f32.mrb[0].mxu0
    %v738 = vadd.f32 %v169, %v737
    %v739 = vpop.f32.mrb[0].mxu0
    %740 = vmatprep.mubr.f32.mxu0 0.0
    %741 = vmatmul.mubr.f32.gmra.mrb[0].mxu0 %v245
    %v742 = vpop.f32.mrb[0].mxu0
    %v743 = vadd.f32 %v169, %v742
    %v744 = vpop.f32.mrb[0].mxu0
    %745 = vmatprep.mubr.f32.mxu0 0.0
    %746 = vmatmul.mubr.f32.gmra.mrb[0].mxu0 %v248
    %v747 = vpop.f32.mrb[0].mxu0
    %v748 = vadd.f32 %v169, %v747
    %v749 = vpop.f32.mrb[0].mxu0
    %750 = vmatprep.mubr.f32.mxu0 0.0
    %751 = vmatmul.mubr.f32.gmra.mrb[0].mxu0 %v251
    %v752 = vpop.f32.mrb[0].mxu0
    %v753 = vadd.f32 %v169, %v752
    %v754 = vpop.f32.mrb[0].mxu0
    %755 = vmatprep.mubr.f32.mxu0 0.0
    %756 = vmatmul.mubr.f32.gmra.mrb[0].mxu0 %v254
    %v757 = vpop.f32.mrb[0].mxu0
    %v758 = vadd.f32 %v169, %v757
    %v759 = vpop.f32.mrb[0].mxu0
    %760 = vmatprep.mubr.f32.mxu0 0.0
    %761 = vmatmul.mubr.f32.gmra.mrb[0].mxu0 %v257
    %v762 = vpop.f32.mrb[0].mxu0
    %v763 = vadd.f32 %v169, %v762
    %v764 = vpop.f32.mrb[0].mxu0
    %765 = vmatprep.mubr.f32.mxu0 0.0
    %766 = vmatmul.mubr.f32.gmra.mrb[0].mxu0 %v260
    %v767 = vpop.f32.mrb[0].mxu0
    %v768 = vadd.f32 %v169, %v767
    %v769 = vpop.f32.mrb[0].mxu0
    %770 = vmatprep.mubr.f32.mxu0 0.0
    %771 = vmatmul.mubr.f32.gmra.mrb[0].mxu0 %v263
    %v772 = vpop.f32.mrb[0].mxu0
    %v773 = vadd.f32 %v169, %v772
    %v774 = vpop.f32.mrb[0].mxu0
    %775 = vmatprep.mubr.f32.mxu0 0.0
    %776 = vmatmul.mubr.f32.gmra.mrb[0].mxu0 %v266
    %v777 = vpop.f32.mrb[0].mxu0
    %v778 = vadd.f32 %v169, %v777
    %v779 = vpop.f32.mrb[0].mxu0
    %780 = vmatprep.mubr.f32.mxu0 0.0
    %781 = vmatmul.mubr.f32.gmra.mrb[0].mxu0 %v269
    %v782 = vpop.f32.mrb[0].mxu0
    %v783 = vadd.f32 %v169, %v782
    %v784 = vpop.f32.mrb[0].mxu0
    %785 = vmatprep.mubr.f32.mxu0 0.0
    %786 = vmatmul.mubr.f32.gmra.mrb[0].mxu0 %v272
    %v787 = vpop.f32.mrb[0].mxu0
    %v788 = vadd.f32 %v169, %v787
    %v789 = vpop.f32.mrb[0].mxu0
    %790 = vmatprep.mubr.f32.mxu0 0.0
    %791 = vmatmul.mubr.f32.gmra.mrb[0].mxu0 %v275
    %v792 = vpop.f32.mrb[0].mxu0
    %v793 = vadd.f32 %v169, %v792
    %v794 = vpop.f32.mrb[0].mxu0
    %795 = vmatprep.mubr.f32.mxu0 0.0
    %796 = vmatmul.mubr.f32.gmra.mrb[0].mxu0 %v278
    %v797 = vpop.f32.mrb[0].mxu0
    %v798 = vadd.f32 %v169, %v797
    %v799 = vpop.f32.mrb[0].mxu0
    %800 = vmatprep.mubr.f32.mxu0 0.0
    %801 = vmatmul.mubr.f32.gmra.mrb[0].mxu0 %v281
    %v802 = vpop.f32.mrb[0].mxu0
    %v803 = vadd.f32 %v169, %v802
    %v804 = vpop.f32.mrb[0].mxu0
    %805 = vmatprep.mubr.f32.mxu0 0.0
    %806 = vmatmul.mubr.f32.gmra.mrb[0].mxu0 %v284
    %v807 = vpop.f32.mrb[0].mxu0
    %v808 = vadd.f32 %v169, %v807
    %v809 = vpop.f32.mrb[0].mxu0
    %810 = vmatprep.mubr.f32.mxu0 0.0
    %811 = vmatmul.mubr.f32.gmra.mrb[0].mxu0 %v287
    %v812 = vpop.f32.mrb[0].mxu0
    %v813 = vadd.f32 %v169, %v812
    %v814 = vpop.f32.mrb[0].mxu0
    %815 = vmatprep.mubr.f32.mxu0 0.0
    %816 = vmatmul.mubr.f32.gmra.mrb[0].mxu0 %v290
    %v817 = vpop.f32.mrb[0].mxu0
    %v818 = vadd.f32 %v169, %v817
    %v819 = vpop.f32.mrb[0].mxu0
    %820 = vmatprep.mubr.f32.mxu0 0.0
    %821 = vmatmul.mubr.f32.gmra.mrb[0].mxu0 %v293
    %v822 = vpop.f32.mrb[0].mxu0
    %v823 = vadd.f32 %v169, %v822
    %v824 = vpop.f32.mrb[0].mxu0
    %825 = vmatprep.mubr.f32.mxu0 0.0
    %826 = vmatmul.mubr.f32.gmra.mrb[0].mxu0 %v296
    %v827 = vpop.f32.mrb[0].mxu0
    %v828 = vadd.f32 %v169, %v827
    %v829 = vpop.f32.mrb[0].mxu0
    %830 = vmatprep.mubr.f32.mxu0 0.0
    %831 = vmatmul.mubr.f32.gmra.mrb[0].mxu0 %v299
    %v832 = vpop.f32.mrb[0].mxu0
    %v833 = vadd.f32 %v169, %v832
    %v834 = vpop.f32.mrb[0].mxu0
    %835 = vmatprep.mubr.f32.mxu0 0.0
    %836 = vmatmul.mubr.f32.gmra.mrb[0].mxu0 %v302
    %v837 = vpop.f32.mrb[0].mxu0
    %v838 = vadd.f32 %v169, %v837
    %v839 = vpop.f32.mrb[0].mxu0
    %840 = vmatprep.mubr.f32.mxu0 0.0
    %841 = vmatmul.mubr.f32.gmra.mrb[0].mxu0 %v305
    %v842 = vpop.f32.mrb[0].mxu0
    %v843 = vadd.f32 %v169, %v842
    %v844 = vpop.f32.mrb[0].mxu0
    %845 = vmatprep.mubr.f32.mxu0 0.0
    %846 = vmatmul.mubr.f32.gmra.mrb[0].mxu0 %v308
    %v847 = vpop.f32.mrb[0].mxu0
    %v848 = vadd.f32 %v169, %v847
    %v849 = vpop.f32.mrb[0].mxu0
    %850 = vmatprep.mubr.f32.mxu0 0.0
    %851 = vmatmul.mubr.f32.gmra.mrb[0].mxu0 %v311
    %v852 = vpop.f32.mrb[0].mxu0
    %v853 = vadd.f32 %v169, %v852
    %v854 = vpop.f32.mrb[0].mxu0
    %855 = vmatprep.mubr.f32.mxu0 0.0
    %856 = vmatmul.mubr.f32.gmra.mrb[0].mxu0 %v314
    %v857 = vpop.f32.mrb[0].mxu0
    %v858 = vadd.f32 %v169, %v857
    %v859 = vpop.f32.mrb[0].mxu0
    %860 = vmatprep.mubr.f32.mxu0 0.0
    %861 = vmatmul.mubr.f32.gmra.mrb[0].mxu0 %v317
    %v862 = vpop.f32.mrb[0].mxu0
    %v863 = vadd.f32 %v169, %v862
    %v864 = vpop.f32.mrb[0].mxu0
    %865 = vmatprep.mubr.f32.mxu0 0.0
    %866 = vmatmul.mubr.f32.gmra.mrb[0].mxu0 %v320
    %v867 = vpop.f32.mrb[0].mxu0
    %v868 = vadd.f32 %v169, %v867
    %v869 = vpop.f32.mrb[0].mxu0
    %870 = vmatprep.mubr.f32.mxu0 0.0
    %871 = vmatmul.mubr.f32.gmra.mrb[0].mxu0 %v323
    %v872 = vpop.f32.mrb[0].mxu0
    %v873 = vadd.f32 %v169, %v872
    %v874 = vpop.f32.mrb[0].mxu0
    %875 = vmatprep.mubr.f32.mxu0 0.0
    %876 = vmatmul.mubr.f32.gmra.mrb[0].mxu0 %v326
    %v877 = vpop.f32.mrb[0].mxu0
    %v878 = vadd.f32 %v169, %v877
    %v879 = vpop.f32.mrb[0].mxu0
    %880 = vmatprep.mubr.f32.mxu0 0.0
    %881 = vmatmul.mubr.f32.gmra.mrb[0].mxu0 %v329
    %v882 = vpop.f32.mrb[0].mxu0
    %v883 = vadd.f32 %v169, %v882
    %v884 = vpop.f32.mrb[0].mxu0
    %885 = vmatprep.mubr.f32.mxu0 0.0
    %886 = vmatmul.mubr.f32.gmra.mrb[0].mxu0 %v332
    %v887 = vpop.f32.mrb[0].mxu0
    %v888 = vadd.f32 %v169, %v887
    %v889 = vpop.f32.mrb[0].mxu0
    %890 = vmatprep.mubr.f32.mxu0 0.0
    %891 = vmatmul.mubr.f32.gmra.mrb[0].mxu0 %v335
    %v892 = vpop.f32.mrb[0].mxu0
    %v893 = vadd.f32 %v169, %v892
    %v894 = vpop.f32.mrb[0].mxu0
    %895 = vmatprep.mubr.f32.mxu0 0.0
    %896 = vmatmul.mubr.f32.gmra.mrb[0].mxu0 %v338
    %v897 = vpop.f32.mrb[0].mxu0
    %v898 = vadd.f32 %v169, %v897
    %v899 = vpop.f32.mrb[0].mxu0
    %900 = vmatprep.mubr.f32.mxu0 0.0
    %901 = vmatmul.mubr.f32.gmra.mrb[0].mxu0 %v341
    %v902 = vpop.f32.mrb[0].mxu0
    %v903 = vadd.f32 %v169, %v902
    %v904 = vpop.f32.mrb[0].mxu0
    %905 = vmatprep.mubr.f32.mxu0 0.0
    %906 = vmatmul.mubr.f32.gmra.mrb[0].mxu0 %v344
    %v907 = vpop.f32.mrb[0].mxu0
    %v908 = vadd.f32 %v169, %v907
    %v909 = vpop.f32.mrb[0].mxu0
    %910 = vmatprep.mubr.f32.mxu0 0.0
    %911 = vmatmul.mubr.f32.gmra.mrb[0].mxu0 %v347
    %v912 = vpop.f32.mrb[0].mxu0
    %v913 = vadd.f32 %v169, %v912
    %v914 = vpop.f32.mrb[0].mxu0
    %915 = vmatprep.mubr.f32.mxu0 0.0
    %916 = vmatmul.mubr.f32.gmra.mrb[0].mxu0 %v350
    %v917 = vpop.f32.mrb[0].mxu0
    %v918 = vadd.f32 %v169, %v917
    %v919 = vpop.f32.mrb[0].mxu0
    %920 = vmatprep.mubr.f32.mxu0 0.0
    %921 = vmatmul.mubr.f32.gmra.mrb[0].mxu0 %v353
    %v922 = vpop.f32.mrb[0].mxu0
    %v923 = vadd.f32 %v169, %v922
    %v924 = vpop.f32.mrb[0].mxu0
    %925 = vmatprep.mubr.f32.mxu0 0.0
    %926 = vmatmul.mubr.f32.gmra.mrb[0].mxu0 %v356
    %v927 = vpop.f32.mrb[0].mxu0
    %v928 = vadd.f32 %v169, %v927
    %v929 = vpop.f32.mrb[0].mxu0
    %930 = vmatprep.mubr.f32.mxu0 0.0
    %931 = vmatmul.mubr.f32.gmra.mrb[0].mxu0 %v359
    %v932 = vpop.f32.mrb[0].mxu0
    %v933 = vadd.f32 %v169, %v932
    %v934 = vpop.f32.mrb[0].mxu0
    %935 = vmatprep.mubr.f32.mxu0 0.0
    %936 = vmatmul.mubr.f32.gmra.mrb[0].mxu0 %v362
    %v937 = vpop.f32.mrb[0].mxu0
    %v938 = vadd.f32 %v169, %v937
    %v939 = vpop.f32.mrb[0].mxu0
    %940 = vmatprep.mubr.f32.mxu0 0.0
    %941 = vmatmul.mubr.f32.gmra.mrb[0].mxu0 %v365
    %v942 = vpop.f32.mrb[0].mxu0
    %v943 = vadd.f32 %v169, %v942
    %v944 = vpop.f32.mrb[0].mxu0
    %945 = vmatprep.mubr.f32.mxu0 0.0
    %946 = vmatmul.mubr.f32.gmra.mrb[0].mxu0 %v368
    %v947 = vpop.f32.mrb[0].mxu0
    %v948 = vadd.f32 %v169, %v947
    %v949 = vpop.f32.mrb[0].mxu0
    %950 = vmatprep.mubr.f32.mxu0 0.0
    %951 = vmatmul.mubr.f32.gmra.mrb[0].mxu0 %v371
    %v952 = vpop.f32.mrb[0].mxu0
    %v953 = vadd.f32 %v169, %v952
    %v954 = vpop.f32.mrb[0].mxu0
    %955 = vmatprep.mubr.f32.mxu0 0.0
    %956 = vmatmul.mubr.f32.gmra.mrb[0].mxu0 %v374
    %v957 = vpop.f32.mrb[0].mxu0
    %v958 = vadd.f32 %v169, %v957
    %v959 = vpop.f32.mrb[0].mxu0
    %960 = vmatprep.mubr.f32.mxu0 0.0
    %961 = vmatmul.mubr.f32.gmra.mrb[0].mxu0 %v377
    %v962 = vpop.f32.mrb[0].mxu0
    %v963 = vadd.f32 %v169, %v962
    %v964 = vpop.f32.mrb[0].mxu0
    %965 = vmatprep.mubr.f32.mxu0 0.0
    %966 = vmatmul.mubr.f32.gmra.mrb[0].mxu0 %v380
    %v967 = vpop.f32.mrb[0].mxu0
    %v968 = vadd.f32 %v169, %v967
    %v969 = vpop.f32.mrb[0].mxu0
    %970 = vmatprep.mubr.f32.mxu0 0.0
    %971 = vmatmul.mubr.f32.gmra.mrb[0].mxu0 %v383
    %v972 = vpop.f32.mrb[0].mxu0
    %v973 = vadd.f32 %v169, %v972
    %v974 = vpop.f32.mrb[0].mxu0
    %975 = vmatprep.mubr.f32.mxu0 0.0
    %976 = vmatmul.mubr.f32.gmra.mrb[0].mxu0 %v386
    %v977 = vpop.f32.mrb[0].mxu0
    %v978 = vadd.f32 %v169, %v977
    %v979 = vpop.f32.mrb[0].mxu0
    %980 = vmatprep.mubr.f32.mxu0 0.0
    %981 = vmatmul.mubr.f32.gmra.mrb[0].mxu0 %v389
    %v982 = vpop.f32.mrb[0].mxu0
    %v983 = vadd.f32 %v169, %v982
    %v984 = vpop.f32.mrb[0].mxu0
    %985 = vmatprep.mubr.f32.mxu0 0.0
    %986 = vmatmul.mubr.f32.gmra.mrb[0].mxu0 %v392
    %v987 = vpop.f32.mrb[0].mxu0
    %v988 = vadd.f32 %v169, %v987
    %v989 = vpop.f32.mrb[0].mxu0
    %990 = vmatprep.mubr.f32.mxu0 0.0
    %991 = vmatmul.mubr.f32.gmra.mrb[0].mxu0 %v395
    %v992 = vpop.f32.mrb[0].mxu0
    %v993 = vadd.f32 %v169, %v992
    %v994 = vpop.f32.mrb[0].mxu0
    %995 = vmatprep.mubr.f32.mxu0 0.0
    %996 = vmatmul.mubr.f32.gmra.mrb[0].mxu0 %v398
    %v997 = vpop.f32.mrb[0].mxu0
    %v998 = vadd.f32 %v169, %v997
    %v999 = vpop.f32.mrb[0].mxu0
    %1000 = vmatprep.mubr.f32.mxu0 0.0
    %1001 = vmatmul.mubr.f32.gmra.mrb[0].mxu0 %v401
    %v1002 = vpop.f32.mrb[0].mxu0
    %v1003 = vadd.f32 %v169, %v1002
    %v1004 = vpop.f32.mrb[0].mxu0
    %1005 = vmatprep.mubr.f32.mxu0 0.0
    %1006 = vmatmul.mubr.f32.gmra.mrb[0].mxu0 %v404
    %v1007 = vpop.f32.mrb[0].mxu0
    %v1008 = vadd.f32 %v169, %v1007
    %v1009 = vpop.f32.mrb[0].mxu0
    %1010 = vmatprep.mubr.f32.mxu0 0.0
    %1011 = vmatmul.mubr.f32.gmra.mrb[0].mxu0 %v407
    %v1012 = vpop.f32.mrb[0].mxu0
    %v1013 = vadd.f32 %v169, %v1012
    %v1014 = vpop.f32.mrb[0].mxu0
    %1015 = vmatprep.mubr.f32.mxu0 0.0
    %1016 = vmatmul.mubr.f32.gmra.mrb[0].mxu0 %v410
    %v1017 = vpop.f32.mrb[0].mxu0
    %v1018 = vadd.f32 %v169, %v1017
    %v1019 = vpop.f32.mrb[0].mxu0
    %1020 = vmatprep.mubr.f32.mxu0 0.0
    %1021 = vmatmul.mubr.f32.gmra.mrb[0].mxu0 %v413
    %v1022 = vpop.f32.mrb[0].mxu0
    %v1023 = vadd.f32 %v169, %v1022
    %v1024 = vpop.f32.mrb[0].mxu0
    %1025 = vmatprep.mubr.f32.mxu0 0.0
    %1026 = vmatmul.mubr.f32.gmra.mrb[0].mxu0 %v416
    %v1027 = vpop.f32.mrb[0].mxu0
    %v1028 = vadd.f32 %v169, %v1027
    %v1029 = vpop.f32.mrb[0].mxu0
    %1030 = vmatprep.mubr.f32.mxu0 0.0
    %1031 = vmatmul.mubr.f32.gmra.mrb[0].mxu0 %v419
    %v1032 = vpop.f32.mrb[0].mxu0
    %v1033 = vadd.f32 %v169, %v1032
    %v1034 = vpop.f32.mrb[0].mxu0
    %1035 = vmatprep.mubr.f32.mxu0 0.0
    %1036 = vmatmul.mubr.f32.gmra.mrb[0].mxu0 %v422
    %v1037 = vpop.f32.mrb[0].mxu0
    %v1038 = vadd.f32 %v169, %v1037
    %v1039 = vpop.f32.mrb[0].mxu0
    %1040 = vmatprep.mubr.f32.mxu0 0.0
    %1041 = vmatmul.mubr.f32.gmra.mrb[0].mxu0 %v425
    %v1042 = vpop.f32.mrb[0].mxu0
    %v1043 = vadd.f32 %v169, %v1042
    %v1044 = vpop.f32.mrb[0].mxu0
    %1045 = vmatprep.mubr.f32.mxu0 0.0
    %1046 = vmatmul.mubr.f32.gmra.mrb[0].mxu0 %v428
    %v1047 = vpop.f32.mrb[0].mxu0
    %v1048 = vadd.f32 %v169, %v1047
    %v1049 = vpop.f32.mrb[0].mxu0
    %1050 = vmatprep.mubr.f32.mxu0 0.0
    %1051 = vmatmul.mubr.f32.gmra.mrb[0].mxu0 %v431
    %v1052 = vpop.f32.mrb[0].mxu0
    %v1053 = vadd.f32 %v169, %v1052
    %v1054 = vpop.f32.mrb[0].mxu0
    %1055 = vmatprep.mubr.f32.mxu0 0.0
    %1056 = vmatmul.mubr.f32.gmra.mrb[0].mxu0 %v434
    %v1057 = vpop.f32.mrb[0].mxu0
    %v1058 = vadd.f32 %v169, %v1057
    %v1059 = vpop.f32.mrb[0].mxu0
    %1060 = vmatprep.mubr.f32.mxu0 0.0
    %1061 = vmatmul.mubr.f32.gmra.mrb[0].mxu0 %v437
    %v1062 = vpop.f32.mrb[0].mxu0
    %v1063 = vadd.f32 %v169, %v1062
    %v1064 = vpop.f32.mrb[0].mxu0
    %1065 = vmatprep.mubr.f32.mxu0 0.0
    %1066 = vmatmul.mubr.f32.gmra.mrb[0].mxu0 %v440
    %v1067 = vpop.f32.mrb[0].mxu0
    %v1068 = vadd.f32 %v169, %v1067
    %v1069 = vpop.f32.mrb[0].mxu0
    %1070 = vmatprep.mubr.f32.mxu0 0.0
    %1071 = vmatmul.mubr.f32.gmra.mrb[0].mxu0 %v443
    %v1072 = vpop.f32.mrb[0].mxu0
    %v1073 = vadd.f32 %v169, %v1072
    %v1074 = vpop.f32.mrb[0].mxu0
    %1075 = vmatprep.mubr.f32.mxu0 0.0
    %1076 = vmatmul.mubr.f32.gmra.mrb[0].mxu0 %v446
    %v1077 = vpop.f32.mrb[0].mxu0
    %v1078 = vadd.f32 %v169, %v1077
    %v1079 = vpop.f32.mrb[0].mxu0
    %1080 = vmatprep.mubr.f32.mxu0 0.0
    %1081 = vmatmul.mubr.f32.gmra.mrb[0].mxu0 %v449
    %v1082 = vpop.f32.mrb[0].mxu0
    %v1083 = vadd.f32 %v169, %v1082
    %v1084 = vpop.f32.mrb[0].mxu0
    %1085 = vmatprep.mubr.f32.mxu0 0.0
    %1086 = vmatmul.mubr.f32.gmra.mrb[0].mxu0 %v452
    %v1087 = vpop.f32.mrb[0].mxu0
    %v1088 = vadd.f32 %v169, %v1087
    %v1089 = vpop.f32.mrb[0].mxu0
    %1090 = vmatprep.mubr.f32.mxu0 0.0
    %1091 = vmatmul.mubr.f32.gmra.mrb[0].mxu0 %v455
    %v1092 = vpop.f32.mrb[0].mxu0
    %v1093 = vadd.f32 %v169, %v1092
    %v1094 = vpop.f32.mrb[0].mxu0
    %1095 = vmatprep.mubr.f32.mxu0 0.0
    %1096 = vmatmul.mubr.f32.gmra.mrb[0].mxu0 %v458
    %v1097 = vpop.f32.mrb[0].mxu0
    %v1098 = vadd.f32 %v169, %v1097
    %v1099 = vpop.f32.mrb[0].mxu0
    %1100 = vmatprep.mubr.f32.mxu0 0.0
    %1101 = vmatmul.mubr.f32.gmra.mrb[0].mxu0 %v461
    %v1102 = vpop.f32.mrb[0].mxu0
    %v1103 = vadd.f32 %v169, %v1102
    %v1104 = vpop.f32.mrb[0].mxu0
    %1105 = vmatprep.mubr.f32.mxu0 0.0
    %1106 = vmatmul.mubr.f32.gmra.mrb[0].mxu0 %v464
    %v1107 = vpop.f32.mrb[0].mxu0
    %v1108 = vadd.f32 %v169, %v1107
    %v1109 = vpop.f32.mrb[0].mxu0
    %1110 = vmatprep.mubr.f32.mxu0 0.0
    %1111 = vmatmul.mubr.f32.gmra.mrb[0].mxu0 %v467
    %v1112 = vpop.f32.mrb[0].mxu0
    %v1113 = vadd.f32 %v169, %v1112
    %v1114 = vpop.f32.mrb[0].mxu0
    %1115 = vmatprep.mubr.f32.mxu0 0.0
    %1116 = vmatmul.mubr.f32.gmra.mrb[0].mxu0 %v470
    %v1117 = vpop.f32.mrb[0].mxu0
    %v1118 = vadd.f32 %v169, %v1117
    %v1119 = vpop.f32.mrb[0].mxu0
    %1120 = vmatprep.mubr.f32.mxu0 0.0
    %1121 = vmatmul.mubr.f32.gmra.mrb[0].mxu0 %v473
    %v1122 = vpop.f32.mrb[0].mxu0
    %v1123 = vadd.f32 %v169, %v1122
    %v1124 = vpop.f32.mrb[0].mxu0
    %1125 = vmatprep.mubr.f32.mxu0 0.0
    %1126 = vmatmul.mubr.f32.gmra.mrb[0].mxu0 %v476
    %v1127 = vpop.f32.mrb[0].mxu0
    %v1128 = vadd.f32 %v169, %v1127
    %v1129 = vpop.f32.mrb[0].mxu0
    %1130 = vmatprep.mubr.f32.mxu0 0.0
    %1131 = vmatmul.mubr.f32.gmra.mrb[0].mxu0 %v479
    %v1132 = vpop.f32.mrb[0].mxu0
    %v1133 = vadd.f32 %v169, %v1132
    %v1134 = vpop.f32.mrb[0].mxu0
    %1135 = vmatprep.mubr.f32.mxu0 0.0
    %1136 = vmatmul.mubr.f32.gmra.mrb[0].mxu0 %v482
    %v1137 = vpop.f32.mrb[0].mxu0
    %v1138 = vadd.f32 %v169, %v1137
    %v1139 = vpop.f32.mrb[0].mxu0
    %1140 = vmatprep.mubr.f32.mxu0 0.0
    %1141 = vmatmul.mubr.f32.gmra.mrb[0].mxu0 %v485
    %v1142 = vpop.f32.mrb[0].mxu0
    %v1143 = vadd.f32 %v169, %v1142
    %v1144 = vpop.f32.mrb[0].mxu0
    %1145 = vmatprep.mubr.f32.mxu0 0.0
    %1146 = vmatmul.mubr.f32.gmra.mrb[0].mxu0 %v488
    %v1147 = vpop.f32.mrb[0].mxu0
    %v1148 = vadd.f32 %v169, %v1147
    %v1149 = vpop.f32.mrb[0].mxu0
    %1150 = vmatprep.mubr.f32.mxu0 0.0
    %1151 = vmatmul.mubr.f32.gmra.mrb[0].mxu0 %v491
    %v1152 = vpop.f32.mrb[0].mxu0
    %v1153 = vadd.f32 %v169, %v1152
    %v1154 = vpop.f32.mrb[0].mxu0
    %1155 = vmatprep.mubr.f32.mxu0 0.0
    %1156 = vmatmul.mubr.f32.gmra.mrb[0].mxu0 %v494
    %v1157 = vpop.f32.mrb[0].mxu0
    %v1158 = vadd.f32 %v169, %v1157
    %v1159 = vpop.f32.mrb[0].mxu0
    %1160 = vmatprep.mubr.f32.mxu0 0.0
    %1161 = vmatmul.mubr.f32.gmra.mrb[0].mxu0 %v497
    %v1162 = vpop.f32.mrb[0].mxu0
    %v1163 = vadd.f32 %v169, %v1162
    %v1164 = vpop.f32.mrb[0].mxu0
    %1165 = vmatprep.mubr.f32.mxu0 0.0
    %1166 = vmatmul.mubr.f32.gmra.mrb[0].mxu0 %v500
    %v1167 = vpop.f32.mrb[0].mxu0
    %v1168 = vadd.f32 %v169, %v1167
    %v1169 = vpop.f32.mrb[0].mxu0
    %1170 = vmatprep.mubr.f32.mxu0 0.0
    %1171 = vmatmul.mubr.f32.gmra.mrb[0].mxu0 %v503
    %v1172 = vpop.f32.mrb[0].mxu0
    %v1173 = vadd.f32 %v169, %v1172
    %v1174 = vpop.f32.mrb[0].mxu0
    %1175 = vmatprep.mubr.f32.mxu0 0.0
    %1176 = vmatmul.mubr.f32.gmra.mrb[0].mxu0 %v506
    %v1177 = vpop.f32.mrb[0].mxu0
    %v1178 = vadd.f32 %v169, %v1177
    %v1179 = vpop.f32.mrb[0].mxu0
    %1180 = vmatprep.mubr.f32.mxu0 0.0
    %1181 = vmatmul.mubr.f32.gmra.mrb[0].mxu0 %v509
    %v1182 = vpop.f32.mrb[0].mxu0
    %v1183 = vadd.f32 %v169, %v1182
    %v1184 = vpop.f32.mrb[0].mxu0
    %1185 = vmatprep.mubr.f32.mxu0 0.0
    %1186 = vmatmul.mubr.f32.gmra.mrb[0].mxu0 %v512
    %v1187 = vpop.f32.mrb[0].mxu0
    %v1188 = vadd.f32 %v169, %v1187
    %v1189 = vpop.f32.mrb[0].mxu0
    %1190 = vmatprep.mubr.f32.mxu0 0.0
    %1191 = vmatmul.mubr.f32.gmra.mrb[0].mxu0 %v515
    %v1192 = vpop.f32.mrb[0].mxu0
    %v1193 = vadd.f32 %v169, %v1192
    %v1194 = vpop.f32.mrb[0].mxu0
    %1195 = vmatprep.mubr.f32.mxu0 0.0
    %1196 = vmatmul.mubr.f32.gmra.mrb[0].mxu0 %v518
    %v1197 = vpop.f32.mrb[0].mxu0
    %v1198 = vadd.f32 %v169, %v1197
    %v1199 = vpop.f32.mrb[0].mxu0
    %1200 = vmatprep.mubr.f32.mxu0 0.0
    %1201 = vmatmul.mubr.f32.gmra.mrb[0].mxu0 %v521
    %v1202 = vpop.f32.mrb[0].mxu0
    %v1203 = vadd.f32 %v169, %v1202
    %v1204 = vpop.f32.mrb[0].mxu0
    %1205 = vmatprep.mubr.f32.mxu0 0.0
    %1206 = vmatmul.mubr.f32.gmra.mrb[0].mxu0 %v524
    %v1207 = vpop.f32.mrb[0].mxu0
    %v1208 = vadd.f32 %v169, %v1207
    %v1209 = vpop.f32.mrb[0].mxu0
    %1210 = vmatprep.mubr.f32.mxu0 0.0
    %1211 = vmatmul.mubr.f32.gmra.mrb[0].mxu0 %v527
    %v1212 = vpop.f32.mrb[0].mxu0
    %v1213 = vadd.f32 %v169, %v1212
    %v1214 = vpop.f32.mrb[0].mxu0
    %1215 = vmatprep.mubr.f32.mxu0 0.0
    %1216 = vmatmul.mubr.f32.gmra.mrb[0].mxu0 %v530
    %v1217 = vpop.f32.mrb[0].mxu0
    %v1218 = vadd.f32 %v169, %v1217
    %v1219 = vpop.f32.mrb[0].mxu0
    %1220 = vmatprep.mubr.f32.mxu0 0.0
    %1221 = vmatmul.mubr.f32.gmra.mrb[0].mxu0 %v533
    %v1222 = vpop.f32.mrb[0].mxu0
    %v1223 = vadd.f32 %v169, %v1222
    %v1224 = vpop.f32.mrb[0].mxu0
    %1225 = vmatprep.mubr.f32.mxu0 0.0
    %1226 = vmatmul.mubr.f32.gmra.mrb[0].mxu0 %v536
    %v1227 = vpop.f32.mrb[0].mxu0
    %v1228 = vadd.f32 %v169, %v1227
    %v1229 = vpop.f32.mrb[0].mxu0
    %1230 = vmatprep.mubr.f32.mxu0 0.0
    %1231 = vmatmul.mubr.f32.gmra.mrb[0].mxu0 %v539
    %v1232 = vpop.f32.mrb[0].mxu0
    %v1233 = vadd.f32 %v169, %v1232
    %v1234 = vpop.f32.mrb[0].mxu0
    %1235 = vmatprep.mubr.f32.mxu0 0.0
    %1236 = vmatmul.mubr.f32.gmra.mrb[0].mxu0 %v542
    %v1237 = vpop.f32.mrb[0].mxu0
    %v1238 = vadd.f32 %v169, %v1237
    %v1239 = vpop.f32.mrb[0].mxu0
    %1240 = vmatprep.mubr.f32.mxu0 0.0
    %1241 = vmatmul.mubr.f32.gmra.mrb[0].mxu0 %v545
    %v1242 = vpop.f32.mrb[0].mxu0
    %v1243 = vadd.f32 %v169, %v1242
    %v1244 = vpop.f32.mrb[0].mxu0
    %1245 = vmatprep.mubr.f32.mxu0 0.0
    %1246 = vmatmul.mubr.f32.gmra.mrb[0].mxu0 %v548
    %v1247 = vpop.f32.mrb[0].mxu0
    %v1248 = vadd.f32 %v169, %v1247
    %v1249 = vpop.f32.mrb[0].mxu0
    %1250 = vmatprep.mubr.f32.mxu0 0.0
    %1251 = vmatmul.mubr.f32.gmra.mrb[0].mxu0 %v551
    %v1252 = vpop.f32.mrb[0].mxu0
    %v1253 = vadd.f32 %v169, %v1252
    %v1254 = vpop.f32.mrb[0].mxu0
    %1255 = vmatprep.mubr.f32.mxu0 0.0
    %1256 = vmatmul.mubr.f32.gmra.mrb[0].mxu0 %v554
    %v1257 = vpop.f32.mrb[0].mxu0
    %v1258 = vadd.f32 %v169, %v1257
    %v1259 = vpop.f32.mrb[0].mxu0
    %1260 = vdwg.mxu0
    %v1261 = vld [vmem:[%s4] sm:$0x1]
    %v1262 = vld [vmem:[%s5] sm:$0x1]
    %1263 = vadd.xlane.f32.xlu0 %v623
    %v1264 = vpop.xlane.xlu0 %1263
    %1265 = vadd.xlane.f32.xlu0 %v628
    %v1266 = vpop.xlane.xlu0 %1265
    %1267 = vadd.xlane.f32.xlu0 %v633
    %v1268 = vpop.xlane.xlu0 %1267
    %1269 = vadd.xlane.f32.xlu0 %v638
    %v1270 = vpop.xlane.xlu0 %1269
    %1271 = vadd.xlane.f32.xlu0 %v643
    %v1272 = vpop.xlane.xlu0 %1271
    %1273 = vadd.xlane.f32.xlu0 %v648
    %v1274 = vpop.xlane.xlu0 %1273
    %1275 = vadd.xlane.f32.xlu0 %v653
    %v1276 = vpop.xlane.xlu0 %1275
    %1277 = vadd.xlane.f32.xlu0 %v658
    %v1278 = vpop.xlane.xlu0 %1277
    %1279 = vadd.xlane.f32.xlu0 %v663
    %v1280 = vpop.xlane.xlu0 %1279
    %1281 = vadd.xlane.f32.xlu0 %v668
    %v1282 = vpop.xlane.xlu0 %1281
    %1283 = vadd.xlane.f32.xlu0 %v673
    %v1284 = vpop.xlane.xlu0 %1283
    %1285 = vadd.xlane.f32.xlu0 %v678
    %v1286 = vpop.xlane.xlu0 %1285
    %1287 = vadd.xlane.f32.xlu0 %v683
    %v1288 = vpop.xlane.xlu0 %1287
    %1289 = vadd.xlane.f32.xlu0 %v688
    %v1290 = vpop.xlane.xlu0 %1289
    %1291 = vadd.xlane.f32.xlu0 %v693
    %v1292 = vpop.xlane.xlu0 %1291
    %1293 = vadd.xlane.f32.xlu0 %v698
    %v1294 = vpop.xlane.xlu0 %1293
    %1295 = vadd.xlane.f32.xlu0 %v703
    %v1296 = vpop.xlane.xlu0 %1295
    %1297 = vadd.xlane.f32.xlu0 %v708
    %v1298 = vpop.xlane.xlu0 %1297
    %1299 = vadd.xlane.f32.xlu0 %v713
    %v1300 = vpop.xlane.xlu0 %1299
    %1301 = vadd.xlane.f32.xlu0 %v718
    %v1302 = vpop.xlane.xlu0 %1301
    %1303 = vadd.xlane.f32.xlu0 %v723
    %v1304 = vpop.xlane.xlu0 %1303
    %1305 = vadd.xlane.f32.xlu0 %v728
    %v1306 = vpop.xlane.xlu0 %1305
    %1307 = vadd.xlane.f32.xlu0 %v733
    %v1308 = vpop.xlane.xlu0 %1307
    %1309 = vadd.xlane.f32.xlu0 %v738
    %v1310 = vpop.xlane.xlu0 %1309
    %1311 = vadd.xlane.f32.xlu0 %v743
    %v1312 = vpop.xlane.xlu0 %1311
    %1313 = vadd.xlane.f32.xlu0 %v748
    %v1314 = vpop.xlane.xlu0 %1313
    %1315 = vadd.xlane.f32.xlu0 %v753
    %v1316 = vpop.xlane.xlu0 %1315
    %1317 = vadd.xlane.f32.xlu0 %v758
    %v1318 = vpop.xlane.xlu0 %1317
    %1319 = vadd.xlane.f32.xlu0 %v763
    %v1320 = vpop.xlane.xlu0 %1319
    %1321 = vadd.xlane.f32.xlu0 %v768
    %v1322 = vpop.xlane.xlu0 %1321
    %1323 = vadd.xlane.f32.xlu0 %v773
    %v1324 = vpop.xlane.xlu0 %1323
    %1325 = vadd.xlane.f32.xlu0 %v778
    %v1326 = vpop.xlane.xlu0 %1325
    %1327 = vadd.xlane.f32.xlu0 %v783
    %v1328 = vpop.xlane.xlu0 %1327
    %1329 = vadd.xlane.f32.xlu0 %v788
    %v1330 = vpop.xlane.xlu0 %1329
    %1331 = vadd.xlane.f32.xlu0 %v793
    %v1332 = vpop.xlane.xlu0 %1331
    %1333 = vadd.xlane.f32.xlu0 %v798
    %v1334 = vpop.xlane.xlu0 %1333
    %1335 = vadd.xlane.f32.xlu0 %v803
    %v1336 = vpop.xlane.xlu0 %1335
    %1337 = vadd.xlane.f32.xlu0 %v808
    %v1338 = vpop.xlane.xlu0 %1337
    %1339 = vadd.xlane.f32.xlu0 %v813
    %v1340 = vpop.xlane.xlu0 %1339
    %1341 = vadd.xlane.f32.xlu0 %v818
    %v1342 = vpop.xlane.xlu0 %1341
    %1343 = vadd.xlane.f32.xlu0 %v823
    %v1344 = vpop.xlane.xlu0 %1343
    %1345 = vadd.xlane.f32.xlu0 %v828
    %v1346 = vpop.xlane.xlu0 %1345
    %1347 = vadd.xlane.f32.xlu0 %v833
    %v1348 = vpop.xlane.xlu0 %1347
    %1349 = vadd.xlane.f32.xlu0 %v838
    %v1350 = vpop.xlane.xlu0 %1349
    %1351 = vadd.xlane.f32.xlu0 %v843
    %v1352 = vpop.xlane.xlu0 %1351
    %1353 = vadd.xlane.f32.xlu0 %v848
    %v1354 = vpop.xlane.xlu0 %1353
    %1355 = vadd.xlane.f32.xlu0 %v853
    %v1356 = vpop.xlane.xlu0 %1355
    %1357 = vadd.xlane.f32.xlu0 %v858
    %v1358 = vpop.xlane.xlu0 %1357
    %1359 = vadd.xlane.f32.xlu0 %v863
    %v1360 = vpop.xlane.xlu0 %1359
    %1361 = vadd.xlane.f32.xlu0 %v868
    %v1362 = vpop.xlane.xlu0 %1361
    %1363 = vadd.xlane.f32.xlu0 %v873
    %v1364 = vpop.xlane.xlu0 %1363
    %1365 = vadd.xlane.f32.xlu0 %v878
    %v1366 = vpop.xlane.xlu0 %1365
    %1367 = vadd.xlane.f32.xlu0 %v883
    %v1368 = vpop.xlane.xlu0 %1367
    %1369 = vadd.xlane.f32.xlu0 %v888
    %v1370 = vpop.xlane.xlu0 %1369
    %1371 = vadd.xlane.f32.xlu0 %v893
    %v1372 = vpop.xlane.xlu0 %1371
    %1373 = vadd.xlane.f32.xlu0 %v898
    %v1374 = vpop.xlane.xlu0 %1373
    %1375 = vadd.xlane.f32.xlu0 %v903
    %v1376 = vpop.xlane.xlu0 %1375
    %1377 = vadd.xlane.f32.xlu0 %v908
    %v1378 = vpop.xlane.xlu0 %1377
    %1379 = vadd.xlane.f32.xlu0 %v913
    %v1380 = vpop.xlane.xlu0 %1379
    %1381 = vadd.xlane.f32.xlu0 %v918
    %v1382 = vpop.xlane.xlu0 %1381
    %1383 = vadd.xlane.f32.xlu0 %v923
    %v1384 = vpop.xlane.xlu0 %1383
    %1385 = vadd.xlane.f32.xlu0 %v928
    %v1386 = vpop.xlane.xlu0 %1385
    %1387 = vadd.xlane.f32.xlu0 %v933
    %v1388 = vpop.xlane.xlu0 %1387
    %1389 = vadd.xlane.f32.xlu0 %v938
    %v1390 = vpop.xlane.xlu0 %1389
    %1391 = vadd.xlane.f32.xlu0 %v943
    %v1392 = vpop.xlane.xlu0 %1391
    %1393 = vadd.xlane.f32.xlu0 %v948
    %v1394 = vpop.xlane.xlu0 %1393
    %1395 = vadd.xlane.f32.xlu0 %v953
    %v1396 = vpop.xlane.xlu0 %1395
    %1397 = vadd.xlane.f32.xlu0 %v958
    %v1398 = vpop.xlane.xlu0 %1397
    %1399 = vadd.xlane.f32.xlu0 %v963
    %v1400 = vpop.xlane.xlu0 %1399
    %1401 = vadd.xlane.f32.xlu0 %v968
    %v1402 = vpop.xlane.xlu0 %1401
    %1403 = vadd.xlane.f32.xlu0 %v973
    %v1404 = vpop.xlane.xlu0 %1403
    %1405 = vadd.xlane.f32.xlu0 %v978
    %v1406 = vpop.xlane.xlu0 %1405
    %1407 = vadd.xlane.f32.xlu0 %v983
    %v1408 = vpop.xlane.xlu0 %1407
    %1409 = vadd.xlane.f32.xlu0 %v988
    %v1410 = vpop.xlane.xlu0 %1409
    %1411 = vadd.xlane.f32.xlu0 %v993
    %v1412 = vpop.xlane.xlu0 %1411
    %1413 = vadd.xlane.f32.xlu0 %v998
    %v1414 = vpop.xlane.xlu0 %1413
    %1415 = vadd.xlane.f32.xlu0 %v1003
    %v1416 = vpop.xlane.xlu0 %1415
    %1417 = vadd.xlane.f32.xlu0 %v1008
    %v1418 = vpop.xlane.xlu0 %1417
    %1419 = vadd.xlane.f32.xlu0 %v1013
    %v1420 = vpop.xlane.xlu0 %1419
    %1421 = vadd.xlane.f32.xlu0 %v1018
    %v1422 = vpop.xlane.xlu0 %1421
    %1423 = vadd.xlane.f32.xlu0 %v1023
    %v1424 = vpop.xlane.xlu0 %1423
    %1425 = vadd.xlane.f32.xlu0 %v1028
    %v1426 = vpop.xlane.xlu0 %1425
    %1427 = vadd.xlane.f32.xlu0 %v1033
    %v1428 = vpop.xlane.xlu0 %1427
    %1429 = vadd.xlane.f32.xlu0 %v1038
    %v1430 = vpop.xlane.xlu0 %1429
    %1431 = vadd.xlane.f32.xlu0 %v1043
    %v1432 = vpop.xlane.xlu0 %1431
    %1433 = vadd.xlane.f32.xlu0 %v1048
    %v1434 = vpop.xlane.xlu0 %1433
    %1435 = vadd.xlane.f32.xlu0 %v1053
    %v1436 = vpop.xlane.xlu0 %1435
    %1437 = vadd.xlane.f32.xlu0 %v1058
    %v1438 = vpop.xlane.xlu0 %1437
    %1439 = vadd.xlane.f32.xlu0 %v1063
    %v1440 = vpop.xlane.xlu0 %1439
    %1441 = vadd.xlane.f32.xlu0 %v1068
    %v1442 = vpop.xlane.xlu0 %1441
    %1443 = vadd.xlane.f32.xlu0 %v1073
    %v1444 = vpop.xlane.xlu0 %1443
    %1445 = vadd.xlane.f32.xlu0 %v1078
    %v1446 = vpop.xlane.xlu0 %1445
    %1447 = vadd.xlane.f32.xlu0 %v1083
    %v1448 = vpop.xlane.xlu0 %1447
    %1449 = vadd.xlane.f32.xlu0 %v1088
    %v1450 = vpop.xlane.xlu0 %1449
    %1451 = vadd.xlane.f32.xlu0 %v1093
    %v1452 = vpop.xlane.xlu0 %1451
    %1453 = vadd.xlane.f32.xlu0 %v1098
    %v1454 = vpop.xlane.xlu0 %1453
    %1455 = vadd.xlane.f32.xlu0 %v1103
    %v1456 = vpop.xlane.xlu0 %1455
    %1457 = vadd.xlane.f32.xlu0 %v1108
    %v1458 = vpop.xlane.xlu0 %1457
    %1459 = vadd.xlane.f32.xlu0 %v1113
    %v1460 = vpop.xlane.xlu0 %1459
    %1461 = vadd.xlane.f32.xlu0 %v1118
    %v1462 = vpop.xlane.xlu0 %1461
    %1463 = vadd.xlane.f32.xlu0 %v1123
    %v1464 = vpop.xlane.xlu0 %1463
    %1465 = vadd.xlane.f32.xlu0 %v1128
    %v1466 = vpop.xlane.xlu0 %1465
    %1467 = vadd.xlane.f32.xlu0 %v1133
    %v1468 = vpop.xlane.xlu0 %1467
    %1469 = vadd.xlane.f32.xlu0 %v1138
    %v1470 = vpop.xlane.xlu0 %1469
    %1471 = vadd.xlane.f32.xlu0 %v1143
    %v1472 = vpop.xlane.xlu0 %1471
    %1473 = vadd.xlane.f32.xlu0 %v1148
    %v1474 = vpop.xlane.xlu0 %1473
    %1475 = vadd.xlane.f32.xlu0 %v1153
    %v1476 = vpop.xlane.xlu0 %1475
    %1477 = vadd.xlane.f32.xlu0 %v1158
    %v1478 = vpop.xlane.xlu0 %1477
    %1479 = vadd.xlane.f32.xlu0 %v1163
    %v1480 = vpop.xlane.xlu0 %1479
    %1481 = vadd.xlane.f32.xlu0 %v1168
    %v1482 = vpop.xlane.xlu0 %1481
    %1483 = vadd.xlane.f32.xlu0 %v1173
    %v1484 = vpop.xlane.xlu0 %1483
    %1485 = vadd.xlane.f32.xlu0 %v1178
    %v1486 = vpop.xlane.xlu0 %1485
    %1487 = vadd.xlane.f32.xlu0 %v1183
    %v1488 = vpop.xlane.xlu0 %1487
    %1489 = vadd.xlane.f32.xlu0 %v1188
    %v1490 = vpop.xlane.xlu0 %1489
    %1491 = vadd.xlane.f32.xlu0 %v1193
    %v1492 = vpop.xlane.xlu0 %1491
    %1493 = vadd.xlane.f32.xlu0 %v1198
    %v1494 = vpop.xlane.xlu0 %1493
    %1495 = vadd.xlane.f32.xlu0 %v1203
    %v1496 = vpop.xlane.xlu0 %1495
    %1497 = vadd.xlane.f32.xlu0 %v1208
    %v1498 = vpop.xlane.xlu0 %1497
    %1499 = vadd.xlane.f32.xlu0 %v1213
    %v1500 = vpop.xlane.xlu0 %1499
    %1501 = vadd.xlane.f32.xlu0 %v1218
    %v1502 = vpop.xlane.xlu0 %1501
    %1503 = vadd.xlane.f32.xlu0 %v1223
    %v1504 = vpop.xlane.xlu0 %1503
    %1505 = vadd.xlane.f32.xlu0 %v1228
    %v1506 = vpop.xlane.xlu0 %1505
    %1507 = vadd.xlane.f32.xlu0 %v1233
    %v1508 = vpop.xlane.xlu0 %1507
    %1509 = vadd.xlane.f32.xlu0 %v1238
    %v1510 = vpop.xlane.xlu0 %1509
    %1511 = vadd.xlane.f32.xlu0 %v1243
    %v1512 = vpop.xlane.xlu0 %1511
    %1513 = vadd.xlane.f32.xlu0 %v1248
    %v1514 = vpop.xlane.xlu0 %1513
    %1515 = vadd.xlane.f32.xlu0 %v1253
    %v1516 = vpop.xlane.xlu0 %1515
    %1517 = vadd.xlane.f32.xlu0 %v1258
    %v1518 = vpop.xlane.xlu0 %1517
    %v1519 = vmul.f32 %v1264, 0.03125
    %v1520 = vmul.f32 %v1266, 0.03125
    %v1521 = vmul.f32 %v1268, 0.03125
    %v1522 = vmul.f32 %v1270, 0.03125
    %v1523 = vmul.f32 %v1272, 0.03125
    %v1524 = vmul.f32 %v1274, 0.03125
    %v1525 = vmul.f32 %v1276, 0.03125
    %v1526 = vmul.f32 %v1278, 0.03125
    %v1527 = vmul.f32 %v1280, 0.03125
    %v1528 = vmul.f32 %v1282, 0.03125
    %v1529 = vmul.f32 %v1284, 0.03125
    %v1530 = vmul.f32 %v1286, 0.03125
    %v1531 = vmul.f32 %v1288, 0.03125
    %v1532 = vmul.f32 %v1290, 0.03125
    %v1533 = vmul.f32 %v1292, 0.03125
    %v1534 = vmul.f32 %v1294, 0.03125
    %v1535 = vmul.f32 %v1296, 0.03125
    %v1536 = vmul.f32 %v1298, 0.03125
    %v1537 = vmul.f32 %v1300, 0.03125
    %v1538 = vmul.f32 %v1302, 0.03125
    %v1539 = vmul.f32 %v1304, 0.03125
    %v1540 = vmul.f32 %v1306, 0.03125
    %v1541 = vmul.f32 %v1308, 0.03125
    %v1542 = vmul.f32 %v1310, 0.03125
    %v1543 = vmul.f32 %v1312, 0.03125
    %v1544 = vmul.f32 %v1314, 0.03125
    %v1545 = vmul.f32 %v1316, 0.03125
    %v1546 = vmul.f32 %v1318, 0.03125
    %v1547 = vmul.f32 %v1320, 0.03125
    %v1548 = vmul.f32 %v1322, 0.03125
    %v1549 = vmul.f32 %v1324, 0.03125
    %v1550 = vmul.f32 %v1326, 0.03125
    %v1551 = vmul.f32 %v1328, 0.03125
    %v1552 = vmul.f32 %v1330, 0.03125
    %v1553 = vmul.f32 %v1332, 0.03125
    %v1554 = vmul.f32 %v1334, 0.03125
    %v1555 = vmul.f32 %v1336, 0.03125
    %v1556 = vmul.f32 %v1338, 0.03125
    %v1557 = vmul.f32 %v1340, 0.03125
    %v1558 = vmul.f32 %v1342, 0.03125
    %v1559 = vmul.f32 %v1344, 0.03125
    %v1560 = vmul.f32 %v1346, 0.03125
    %v1561 = vmul.f32 %v1348, 0.03125
    %v1562 = vmul.f32 %v1350, 0.03125
    %v1563 = vmul.f32 %v1352, 0.03125
    %v1564 = vmul.f32 %v1354, 0.03125
    %v1565 = vmul.f32 %v1356, 0.03125
    %v1566 = vmul.f32 %v1358, 0.03125
    %v1567 = vmul.f32 %v1360, 0.03125
    %v1568 = vmul.f32 %v1362, 0.03125
    %v1569 = vmul.f32 %v1364, 0.03125
    %v1570 = vmul.f32 %v1366, 0.03125
    %v1571 = vmul.f32 %v1368, 0.03125
    %v1572 = vmul.f32 %v1370, 0.03125
    %v1573 = vmul.f32 %v1372, 0.03125
    %v1574 = vmul.f32 %v1374, 0.03125
    %v1575 = vmul.f32 %v1376, 0.03125
    %v1576 = vmul.f32 %v1378, 0.03125
    %v1577 = vmul.f32 %v1380, 0.03125
    %v1578 = vmul.f32 %v1382, 0.03125
    %v1579 = vmul.f32 %v1384, 0.03125
    %v1580 = vmul.f32 %v1386, 0.03125
    %v1581 = vmul.f32 %v1388, 0.03125
    %v1582 = vmul.f32 %v1390, 0.03125
    %v1583 = vmul.f32 %v1392, 0.03125
    %v1584 = vmul.f32 %v1394, 0.03125
    %v1585 = vmul.f32 %v1396, 0.03125
    %v1586 = vmul.f32 %v1398, 0.03125
    %v1587 = vmul.f32 %v1400, 0.03125
    %v1588 = vmul.f32 %v1402, 0.03125
    %v1589 = vmul.f32 %v1404, 0.03125
    %v1590 = vmul.f32 %v1406, 0.03125
    %v1591 = vmul.f32 %v1408, 0.03125
    %v1592 = vmul.f32 %v1410, 0.03125
    %v1593 = vmul.f32 %v1412, 0.03125
    %v1594 = vmul.f32 %v1414, 0.03125
    %v1595 = vmul.f32 %v1416, 0.03125
    %v1596 = vmul.f32 %v1418, 0.03125
    %v1597 = vmul.f32 %v1420, 0.03125
    %v1598 = vmul.f32 %v1422, 0.03125
    %v1599 = vmul.f32 %v1424, 0.03125
    %v1600 = vmul.f32 %v1426, 0.03125
    %v1601 = vmul.f32 %v1428, 0.03125
    %v1602 = vmul.f32 %v1430, 0.03125
    %v1603 = vmul.f32 %v1432, 0.03125
    %v1604 = vmul.f32 %v1434, 0.03125
    %v1605 = vmul.f32 %v1436, 0.03125
    %v1606 = vmul.f32 %v1438, 0.03125
    %v1607 = vmul.f32 %v1440, 0.03125
    %v1608 = vmul.f32 %v1442, 0.03125
    %v1609 = vmul.f32 %v1444, 0.03125
    %v1610 = vmul.f32 %v1446, 0.03125
    %v1611 = vmul.f32 %v1448, 0.03125
    %v1612 = vmul.f32 %v1450, 0.03125
    %v1613 = vmul.f32 %v1452, 0.03125
    %v1614 = vmul.f32 %v1454, 0.03125
    %v1615 = vmul.f32 %v1456, 0.03125
    %v1616 = vmul.f32 %v1458, 0.03125
    %v1617 = vmul.f32 %v1460, 0.03125
    %v1618 = vmul.f32 %v1462, 0.03125
    %v1619 = vmul.f32 %v1464, 0.03125
    %v1620 = vmul.f32 %v1466, 0.03125
    %v1621 = vmul.f32 %v1468, 0.03125
    %v1622 = vmul.f32 %v1470, 0.03125
    %v1623 = vmul.f32 %v1472, 0.03125
    %v1624 = vmul.f32 %v1474, 0.03125
    %v1625 = vmul.f32 %v1476, 0.03125
    %v1626 = vmul.f32 %v1478, 0.03125
    %v1627 = vmul.f32 %v1480, 0.03125
    %v1628 = vmul.f32 %v1482, 0.03125
    %v1629 = vmul.f32 %v1484, 0.03125
    %v1630 = vmul.f32 %v1486, 0.03125
    %v1631 = vmul.f32 %v1488, 0.03125
    %v1632 = vmul.f32 %v1490, 0.03125
    %v1633 = vmul.f32 %v1492, 0.03125
    %v1634 = vmul.f32 %v1494, 0.03125
    %v1635 = vmul.f32 %v1496, 0.03125
    %v1636 = vmul.f32 %v1498, 0.03125
    %v1637 = vmul.f32 %v1500, 0.03125
    %v1638 = vmul.f32 %v1502, 0.03125
    %v1639 = vmul.f32 %v1504, 0.03125
    %v1640 = vmul.f32 %v1506, 0.03125
    %v1641 = vmul.f32 %v1508, 0.03125
    %v1642 = vmul.f32 %v1510, 0.03125
    %v1643 = vmul.f32 %v1512, 0.03125
    %v1644 = vmul.f32 %v1514, 0.03125
    %v1645 = vmul.f32 %v1516, 0.03125
    %v1646 = vmul.f32 %v1518, 0.03125
    %v1647 = vmul.f32 %v623, %v623
    %v1648 = vmul.f32 %v628, %v628
    %v1649 = vmul.f32 %v633, %v633
    %v1650 = vmul.f32 %v638, %v638
    %v1651 = vmul.f32 %v643, %v643
    %v1652 = vmul.f32 %v648, %v648
    %v1653 = vmul.f32 %v653, %v653
    %v1654 = vmul.f32 %v658, %v658
    %v1655 = vmul.f32 %v663, %v663
    %v1656 = vmul.f32 %v668, %v668
    %v1657 = vmul.f32 %v673, %v673
    %v1658 = vmul.f32 %v678, %v678
    %v1659 = vmul.f32 %v683, %v683
    %v1660 = vmul.f32 %v688, %v688
    %v1661 = vmul.f32 %v693, %v693
    %v1662 = vmul.f32 %v698, %v698
    %v1663 = vmul.f32 %v703, %v703
    %v1664 = vmul.f32 %v708, %v708
    %v1665 = vmul.f32 %v713, %v713
    %v1666 = vmul.f32 %v718, %v718
    %v1667 = vmul.f32 %v723, %v723
    %v1668 = vmul.f32 %v728, %v728
    %v1669 = vmul.f32 %v733, %v733
    %v1670 = vmul.f32 %v738, %v738
    %v1671 = vmul.f32 %v743, %v743
    %v1672 = vmul.f32 %v748, %v748
    %v1673 = vmul.f32 %v753, %v753
    %v1674 = vmul.f32 %v758, %v758
    %v1675 = vmul.f32 %v763, %v763
    %v1676 = vmul.f32 %v768, %v768
    %v1677 = vmul.f32 %v773, %v773
    %v1678 = vmul.f32 %v778, %v778
    %v1679 = vmul.f32 %v783, %v783
    %v1680 = vmul.f32 %v788, %v788
    %v1681 = vmul.f32 %v793, %v793
    %v1682 = vmul.f32 %v798, %v798
    %v1683 = vmul.f32 %v803, %v803
    %v1684 = vmul.f32 %v808, %v808
    %v1685 = vmul.f32 %v813, %v813
    %v1686 = vmul.f32 %v818, %v818
    %v1687 = vmul.f32 %v823, %v823
    %v1688 = vmul.f32 %v828, %v828
    %v1689 = vmul.f32 %v833, %v833
    %v1690 = vmul.f32 %v838, %v838
    %v1691 = vmul.f32 %v843, %v843
    %v1692 = vmul.f32 %v848, %v848
    %v1693 = vmul.f32 %v853, %v853
    %v1694 = vmul.f32 %v858, %v858
    %v1695 = vmul.f32 %v863, %v863
    %v1696 = vmul.f32 %v868, %v868
    %v1697 = vmul.f32 %v873, %v873
    %v1698 = vmul.f32 %v878, %v878
    %v1699 = vmul.f32 %v883, %v883
    %v1700 = vmul.f32 %v888, %v888
    %v1701 = vmul.f32 %v893, %v893
    %v1702 = vmul.f32 %v898, %v898
    %v1703 = vmul.f32 %v903, %v903
    %v1704 = vmul.f32 %v908, %v908
    %v1705 = vmul.f32 %v913, %v913
    %v1706 = vmul.f32 %v918, %v918
    %v1707 = vmul.f32 %v923, %v923
    %v1708 = vmul.f32 %v928, %v928
    %v1709 = vmul.f32 %v933, %v933
    %v1710 = vmul.f32 %v938, %v938
    %v1711 = vmul.f32 %v943, %v943
    %v1712 = vmul.f32 %v948, %v948
    %v1713 = vmul.f32 %v953, %v953
    %v1714 = vmul.f32 %v958, %v958
    %v1715 = vmul.f32 %v963, %v963
    %v1716 = vmul.f32 %v968, %v968
    %v1717 = vmul.f32 %v973, %v973
    %v1718 = vmul.f32 %v978, %v978
    %v1719 = vmul.f32 %v983, %v983
    %v1720 = vmul.f32 %v988, %v988
    %v1721 = vmul.f32 %v993, %v993
    %v1722 = vmul.f32 %v998, %v998
    %v1723 = vmul.f32 %v1003, %v1003
    %v1724 = vmul.f32 %v1008, %v1008
    %v1725 = vmul.f32 %v1013, %v1013
    %v1726 = vmul.f32 %v1018, %v1018
    %v1727 = vmul.f32 %v1023, %v1023
    %v1728 = vmul.f32 %v1028, %v1028
    %v1729 = vmul.f32 %v1033, %v1033
    %v1730 = vmul.f32 %v1038, %v1038
    %v1731 = vmul.f32 %v1043, %v1043
    %v1732 = vmul.f32 %v1048, %v1048
    %v1733 = vmul.f32 %v1053, %v1053
    %v1734 = vmul.f32 %v1058, %v1058
    %v1735 = vmul.f32 %v1063, %v1063
    %v1736 = vmul.f32 %v1068, %v1068
    %v1737 = vmul.f32 %v1073, %v1073
    %v1738 = vmul.f32 %v1078, %v1078
    %v1739 = vmul.f32 %v1083, %v1083
    %v1740 = vmul.f32 %v1088, %v1088
    %v1741 = vmul.f32 %v1093, %v1093
    %v1742 = vmul.f32 %v1098, %v1098
    %v1743 = vmul.f32 %v1103, %v1103
    %v1744 = vmul.f32 %v1108, %v1108
    %v1745 = vmul.f32 %v1113, %v1113
    %v1746 = vmul.f32 %v1118, %v1118
    %v1747 = vmul.f32 %v1123, %v1123
    %v1748 = vmul.f32 %v1128, %v1128
    %v1749 = vmul.f32 %v1133, %v1133
    %v1750 = vmul.f32 %v1138, %v1138
    %v1751 = vmul.f32 %v1143, %v1143
    %v1752 = vmul.f32 %v1148, %v1148
    %v1753 = vmul.f32 %v1153, %v1153
    %v1754 = vmul.f32 %v1158, %v1158
    %v1755 = vmul.f32 %v1163, %v1163
    %v1756 = vmul.f32 %v1168, %v1168
    %v1757 = vmul.f32 %v1173, %v1173
    %v1758 = vmul.f32 %v1178, %v1178
    %v1759 = vmul.f32 %v1183, %v1183
    %v1760 = vmul.f32 %v1188, %v1188
    %v1761 = vmul.f32 %v1193, %v1193
    %v1762 = vmul.f32 %v1198, %v1198
    %v1763 = vmul.f32 %v1203, %v1203
    %v1764 = vmul.f32 %v1208, %v1208
    %v1765 = vmul.f32 %v1213, %v1213
    %v1766 = vmul.f32 %v1218, %v1218
    %v1767 = vmul.f32 %v1223, %v1223
    %v1768 = vmul.f32 %v1228, %v1228
    %v1769 = vmul.f32 %v1233, %v1233
    %v1770 = vmul.f32 %v1238, %v1238
    %v1771 = vmul.f32 %v1243, %v1243
    %v1772 = vmul.f32 %v1248, %v1248
    %v1773 = vmul.f32 %v1253, %v1253
    %v1774 = vmul.f32 %v1258, %v1258
    %1775 = vadd.xlane.f32.xlu0 %v1647
    %v1776 = vpop.xlane.xlu0 %1775
    %1777 = vadd.xlane.f32.xlu0 %v1648
    %v1778 = vpop.xlane.xlu0 %1777
    %1779 = vadd.xlane.f32.xlu0 %v1649
    %v1780 = vpop.xlane.xlu0 %1779
    %1781 = vadd.xlane.f32.xlu0 %v1650
    %v1782 = vpop.xlane.xlu0 %1781
    %1783 = vadd.xlane.f32.xlu0 %v1651
    %v1784 = vpop.xlane.xlu0 %1783
    %1785 = vadd.xlane.f32.xlu0 %v1652
    %v1786 = vpop.xlane.xlu0 %1785
    %1787 = vadd.xlane.f32.xlu0 %v1653
    %v1788 = vpop.xlane.xlu0 %1787
    %1789 = vadd.xlane.f32.xlu0 %v1654
    %v1790 = vpop.xlane.xlu0 %1789
    %1791 = vadd.xlane.f32.xlu0 %v1655
    %v1792 = vpop.xlane.xlu0 %1791
    %1793 = vadd.xlane.f32.xlu0 %v1656
    %v1794 = vpop.xlane.xlu0 %1793
    %1795 = vadd.xlane.f32.xlu0 %v1657
    %v1796 = vpop.xlane.xlu0 %1795
    %1797 = vadd.xlane.f32.xlu0 %v1658
    %v1798 = vpop.xlane.xlu0 %1797
    %1799 = vadd.xlane.f32.xlu0 %v1659
    %v1800 = vpop.xlane.xlu0 %1799
    %1801 = vadd.xlane.f32.xlu0 %v1660
    %v1802 = vpop.xlane.xlu0 %1801
    %1803 = vadd.xlane.f32.xlu0 %v1661
    %v1804 = vpop.xlane.xlu0 %1803
    %1805 = vadd.xlane.f32.xlu0 %v1662
    %v1806 = vpop.xlane.xlu0 %1805
    %1807 = vadd.xlane.f32.xlu0 %v1663
    %v1808 = vpop.xlane.xlu0 %1807
    %1809 = vadd.xlane.f32.xlu0 %v1664
    %v1810 = vpop.xlane.xlu0 %1809
    %1811 = vadd.xlane.f32.xlu0 %v1665
    %v1812 = vpop.xlane.xlu0 %1811
    %1813 = vadd.xlane.f32.xlu0 %v1666
    %v1814 = vpop.xlane.xlu0 %1813
    %1815 = vadd.xlane.f32.xlu0 %v1667
    %v1816 = vpop.xlane.xlu0 %1815
    %1817 = vadd.xlane.f32.xlu0 %v1668
    %v1818 = vpop.xlane.xlu0 %1817
    %1819 = vadd.xlane.f32.xlu0 %v1669
    %v1820 = vpop.xlane.xlu0 %1819
    %1821 = vadd.xlane.f32.xlu0 %v1670
    %v1822 = vpop.xlane.xlu0 %1821
    %1823 = vadd.xlane.f32.xlu0 %v1671
    %v1824 = vpop.xlane.xlu0 %1823
    %1825 = vadd.xlane.f32.xlu0 %v1672
    %v1826 = vpop.xlane.xlu0 %1825
    %1827 = vadd.xlane.f32.xlu0 %v1673
    %v1828 = vpop.xlane.xlu0 %1827
    %1829 = vadd.xlane.f32.xlu0 %v1674
    %v1830 = vpop.xlane.xlu0 %1829
    %1831 = vadd.xlane.f32.xlu0 %v1675
    %v1832 = vpop.xlane.xlu0 %1831
    %1833 = vadd.xlane.f32.xlu0 %v1676
    %v1834 = vpop.xlane.xlu0 %1833
    %1835 = vadd.xlane.f32.xlu0 %v1677
    %v1836 = vpop.xlane.xlu0 %1835
    %1837 = vadd.xlane.f32.xlu0 %v1678
    %v1838 = vpop.xlane.xlu0 %1837
    %1839 = vadd.xlane.f32.xlu0 %v1679
    %v1840 = vpop.xlane.xlu0 %1839
    %1841 = vadd.xlane.f32.xlu0 %v1680
    %v1842 = vpop.xlane.xlu0 %1841
    %1843 = vadd.xlane.f32.xlu0 %v1681
    %v1844 = vpop.xlane.xlu0 %1843
    %1845 = vadd.xlane.f32.xlu0 %v1682
    %v1846 = vpop.xlane.xlu0 %1845
    %1847 = vadd.xlane.f32.xlu0 %v1683
    %v1848 = vpop.xlane.xlu0 %1847
    %1849 = vadd.xlane.f32.xlu0 %v1684
    %v1850 = vpop.xlane.xlu0 %1849
    %1851 = vadd.xlane.f32.xlu0 %v1685
    %v1852 = vpop.xlane.xlu0 %1851
    %1853 = vadd.xlane.f32.xlu0 %v1686
    %v1854 = vpop.xlane.xlu0 %1853
    %1855 = vadd.xlane.f32.xlu0 %v1687
    %v1856 = vpop.xlane.xlu0 %1855
    %1857 = vadd.xlane.f32.xlu0 %v1688
    %v1858 = vpop.xlane.xlu0 %1857
    %1859 = vadd.xlane.f32.xlu0 %v1689
    %v1860 = vpop.xlane.xlu0 %1859
    %1861 = vadd.xlane.f32.xlu0 %v1690
    %v1862 = vpop.xlane.xlu0 %1861
    %1863 = vadd.xlane.f32.xlu0 %v1691
    %v1864 = vpop.xlane.xlu0 %1863
    %1865 = vadd.xlane.f32.xlu0 %v1692
    %v1866 = vpop.xlane.xlu0 %1865
    %1867 = vadd.xlane.f32.xlu0 %v1693
    %v1868 = vpop.xlane.xlu0 %1867
    %1869 = vadd.xlane.f32.xlu0 %v1694
    %v1870 = vpop.xlane.xlu0 %1869
    %1871 = vadd.xlane.f32.xlu0 %v1695
    %v1872 = vpop.xlane.xlu0 %1871
    %1873 = vadd.xlane.f32.xlu0 %v1696
    %v1874 = vpop.xlane.xlu0 %1873
    %1875 = vadd.xlane.f32.xlu0 %v1697
    %v1876 = vpop.xlane.xlu0 %1875
    %1877 = vadd.xlane.f32.xlu0 %v1698
    %v1878 = vpop.xlane.xlu0 %1877
    %1879 = vadd.xlane.f32.xlu0 %v1699
    %v1880 = vpop.xlane.xlu0 %1879
    %1881 = vadd.xlane.f32.xlu0 %v1700
    %v1882 = vpop.xlane.xlu0 %1881
    %1883 = vadd.xlane.f32.xlu0 %v1701
    %v1884 = vpop.xlane.xlu0 %1883
    %1885 = vadd.xlane.f32.xlu0 %v1702
    %v1886 = vpop.xlane.xlu0 %1885
    %1887 = vadd.xlane.f32.xlu0 %v1703
    %v1888 = vpop.xlane.xlu0 %1887
    %1889 = vadd.xlane.f32.xlu0 %v1704
    %v1890 = vpop.xlane.xlu0 %1889
    %1891 = vadd.xlane.f32.xlu0 %v1705
    %v1892 = vpop.xlane.xlu0 %1891
    %1893 = vadd.xlane.f32.xlu0 %v1706
    %v1894 = vpop.xlane.xlu0 %1893
    %1895 = vadd.xlane.f32.xlu0 %v1707
    %v1896 = vpop.xlane.xlu0 %1895
    %1897 = vadd.xlane.f32.xlu0 %v1708
    %v1898 = vpop.xlane.xlu0 %1897
    %1899 = vadd.xlane.f32.xlu0 %v1709
    %v1900 = vpop.xlane.xlu0 %1899
    %1901 = vadd.xlane.f32.xlu0 %v1710
    %v1902 = vpop.xlane.xlu0 %1901
    %1903 = vadd.xlane.f32.xlu0 %v1711
    %v1904 = vpop.xlane.xlu0 %1903
    %1905 = vadd.xlane.f32.xlu0 %v1712
    %v1906 = vpop.xlane.xlu0 %1905
    %1907 = vadd.xlane.f32.xlu0 %v1713
    %v1908 = vpop.xlane.xlu0 %1907
    %1909 = vadd.xlane.f32.xlu0 %v1714
    %v1910 = vpop.xlane.xlu0 %1909
    %1911 = vadd.xlane.f32.xlu0 %v1715
    %v1912 = vpop.xlane.xlu0 %1911
    %1913 = vadd.xlane.f32.xlu0 %v1716
    %v1914 = vpop.xlane.xlu0 %1913
    %1915 = vadd.xlane.f32.xlu0 %v1717
    %v1916 = vpop.xlane.xlu0 %1915
    %1917 = vadd.xlane.f32.xlu0 %v1718
    %v1918 = vpop.xlane.xlu0 %1917
    %1919 = vadd.xlane.f32.xlu0 %v1719
    %v1920 = vpop.xlane.xlu0 %1919
    %1921 = vadd.xlane.f32.xlu0 %v1720
    %v1922 = vpop.xlane.xlu0 %1921
    %1923 = vadd.xlane.f32.xlu0 %v1721
    %v1924 = vpop.xlane.xlu0 %1923
    %1925 = vadd.xlane.f32.xlu0 %v1722
    %v1926 = vpop.xlane.xlu0 %1925
    %1927 = vadd.xlane.f32.xlu0 %v1723
    %v1928 = vpop.xlane.xlu0 %1927
    %1929 = vadd.xlane.f32.xlu0 %v1724
    %v1930 = vpop.xlane.xlu0 %1929
    %1931 = vadd.xlane.f32.xlu0 %v1725
    %v1932 = vpop.xlane.xlu0 %1931
    %1933 = vadd.xlane.f32.xlu0 %v1726
    %v1934 = vpop.xlane.xlu0 %1933
    %1935 = vadd.xlane.f32.xlu0 %v1727
    %v1936 = vpop.xlane.xlu0 %1935
    %1937 = vadd.xlane.f32.xlu0 %v1728
    %v1938 = vpop.xlane.xlu0 %1937
    %1939 = vadd.xlane.f32.xlu0 %v1729
    %v1940 = vpop.xlane.xlu0 %1939
    %1941 = vadd.xlane.f32.xlu0 %v1730
    %v1942 = vpop.xlane.xlu0 %1941
    %1943 = vadd.xlane.f32.xlu0 %v1731
    %v1944 = vpop.xlane.xlu0 %1943
    %1945 = vadd.xlane.f32.xlu0 %v1732
    %v1946 = vpop.xlane.xlu0 %1945
    %1947 = vadd.xlane.f32.xlu0 %v1733
    %v1948 = vpop.xlane.xlu0 %1947
    %1949 = vadd.xlane.f32.xlu0 %v1734
    %v1950 = vpop.xlane.xlu0 %1949
    %1951 = vadd.xlane.f32.xlu0 %v1735
    %v1952 = vpop.xlane.xlu0 %1951
    %1953 = vadd.xlane.f32.xlu0 %v1736
    %v1954 = vpop.xlane.xlu0 %1953
    %1955 = vadd.xlane.f32.xlu0 %v1737
    %v1956 = vpop.xlane.xlu0 %1955
    %1957 = vadd.xlane.f32.xlu0 %v1738
    %v1958 = vpop.xlane.xlu0 %1957
    %1959 = vadd.xlane.f32.xlu0 %v1739
    %v1960 = vpop.xlane.xlu0 %1959
    %1961 = vadd.xlane.f32.xlu0 %v1740
    %v1962 = vpop.xlane.xlu0 %1961
    %1963 = vadd.xlane.f32.xlu0 %v1741
    %v1964 = vpop.xlane.xlu0 %1963
    %1965 = vadd.xlane.f32.xlu0 %v1742
    %v1966 = vpop.xlane.xlu0 %1965
    %1967 = vadd.xlane.f32.xlu0 %v1743
    %v1968 = vpop.xlane.xlu0 %1967
    %1969 = vadd.xlane.f32.xlu0 %v1744
    %v1970 = vpop.xlane.xlu0 %1969
    %1971 = vadd.xlane.f32.xlu0 %v1745
    %v1972 = vpop.xlane.xlu0 %1971
    %1973 = vadd.xlane.f32.xlu0 %v1746
    %v1974 = vpop.xlane.xlu0 %1973
    %1975 = vadd.xlane.f32.xlu0 %v1747
    %v1976 = vpop.xlane.xlu0 %1975
    %1977 = vadd.xlane.f32.xlu0 %v1748
    %v1978 = vpop.xlane.xlu0 %1977
    %1979 = vadd.xlane.f32.xlu0 %v1749
    %v1980 = vpop.xlane.xlu0 %1979
    %1981 = vadd.xlane.f32.xlu0 %v1750
    %v1982 = vpop.xlane.xlu0 %1981
    %1983 = vadd.xlane.f32.xlu0 %v1751
    %v1984 = vpop.xlane.xlu0 %1983
    %1985 = vadd.xlane.f32.xlu0 %v1752
    %v1986 = vpop.xlane.xlu0 %1985
    %1987 = vadd.xlane.f32.xlu0 %v1753
    %v1988 = vpop.xlane.xlu0 %1987
    %1989 = vadd.xlane.f32.xlu0 %v1754
    %v1990 = vpop.xlane.xlu0 %1989
    %1991 = vadd.xlane.f32.xlu0 %v1755
    %v1992 = vpop.xlane.xlu0 %1991
    %1993 = vadd.xlane.f32.xlu0 %v1756
    %v1994 = vpop.xlane.xlu0 %1993
    %1995 = vadd.xlane.f32.xlu0 %v1757
    %v1996 = vpop.xlane.xlu0 %1995
    %1997 = vadd.xlane.f32.xlu0 %v1758
    %v1998 = vpop.xlane.xlu0 %1997
    %1999 = vadd.xlane.f32.xlu0 %v1759
    %v2000 = vpop.xlane.xlu0 %1999
    %2001 = vadd.xlane.f32.xlu0 %v1760
    %v2002 = vpop.xlane.xlu0 %2001
    %2003 = vadd.xlane.f32.xlu0 %v1761
    %v2004 = vpop.xlane.xlu0 %2003
    %2005 = vadd.xlane.f32.xlu0 %v1762
    %v2006 = vpop.xlane.xlu0 %2005
    %2007 = vadd.xlane.f32.xlu0 %v1763
    %v2008 = vpop.xlane.xlu0 %2007
    %2009 = vadd.xlane.f32.xlu0 %v1764
    %v2010 = vpop.xlane.xlu0 %2009
    %2011 = vadd.xlane.f32.xlu0 %v1765
    %v2012 = vpop.xlane.xlu0 %2011
    %2013 = vadd.xlane.f32.xlu0 %v1766
    %v2014 = vpop.xlane.xlu0 %2013
    %2015 = vadd.xlane.f32.xlu0 %v1767
    %v2016 = vpop.xlane.xlu0 %2015
    %2017 = vadd.xlane.f32.xlu0 %v1768
    %v2018 = vpop.xlane.xlu0 %2017
    %2019 = vadd.xlane.f32.xlu0 %v1769
    %v2020 = vpop.xlane.xlu0 %2019
    %2021 = vadd.xlane.f32.xlu0 %v1770
    %v2022 = vpop.xlane.xlu0 %2021
    %2023 = vadd.xlane.f32.xlu0 %v1771
    %v2024 = vpop.xlane.xlu0 %2023
    %2025 = vadd.xlane.f32.xlu0 %v1772
    %v2026 = vpop.xlane.xlu0 %2025
    %2027 = vadd.xlane.f32.xlu0 %v1773
    %v2028 = vpop.xlane.xlu0 %2027
    %2029 = vadd.xlane.f32.xlu0 %v1774
    %v2030 = vpop.xlane.xlu0 %2029
    %v2031 = vmul.f32 %v1776, 0.03125
    %v2032 = vmul.f32 %v1778, 0.03125
    %v2033 = vmul.f32 %v1780, 0.03125
    %v2034 = vmul.f32 %v1782, 0.03125
    %v2035 = vmul.f32 %v1784, 0.03125
    %v2036 = vmul.f32 %v1786, 0.03125
    %v2037 = vmul.f32 %v1788, 0.03125
    %v2038 = vmul.f32 %v1790, 0.03125
    %v2039 = vmul.f32 %v1792, 0.03125
    %v2040 = vmul.f32 %v1794, 0.03125
    %v2041 = vmul.f32 %v1796, 0.03125
    %v2042 = vmul.f32 %v1798, 0.03125
    %v2043 = vmul.f32 %v1800, 0.03125
    %v2044 = vmul.f32 %v1802, 0.03125
    %v2045 = vmul.f32 %v1804, 0.03125
    %v2046 = vmul.f32 %v1806, 0.03125
    %v2047 = vmul.f32 %v1808, 0.03125
    %v2048 = vmul.f32 %v1810, 0.03125
    %v2049 = vmul.f32 %v1812, 0.03125
    %v2050 = vmul.f32 %v1814, 0.03125
    %v2051 = vmul.f32 %v1816, 0.03125
    %v2052 = vmul.f32 %v1818, 0.03125
    %v2053 = vmul.f32 %v1820, 0.03125
    %v2054 = vmul.f32 %v1822, 0.03125
    %v2055 = vmul.f32 %v1824, 0.03125
    %v2056 = vmul.f32 %v1826, 0.03125
    %v2057 = vmul.f32 %v1828, 0.03125
    %v2058 = vmul.f32 %v1830, 0.03125
    %v2059 = vmul.f32 %v1832, 0.03125
    %v2060 = vmul.f32 %v1834, 0.03125
    %v2061 = vmul.f32 %v1836, 0.03125
    %v2062 = vmul.f32 %v1838, 0.03125
    %v2063 = vmul.f32 %v1840, 0.03125
    %v2064 = vmul.f32 %v1842, 0.03125
    %v2065 = vmul.f32 %v1844, 0.03125
    %v2066 = vmul.f32 %v1846, 0.03125
    %v2067 = vmul.f32 %v1848, 0.03125
    %v2068 = vmul.f32 %v1850, 0.03125
    %v2069 = vmul.f32 %v1852, 0.03125
    %v2070 = vmul.f32 %v1854, 0.03125
    %v2071 = vmul.f32 %v1856, 0.03125
    %v2072 = vmul.f32 %v1858, 0.03125
    %v2073 = vmul.f32 %v1860, 0.03125
    %v2074 = vmul.f32 %v1862, 0.03125
    %v2075 = vmul.f32 %v1864, 0.03125
    %v2076 = vmul.f32 %v1866, 0.03125
    %v2077 = vmul.f32 %v1868, 0.03125
    %v2078 = vmul.f32 %v1870, 0.03125
    %v2079 = vmul.f32 %v1872, 0.03125
    %v2080 = vmul.f32 %v1874, 0.03125
    %v2081 = vmul.f32 %v1876, 0.03125
    %v2082 = vmul.f32 %v1878, 0.03125
    %v2083 = vmul.f32 %v1880, 0.03125
    %v2084 = vmul.f32 %v1882, 0.03125
    %v2085 = vmul.f32 %v1884, 0.03125
    %v2086 = vmul.f32 %v1886, 0.03125
    %v2087 = vmul.f32 %v1888, 0.03125
    %v2088 = vmul.f32 %v1890, 0.03125
    %v2089 = vmul.f32 %v1892, 0.03125
    %v2090 = vmul.f32 %v1894, 0.03125
    %v2091 = vmul.f32 %v1896, 0.03125
    %v2092 = vmul.f32 %v1898, 0.03125
    %v2093 = vmul.f32 %v1900, 0.03125
    %v2094 = vmul.f32 %v1902, 0.03125
    %v2095 = vmul.f32 %v1904, 0.03125
    %v2096 = vmul.f32 %v1906, 0.03125
    %v2097 = vmul.f32 %v1908, 0.03125
    %v2098 = vmul.f32 %v1910, 0.03125
    %v2099 = vmul.f32 %v1912, 0.03125
    %v2100 = vmul.f32 %v1914, 0.03125
    %v2101 = vmul.f32 %v1916, 0.03125
    %v2102 = vmul.f32 %v1918, 0.03125
    %v2103 = vmul.f32 %v1920, 0.03125
    %v2104 = vmul.f32 %v1922, 0.03125
    %v2105 = vmul.f32 %v1924, 0.03125
    %v2106 = vmul.f32 %v1926, 0.03125
    %v2107 = vmul.f32 %v1928, 0.03125
    %v2108 = vmul.f32 %v1930, 0.03125
    %v2109 = vmul.f32 %v1932, 0.03125
    %v2110 = vmul.f32 %v1934, 0.03125
    %v2111 = vmul.f32 %v1936, 0.03125
    %v2112 = vmul.f32 %v1938, 0.03125
    %v2113 = vmul.f32 %v1940, 0.03125
    %v2114 = vmul.f32 %v1942, 0.03125
    %v2115 = vmul.f32 %v1944, 0.03125
    %v2116 = vmul.f32 %v1946, 0.03125
    %v2117 = vmul.f32 %v1948, 0.03125
    %v2118 = vmul.f32 %v1950, 0.03125
    %v2119 = vmul.f32 %v1952, 0.03125
    %v2120 = vmul.f32 %v1954, 0.03125
    %v2121 = vmul.f32 %v1956, 0.03125
    %v2122 = vmul.f32 %v1958, 0.03125
    %v2123 = vmul.f32 %v1960, 0.03125
    %v2124 = vmul.f32 %v1962, 0.03125
    %v2125 = vmul.f32 %v1964, 0.03125
    %v2126 = vmul.f32 %v1966, 0.03125
    %v2127 = vmul.f32 %v1968, 0.03125
    %v2128 = vmul.f32 %v1970, 0.03125
    %v2129 = vmul.f32 %v1972, 0.03125
    %v2130 = vmul.f32 %v1974, 0.03125
    %v2131 = vmul.f32 %v1976, 0.03125
    %v2132 = vmul.f32 %v1978, 0.03125
    %v2133 = vmul.f32 %v1980, 0.03125
    %v2134 = vmul.f32 %v1982, 0.03125
    %v2135 = vmul.f32 %v1984, 0.03125
    %v2136 = vmul.f32 %v1986, 0.03125
    %v2137 = vmul.f32 %v1988, 0.03125
    %v2138 = vmul.f32 %v1990, 0.03125
    %v2139 = vmul.f32 %v1992, 0.03125
    %v2140 = vmul.f32 %v1994, 0.03125
    %v2141 = vmul.f32 %v1996, 0.03125
    %v2142 = vmul.f32 %v1998, 0.03125
    %v2143 = vmul.f32 %v2000, 0.03125
    %v2144 = vmul.f32 %v2002, 0.03125
    %v2145 = vmul.f32 %v2004, 0.03125
    %v2146 = vmul.f32 %v2006, 0.03125
    %v2147 = vmul.f32 %v2008, 0.03125
    %v2148 = vmul.f32 %v2010, 0.03125
    %v2149 = vmul.f32 %v2012, 0.03125
    %v2150 = vmul.f32 %v2014, 0.03125
    %v2151 = vmul.f32 %v2016, 0.03125
    %v2152 = vmul.f32 %v2018, 0.03125
    %v2153 = vmul.f32 %v2020, 0.03125
    %v2154 = vmul.f32 %v2022, 0.03125
    %v2155 = vmul.f32 %v2024, 0.03125
    %v2156 = vmul.f32 %v2026, 0.03125
    %v2157 = vmul.f32 %v2028, 0.03125
    %v2158 = vmul.f32 %v2030, 0.03125
    %v2159 = vmul.f32 %v1519, %v1519
    %v2160 = vmul.f32 %v1520, %v1520
    %v2161 = vmul.f32 %v1521, %v1521
    %v2162 = vmul.f32 %v1522, %v1522
    %v2163 = vmul.f32 %v1523, %v1523
    %v2164 = vmul.f32 %v1524, %v1524
    %v2165 = vmul.f32 %v1525, %v1525
    %v2166 = vmul.f32 %v1526, %v1526
    %v2167 = vmul.f32 %v1527, %v1527
    %v2168 = vmul.f32 %v1528, %v1528
    %v2169 = vmul.f32 %v1529, %v1529
    %v2170 = vmul.f32 %v1530, %v1530
    %v2171 = vmul.f32 %v1531, %v1531
    %v2172 = vmul.f32 %v1532, %v1532
    %v2173 = vmul.f32 %v1533, %v1533
    %v2174 = vmul.f32 %v1534, %v1534
    %v2175 = vmul.f32 %v1535, %v1535
    %v2176 = vmul.f32 %v1536, %v1536
    %v2177 = vmul.f32 %v1537, %v1537
    %v2178 = vmul.f32 %v1538, %v1538
    %v2179 = vmul.f32 %v1539, %v1539
    %v2180 = vmul.f32 %v1540, %v1540
    %v2181 = vmul.f32 %v1541, %v1541
    %v2182 = vmul.f32 %v1542, %v1542
    %v2183 = vmul.f32 %v1543, %v1543
    %v2184 = vmul.f32 %v1544, %v1544
    %v2185 = vmul.f32 %v1545, %v1545
    %v2186 = vmul.f32 %v1546, %v1546
    %v2187 = vmul.f32 %v1547, %v1547
    %v2188 = vmul.f32 %v1548, %v1548
    %v2189 = vmul.f32 %v1549, %v1549
    %v2190 = vmul.f32 %v1550, %v1550
    %v2191 = vmul.f32 %v1551, %v1551
    %v2192 = vmul.f32 %v1552, %v1552
    %v2193 = vmul.f32 %v1553, %v1553
    %v2194 = vmul.f32 %v1554, %v1554
    %v2195 = vmul.f32 %v1555, %v1555
    %v2196 = vmul.f32 %v1556, %v1556
    %v2197 = vmul.f32 %v1557, %v1557
    %v2198 = vmul.f32 %v1558, %v1558
    %v2199 = vmul.f32 %v1559, %v1559
    %v2200 = vmul.f32 %v1560, %v1560
    %v2201 = vmul.f32 %v1561, %v1561
    %v2202 = vmul.f32 %v1562, %v1562
    %v2203 = vmul.f32 %v1563, %v1563
    %v2204 = vmul.f32 %v1564, %v1564
    %v2205 = vmul.f32 %v1565, %v1565
    %v2206 = vmul.f32 %v1566, %v1566
    %v2207 = vmul.f32 %v1567, %v1567
    %v2208 = vmul.f32 %v1568, %v1568
    %v2209 = vmul.f32 %v1569, %v1569
    %v2210 = vmul.f32 %v1570, %v1570
    %v2211 = vmul.f32 %v1571, %v1571
    %v2212 = vmul.f32 %v1572, %v1572
    %v2213 = vmul.f32 %v1573, %v1573
    %v2214 = vmul.f32 %v1574, %v1574
    %v2215 = vmul.f32 %v1575, %v1575
    %v2216 = vmul.f32 %v1576, %v1576
    %v2217 = vmul.f32 %v1577, %v1577
    %v2218 = vmul.f32 %v1578, %v1578
    %v2219 = vmul.f32 %v1579, %v1579
    %v2220 = vmul.f32 %v1580, %v1580
    %v2221 = vmul.f32 %v1581, %v1581
    %v2222 = vmul.f32 %v1582, %v1582
    %v2223 = vmul.f32 %v1583, %v1583
    %v2224 = vmul.f32 %v1584, %v1584
    %v2225 = vmul.f32 %v1585, %v1585
    %v2226 = vmul.f32 %v1586, %v1586
    %v2227 = vmul.f32 %v1587, %v1587
    %v2228 = vmul.f32 %v1588, %v1588
    %v2229 = vmul.f32 %v1589, %v1589
    %v2230 = vmul.f32 %v1590, %v1590
    %v2231 = vmul.f32 %v1591, %v1591
    %v2232 = vmul.f32 %v1592, %v1592
    %v2233 = vmul.f32 %v1593, %v1593
    %v2234 = vmul.f32 %v1594, %v1594
    %v2235 = vmul.f32 %v1595, %v1595
    %v2236 = vmul.f32 %v1596, %v1596
    %v2237 = vmul.f32 %v1597, %v1597
    %v2238 = vmul.f32 %v1598, %v1598
    %v2239 = vmul.f32 %v1599, %v1599
    %v2240 = vmul.f32 %v1600, %v1600
    %v2241 = vmul.f32 %v1601, %v1601
    %v2242 = vmul.f32 %v1602, %v1602
    %v2243 = vmul.f32 %v1603, %v1603
    %v2244 = vmul.f32 %v1604, %v1604
    %v2245 = vmul.f32 %v1605, %v1605
    %v2246 = vmul.f32 %v1606, %v1606
    %v2247 = vmul.f32 %v1607, %v1607
    %v2248 = vmul.f32 %v1608, %v1608
    %v2249 = vmul.f32 %v1609, %v1609
    %v2250 = vmul.f32 %v1610, %v1610
    %v2251 = vmul.f32 %v1611, %v1611
    %v2252 = vmul.f32 %v1612, %v1612
    %v2253 = vmul.f32 %v1613, %v1613
    %v2254 = vmul.f32 %v1614, %v1614
    %v2255 = vmul.f32 %v1615, %v1615
    %v2256 = vmul.f32 %v1616, %v1616
    %v2257 = vmul.f32 %v1617, %v1617
    %v2258 = vmul.f32 %v1618, %v1618
    %v2259 = vmul.f32 %v1619, %v1619
    %v2260 = vmul.f32 %v1620, %v1620
    %v2261 = vmul.f32 %v1621, %v1621
    %v2262 = vmul.f32 %v1622, %v1622
    %v2263 = vmul.f32 %v1623, %v1623
    %v2264 = vmul.f32 %v1624, %v1624
    %v2265 = vmul.f32 %v1625, %v1625
    %v2266 = vmul.f32 %v1626, %v1626
    %v2267 = vmul.f32 %v1627, %v1627
    %v2268 = vmul.f32 %v1628, %v1628
    %v2269 = vmul.f32 %v1629, %v1629
    %v2270 = vmul.f32 %v1630, %v1630
    %v2271 = vmul.f32 %v1631, %v1631
    %v2272 = vmul.f32 %v1632, %v1632
    %v2273 = vmul.f32 %v1633, %v1633
    %v2274 = vmul.f32 %v1634, %v1634
    %v2275 = vmul.f32 %v1635, %v1635
    %v2276 = vmul.f32 %v1636, %v1636
    %v2277 = vmul.f32 %v1637, %v1637
    %v2278 = vmul.f32 %v1638, %v1638
    %v2279 = vmul.f32 %v1639, %v1639
    %v2280 = vmul.f32 %v1640, %v1640
    %v2281 = vmul.f32 %v1641, %v1641
    %v2282 = vmul.f32 %v1642, %v1642
    %v2283 = vmul.f32 %v1643, %v1643
    %v2284 = vmul.f32 %v1644, %v1644
    %v2285 = vmul.f32 %v1645, %v1645
    %v2286 = vmul.f32 %v1646, %v1646
    %v2287 = vsub.f32 %v2031, %v2159
    %v2288 = vsub.f32 %v2032, %v2160
    %v2289 = vsub.f32 %v2033, %v2161
    %v2290 = vsub.f32 %v2034, %v2162
    %v2291 = vsub.f32 %v2035, %v2163
    %v2292 = vsub.f32 %v2036, %v2164
    %v2293 = vsub.f32 %v2037, %v2165
    %v2294 = vsub.f32 %v2038, %v2166
    %v2295 = vsub.f32 %v2039, %v2167
    %v2296 = vsub.f32 %v2040, %v2168
    %v2297 = vsub.f32 %v2041, %v2169
    %v2298 = vsub.f32 %v2042, %v2170
    %v2299 = vsub.f32 %v2043, %v2171
    %v2300 = vsub.f32 %v2044, %v2172
    %v2301 = vsub.f32 %v2045, %v2173
    %v2302 = vsub.f32 %v2046, %v2174
    %v2303 = vsub.f32 %v2047, %v2175
    %v2304 = vsub.f32 %v2048, %v2176
    %v2305 = vsub.f32 %v2049, %v2177
    %v2306 = vsub.f32 %v2050, %v2178
    %v2307 = vsub.f32 %v2051, %v2179
    %v2308 = vsub.f32 %v2052, %v2180
    %v2309 = vsub.f32 %v2053, %v2181
    %v2310 = vsub.f32 %v2054, %v2182
    %v2311 = vsub.f32 %v2055, %v2183
    %v2312 = vsub.f32 %v2056, %v2184
    %v2313 = vsub.f32 %v2057, %v2185
    %v2314 = vsub.f32 %v2058, %v2186
    %v2315 = vsub.f32 %v2059, %v2187
    %v2316 = vsub.f32 %v2060, %v2188
    %v2317 = vsub.f32 %v2061, %v2189
    %v2318 = vsub.f32 %v2062, %v2190
    %v2319 = vsub.f32 %v2063, %v2191
    %v2320 = vsub.f32 %v2064, %v2192
    %v2321 = vsub.f32 %v2065, %v2193
    %v2322 = vsub.f32 %v2066, %v2194
    %v2323 = vsub.f32 %v2067, %v2195
    %v2324 = vsub.f32 %v2068, %v2196
    %v2325 = vsub.f32 %v2069, %v2197
    %v2326 = vsub.f32 %v2070, %v2198
    %v2327 = vsub.f32 %v2071, %v2199
    %v2328 = vsub.f32 %v2072, %v2200
    %v2329 = vsub.f32 %v2073, %v2201
    %v2330 = vsub.f32 %v2074, %v2202
    %v2331 = vsub.f32 %v2075, %v2203
    %v2332 = vsub.f32 %v2076, %v2204
    %v2333 = vsub.f32 %v2077, %v2205
    %v2334 = vsub.f32 %v2078, %v2206
    %v2335 = vsub.f32 %v2079, %v2207
    %v2336 = vsub.f32 %v2080, %v2208
    %v2337 = vsub.f32 %v2081, %v2209
    %v2338 = vsub.f32 %v2082, %v2210
    %v2339 = vsub.f32 %v2083, %v2211
    %v2340 = vsub.f32 %v2084, %v2212
    %v2341 = vsub.f32 %v2085, %v2213
    %v2342 = vsub.f32 %v2086, %v2214
    %v2343 = vsub.f32 %v2087, %v2215
    %v2344 = vsub.f32 %v2088, %v2216
    %v2345 = vsub.f32 %v2089, %v2217
    %v2346 = vsub.f32 %v2090, %v2218
    %v2347 = vsub.f32 %v2091, %v2219
    %v2348 = vsub.f32 %v2092, %v2220
    %v2349 = vsub.f32 %v2093, %v2221
    %v2350 = vsub.f32 %v2094, %v2222
    %v2351 = vsub.f32 %v2095, %v2223
    %v2352 = vsub.f32 %v2096, %v2224
    %v2353 = vsub.f32 %v2097, %v2225
    %v2354 = vsub.f32 %v2098, %v2226
    %v2355 = vsub.f32 %v2099, %v2227
    %v2356 = vsub.f32 %v2100, %v2228
    %v2357 = vsub.f32 %v2101, %v2229
    %v2358 = vsub.f32 %v2102, %v2230
    %v2359 = vsub.f32 %v2103, %v2231
    %v2360 = vsub.f32 %v2104, %v2232
    %v2361 = vsub.f32 %v2105, %v2233
    %v2362 = vsub.f32 %v2106, %v2234
    %v2363 = vsub.f32 %v2107, %v2235
    %v2364 = vsub.f32 %v2108, %v2236
    %v2365 = vsub.f32 %v2109, %v2237
    %v2366 = vsub.f32 %v2110, %v2238
    %v2367 = vsub.f32 %v2111, %v2239
    %v2368 = vsub.f32 %v2112, %v2240
    %v2369 = vsub.f32 %v2113, %v2241
    %v2370 = vsub.f32 %v2114, %v2242
    %v2371 = vsub.f32 %v2115, %v2243
    %v2372 = vsub.f32 %v2116, %v2244
    %v2373 = vsub.f32 %v2117, %v2245
    %v2374 = vsub.f32 %v2118, %v2246
    %v2375 = vsub.f32 %v2119, %v2247
    %v2376 = vsub.f32 %v2120, %v2248
    %v2377 = vsub.f32 %v2121, %v2249
    %v2378 = vsub.f32 %v2122, %v2250
    %v2379 = vsub.f32 %v2123, %v2251
    %v2380 = vsub.f32 %v2124, %v2252
    %v2381 = vsub.f32 %v2125, %v2253
    %v2382 = vsub.f32 %v2126, %v2254
    %v2383 = vsub.f32 %v2127, %v2255
    %v2384 = vsub.f32 %v2128, %v2256
    %v2385 = vsub.f32 %v2129, %v2257
    %v2386 = vsub.f32 %v2130, %v2258
    %v2387 = vsub.f32 %v2131, %v2259
    %v2388 = vsub.f32 %v2132, %v2260
    %v2389 = vsub.f32 %v2133, %v2261
    %v2390 = vsub.f32 %v2134, %v2262
    %v2391 = vsub.f32 %v2135, %v2263
    %v2392 = vsub.f32 %v2136, %v2264
    %v2393 = vsub.f32 %v2137, %v2265
    %v2394 = vsub.f32 %v2138, %v2266
    %v2395 = vsub.f32 %v2139, %v2267
    %v2396 = vsub.f32 %v2140, %v2268
    %v2397 = vsub.f32 %v2141, %v2269
    %v2398 = vsub.f32 %v2142, %v2270
    %v2399 = vsub.f32 %v2143, %v2271
    %v2400 = vsub.f32 %v2144, %v2272
    %v2401 = vsub.f32 %v2145, %v2273
    %v2402 = vsub.f32 %v2146, %v2274
    %v2403 = vsub.f32 %v2147, %v2275
    %v2404 = vsub.f32 %v2148, %v2276
    %v2405 = vsub.f32 %v2149, %v2277
    %v2406 = vsub.f32 %v2150, %v2278
    %v2407 = vsub.f32 %v2151, %v2279
    %v2408 = vsub.f32 %v2152, %v2280
    %v2409 = vsub.f32 %v2153, %v2281
    %v2410 = vsub.f32 %v2154, %v2282
    %v2411 = vsub.f32 %v2155, %v2283
    %v2412 = vsub.f32 %v2156, %v2284
    %v2413 = vsub.f32 %v2157, %v2285
    %v2414 = vsub.f32 %v2158, %v2286
    %v2415 = vsub.f32 %v623, %v1519
    %v2416 = vsub.f32 %v628, %v1520
    %v2417 = vsub.f32 %v633, %v1521
    %v2418 = vsub.f32 %v638, %v1522
    %v2419 = vsub.f32 %v643, %v1523
    %v2420 = vsub.f32 %v648, %v1524
    %v2421 = vsub.f32 %v653, %v1525
    %v2422 = vsub.f32 %v658, %v1526
    %v2423 = vsub.f32 %v663, %v1527
    %v2424 = vsub.f32 %v668, %v1528
    %v2425 = vsub.f32 %v673, %v1529
    %v2426 = vsub.f32 %v678, %v1530
    %v2427 = vsub.f32 %v683, %v1531
    %v2428 = vsub.f32 %v688, %v1532
    %v2429 = vsub.f32 %v693, %v1533
    %v2430 = vsub.f32 %v698, %v1534
    %v2431 = vsub.f32 %v703, %v1535
    %v2432 = vsub.f32 %v708, %v1536
    %v2433 = vsub.f32 %v713, %v1537
    %v2434 = vsub.f32 %v718, %v1538
    %v2435 = vsub.f32 %v723, %v1539
    %v2436 = vsub.f32 %v728, %v1540
    %v2437 = vsub.f32 %v733, %v1541
    %v2438 = vsub.f32 %v738, %v1542
    %v2439 = vsub.f32 %v743, %v1543
    %v2440 = vsub.f32 %v748, %v1544
    %v2441 = vsub.f32 %v753, %v1545
    %v2442 = vsub.f32 %v758, %v1546
    %v2443 = vsub.f32 %v763, %v1547
    %v2444 = vsub.f32 %v768, %v1548
    %v2445 = vsub.f32 %v773, %v1549
    %v2446 = vsub.f32 %v778, %v1550
    %v2447 = vsub.f32 %v783, %v1551
    %v2448 = vsub.f32 %v788, %v1552
    %v2449 = vsub.f32 %v793, %v1553
    %v2450 = vsub.f32 %v798, %v1554
    %v2451 = vsub.f32 %v803, %v1555
    %v2452 = vsub.f32 %v808, %v1556
    %v2453 = vsub.f32 %v813, %v1557
    %v2454 = vsub.f32 %v818, %v1558
    %v2455 = vsub.f32 %v823, %v1559
    %v2456 = vsub.f32 %v828, %v1560
    %v2457 = vsub.f32 %v833, %v1561
    %v2458 = vsub.f32 %v838, %v1562
    %v2459 = vsub.f32 %v843, %v1563
    %v2460 = vsub.f32 %v848, %v1564
    %v2461 = vsub.f32 %v853, %v1565
    %v2462 = vsub.f32 %v858, %v1566
    %v2463 = vsub.f32 %v863, %v1567
    %v2464 = vsub.f32 %v868, %v1568
    %v2465 = vsub.f32 %v873, %v1569
    %v2466 = vsub.f32 %v878, %v1570
    %v2467 = vsub.f32 %v883, %v1571
    %v2468 = vsub.f32 %v888, %v1572
    %v2469 = vsub.f32 %v893, %v1573
    %v2470 = vsub.f32 %v898, %v1574
    %v2471 = vsub.f32 %v903, %v1575
    %v2472 = vsub.f32 %v908, %v1576
    %v2473 = vsub.f32 %v913, %v1577
    %v2474 = vsub.f32 %v918, %v1578
    %v2475 = vsub.f32 %v923, %v1579
    %v2476 = vsub.f32 %v928, %v1580
    %v2477 = vsub.f32 %v933, %v1581
    %v2478 = vsub.f32 %v938, %v1582
    %v2479 = vsub.f32 %v943, %v1583
    %v2480 = vsub.f32 %v948, %v1584
    %v2481 = vsub.f32 %v953, %v1585
    %v2482 = vsub.f32 %v958, %v1586
    %v2483 = vsub.f32 %v963, %v1587
    %v2484 = vsub.f32 %v968, %v1588
    %v2485 = vsub.f32 %v973, %v1589
    %v2486 = vsub.f32 %v978, %v1590
    %v2487 = vsub.f32 %v983, %v1591
    %v2488 = vsub.f32 %v988, %v1592
    %v2489 = vsub.f32 %v993, %v1593
    %v2490 = vsub.f32 %v998, %v1594
    %v2491 = vsub.f32 %v1003, %v1595
    %v2492 = vsub.f32 %v1008, %v1596
    %v2493 = vsub.f32 %v1013, %v1597
    %v2494 = vsub.f32 %v1018, %v1598
    %v2495 = vsub.f32 %v1023, %v1599
    %v2496 = vsub.f32 %v1028, %v1600
    %v2497 = vsub.f32 %v1033, %v1601
    %v2498 = vsub.f32 %v1038, %v1602
    %v2499 = vsub.f32 %v1043, %v1603
    %v2500 = vsub.f32 %v1048, %v1604
    %v2501 = vsub.f32 %v1053, %v1605
    %v2502 = vsub.f32 %v1058, %v1606
    %v2503 = vsub.f32 %v1063, %v1607
    %v2504 = vsub.f32 %v1068, %v1608
    %v2505 = vsub.f32 %v1073, %v1609
    %v2506 = vsub.f32 %v1078, %v1610
    %v2507 = vsub.f32 %v1083, %v1611
    %v2508 = vsub.f32 %v1088, %v1612
    %v2509 = vsub.f32 %v1093, %v1613
    %v2510 = vsub.f32 %v1098, %v1614
    %v2511 = vsub.f32 %v1103, %v1615
    %v2512 = vsub.f32 %v1108, %v1616
    %v2513 = vsub.f32 %v1113, %v1617
    %v2514 = vsub.f32 %v1118, %v1618
    %v2515 = vsub.f32 %v1123, %v1619
    %v2516 = vsub.f32 %v1128, %v1620
    %v2517 = vsub.f32 %v1133, %v1621
    %v2518 = vsub.f32 %v1138, %v1622
    %v2519 = vsub.f32 %v1143, %v1623
    %v2520 = vsub.f32 %v1148, %v1624
    %v2521 = vsub.f32 %v1153, %v1625
    %v2522 = vsub.f32 %v1158, %v1626
    %v2523 = vsub.f32 %v1163, %v1627
    %v2524 = vsub.f32 %v1168, %v1628
    %v2525 = vsub.f32 %v1173, %v1629
    %v2526 = vsub.f32 %v1178, %v1630
    %v2527 = vsub.f32 %v1183, %v1631
    %v2528 = vsub.f32 %v1188, %v1632
    %v2529 = vsub.f32 %v1193, %v1633
    %v2530 = vsub.f32 %v1198, %v1634
    %v2531 = vsub.f32 %v1203, %v1635
    %v2532 = vsub.f32 %v1208, %v1636
    %v2533 = vsub.f32 %v1213, %v1637
    %v2534 = vsub.f32 %v1218, %v1638
    %v2535 = vsub.f32 %v1223, %v1639
    %v2536 = vsub.f32 %v1228, %v1640
    %v2537 = vsub.f32 %v1233, %v1641
    %v2538 = vsub.f32 %v1238, %v1642
    %v2539 = vsub.f32 %v1243, %v1643
    %v2540 = vsub.f32 %v1248, %v1644
    %v2541 = vsub.f32 %v1253, %v1645
    %v2542 = vsub.f32 %v1258, %v1646
    %v2543 = vadd.f32 %v2287, 1e-05
    %v2544 = vadd.f32 %v2288, 1e-05
    %v2545 = vadd.f32 %v2289, 1e-05
    %v2546 = vadd.f32 %v2290, 1e-05
    %v2547 = vadd.f32 %v2291, 1e-05
    %v2548 = vadd.f32 %v2292, 1e-05
    %v2549 = vadd.f32 %v2293, 1e-05
    %v2550 = vadd.f32 %v2294, 1e-05
    %v2551 = vadd.f32 %v2295, 1e-05
    %v2552 = vadd.f32 %v2296, 1e-05
    %v2553 = vadd.f32 %v2297, 1e-05
    %v2554 = vadd.f32 %v2298, 1e-05
    %v2555 = vadd.f32 %v2299, 1e-05
    %v2556 = vadd.f32 %v2300, 1e-05
    %v2557 = vadd.f32 %v2301, 1e-05
    %v2558 = vadd.f32 %v2302, 1e-05
    %v2559 = vadd.f32 %v2303, 1e-05
    %v2560 = vadd.f32 %v2304, 1e-05
    %v2561 = vadd.f32 %v2305, 1e-05
    %v2562 = vadd.f32 %v2306, 1e-05
    %v2563 = vadd.f32 %v2307, 1e-05
    %v2564 = vadd.f32 %v2308, 1e-05
    %v2565 = vadd.f32 %v2309, 1e-05
    %v2566 = vadd.f32 %v2310, 1e-05
    %v2567 = vadd.f32 %v2311, 1e-05
    %v2568 = vadd.f32 %v2312, 1e-05
    %v2569 = vadd.f32 %v2313, 1e-05
    %v2570 = vadd.f32 %v2314, 1e-05
    %v2571 = vadd.f32 %v2315, 1e-05
    %v2572 = vadd.f32 %v2316, 1e-05
    %v2573 = vadd.f32 %v2317, 1e-05
    %v2574 = vadd.f32 %v2318, 1e-05
    %v2575 = vadd.f32 %v2319, 1e-05
    %v2576 = vadd.f32 %v2320, 1e-05
    %v2577 = vadd.f32 %v2321, 1e-05
    %v2578 = vadd.f32 %v2322, 1e-05
    %v2579 = vadd.f32 %v2323, 1e-05
    %v2580 = vadd.f32 %v2324, 1e-05
    %v2581 = vadd.f32 %v2325, 1e-05
    %v2582 = vadd.f32 %v2326, 1e-05
    %v2583 = vadd.f32 %v2327, 1e-05
    %v2584 = vadd.f32 %v2328, 1e-05
    %v2585 = vadd.f32 %v2329, 1e-05
    %v2586 = vadd.f32 %v2330, 1e-05
    %v2587 = vadd.f32 %v2331, 1e-05
    %v2588 = vadd.f32 %v2332, 1e-05
    %v2589 = vadd.f32 %v2333, 1e-05
    %v2590 = vadd.f32 %v2334, 1e-05
    %v2591 = vadd.f32 %v2335, 1e-05
    %v2592 = vadd.f32 %v2336, 1e-05
    %v2593 = vadd.f32 %v2337, 1e-05
    %v2594 = vadd.f32 %v2338, 1e-05
    %v2595 = vadd.f32 %v2339, 1e-05
    %v2596 = vadd.f32 %v2340, 1e-05
    %v2597 = vadd.f32 %v2341, 1e-05
    %v2598 = vadd.f32 %v2342, 1e-05
    %v2599 = vadd.f32 %v2343, 1e-05
    %v2600 = vadd.f32 %v2344, 1e-05
    %v2601 = vadd.f32 %v2345, 1e-05
    %v2602 = vadd.f32 %v2346, 1e-05
    %v2603 = vadd.f32 %v2347, 1e-05
    %v2604 = vadd.f32 %v2348, 1e-05
    %v2605 = vadd.f32 %v2349, 1e-05
    %v2606 = vadd.f32 %v2350, 1e-05
    %v2607 = vadd.f32 %v2351, 1e-05
    %v2608 = vadd.f32 %v2352, 1e-05
    %v2609 = vadd.f32 %v2353, 1e-05
    %v2610 = vadd.f32 %v2354, 1e-05
    %v2611 = vadd.f32 %v2355, 1e-05
    %v2612 = vadd.f32 %v2356, 1e-05
    %v2613 = vadd.f32 %v2357, 1e-05
    %v2614 = vadd.f32 %v2358, 1e-05
    %v2615 = vadd.f32 %v2359, 1e-05
    %v2616 = vadd.f32 %v2360, 1e-05
    %v2617 = vadd.f32 %v2361, 1e-05
    %v2618 = vadd.f32 %v2362, 1e-05
    %v2619 = vadd.f32 %v2363, 1e-05
    %v2620 = vadd.f32 %v2364, 1e-05
    %v2621 = vadd.f32 %v2365, 1e-05
    %v2622 = vadd.f32 %v2366, 1e-05
    %v2623 = vadd.f32 %v2367, 1e-05
    %v2624 = vadd.f32 %v2368, 1e-05
    %v2625 = vadd.f32 %v2369, 1e-05
    %v2626 = vadd.f32 %v2370, 1e-05
    %v2627 = vadd.f32 %v2371, 1e-05
    %v2628 = vadd.f32 %v2372, 1e-05
    %v2629 = vadd.f32 %v2373, 1e-05
    %v2630 = vadd.f32 %v2374, 1e-05
    %v2631 = vadd.f32 %v2375, 1e-05
    %v2632 = vadd.f32 %v2376, 1e-05
    %v2633 = vadd.f32 %v2377, 1e-05
    %v2634 = vadd.f32 %v2378, 1e-05
    %v2635 = vadd.f32 %v2379, 1e-05
    %v2636 = vadd.f32 %v2380, 1e-05
    %v2637 = vadd.f32 %v2381, 1e-05
    %v2638 = vadd.f32 %v2382, 1e-05
    %v2639 = vadd.f32 %v2383, 1e-05
    %v2640 = vadd.f32 %v2384, 1e-05
    %v2641 = vadd.f32 %v2385, 1e-05
    %v2642 = vadd.f32 %v2386, 1e-05
    %v2643 = vadd.f32 %v2387, 1e-05
    %v2644 = vadd.f32 %v2388, 1e-05
    %v2645 = vadd.f32 %v2389, 1e-05
    %v2646 = vadd.f32 %v2390, 1e-05
    %v2647 = vadd.f32 %v2391, 1e-05
    %v2648 = vadd.f32 %v2392, 1e-05
    %v2649 = vadd.f32 %v2393, 1e-05
    %v2650 = vadd.f32 %v2394, 1e-05
    %v2651 = vadd.f32 %v2395, 1e-05
    %v2652 = vadd.f32 %v2396, 1e-05
    %v2653 = vadd.f32 %v2397, 1e-05
    %v2654 = vadd.f32 %v2398, 1e-05
    %v2655 = vadd.f32 %v2399, 1e-05
    %v2656 = vadd.f32 %v2400, 1e-05
    %v2657 = vadd.f32 %v2401, 1e-05
    %v2658 = vadd.f32 %v2402, 1e-05
    %v2659 = vadd.f32 %v2403, 1e-05
    %v2660 = vadd.f32 %v2404, 1e-05
    %v2661 = vadd.f32 %v2405, 1e-05
    %v2662 = vadd.f32 %v2406, 1e-05
    %v2663 = vadd.f32 %v2407, 1e-05
    %v2664 = vadd.f32 %v2408, 1e-05
    %v2665 = vadd.f32 %v2409, 1e-05
    %v2666 = vadd.f32 %v2410, 1e-05
    %v2667 = vadd.f32 %v2411, 1e-05
    %v2668 = vadd.f32 %v2412, 1e-05
    %v2669 = vadd.f32 %v2413, 1e-05
    %v2670 = vadd.f32 %v2414, 1e-05
    %v2671 = vrsqrt.pop %v2543
    %v2672 = vrsqrt.pop %v2544
    %v2673 = vrsqrt.pop %v2545
    %v2674 = vrsqrt.pop %v2546
    %v2675 = vrsqrt.pop %v2547
    %v2676 = vrsqrt.pop %v2548
    %v2677 = vrsqrt.pop %v2549
    %v2678 = vrsqrt.pop %v2550
    %v2679 = vrsqrt.pop %v2551
    %v2680 = vrsqrt.pop %v2552
    %v2681 = vrsqrt.pop %v2553
    %v2682 = vrsqrt.pop %v2554
    %v2683 = vrsqrt.pop %v2555
    %v2684 = vrsqrt.pop %v2556
    %v2685 = vrsqrt.pop %v2557
    %v2686 = vrsqrt.pop %v2558
    %v2687 = vrsqrt.pop %v2559
    %v2688 = vrsqrt.pop %v2560
    %v2689 = vrsqrt.pop %v2561
    %v2690 = vrsqrt.pop %v2562
    %v2691 = vrsqrt.pop %v2563
    %v2692 = vrsqrt.pop %v2564
    %v2693 = vrsqrt.pop %v2565
    %v2694 = vrsqrt.pop %v2566
    %v2695 = vrsqrt.pop %v2567
    %v2696 = vrsqrt.pop %v2568
    %v2697 = vrsqrt.pop %v2569
    %v2698 = vrsqrt.pop %v2570
    %v2699 = vrsqrt.pop %v2571
    %v2700 = vrsqrt.pop %v2572
    %v2701 = vrsqrt.pop %v2573
    %v2702 = vrsqrt.pop %v2574
    %v2703 = vrsqrt.pop %v2575
    %v2704 = vrsqrt.pop %v2576
    %v2705 = vrsqrt.pop %v2577
    %v2706 = vrsqrt.pop %v2578
    %v2707 = vrsqrt.pop %v2579
    %v2708 = vrsqrt.pop %v2580
    %v2709 = vrsqrt.pop %v2581
    %v2710 = vrsqrt.pop %v2582
    %v2711 = vrsqrt.pop %v2583
    %v2712 = vrsqrt.pop %v2584
    %v2713 = vrsqrt.pop %v2585
    %v2714 = vrsqrt.pop %v2586
    %v2715 = vrsqrt.pop %v2587
    %v2716 = vrsqrt.pop %v2588
    %v2717 = vrsqrt.pop %v2589
    %v2718 = vrsqrt.pop %v2590
    %v2719 = vrsqrt.pop %v2591
    %v2720 = vrsqrt.pop %v2592
    %v2721 = vrsqrt.pop %v2593
    %v2722 = vrsqrt.pop %v2594
    %v2723 = vrsqrt.pop %v2595
    %v2724 = vrsqrt.pop %v2596
    %v2725 = vrsqrt.pop %v2597
    %v2726 = vrsqrt.pop %v2598
    %v2727 = vrsqrt.pop %v2599
    %v2728 = vrsqrt.pop %v2600
    %v2729 = vrsqrt.pop %v2601
    %v2730 = vrsqrt.pop %v2602
    %v2731 = vrsqrt.pop %v2603
    %v2732 = vrsqrt.pop %v2604
    %v2733 = vrsqrt.pop %v2605
    %v2734 = vrsqrt.pop %v2606
    %v2735 = vrsqrt.pop %v2607
    %v2736 = vrsqrt.pop %v2608
    %v2737 = vrsqrt.pop %v2609
    %v2738 = vrsqrt.pop %v2610
    %v2739 = vrsqrt.pop %v2611
    %v2740 = vrsqrt.pop %v2612
    %v2741 = vrsqrt.pop %v2613
    %v2742 = vrsqrt.pop %v2614
    %v2743 = vrsqrt.pop %v2615
    %v2744 = vrsqrt.pop %v2616
    %v2745 = vrsqrt.pop %v2617
    %v2746 = vrsqrt.pop %v2618
    %v2747 = vrsqrt.pop %v2619
    %v2748 = vrsqrt.pop %v2620
    %v2749 = vrsqrt.pop %v2621
    %v2750 = vrsqrt.pop %v2622
    %v2751 = vrsqrt.pop %v2623
    %v2752 = vrsqrt.pop %v2624
    %v2753 = vrsqrt.pop %v2625
    %v2754 = vrsqrt.pop %v2626
    %v2755 = vrsqrt.pop %v2627
    %v2756 = vrsqrt.pop %v2628
    %v2757 = vrsqrt.pop %v2629
    %v2758 = vrsqrt.pop %v2630
    %v2759 = vrsqrt.pop %v2631
    %v2760 = vrsqrt.pop %v2632
    %v2761 = vrsqrt.pop %v2633
    %v2762 = vrsqrt.pop %v2634
    %v2763 = vrsqrt.pop %v2635
    %v2764 = vrsqrt.pop %v2636
    %v2765 = vrsqrt.pop %v2637
    %v2766 = vrsqrt.pop %v2638
    %v2767 = vrsqrt.pop %v2639
    %v2768 = vrsqrt.pop %v2640
    %v2769 = vrsqrt.pop %v2641
    %v2770 = vrsqrt.pop %v2642
    %v2771 = vrsqrt.pop %v2643
    %v2772 = vrsqrt.pop %v2644
    %v2773 = vrsqrt.pop %v2645
    %v2774 = vrsqrt.pop %v2646
    %v2775 = vrsqrt.pop %v2647
    %v2776 = vrsqrt.pop %v2648
    %v2777 = vrsqrt.pop %v2649
    %v2778 = vrsqrt.pop %v2650
    %v2779 = vrsqrt.pop %v2651
    %v2780 = vrsqrt.pop %v2652
    %v2781 = vrsqrt.pop %v2653
    %v2782 = vrsqrt.pop %v2654
    %v2783 = vrsqrt.pop %v2655
    %v2784 = vrsqrt.pop %v2656
    %v2785 = vrsqrt.pop %v2657
    %v2786 = vrsqrt.pop %v2658
    %v2787 = vrsqrt.pop %v2659
    %v2788 = vrsqrt.pop %v2660
    %v2789 = vrsqrt.pop %v2661
    %v2790 = vrsqrt.pop %v2662
    %v2791 = vrsqrt.pop %v2663
    %v2792 = vrsqrt.pop %v2664
    %v2793 = vrsqrt.pop %v2665
    %v2794 = vrsqrt.pop %v2666
    %v2795 = vrsqrt.pop %v2667
    %v2796 = vrsqrt.pop %v2668
    %v2797 = vrsqrt.pop %v2669
    %v2798 = vrsqrt.pop %v2670
    %v2799 = vmul.f32 %v2415, %v2671
    %v2800 = vmul.f32 %v2416, %v2672
    %v2801 = vmul.f32 %v2417, %v2673
    %v2802 = vmul.f32 %v2418, %v2674
    %v2803 = vmul.f32 %v2419, %v2675
    %v2804 = vmul.f32 %v2420, %v2676
    %v2805 = vmul.f32 %v2421, %v2677
    %v2806 = vmul.f32 %v2422, %v2678
    %v2807 = vmul.f32 %v2423, %v2679
    %v2808 = vmul.f32 %v2424, %v2680
    %v2809 = vmul.f32 %v2425, %v2681
    %v2810 = vmul.f32 %v2426, %v2682
    %v2811 = vmul.f32 %v2427, %v2683
    %v2812 = vmul.f32 %v2428, %v2684
    %v2813 = vmul.f32 %v2429, %v2685
    %v2814 = vmul.f32 %v2430, %v2686
    %v2815 = vmul.f32 %v2431, %v2687
    %v2816 = vmul.f32 %v2432, %v2688
    %v2817 = vmul.f32 %v2433, %v2689
    %v2818 = vmul.f32 %v2434, %v2690
    %v2819 = vmul.f32 %v2435, %v2691
    %v2820 = vmul.f32 %v2436, %v2692
    %v2821 = vmul.f32 %v2437, %v2693
    %v2822 = vmul.f32 %v2438, %v2694
    %v2823 = vmul.f32 %v2439, %v2695
    %v2824 = vmul.f32 %v2440, %v2696
    %v2825 = vmul.f32 %v2441, %v2697
    %v2826 = vmul.f32 %v2442, %v2698
    %v2827 = vmul.f32 %v2443, %v2699
    %v2828 = vmul.f32 %v2444, %v2700
    %v2829 = vmul.f32 %v2445, %v2701
    %v2830 = vmul.f32 %v2446, %v2702
    %v2831 = vmul.f32 %v2447, %v2703
    %v2832 = vmul.f32 %v2448, %v2704
    %v2833 = vmul.f32 %v2449, %v2705
    %v2834 = vmul.f32 %v2450, %v2706
    %v2835 = vmul.f32 %v2451, %v2707
    %v2836 = vmul.f32 %v2452, %v2708
    %v2837 = vmul.f32 %v2453, %v2709
    %v2838 = vmul.f32 %v2454, %v2710
    %v2839 = vmul.f32 %v2455, %v2711
    %v2840 = vmul.f32 %v2456, %v2712
    %v2841 = vmul.f32 %v2457, %v2713
    %v2842 = vmul.f32 %v2458, %v2714
    %v2843 = vmul.f32 %v2459, %v2715
    %v2844 = vmul.f32 %v2460, %v2716
    %v2845 = vmul.f32 %v2461, %v2717
    %v2846 = vmul.f32 %v2462, %v2718
    %v2847 = vmul.f32 %v2463, %v2719
    %v2848 = vmul.f32 %v2464, %v2720
    %v2849 = vmul.f32 %v2465, %v2721
    %v2850 = vmul.f32 %v2466, %v2722
    %v2851 = vmul.f32 %v2467, %v2723
    %v2852 = vmul.f32 %v2468, %v2724
    %v2853 = vmul.f32 %v2469, %v2725
    %v2854 = vmul.f32 %v2470, %v2726
    %v2855 = vmul.f32 %v2471, %v2727
    %v2856 = vmul.f32 %v2472, %v2728
    %v2857 = vmul.f32 %v2473, %v2729
    %v2858 = vmul.f32 %v2474, %v2730
    %v2859 = vmul.f32 %v2475, %v2731
    %v2860 = vmul.f32 %v2476, %v2732
    %v2861 = vmul.f32 %v2477, %v2733
    %v2862 = vmul.f32 %v2478, %v2734
    %v2863 = vmul.f32 %v2479, %v2735
    %v2864 = vmul.f32 %v2480, %v2736
    %v2865 = vmul.f32 %v2481, %v2737
    %v2866 = vmul.f32 %v2482, %v2738
    %v2867 = vmul.f32 %v2483, %v2739
    %v2868 = vmul.f32 %v2484, %v2740
    %v2869 = vmul.f32 %v2485, %v2741
    %v2870 = vmul.f32 %v2486, %v2742
    %v2871 = vmul.f32 %v2487, %v2743
    %v2872 = vmul.f32 %v2488, %v2744
    %v2873 = vmul.f32 %v2489, %v2745
    %v2874 = vmul.f32 %v2490, %v2746
    %v2875 = vmul.f32 %v2491, %v2747
    %v2876 = vmul.f32 %v2492, %v2748
    %v2877 = vmul.f32 %v2493, %v2749
    %v2878 = vmul.f32 %v2494, %v2750
    %v2879 = vmul.f32 %v2495, %v2751
    %v2880 = vmul.f32 %v2496, %v2752
    %v2881 = vmul.f32 %v2497, %v2753
    %v2882 = vmul.f32 %v2498, %v2754
    %v2883 = vmul.f32 %v2499, %v2755
    %v2884 = vmul.f32 %v2500, %v2756
    %v2885 = vmul.f32 %v2501, %v2757
    %v2886 = vmul.f32 %v2502, %v2758
    %v2887 = vmul.f32 %v2503, %v2759
    %v2888 = vmul.f32 %v2504, %v2760
    %v2889 = vmul.f32 %v2505, %v2761
    %v2890 = vmul.f32 %v2506, %v2762
    %v2891 = vmul.f32 %v2507, %v2763
    %v2892 = vmul.f32 %v2508, %v2764
    %v2893 = vmul.f32 %v2509, %v2765
    %v2894 = vmul.f32 %v2510, %v2766
    %v2895 = vmul.f32 %v2511, %v2767
    %v2896 = vmul.f32 %v2512, %v2768
    %v2897 = vmul.f32 %v2513, %v2769
    %v2898 = vmul.f32 %v2514, %v2770
    %v2899 = vmul.f32 %v2515, %v2771
    %v2900 = vmul.f32 %v2516, %v2772
    %v2901 = vmul.f32 %v2517, %v2773
    %v2902 = vmul.f32 %v2518, %v2774
    %v2903 = vmul.f32 %v2519, %v2775
    %v2904 = vmul.f32 %v2520, %v2776
    %v2905 = vmul.f32 %v2521, %v2777
    %v2906 = vmul.f32 %v2522, %v2778
    %v2907 = vmul.f32 %v2523, %v2779
    %v2908 = vmul.f32 %v2524, %v2780
    %v2909 = vmul.f32 %v2525, %v2781
    %v2910 = vmul.f32 %v2526, %v2782
    %v2911 = vmul.f32 %v2527, %v2783
    %v2912 = vmul.f32 %v2528, %v2784
    %v2913 = vmul.f32 %v2529, %v2785
    %v2914 = vmul.f32 %v2530, %v2786
    %v2915 = vmul.f32 %v2531, %v2787
    %v2916 = vmul.f32 %v2532, %v2788
    %v2917 = vmul.f32 %v2533, %v2789
    %v2918 = vmul.f32 %v2534, %v2790
    %v2919 = vmul.f32 %v2535, %v2791
    %v2920 = vmul.f32 %v2536, %v2792
    %v2921 = vmul.f32 %v2537, %v2793
    %v2922 = vmul.f32 %v2538, %v2794
    %v2923 = vmul.f32 %v2539, %v2795
    %v2924 = vmul.f32 %v2540, %v2796
    %v2925 = vmul.f32 %v2541, %v2797
    %v2926 = vmul.f32 %v2542, %v2798
    %v2928 = vlaneseq
    %v2929 = vshrl.u32 %v2928, 7
    %v2930 = vsub.s32 0, %v2929
    %v2931 = vrot.slane %v1261, %v2930
    %v2933 = vmul.f32 %v2799, %v2931
    %v2934 = vmul.f32 %v2800, %v2931
    %v2935 = vmul.f32 %v2801, %v2931
    %v2936 = vmul.f32 %v2802, %v2931
    %v2937 = vmul.f32 %v2803, %v2931
    %v2938 = vmul.f32 %v2804, %v2931
    %v2939 = vmul.f32 %v2805, %v2931
    %v2940 = vmul.f32 %v2806, %v2931
    %v2941 = vmul.f32 %v2807, %v2931
    %v2942 = vmul.f32 %v2808, %v2931
    %v2943 = vmul.f32 %v2809, %v2931
    %v2944 = vmul.f32 %v2810, %v2931
    %v2945 = vmul.f32 %v2811, %v2931
    %v2946 = vmul.f32 %v2812, %v2931
    %v2947 = vmul.f32 %v2813, %v2931
    %v2948 = vmul.f32 %v2814, %v2931
    %v2949 = vmul.f32 %v2815, %v2931
    %v2950 = vmul.f32 %v2816, %v2931
    %v2951 = vmul.f32 %v2817, %v2931
    %v2952 = vmul.f32 %v2818, %v2931
    %v2953 = vmul.f32 %v2819, %v2931
    %v2954 = vmul.f32 %v2820, %v2931
    %v2955 = vmul.f32 %v2821, %v2931
    %v2956 = vmul.f32 %v2822, %v2931
    %v2957 = vmul.f32 %v2823, %v2931
    %v2958 = vmul.f32 %v2824, %v2931
    %v2959 = vmul.f32 %v2825, %v2931
    %v2960 = vmul.f32 %v2826, %v2931
    %v2961 = vmul.f32 %v2827, %v2931
    %v2962 = vmul.f32 %v2828, %v2931
    %v2963 = vmul.f32 %v2829, %v2931
    %v2964 = vmul.f32 %v2830, %v2931
    %v2965 = vmul.f32 %v2831, %v2931
    %v2966 = vmul.f32 %v2832, %v2931
    %v2967 = vmul.f32 %v2833, %v2931
    %v2968 = vmul.f32 %v2834, %v2931
    %v2969 = vmul.f32 %v2835, %v2931
    %v2970 = vmul.f32 %v2836, %v2931
    %v2971 = vmul.f32 %v2837, %v2931
    %v2972 = vmul.f32 %v2838, %v2931
    %v2973 = vmul.f32 %v2839, %v2931
    %v2974 = vmul.f32 %v2840, %v2931
    %v2975 = vmul.f32 %v2841, %v2931
    %v2976 = vmul.f32 %v2842, %v2931
    %v2977 = vmul.f32 %v2843, %v2931
    %v2978 = vmul.f32 %v2844, %v2931
    %v2979 = vmul.f32 %v2845, %v2931
    %v2980 = vmul.f32 %v2846, %v2931
    %v2981 = vmul.f32 %v2847, %v2931
    %v2982 = vmul.f32 %v2848, %v2931
    %v2983 = vmul.f32 %v2849, %v2931
    %v2984 = vmul.f32 %v2850, %v2931
    %v2985 = vmul.f32 %v2851, %v2931
    %v2986 = vmul.f32 %v2852, %v2931
    %v2987 = vmul.f32 %v2853, %v2931
    %v2988 = vmul.f32 %v2854, %v2931
    %v2989 = vmul.f32 %v2855, %v2931
    %v2990 = vmul.f32 %v2856, %v2931
    %v2991 = vmul.f32 %v2857, %v2931
    %v2992 = vmul.f32 %v2858, %v2931
    %v2993 = vmul.f32 %v2859, %v2931
    %v2994 = vmul.f32 %v2860, %v2931
    %v2995 = vmul.f32 %v2861, %v2931
    %v2996 = vmul.f32 %v2862, %v2931
    %v2997 = vmul.f32 %v2863, %v2931
    %v2998 = vmul.f32 %v2864, %v2931
    %v2999 = vmul.f32 %v2865, %v2931
    %v3000 = vmul.f32 %v2866, %v2931
    %v3001 = vmul.f32 %v2867, %v2931
    %v3002 = vmul.f32 %v2868, %v2931
    %v3003 = vmul.f32 %v2869, %v2931
    %v3004 = vmul.f32 %v2870, %v2931
    %v3005 = vmul.f32 %v2871, %v2931
    %v3006 = vmul.f32 %v2872, %v2931
    %v3007 = vmul.f32 %v2873, %v2931
    %v3008 = vmul.f32 %v2874, %v2931
    %v3009 = vmul.f32 %v2875, %v2931
    %v3010 = vmul.f32 %v2876, %v2931
    %v3011 = vmul.f32 %v2877, %v2931
    %v3012 = vmul.f32 %v2878, %v2931
    %v3013 = vmul.f32 %v2879, %v2931
    %v3014 = vmul.f32 %v2880, %v2931
    %v3015 = vmul.f32 %v2881, %v2931
    %v3016 = vmul.f32 %v2882, %v2931
    %v3017 = vmul.f32 %v2883, %v2931
    %v3018 = vmul.f32 %v2884, %v2931
    %v3019 = vmul.f32 %v2885, %v2931
    %v3020 = vmul.f32 %v2886, %v2931
    %v3021 = vmul.f32 %v2887, %v2931
    %v3022 = vmul.f32 %v2888, %v2931
    %v3023 = vmul.f32 %v2889, %v2931
    %v3024 = vmul.f32 %v2890, %v2931
    %v3025 = vmul.f32 %v2891, %v2931
    %v3026 = vmul.f32 %v2892, %v2931
    %v3027 = vmul.f32 %v2893, %v2931
    %v3028 = vmul.f32 %v2894, %v2931
    %v3029 = vmul.f32 %v2895, %v2931
    %v3030 = vmul.f32 %v2896, %v2931
    %v3031 = vmul.f32 %v2897, %v2931
    %v3032 = vmul.f32 %v2898, %v2931
    %v3033 = vmul.f32 %v2899, %v2931
    %v3034 = vmul.f32 %v2900, %v2931
    %v3035 = vmul.f32 %v2901, %v2931
    %v3036 = vmul.f32 %v2902, %v2931
    %v3037 = vmul.f32 %v2903, %v2931
    %v3038 = vmul.f32 %v2904, %v2931
    %v3039 = vmul.f32 %v2905, %v2931
    %v3040 = vmul.f32 %v2906, %v2931
    %v3041 = vmul.f32 %v2907, %v2931
    %v3042 = vmul.f32 %v2908, %v2931
    %v3043 = vmul.f32 %v2909, %v2931
    %v3044 = vmul.f32 %v2910, %v2931
    %v3045 = vmul.f32 %v2911, %v2931
    %v3046 = vmul.f32 %v2912, %v2931
    %v3047 = vmul.f32 %v2913, %v2931
    %v3048 = vmul.f32 %v2914, %v2931
    %v3049 = vmul.f32 %v2915, %v2931
    %v3050 = vmul.f32 %v2916, %v2931
    %v3051 = vmul.f32 %v2917, %v2931
    %v3052 = vmul.f32 %v2918, %v2931
    %v3053 = vmul.f32 %v2919, %v2931
    %v3054 = vmul.f32 %v2920, %v2931
    %v3055 = vmul.f32 %v2921, %v2931
    %v3056 = vmul.f32 %v2922, %v2931
    %v3057 = vmul.f32 %v2923, %v2931
    %v3058 = vmul.f32 %v2924, %v2931
    %v3059 = vmul.f32 %v2925, %v2931
    %v3060 = vmul.f32 %v2926, %v2931
    %v3062 = vlaneseq
    %v3063 = vshrl.u32 %v3062, 7
    %v3064 = vsub.s32 0, %v3063
    %v3065 = vrot.slane %v1262, %v3064
    %v3067 = vadd.f32 %v2933, %v3065
    %v3068 = vadd.f32 %v2934, %v3065
    %v3069 = vadd.f32 %v2935, %v3065
    %v3070 = vadd.f32 %v2936, %v3065
    %v3071 = vadd.f32 %v2937, %v3065
    %v3072 = vadd.f32 %v2938, %v3065
    %v3073 = vadd.f32 %v2939, %v3065
    %v3074 = vadd.f32 %v2940, %v3065
    %v3075 = vadd.f32 %v2941, %v3065
    %v3076 = vadd.f32 %v2942, %v3065
    %v3077 = vadd.f32 %v2943, %v3065
    %v3078 = vadd.f32 %v2944, %v3065
    %v3079 = vadd.f32 %v2945, %v3065
    %v3080 = vadd.f32 %v2946, %v3065
    %v3081 = vadd.f32 %v2947, %v3065
    %v3082 = vadd.f32 %v2948, %v3065
    %v3083 = vadd.f32 %v2949, %v3065
    %v3084 = vadd.f32 %v2950, %v3065
    %v3085 = vadd.f32 %v2951, %v3065
    %v3086 = vadd.f32 %v2952, %v3065
    %v3087 = vadd.f32 %v2953, %v3065
    %v3088 = vadd.f32 %v2954, %v3065
    %v3089 = vadd.f32 %v2955, %v3065
    %v3090 = vadd.f32 %v2956, %v3065
    %v3091 = vadd.f32 %v2957, %v3065
    %v3092 = vadd.f32 %v2958, %v3065
    %v3093 = vadd.f32 %v2959, %v3065
    %v3094 = vadd.f32 %v2960, %v3065
    %v3095 = vadd.f32 %v2961, %v3065
    %v3096 = vadd.f32 %v2962, %v3065
    %v3097 = vadd.f32 %v2963, %v3065
    %v3098 = vadd.f32 %v2964, %v3065
    %v3099 = vadd.f32 %v2965, %v3065
    %v3100 = vadd.f32 %v2966, %v3065
    %v3101 = vadd.f32 %v2967, %v3065
    %v3102 = vadd.f32 %v2968, %v3065
    %v3103 = vadd.f32 %v2969, %v3065
    %v3104 = vadd.f32 %v2970, %v3065
    %v3105 = vadd.f32 %v2971, %v3065
    %v3106 = vadd.f32 %v2972, %v3065
    %v3107 = vadd.f32 %v2973, %v3065
    %v3108 = vadd.f32 %v2974, %v3065
    %v3109 = vadd.f32 %v2975, %v3065
    %v3110 = vadd.f32 %v2976, %v3065
    %v3111 = vadd.f32 %v2977, %v3065
    %v3112 = vadd.f32 %v2978, %v3065
    %v3113 = vadd.f32 %v2979, %v3065
    %v3114 = vadd.f32 %v2980, %v3065
    %v3115 = vadd.f32 %v2981, %v3065
    %v3116 = vadd.f32 %v2982, %v3065
    %v3117 = vadd.f32 %v2983, %v3065
    %v3118 = vadd.f32 %v2984, %v3065
    %v3119 = vadd.f32 %v2985, %v3065
    %v3120 = vadd.f32 %v2986, %v3065
    %v3121 = vadd.f32 %v2987, %v3065
    %v3122 = vadd.f32 %v2988, %v3065
    %v3123 = vadd.f32 %v2989, %v3065
    %v3124 = vadd.f32 %v2990, %v3065
    %v3125 = vadd.f32 %v2991, %v3065
    %v3126 = vadd.f32 %v2992, %v3065
    %v3127 = vadd.f32 %v2993, %v3065
    %v3128 = vadd.f32 %v2994, %v3065
    %v3129 = vadd.f32 %v2995, %v3065
    %v3130 = vadd.f32 %v2996, %v3065
    %v3131 = vadd.f32 %v2997, %v3065
    %v3132 = vadd.f32 %v2998, %v3065
    %v3133 = vadd.f32 %v2999, %v3065
    %v3134 = vadd.f32 %v3000, %v3065
    %v3135 = vadd.f32 %v3001, %v3065
    %v3136 = vadd.f32 %v3002, %v3065
    %v3137 = vadd.f32 %v3003, %v3065
    %v3138 = vadd.f32 %v3004, %v3065
    %v3139 = vadd.f32 %v3005, %v3065
    %v3140 = vadd.f32 %v3006, %v3065
    %v3141 = vadd.f32 %v3007, %v3065
    %v3142 = vadd.f32 %v3008, %v3065
    %v3143 = vadd.f32 %v3009, %v3065
    %v3144 = vadd.f32 %v3010, %v3065
    %v3145 = vadd.f32 %v3011, %v3065
    %v3146 = vadd.f32 %v3012, %v3065
    %v3147 = vadd.f32 %v3013, %v3065
    %v3148 = vadd.f32 %v3014, %v3065
    %v3149 = vadd.f32 %v3015, %v3065
    %v3150 = vadd.f32 %v3016, %v3065
    %v3151 = vadd.f32 %v3017, %v3065
    %v3152 = vadd.f32 %v3018, %v3065
    %v3153 = vadd.f32 %v3019, %v3065
    %v3154 = vadd.f32 %v3020, %v3065
    %v3155 = vadd.f32 %v3021, %v3065
    %v3156 = vadd.f32 %v3022, %v3065
    %v3157 = vadd.f32 %v3023, %v3065
    %v3158 = vadd.f32 %v3024, %v3065
    %v3159 = vadd.f32 %v3025, %v3065
    %v3160 = vadd.f32 %v3026, %v3065
    %v3161 = vadd.f32 %v3027, %v3065
    %v3162 = vadd.f32 %v3028, %v3065
    %v3163 = vadd.f32 %v3029, %v3065
    %v3164 = vadd.f32 %v3030, %v3065
    %v3165 = vadd.f32 %v3031, %v3065
    %v3166 = vadd.f32 %v3032, %v3065
    %v3167 = vadd.f32 %v3033, %v3065
    %v3168 = vadd.f32 %v3034, %v3065
    %v3169 = vadd.f32 %v3035, %v3065
    %v3170 = vadd.f32 %v3036, %v3065
    %v3171 = vadd.f32 %v3037, %v3065
    %v3172 = vadd.f32 %v3038, %v3065
    %v3173 = vadd.f32 %v3039, %v3065
    %v3174 = vadd.f32 %v3040, %v3065
    %v3175 = vadd.f32 %v3041, %v3065
    %v3176 = vadd.f32 %v3042, %v3065
    %v3177 = vadd.f32 %v3043, %v3065
    %v3178 = vadd.f32 %v3044, %v3065
    %v3179 = vadd.f32 %v3045, %v3065
    %v3180 = vadd.f32 %v3046, %v3065
    %v3181 = vadd.f32 %v3047, %v3065
    %v3182 = vadd.f32 %v3048, %v3065
    %v3183 = vadd.f32 %v3049, %v3065
    %v3184 = vadd.f32 %v3050, %v3065
    %v3185 = vadd.f32 %v3051, %v3065
    %v3186 = vadd.f32 %v3052, %v3065
    %v3187 = vadd.f32 %v3053, %v3065
    %v3188 = vadd.f32 %v3054, %v3065
    %v3189 = vadd.f32 %v3055, %v3065
    %v3190 = vadd.f32 %v3056, %v3065
    %v3191 = vadd.f32 %v3057, %v3065
    %v3192 = vadd.f32 %v3058, %v3065
    %v3193 = vadd.f32 %v3059, %v3065
    %v3194 = vadd.f32 %v3060, %v3065
    %v3195 = vmax.f32 %v3067, 0.0
    %v3196 = vmax.f32 %v3068, 0.0
    %v3197 = vmax.f32 %v3069, 0.0
    %v3198 = vmax.f32 %v3070, 0.0
    %v3199 = vmax.f32 %v3071, 0.0
    %v3200 = vmax.f32 %v3072, 0.0
    %v3201 = vmax.f32 %v3073, 0.0
    %v3202 = vmax.f32 %v3074, 0.0
    %v3203 = vmax.f32 %v3075, 0.0
    %v3204 = vmax.f32 %v3076, 0.0
    %v3205 = vmax.f32 %v3077, 0.0
    %v3206 = vmax.f32 %v3078, 0.0
    %v3207 = vmax.f32 %v3079, 0.0
    %v3208 = vmax.f32 %v3080, 0.0
    %v3209 = vmax.f32 %v3081, 0.0
    %v3210 = vmax.f32 %v3082, 0.0
    %v3211 = vmax.f32 %v3083, 0.0
    %v3212 = vmax.f32 %v3084, 0.0
    %v3213 = vmax.f32 %v3085, 0.0
    %v3214 = vmax.f32 %v3086, 0.0
    %v3215 = vmax.f32 %v3087, 0.0
    %v3216 = vmax.f32 %v3088, 0.0
    %v3217 = vmax.f32 %v3089, 0.0
    %v3218 = vmax.f32 %v3090, 0.0
    %v3219 = vmax.f32 %v3091, 0.0
    %v3220 = vmax.f32 %v3092, 0.0
    %v3221 = vmax.f32 %v3093, 0.0
    %v3222 = vmax.f32 %v3094, 0.0
    %v3223 = vmax.f32 %v3095, 0.0
    %v3224 = vmax.f32 %v3096, 0.0
    %v3225 = vmax.f32 %v3097, 0.0
    %v3226 = vmax.f32 %v3098, 0.0
    %v3227 = vmax.f32 %v3099, 0.0
    %v3228 = vmax.f32 %v3100, 0.0
    %v3229 = vmax.f32 %v3101, 0.0
    %v3230 = vmax.f32 %v3102, 0.0
    %v3231 = vmax.f32 %v3103, 0.0
    %v3232 = vmax.f32 %v3104, 0.0
    %v3233 = vmax.f32 %v3105, 0.0
    %v3234 = vmax.f32 %v3106, 0.0
    %v3235 = vmax.f32 %v3107, 0.0
    %v3236 = vmax.f32 %v3108, 0.0
    %v3237 = vmax.f32 %v3109, 0.0
    %v3238 = vmax.f32 %v3110, 0.0
    %v3239 = vmax.f32 %v3111, 0.0
    %v3240 = vmax.f32 %v3112, 0.0
    %v3241 = vmax.f32 %v3113, 0.0
    %v3242 = vmax.f32 %v3114, 0.0
    %v3243 = vmax.f32 %v3115, 0.0
    %v3244 = vmax.f32 %v3116, 0.0
    %v3245 = vmax.f32 %v3117, 0.0
    %v3246 = vmax.f32 %v3118, 0.0
    %v3247 = vmax.f32 %v3119, 0.0
    %v3248 = vmax.f32 %v3120, 0.0
    %v3249 = vmax.f32 %v3121, 0.0
    %v3250 = vmax.f32 %v3122, 0.0
    %v3251 = vmax.f32 %v3123, 0.0
    %v3252 = vmax.f32 %v3124, 0.0
    %v3253 = vmax.f32 %v3125, 0.0
    %v3254 = vmax.f32 %v3126, 0.0
    %v3255 = vmax.f32 %v3127, 0.0
    %v3256 = vmax.f32 %v3128, 0.0
    %v3257 = vmax.f32 %v3129, 0.0
    %v3258 = vmax.f32 %v3130, 0.0
    %v3259 = vmax.f32 %v3131, 0.0
    %v3260 = vmax.f32 %v3132, 0.0
    %v3261 = vmax.f32 %v3133, 0.0
    %v3262 = vmax.f32 %v3134, 0.0
    %v3263 = vmax.f32 %v3135, 0.0
    %v3264 = vmax.f32 %v3136, 0.0
    %v3265 = vmax.f32 %v3137, 0.0
    %v3266 = vmax.f32 %v3138, 0.0
    %v3267 = vmax.f32 %v3139, 0.0
    %v3268 = vmax.f32 %v3140, 0.0
    %v3269 = vmax.f32 %v3141, 0.0
    %v3270 = vmax.f32 %v3142, 0.0
    %v3271 = vmax.f32 %v3143, 0.0
    %v3272 = vmax.f32 %v3144, 0.0
    %v3273 = vmax.f32 %v3145, 0.0
    %v3274 = vmax.f32 %v3146, 0.0
    %v3275 = vmax.f32 %v3147, 0.0
    %v3276 = vmax.f32 %v3148, 0.0
    %v3277 = vmax.f32 %v3149, 0.0
    %v3278 = vmax.f32 %v3150, 0.0
    %v3279 = vmax.f32 %v3151, 0.0
    %v3280 = vmax.f32 %v3152, 0.0
    %v3281 = vmax.f32 %v3153, 0.0
    %v3282 = vmax.f32 %v3154, 0.0
    %v3283 = vmax.f32 %v3155, 0.0
    %v3284 = vmax.f32 %v3156, 0.0
    %v3285 = vmax.f32 %v3157, 0.0
    %v3286 = vmax.f32 %v3158, 0.0
    %v3287 = vmax.f32 %v3159, 0.0
    %v3288 = vmax.f32 %v3160, 0.0
    %v3289 = vmax.f32 %v3161, 0.0
    %v3290 = vmax.f32 %v3162, 0.0
    %v3291 = vmax.f32 %v3163, 0.0
    %v3292 = vmax.f32 %v3164, 0.0
    %v3293 = vmax.f32 %v3165, 0.0
    %v3294 = vmax.f32 %v3166, 0.0
    %v3295 = vmax.f32 %v3167, 0.0
    %v3296 = vmax.f32 %v3168, 0.0
    %v3297 = vmax.f32 %v3169, 0.0
    %v3298 = vmax.f32 %v3170, 0.0
    %v3299 = vmax.f32 %v3171, 0.0
    %v3300 = vmax.f32 %v3172, 0.0
    %v3301 = vmax.f32 %v3173, 0.0
    %v3302 = vmax.f32 %v3174, 0.0
    %v3303 = vmax.f32 %v3175, 0.0
    %v3304 = vmax.f32 %v3176, 0.0
    %v3305 = vmax.f32 %v3177, 0.0
    %v3306 = vmax.f32 %v3178, 0.0
    %v3307 = vmax.f32 %v3179, 0.0
    %v3308 = vmax.f32 %v3180, 0.0
    %v3309 = vmax.f32 %v3181, 0.0
    %v3310 = vmax.f32 %v3182, 0.0
    %v3311 = vmax.f32 %v3183, 0.0
    %v3312 = vmax.f32 %v3184, 0.0
    %v3313 = vmax.f32 %v3185, 0.0
    %v3314 = vmax.f32 %v3186, 0.0
    %v3315 = vmax.f32 %v3187, 0.0
    %v3316 = vmax.f32 %v3188, 0.0
    %v3317 = vmax.f32 %v3189, 0.0
    %v3318 = vmax.f32 %v3190, 0.0
    %v3319 = vmax.f32 %v3191, 0.0
    %v3320 = vmax.f32 %v3192, 0.0
    %v3321 = vmax.f32 %v3193, 0.0
    %v3322 = vmax.f32 %v3194, 0.0
    %v3323 = vld [vmem:[%s2] sm:$0xff]
    %v3324 = vld [vmem:[%s2 + $0x8] sm:$0xff]
    %v3325 = vld [vmem:[%s2 + $0x10] sm:$0xff]
    %v3326 = vld [vmem:[%s2 + $0x18] sm:$0xff]
    %v3327 = vld [vmem:[%s2 + $0x20] sm:$0xff]
    %v3328 = vld [vmem:[%s2 + $0x28] sm:$0xff]
    %v3329 = vld [vmem:[%s2 + $0x30] sm:$0xff]
    %v3330 = vld [vmem:[%s2 + $0x38] sm:$0xff]
    %v3331 = vld [vmem:[%s2 + $0x40] sm:$0xff]
    %v3332 = vld [vmem:[%s2 + $0x48] sm:$0xff]
    %v3333 = vld [vmem:[%s2 + $0x50] sm:$0xff]
    %v3334 = vld [vmem:[%s2 + $0x58] sm:$0xff]
    %v3335 = vld [vmem:[%s2 + $0x60] sm:$0xff]
    %v3336 = vld [vmem:[%s2 + $0x68] sm:$0xff]
    %v3337 = vld [vmem:[%s2 + $0x70] sm:$0xff]
    %v3338 = vld [vmem:[%s2 + $0x78] sm:$0xff]
    %s3339 = scalar_lea.vmem %s3, 1
    %v3340 = vld [vmem:[%s3339] sm:$0x1]
    %v3342 = vlaneseq
    %v3343 = vshrl.u32 %v3342, 7
    %v3344 = vsub.s32 0, %v3343
    %v3345 = vrot.slane %v3340, %v3344
    %3347 = vmatprep.subr.mxu0 0.0
    %3348 = vmatpush1.msra.mxu0 %v3323
    %3349 = vmatprep.subr.mxu0 0.0
    %3350 = vmatpush1.msra.mxu0 %v3324
    %3351 = vmatprep.subr.mxu0 0.0
    %3352 = vmatpush1.msra.mxu0 %v3325
    %3353 = vmatprep.subr.mxu0 0.0
    %3354 = vmatpush1.msra.mxu0 %v3326
    %3355 = vmatprep.subr.mxu0 0.0
    %3356 = vmatpush1.msra.mxu0 %v3327
    %3357 = vmatprep.subr.mxu0 0.0
    %3358 = vmatpush1.msra.mxu0 %v3328
    %3359 = vmatprep.subr.mxu0 0.0
    %3360 = vmatpush1.msra.mxu0 %v3329
    %3361 = vmatprep.subr.mxu0 0.0
    %3362 = vmatpush1.msra.mxu0 %v3330
    %3363 = vmatprep.subr.mxu0 0.0
    %3364 = vmatpush1.msra.mxu0 %v3331
    %3365 = vmatprep.subr.mxu0 0.0
    %3366 = vmatpush1.msra.mxu0 %v3332
    %3367 = vmatprep.subr.mxu0 0.0
    %3368 = vmatpush1.msra.mxu0 %v3333
    %3369 = vmatprep.subr.mxu0 0.0
    %3370 = vmatpush1.msra.mxu0 %v3334
    %3371 = vmatprep.subr.mxu0 0.0
    %3372 = vmatpush1.msra.mxu0 %v3335
    %3373 = vmatprep.subr.mxu0 0.0
    %3374 = vmatpush1.msra.mxu0 %v3336
    %3375 = vmatprep.subr.mxu0 0.0
    %3376 = vmatpush1.msra.mxu0 %v3337
    %3377 = vmatprep.subr.mxu0 0.0
    %3378 = vmatpush1.msra.mxu0 %v3338
    %3379 = vmatprep.subr.mxu0 0.0
    %3380 = vmatpush1.msra.mxu0 0.0
    %3381 = vmatprep.subr.mxu0 0.0
    %3382 = vmatpush1.msra.mxu0 0.0
    %3383 = vmatprep.subr.mxu0 0.0
    %3384 = vmatpush1.msra.mxu0 0.0
    %3385 = vmatprep.subr.mxu0 0.0
    %3386 = vmatpush1.msra.mxu0 0.0
    %3387 = vmatprep.subr.mxu0 0.0
    %3388 = vmatpush1.msra.mxu0 0.0
    %3389 = vmatprep.subr.mxu0 0.0
    %3390 = vmatpush1.msra.mxu0 0.0
    %3391 = vmatprep.subr.mxu0 0.0
    %3392 = vmatpush1.msra.mxu0 0.0
    %3393 = vmatprep.subr.mxu0 0.0
    %3394 = vmatpush1.msra.mxu0 0.0
    %3395 = vmatprep.subr.mxu0 0.0
    %3396 = vmatpush1.msra.mxu0 0.0
    %3397 = vmatprep.subr.mxu0 0.0
    %3398 = vmatpush1.msra.mxu0 0.0
    %3399 = vmatprep.subr.mxu0 0.0
    %3400 = vmatpush1.msra.mxu0 0.0
    %3401 = vmatprep.subr.mxu0 0.0
    %3402 = vmatpush1.msra.mxu0 0.0
    %3403 = vmatprep.subr.mxu0 0.0
    %3404 = vmatpush1.msra.mxu0 0.0
    %3405 = vmatprep.subr.mxu0 0.0
    %3406 = vmatpush1.msra.mxu0 0.0
    %3407 = vmatprep.subr.mxu0 0.0
    %3408 = vmatpush1.msra.mxu0 0.0
    %3409 = vmatprep.subr.mxu0 0.0
    %3410 = vmatpush1.msra.mxu0 0.0
    %3411 = vmatprep.mubr.f32.mxu0 0.0
    %3412 = vmatmul.mubr.f32.gmra.mrb[0].mxu0 %v3195
    %v3413 = vpop.f32.mrb[0].mxu0
    %v3414 = vadd.f32 %v3345, %v3413
    %v3415 = vpop.f32.mrb[0].mxu0
    %3416 = vmatprep.mubr.f32.mxu0 0.0
    %3417 = vmatmul.mubr.f32.gmra.mrb[0].mxu0 %v3196
    %v3418 = vpop.f32.mrb[0].mxu0
    %v3419 = vadd.f32 %v3345, %v3418
    %v3420 = vpop.f32.mrb[0].mxu0
    %3421 = vmatprep.mubr.f32.mxu0 0.0
    %3422 = vmatmul.mubr.f32.gmra.mrb[0].mxu0 %v3197
    %v3423 = vpop.f32.mrb[0].mxu0
    %v3424 = vadd.f32 %v3345, %v3423
    %v3425 = vpop.f32.mrb[0].mxu0
    %3426 = vmatprep.mubr.f32.mxu0 0.0
    %3427 = vmatmul.mubr.f32.gmra.mrb[0].mxu0 %v3198
    %v3428 = vpop.f32.mrb[0].mxu0
    %v3429 = vadd.f32 %v3345, %v3428
    %v3430 = vpop.f32.mrb[0].mxu0
    %3431 = vmatprep.mubr.f32.mxu0 0.0
    %3432 = vmatmul.mubr.f32.gmra.mrb[0].mxu0 %v3199
    %v3433 = vpop.f32.mrb[0].mxu0
    %v3434 = vadd.f32 %v3345, %v3433
    %v3435 = vpop.f32.mrb[0].mxu0
    %3436 = vmatprep.mubr.f32.mxu0 0.0
    %3437 = vmatmul.mubr.f32.gmra.mrb[0].mxu0 %v3200
    %v3438 = vpop.f32.mrb[0].mxu0
    %v3439 = vadd.f32 %v3345, %v3438
    %v3440 = vpop.f32.mrb[0].mxu0
    %3441 = vmatprep.mubr.f32.mxu0 0.0
    %3442 = vmatmul.mubr.f32.gmra.mrb[0].mxu0 %v3201
    %v3443 = vpop.f32.mrb[0].mxu0
    %v3444 = vadd.f32 %v3345, %v3443
    %v3445 = vpop.f32.mrb[0].mxu0
    %3446 = vmatprep.mubr.f32.mxu0 0.0
    %3447 = vmatmul.mubr.f32.gmra.mrb[0].mxu0 %v3202
    %v3448 = vpop.f32.mrb[0].mxu0
    %v3449 = vadd.f32 %v3345, %v3448
    %v3450 = vpop.f32.mrb[0].mxu0
    %3451 = vmatprep.mubr.f32.mxu0 0.0
    %3452 = vmatmul.mubr.f32.gmra.mrb[0].mxu0 %v3203
    %v3453 = vpop.f32.mrb[0].mxu0
    %v3454 = vadd.f32 %v3345, %v3453
    %v3455 = vpop.f32.mrb[0].mxu0
    %3456 = vmatprep.mubr.f32.mxu0 0.0
    %3457 = vmatmul.mubr.f32.gmra.mrb[0].mxu0 %v3204
    %v3458 = vpop.f32.mrb[0].mxu0
    %v3459 = vadd.f32 %v3345, %v3458
    %v3460 = vpop.f32.mrb[0].mxu0
    %3461 = vmatprep.mubr.f32.mxu0 0.0
    %3462 = vmatmul.mubr.f32.gmra.mrb[0].mxu0 %v3205
    %v3463 = vpop.f32.mrb[0].mxu0
    %v3464 = vadd.f32 %v3345, %v3463
    %v3465 = vpop.f32.mrb[0].mxu0
    %3466 = vmatprep.mubr.f32.mxu0 0.0
    %3467 = vmatmul.mubr.f32.gmra.mrb[0].mxu0 %v3206
    %v3468 = vpop.f32.mrb[0].mxu0
    %v3469 = vadd.f32 %v3345, %v3468
    %v3470 = vpop.f32.mrb[0].mxu0
    %3471 = vmatprep.mubr.f32.mxu0 0.0
    %3472 = vmatmul.mubr.f32.gmra.mrb[0].mxu0 %v3207
    %v3473 = vpop.f32.mrb[0].mxu0
    %v3474 = vadd.f32 %v3345, %v3473
    %v3475 = vpop.f32.mrb[0].mxu0
    %3476 = vmatprep.mubr.f32.mxu0 0.0
    %3477 = vmatmul.mubr.f32.gmra.mrb[0].mxu0 %v3208
    %v3478 = vpop.f32.mrb[0].mxu0
    %v3479 = vadd.f32 %v3345, %v3478
    %v3480 = vpop.f32.mrb[0].mxu0
    %3481 = vmatprep.mubr.f32.mxu0 0.0
    %3482 = vmatmul.mubr.f32.gmra.mrb[0].mxu0 %v3209
    %v3483 = vpop.f32.mrb[0].mxu0
    %v3484 = vadd.f32 %v3345, %v3483
    %v3485 = vpop.f32.mrb[0].mxu0
    %3486 = vmatprep.mubr.f32.mxu0 0.0
    %3487 = vmatmul.mubr.f32.gmra.mrb[0].mxu0 %v3210
    %v3488 = vpop.f32.mrb[0].mxu0
    %v3489 = vadd.f32 %v3345, %v3488
    %v3490 = vpop.f32.mrb[0].mxu0
    %3491 = vmatprep.mubr.f32.mxu0 0.0
    %3492 = vmatmul.mubr.f32.gmra.mrb[0].mxu0 %v3211
    %v3493 = vpop.f32.mrb[0].mxu0
    %v3494 = vadd.f32 %v3345, %v3493
    %v3495 = vpop.f32.mrb[0].mxu0
    %3496 = vmatprep.mubr.f32.mxu0 0.0
    %3497 = vmatmul.mubr.f32.gmra.mrb[0].mxu0 %v3212
    %v3498 = vpop.f32.mrb[0].mxu0
    %v3499 = vadd.f32 %v3345, %v3498
    %v3500 = vpop.f32.mrb[0].mxu0
    %3501 = vmatprep.mubr.f32.mxu0 0.0
    %3502 = vmatmul.mubr.f32.gmra.mrb[0].mxu0 %v3213
    %v3503 = vpop.f32.mrb[0].mxu0
    %v3504 = vadd.f32 %v3345, %v3503
    %v3505 = vpop.f32.mrb[0].mxu0
    %3506 = vmatprep.mubr.f32.mxu0 0.0
    %3507 = vmatmul.mubr.f32.gmra.mrb[0].mxu0 %v3214
    %v3508 = vpop.f32.mrb[0].mxu0
    %v3509 = vadd.f32 %v3345, %v3508
    %v3510 = vpop.f32.mrb[0].mxu0
    %3511 = vmatprep.mubr.f32.mxu0 0.0
    %3512 = vmatmul.mubr.f32.gmra.mrb[0].mxu0 %v3215
    %v3513 = vpop.f32.mrb[0].mxu0
    %v3514 = vadd.f32 %v3345, %v3513
    %v3515 = vpop.f32.mrb[0].mxu0
    %3516 = vmatprep.mubr.f32.mxu0 0.0
    %3517 = vmatmul.mubr.f32.gmra.mrb[0].mxu0 %v3216
    %v3518 = vpop.f32.mrb[0].mxu0
    %v3519 = vadd.f32 %v3345, %v3518
    %v3520 = vpop.f32.mrb[0].mxu0
    %3521 = vmatprep.mubr.f32.mxu0 0.0
    %3522 = vmatmul.mubr.f32.gmra.mrb[0].mxu0 %v3217
    %v3523 = vpop.f32.mrb[0].mxu0
    %v3524 = vadd.f32 %v3345, %v3523
    %v3525 = vpop.f32.mrb[0].mxu0
    %3526 = vmatprep.mubr.f32.mxu0 0.0
    %3527 = vmatmul.mubr.f32.gmra.mrb[0].mxu0 %v3218
    %v3528 = vpop.f32.mrb[0].mxu0
    %v3529 = vadd.f32 %v3345, %v3528
    %v3530 = vpop.f32.mrb[0].mxu0
    %3531 = vmatprep.mubr.f32.mxu0 0.0
    %3532 = vmatmul.mubr.f32.gmra.mrb[0].mxu0 %v3219
    %v3533 = vpop.f32.mrb[0].mxu0
    %v3534 = vadd.f32 %v3345, %v3533
    %v3535 = vpop.f32.mrb[0].mxu0
    %3536 = vmatprep.mubr.f32.mxu0 0.0
    %3537 = vmatmul.mubr.f32.gmra.mrb[0].mxu0 %v3220
    %v3538 = vpop.f32.mrb[0].mxu0
    %v3539 = vadd.f32 %v3345, %v3538
    %v3540 = vpop.f32.mrb[0].mxu0
    %3541 = vmatprep.mubr.f32.mxu0 0.0
    %3542 = vmatmul.mubr.f32.gmra.mrb[0].mxu0 %v3221
    %v3543 = vpop.f32.mrb[0].mxu0
    %v3544 = vadd.f32 %v3345, %v3543
    %v3545 = vpop.f32.mrb[0].mxu0
    %3546 = vmatprep.mubr.f32.mxu0 0.0
    %3547 = vmatmul.mubr.f32.gmra.mrb[0].mxu0 %v3222
    %v3548 = vpop.f32.mrb[0].mxu0
    %v3549 = vadd.f32 %v3345, %v3548
    %v3550 = vpop.f32.mrb[0].mxu0
    %3551 = vmatprep.mubr.f32.mxu0 0.0
    %3552 = vmatmul.mubr.f32.gmra.mrb[0].mxu0 %v3223
    %v3553 = vpop.f32.mrb[0].mxu0
    %v3554 = vadd.f32 %v3345, %v3553
    %v3555 = vpop.f32.mrb[0].mxu0
    %3556 = vmatprep.mubr.f32.mxu0 0.0
    %3557 = vmatmul.mubr.f32.gmra.mrb[0].mxu0 %v3224
    %v3558 = vpop.f32.mrb[0].mxu0
    %v3559 = vadd.f32 %v3345, %v3558
    %v3560 = vpop.f32.mrb[0].mxu0
    %3561 = vmatprep.mubr.f32.mxu0 0.0
    %3562 = vmatmul.mubr.f32.gmra.mrb[0].mxu0 %v3225
    %v3563 = vpop.f32.mrb[0].mxu0
    %v3564 = vadd.f32 %v3345, %v3563
    %v3565 = vpop.f32.mrb[0].mxu0
    %3566 = vmatprep.mubr.f32.mxu0 0.0
    %3567 = vmatmul.mubr.f32.gmra.mrb[0].mxu0 %v3226
    %v3568 = vpop.f32.mrb[0].mxu0
    %v3569 = vadd.f32 %v3345, %v3568
    %v3570 = vpop.f32.mrb[0].mxu0
    %3571 = vmatprep.mubr.f32.mxu0 0.0
    %3572 = vmatmul.mubr.f32.gmra.mrb[0].mxu0 %v3227
    %v3573 = vpop.f32.mrb[0].mxu0
    %v3574 = vadd.f32 %v3345, %v3573
    %v3575 = vpop.f32.mrb[0].mxu0
    %3576 = vmatprep.mubr.f32.mxu0 0.0
    %3577 = vmatmul.mubr.f32.gmra.mrb[0].mxu0 %v3228
    %v3578 = vpop.f32.mrb[0].mxu0
    %v3579 = vadd.f32 %v3345, %v3578
    %v3580 = vpop.f32.mrb[0].mxu0
    %3581 = vmatprep.mubr.f32.mxu0 0.0
    %3582 = vmatmul.mubr.f32.gmra.mrb[0].mxu0 %v3229
    %v3583 = vpop.f32.mrb[0].mxu0
    %v3584 = vadd.f32 %v3345, %v3583
    %v3585 = vpop.f32.mrb[0].mxu0
    %3586 = vmatprep.mubr.f32.mxu0 0.0
    %3587 = vmatmul.mubr.f32.gmra.mrb[0].mxu0 %v3230
    %v3588 = vpop.f32.mrb[0].mxu0
    %v3589 = vadd.f32 %v3345, %v3588
    %v3590 = vpop.f32.mrb[0].mxu0
    %3591 = vmatprep.mubr.f32.mxu0 0.0
    %3592 = vmatmul.mubr.f32.gmra.mrb[0].mxu0 %v3231
    %v3593 = vpop.f32.mrb[0].mxu0
    %v3594 = vadd.f32 %v3345, %v3593
    %v3595 = vpop.f32.mrb[0].mxu0
    %3596 = vmatprep.mubr.f32.mxu0 0.0
    %3597 = vmatmul.mubr.f32.gmra.mrb[0].mxu0 %v3232
    %v3598 = vpop.f32.mrb[0].mxu0
    %v3599 = vadd.f32 %v3345, %v3598
    %v3600 = vpop.f32.mrb[0].mxu0
    %3601 = vmatprep.mubr.f32.mxu0 0.0
    %3602 = vmatmul.mubr.f32.gmra.mrb[0].mxu0 %v3233
    %v3603 = vpop.f32.mrb[0].mxu0
    %v3604 = vadd.f32 %v3345, %v3603
    %v3605 = vpop.f32.mrb[0].mxu0
    %3606 = vmatprep.mubr.f32.mxu0 0.0
    %3607 = vmatmul.mubr.f32.gmra.mrb[0].mxu0 %v3234
    %v3608 = vpop.f32.mrb[0].mxu0
    %v3609 = vadd.f32 %v3345, %v3608
    %v3610 = vpop.f32.mrb[0].mxu0
    %3611 = vmatprep.mubr.f32.mxu0 0.0
    %3612 = vmatmul.mubr.f32.gmra.mrb[0].mxu0 %v3235
    %v3613 = vpop.f32.mrb[0].mxu0
    %v3614 = vadd.f32 %v3345, %v3613
    %v3615 = vpop.f32.mrb[0].mxu0
    %3616 = vmatprep.mubr.f32.mxu0 0.0
    %3617 = vmatmul.mubr.f32.gmra.mrb[0].mxu0 %v3236
    %v3618 = vpop.f32.mrb[0].mxu0
    %v3619 = vadd.f32 %v3345, %v3618
    %v3620 = vpop.f32.mrb[0].mxu0
    %3621 = vmatprep.mubr.f32.mxu0 0.0
    %3622 = vmatmul.mubr.f32.gmra.mrb[0].mxu0 %v3237
    %v3623 = vpop.f32.mrb[0].mxu0
    %v3624 = vadd.f32 %v3345, %v3623
    %v3625 = vpop.f32.mrb[0].mxu0
    %3626 = vmatprep.mubr.f32.mxu0 0.0
    %3627 = vmatmul.mubr.f32.gmra.mrb[0].mxu0 %v3238
    %v3628 = vpop.f32.mrb[0].mxu0
    %v3629 = vadd.f32 %v3345, %v3628
    %v3630 = vpop.f32.mrb[0].mxu0
    %3631 = vmatprep.mubr.f32.mxu0 0.0
    %3632 = vmatmul.mubr.f32.gmra.mrb[0].mxu0 %v3239
    %v3633 = vpop.f32.mrb[0].mxu0
    %v3634 = vadd.f32 %v3345, %v3633
    %v3635 = vpop.f32.mrb[0].mxu0
    %3636 = vmatprep.mubr.f32.mxu0 0.0
    %3637 = vmatmul.mubr.f32.gmra.mrb[0].mxu0 %v3240
    %v3638 = vpop.f32.mrb[0].mxu0
    %v3639 = vadd.f32 %v3345, %v3638
    %v3640 = vpop.f32.mrb[0].mxu0
    %3641 = vmatprep.mubr.f32.mxu0 0.0
    %3642 = vmatmul.mubr.f32.gmra.mrb[0].mxu0 %v3241
    %v3643 = vpop.f32.mrb[0].mxu0
    %v3644 = vadd.f32 %v3345, %v3643
    %v3645 = vpop.f32.mrb[0].mxu0
    %3646 = vmatprep.mubr.f32.mxu0 0.0
    %3647 = vmatmul.mubr.f32.gmra.mrb[0].mxu0 %v3242
    %v3648 = vpop.f32.mrb[0].mxu0
    %v3649 = vadd.f32 %v3345, %v3648
    %v3650 = vpop.f32.mrb[0].mxu0
    %3651 = vmatprep.mubr.f32.mxu0 0.0
    %3652 = vmatmul.mubr.f32.gmra.mrb[0].mxu0 %v3243
    %v3653 = vpop.f32.mrb[0].mxu0
    %v3654 = vadd.f32 %v3345, %v3653
    %v3655 = vpop.f32.mrb[0].mxu0
    %3656 = vmatprep.mubr.f32.mxu0 0.0
    %3657 = vmatmul.mubr.f32.gmra.mrb[0].mxu0 %v3244
    %v3658 = vpop.f32.mrb[0].mxu0
    %v3659 = vadd.f32 %v3345, %v3658
    %v3660 = vpop.f32.mrb[0].mxu0
    %3661 = vmatprep.mubr.f32.mxu0 0.0
    %3662 = vmatmul.mubr.f32.gmra.mrb[0].mxu0 %v3245
    %v3663 = vpop.f32.mrb[0].mxu0
    %v3664 = vadd.f32 %v3345, %v3663
    %v3665 = vpop.f32.mrb[0].mxu0
    %3666 = vmatprep.mubr.f32.mxu0 0.0
    %3667 = vmatmul.mubr.f32.gmra.mrb[0].mxu0 %v3246
    %v3668 = vpop.f32.mrb[0].mxu0
    %v3669 = vadd.f32 %v3345, %v3668
    %v3670 = vpop.f32.mrb[0].mxu0
    %3671 = vmatprep.mubr.f32.mxu0 0.0
    %3672 = vmatmul.mubr.f32.gmra.mrb[0].mxu0 %v3247
    %v3673 = vpop.f32.mrb[0].mxu0
    %v3674 = vadd.f32 %v3345, %v3673
    %v3675 = vpop.f32.mrb[0].mxu0
    %3676 = vmatprep.mubr.f32.mxu0 0.0
    %3677 = vmatmul.mubr.f32.gmra.mrb[0].mxu0 %v3248
    %v3678 = vpop.f32.mrb[0].mxu0
    %v3679 = vadd.f32 %v3345, %v3678
    %v3680 = vpop.f32.mrb[0].mxu0
    %3681 = vmatprep.mubr.f32.mxu0 0.0
    %3682 = vmatmul.mubr.f32.gmra.mrb[0].mxu0 %v3249
    %v3683 = vpop.f32.mrb[0].mxu0
    %v3684 = vadd.f32 %v3345, %v3683
    %v3685 = vpop.f32.mrb[0].mxu0
    %3686 = vmatprep.mubr.f32.mxu0 0.0
    %3687 = vmatmul.mubr.f32.gmra.mrb[0].mxu0 %v3250
    %v3688 = vpop.f32.mrb[0].mxu0
    %v3689 = vadd.f32 %v3345, %v3688
    %v3690 = vpop.f32.mrb[0].mxu0
    %3691 = vmatprep.mubr.f32.mxu0 0.0
    %3692 = vmatmul.mubr.f32.gmra.mrb[0].mxu0 %v3251
    %v3693 = vpop.f32.mrb[0].mxu0
    %v3694 = vadd.f32 %v3345, %v3693
    %v3695 = vpop.f32.mrb[0].mxu0
    %3696 = vmatprep.mubr.f32.mxu0 0.0
    %3697 = vmatmul.mubr.f32.gmra.mrb[0].mxu0 %v3252
    %v3698 = vpop.f32.mrb[0].mxu0
    %v3699 = vadd.f32 %v3345, %v3698
    %v3700 = vpop.f32.mrb[0].mxu0
    %3701 = vmatprep.mubr.f32.mxu0 0.0
    %3702 = vmatmul.mubr.f32.gmra.mrb[0].mxu0 %v3253
    %v3703 = vpop.f32.mrb[0].mxu0
    %v3704 = vadd.f32 %v3345, %v3703
    %v3705 = vpop.f32.mrb[0].mxu0
    %3706 = vmatprep.mubr.f32.mxu0 0.0
    %3707 = vmatmul.mubr.f32.gmra.mrb[0].mxu0 %v3254
    %v3708 = vpop.f32.mrb[0].mxu0
    %v3709 = vadd.f32 %v3345, %v3708
    %v3710 = vpop.f32.mrb[0].mxu0
    %3711 = vmatprep.mubr.f32.mxu0 0.0
    %3712 = vmatmul.mubr.f32.gmra.mrb[0].mxu0 %v3255
    %v3713 = vpop.f32.mrb[0].mxu0
    %v3714 = vadd.f32 %v3345, %v3713
    %v3715 = vpop.f32.mrb[0].mxu0
    %3716 = vmatprep.mubr.f32.mxu0 0.0
    %3717 = vmatmul.mubr.f32.gmra.mrb[0].mxu0 %v3256
    %v3718 = vpop.f32.mrb[0].mxu0
    %v3719 = vadd.f32 %v3345, %v3718
    %v3720 = vpop.f32.mrb[0].mxu0
    %3721 = vmatprep.mubr.f32.mxu0 0.0
    %3722 = vmatmul.mubr.f32.gmra.mrb[0].mxu0 %v3257
    %v3723 = vpop.f32.mrb[0].mxu0
    %v3724 = vadd.f32 %v3345, %v3723
    %v3725 = vpop.f32.mrb[0].mxu0
    %3726 = vmatprep.mubr.f32.mxu0 0.0
    %3727 = vmatmul.mubr.f32.gmra.mrb[0].mxu0 %v3258
    %v3728 = vpop.f32.mrb[0].mxu0
    %v3729 = vadd.f32 %v3345, %v3728
    %v3730 = vpop.f32.mrb[0].mxu0
    %3731 = vmatprep.mubr.f32.mxu0 0.0
    %3732 = vmatmul.mubr.f32.gmra.mrb[0].mxu0 %v3259
    %v3733 = vpop.f32.mrb[0].mxu0
    %v3734 = vadd.f32 %v3345, %v3733
    %v3735 = vpop.f32.mrb[0].mxu0
    %3736 = vmatprep.mubr.f32.mxu0 0.0
    %3737 = vmatmul.mubr.f32.gmra.mrb[0].mxu0 %v3260
    %v3738 = vpop.f32.mrb[0].mxu0
    %v3739 = vadd.f32 %v3345, %v3738
    %v3740 = vpop.f32.mrb[0].mxu0
    %3741 = vmatprep.mubr.f32.mxu0 0.0
    %3742 = vmatmul.mubr.f32.gmra.mrb[0].mxu0 %v3261
    %v3743 = vpop.f32.mrb[0].mxu0
    %v3744 = vadd.f32 %v3345, %v3743
    %v3745 = vpop.f32.mrb[0].mxu0
    %3746 = vmatprep.mubr.f32.mxu0 0.0
    %3747 = vmatmul.mubr.f32.gmra.mrb[0].mxu0 %v3262
    %v3748 = vpop.f32.mrb[0].mxu0
    %v3749 = vadd.f32 %v3345, %v3748
    %v3750 = vpop.f32.mrb[0].mxu0
    %3751 = vmatprep.mubr.f32.mxu0 0.0
    %3752 = vmatmul.mubr.f32.gmra.mrb[0].mxu0 %v3263
    %v3753 = vpop.f32.mrb[0].mxu0
    %v3754 = vadd.f32 %v3345, %v3753
    %v3755 = vpop.f32.mrb[0].mxu0
    %3756 = vmatprep.mubr.f32.mxu0 0.0
    %3757 = vmatmul.mubr.f32.gmra.mrb[0].mxu0 %v3264
    %v3758 = vpop.f32.mrb[0].mxu0
    %v3759 = vadd.f32 %v3345, %v3758
    %v3760 = vpop.f32.mrb[0].mxu0
    %3761 = vmatprep.mubr.f32.mxu0 0.0
    %3762 = vmatmul.mubr.f32.gmra.mrb[0].mxu0 %v3265
    %v3763 = vpop.f32.mrb[0].mxu0
    %v3764 = vadd.f32 %v3345, %v3763
    %v3765 = vpop.f32.mrb[0].mxu0
    %3766 = vmatprep.mubr.f32.mxu0 0.0
    %3767 = vmatmul.mubr.f32.gmra.mrb[0].mxu0 %v3266
    %v3768 = vpop.f32.mrb[0].mxu0
    %v3769 = vadd.f32 %v3345, %v3768
    %v3770 = vpop.f32.mrb[0].mxu0
    %3771 = vmatprep.mubr.f32.mxu0 0.0
    %3772 = vmatmul.mubr.f32.gmra.mrb[0].mxu0 %v3267
    %v3773 = vpop.f32.mrb[0].mxu0
    %v3774 = vadd.f32 %v3345, %v3773
    %v3775 = vpop.f32.mrb[0].mxu0
    %3776 = vmatprep.mubr.f32.mxu0 0.0
    %3777 = vmatmul.mubr.f32.gmra.mrb[0].mxu0 %v3268
    %v3778 = vpop.f32.mrb[0].mxu0
    %v3779 = vadd.f32 %v3345, %v3778
    %v3780 = vpop.f32.mrb[0].mxu0
    %3781 = vmatprep.mubr.f32.mxu0 0.0
    %3782 = vmatmul.mubr.f32.gmra.mrb[0].mxu0 %v3269
    %v3783 = vpop.f32.mrb[0].mxu0
    %v3784 = vadd.f32 %v3345, %v3783
    %v3785 = vpop.f32.mrb[0].mxu0
    %3786 = vmatprep.mubr.f32.mxu0 0.0
    %3787 = vmatmul.mubr.f32.gmra.mrb[0].mxu0 %v3270
    %v3788 = vpop.f32.mrb[0].mxu0
    %v3789 = vadd.f32 %v3345, %v3788
    %v3790 = vpop.f32.mrb[0].mxu0
    %3791 = vmatprep.mubr.f32.mxu0 0.0
    %3792 = vmatmul.mubr.f32.gmra.mrb[0].mxu0 %v3271
    %v3793 = vpop.f32.mrb[0].mxu0
    %v3794 = vadd.f32 %v3345, %v3793
    %v3795 = vpop.f32.mrb[0].mxu0
    %3796 = vmatprep.mubr.f32.mxu0 0.0
    %3797 = vmatmul.mubr.f32.gmra.mrb[0].mxu0 %v3272
    %v3798 = vpop.f32.mrb[0].mxu0
    %v3799 = vadd.f32 %v3345, %v3798
    %v3800 = vpop.f32.mrb[0].mxu0
    %3801 = vmatprep.mubr.f32.mxu0 0.0
    %3802 = vmatmul.mubr.f32.gmra.mrb[0].mxu0 %v3273
    %v3803 = vpop.f32.mrb[0].mxu0
    %v3804 = vadd.f32 %v3345, %v3803
    %v3805 = vpop.f32.mrb[0].mxu0
    %3806 = vmatprep.mubr.f32.mxu0 0.0
    %3807 = vmatmul.mubr.f32.gmra.mrb[0].mxu0 %v3274
    %v3808 = vpop.f32.mrb[0].mxu0
    %v3809 = vadd.f32 %v3345, %v3808
    %v3810 = vpop.f32.mrb[0].mxu0
    %3811 = vmatprep.mubr.f32.mxu0 0.0
    %3812 = vmatmul.mubr.f32.gmra.mrb[0].mxu0 %v3275
    %v3813 = vpop.f32.mrb[0].mxu0
    %v3814 = vadd.f32 %v3345, %v3813
    %v3815 = vpop.f32.mrb[0].mxu0
    %3816 = vmatprep.mubr.f32.mxu0 0.0
    %3817 = vmatmul.mubr.f32.gmra.mrb[0].mxu0 %v3276
    %v3818 = vpop.f32.mrb[0].mxu0
    %v3819 = vadd.f32 %v3345, %v3818
    %v3820 = vpop.f32.mrb[0].mxu0
    %3821 = vmatprep.mubr.f32.mxu0 0.0
    %3822 = vmatmul.mubr.f32.gmra.mrb[0].mxu0 %v3277
    %v3823 = vpop.f32.mrb[0].mxu0
    %v3824 = vadd.f32 %v3345, %v3823
    %v3825 = vpop.f32.mrb[0].mxu0
    %3826 = vmatprep.mubr.f32.mxu0 0.0
    %3827 = vmatmul.mubr.f32.gmra.mrb[0].mxu0 %v3278
    %v3828 = vpop.f32.mrb[0].mxu0
    %v3829 = vadd.f32 %v3345, %v3828
    %v3830 = vpop.f32.mrb[0].mxu0
    %3831 = vmatprep.mubr.f32.mxu0 0.0
    %3832 = vmatmul.mubr.f32.gmra.mrb[0].mxu0 %v3279
    %v3833 = vpop.f32.mrb[0].mxu0
    %v3834 = vadd.f32 %v3345, %v3833
    %v3835 = vpop.f32.mrb[0].mxu0
    %3836 = vmatprep.mubr.f32.mxu0 0.0
    %3837 = vmatmul.mubr.f32.gmra.mrb[0].mxu0 %v3280
    %v3838 = vpop.f32.mrb[0].mxu0
    %v3839 = vadd.f32 %v3345, %v3838
    %v3840 = vpop.f32.mrb[0].mxu0
    %3841 = vmatprep.mubr.f32.mxu0 0.0
    %3842 = vmatmul.mubr.f32.gmra.mrb[0].mxu0 %v3281
    %v3843 = vpop.f32.mrb[0].mxu0
    %v3844 = vadd.f32 %v3345, %v3843
    %v3845 = vpop.f32.mrb[0].mxu0
    %3846 = vmatprep.mubr.f32.mxu0 0.0
    %3847 = vmatmul.mubr.f32.gmra.mrb[0].mxu0 %v3282
    %v3848 = vpop.f32.mrb[0].mxu0
    %v3849 = vadd.f32 %v3345, %v3848
    %v3850 = vpop.f32.mrb[0].mxu0
    %3851 = vmatprep.mubr.f32.mxu0 0.0
    %3852 = vmatmul.mubr.f32.gmra.mrb[0].mxu0 %v3283
    %v3853 = vpop.f32.mrb[0].mxu0
    %v3854 = vadd.f32 %v3345, %v3853
    %v3855 = vpop.f32.mrb[0].mxu0
    %3856 = vmatprep.mubr.f32.mxu0 0.0
    %3857 = vmatmul.mubr.f32.gmra.mrb[0].mxu0 %v3284
    %v3858 = vpop.f32.mrb[0].mxu0
    %v3859 = vadd.f32 %v3345, %v3858
    %v3860 = vpop.f32.mrb[0].mxu0
    %3861 = vmatprep.mubr.f32.mxu0 0.0
    %3862 = vmatmul.mubr.f32.gmra.mrb[0].mxu0 %v3285
    %v3863 = vpop.f32.mrb[0].mxu0
    %v3864 = vadd.f32 %v3345, %v3863
    %v3865 = vpop.f32.mrb[0].mxu0
    %3866 = vmatprep.mubr.f32.mxu0 0.0
    %3867 = vmatmul.mubr.f32.gmra.mrb[0].mxu0 %v3286
    %v3868 = vpop.f32.mrb[0].mxu0
    %v3869 = vadd.f32 %v3345, %v3868
    %v3870 = vpop.f32.mrb[0].mxu0
    %3871 = vmatprep.mubr.f32.mxu0 0.0
    %3872 = vmatmul.mubr.f32.gmra.mrb[0].mxu0 %v3287
    %v3873 = vpop.f32.mrb[0].mxu0
    %v3874 = vadd.f32 %v3345, %v3873
    %v3875 = vpop.f32.mrb[0].mxu0
    %3876 = vmatprep.mubr.f32.mxu0 0.0
    %3877 = vmatmul.mubr.f32.gmra.mrb[0].mxu0 %v3288
    %v3878 = vpop.f32.mrb[0].mxu0
    %v3879 = vadd.f32 %v3345, %v3878
    %v3880 = vpop.f32.mrb[0].mxu0
    %3881 = vmatprep.mubr.f32.mxu0 0.0
    %3882 = vmatmul.mubr.f32.gmra.mrb[0].mxu0 %v3289
    %v3883 = vpop.f32.mrb[0].mxu0
    %v3884 = vadd.f32 %v3345, %v3883
    %v3885 = vpop.f32.mrb[0].mxu0
    %3886 = vmatprep.mubr.f32.mxu0 0.0
    %3887 = vmatmul.mubr.f32.gmra.mrb[0].mxu0 %v3290
    %v3888 = vpop.f32.mrb[0].mxu0
    %v3889 = vadd.f32 %v3345, %v3888
    %v3890 = vpop.f32.mrb[0].mxu0
    %3891 = vmatprep.mubr.f32.mxu0 0.0
    %3892 = vmatmul.mubr.f32.gmra.mrb[0].mxu0 %v3291
    %v3893 = vpop.f32.mrb[0].mxu0
    %v3894 = vadd.f32 %v3345, %v3893
    %v3895 = vpop.f32.mrb[0].mxu0
    %3896 = vmatprep.mubr.f32.mxu0 0.0
    %3897 = vmatmul.mubr.f32.gmra.mrb[0].mxu0 %v3292
    %v3898 = vpop.f32.mrb[0].mxu0
    %v3899 = vadd.f32 %v3345, %v3898
    %v3900 = vpop.f32.mrb[0].mxu0
    %3901 = vmatprep.mubr.f32.mxu0 0.0
    %3902 = vmatmul.mubr.f32.gmra.mrb[0].mxu0 %v3293
    %v3903 = vpop.f32.mrb[0].mxu0
    %v3904 = vadd.f32 %v3345, %v3903
    %v3905 = vpop.f32.mrb[0].mxu0
    %3906 = vmatprep.mubr.f32.mxu0 0.0
    %3907 = vmatmul.mubr.f32.gmra.mrb[0].mxu0 %v3294
    %v3908 = vpop.f32.mrb[0].mxu0
    %v3909 = vadd.f32 %v3345, %v3908
    %v3910 = vpop.f32.mrb[0].mxu0
    %3911 = vmatprep.mubr.f32.mxu0 0.0
    %3912 = vmatmul.mubr.f32.gmra.mrb[0].mxu0 %v3295
    %v3913 = vpop.f32.mrb[0].mxu0
    %v3914 = vadd.f32 %v3345, %v3913
    %v3915 = vpop.f32.mrb[0].mxu0
    %3916 = vmatprep.mubr.f32.mxu0 0.0
    %3917 = vmatmul.mubr.f32.gmra.mrb[0].mxu0 %v3296
    %v3918 = vpop.f32.mrb[0].mxu0
    %v3919 = vadd.f32 %v3345, %v3918
    %v3920 = vpop.f32.mrb[0].mxu0
    %3921 = vmatprep.mubr.f32.mxu0 0.0
    %3922 = vmatmul.mubr.f32.gmra.mrb[0].mxu0 %v3297
    %v3923 = vpop.f32.mrb[0].mxu0
    %v3924 = vadd.f32 %v3345, %v3923
    %v3925 = vpop.f32.mrb[0].mxu0
    %3926 = vmatprep.mubr.f32.mxu0 0.0
    %3927 = vmatmul.mubr.f32.gmra.mrb[0].mxu0 %v3298
    %v3928 = vpop.f32.mrb[0].mxu0
    %v3929 = vadd.f32 %v3345, %v3928
    %v3930 = vpop.f32.mrb[0].mxu0
    %3931 = vmatprep.mubr.f32.mxu0 0.0
    %3932 = vmatmul.mubr.f32.gmra.mrb[0].mxu0 %v3299
    %v3933 = vpop.f32.mrb[0].mxu0
    %v3934 = vadd.f32 %v3345, %v3933
    %v3935 = vpop.f32.mrb[0].mxu0
    %3936 = vmatprep.mubr.f32.mxu0 0.0
    %3937 = vmatmul.mubr.f32.gmra.mrb[0].mxu0 %v3300
    %v3938 = vpop.f32.mrb[0].mxu0
    %v3939 = vadd.f32 %v3345, %v3938
    %v3940 = vpop.f32.mrb[0].mxu0
    %3941 = vmatprep.mubr.f32.mxu0 0.0
    %3942 = vmatmul.mubr.f32.gmra.mrb[0].mxu0 %v3301
    %v3943 = vpop.f32.mrb[0].mxu0
    %v3944 = vadd.f32 %v3345, %v3943
    %v3945 = vpop.f32.mrb[0].mxu0
    %3946 = vmatprep.mubr.f32.mxu0 0.0
    %3947 = vmatmul.mubr.f32.gmra.mrb[0].mxu0 %v3302
    %v3948 = vpop.f32.mrb[0].mxu0
    %v3949 = vadd.f32 %v3345, %v3948
    %v3950 = vpop.f32.mrb[0].mxu0
    %3951 = vmatprep.mubr.f32.mxu0 0.0
    %3952 = vmatmul.mubr.f32.gmra.mrb[0].mxu0 %v3303
    %v3953 = vpop.f32.mrb[0].mxu0
    %v3954 = vadd.f32 %v3345, %v3953
    %v3955 = vpop.f32.mrb[0].mxu0
    %3956 = vmatprep.mubr.f32.mxu0 0.0
    %3957 = vmatmul.mubr.f32.gmra.mrb[0].mxu0 %v3304
    %v3958 = vpop.f32.mrb[0].mxu0
    %v3959 = vadd.f32 %v3345, %v3958
    %v3960 = vpop.f32.mrb[0].mxu0
    %3961 = vmatprep.mubr.f32.mxu0 0.0
    %3962 = vmatmul.mubr.f32.gmra.mrb[0].mxu0 %v3305
    %v3963 = vpop.f32.mrb[0].mxu0
    %v3964 = vadd.f32 %v3345, %v3963
    %v3965 = vpop.f32.mrb[0].mxu0
    %3966 = vmatprep.mubr.f32.mxu0 0.0
    %3967 = vmatmul.mubr.f32.gmra.mrb[0].mxu0 %v3306
    %v3968 = vpop.f32.mrb[0].mxu0
    %v3969 = vadd.f32 %v3345, %v3968
    %v3970 = vpop.f32.mrb[0].mxu0
    %3971 = vmatprep.mubr.f32.mxu0 0.0
    %3972 = vmatmul.mubr.f32.gmra.mrb[0].mxu0 %v3307
    %v3973 = vpop.f32.mrb[0].mxu0
    %v3974 = vadd.f32 %v3345, %v3973
    %v3975 = vpop.f32.mrb[0].mxu0
    %3976 = vmatprep.mubr.f32.mxu0 0.0
    %3977 = vmatmul.mubr.f32.gmra.mrb[0].mxu0 %v3308
    %v3978 = vpop.f32.mrb[0].mxu0
    %v3979 = vadd.f32 %v3345, %v3978
    %v3980 = vpop.f32.mrb[0].mxu0
    %3981 = vmatprep.mubr.f32.mxu0 0.0
    %3982 = vmatmul.mubr.f32.gmra.mrb[0].mxu0 %v3309
    %v3983 = vpop.f32.mrb[0].mxu0
    %v3984 = vadd.f32 %v3345, %v3983
    %v3985 = vpop.f32.mrb[0].mxu0
    %3986 = vmatprep.mubr.f32.mxu0 0.0
    %3987 = vmatmul.mubr.f32.gmra.mrb[0].mxu0 %v3310
    %v3988 = vpop.f32.mrb[0].mxu0
    %v3989 = vadd.f32 %v3345, %v3988
    %v3990 = vpop.f32.mrb[0].mxu0
    %3991 = vmatprep.mubr.f32.mxu0 0.0
    %3992 = vmatmul.mubr.f32.gmra.mrb[0].mxu0 %v3311
    %v3993 = vpop.f32.mrb[0].mxu0
    %v3994 = vadd.f32 %v3345, %v3993
    %v3995 = vpop.f32.mrb[0].mxu0
    %3996 = vmatprep.mubr.f32.mxu0 0.0
    %3997 = vmatmul.mubr.f32.gmra.mrb[0].mxu0 %v3312
    %v3998 = vpop.f32.mrb[0].mxu0
    %v3999 = vadd.f32 %v3345, %v3998
    %v4000 = vpop.f32.mrb[0].mxu0
    %4001 = vmatprep.mubr.f32.mxu0 0.0
    %4002 = vmatmul.mubr.f32.gmra.mrb[0].mxu0 %v3313
    %v4003 = vpop.f32.mrb[0].mxu0
    %v4004 = vadd.f32 %v3345, %v4003
    %v4005 = vpop.f32.mrb[0].mxu0
    %4006 = vmatprep.mubr.f32.mxu0 0.0
    %4007 = vmatmul.mubr.f32.gmra.mrb[0].mxu0 %v3314
    %v4008 = vpop.f32.mrb[0].mxu0
    %v4009 = vadd.f32 %v3345, %v4008
    %v4010 = vpop.f32.mrb[0].mxu0
    %4011 = vmatprep.mubr.f32.mxu0 0.0
    %4012 = vmatmul.mubr.f32.gmra.mrb[0].mxu0 %v3315
    %v4013 = vpop.f32.mrb[0].mxu0
    %v4014 = vadd.f32 %v3345, %v4013
    %v4015 = vpop.f32.mrb[0].mxu0
    %4016 = vmatprep.mubr.f32.mxu0 0.0
    %4017 = vmatmul.mubr.f32.gmra.mrb[0].mxu0 %v3316
    %v4018 = vpop.f32.mrb[0].mxu0
    %v4019 = vadd.f32 %v3345, %v4018
    %v4020 = vpop.f32.mrb[0].mxu0
    %4021 = vmatprep.mubr.f32.mxu0 0.0
    %4022 = vmatmul.mubr.f32.gmra.mrb[0].mxu0 %v3317
    %v4023 = vpop.f32.mrb[0].mxu0
    %v4024 = vadd.f32 %v3345, %v4023
    %v4025 = vpop.f32.mrb[0].mxu0
    %4026 = vmatprep.mubr.f32.mxu0 0.0
    %4027 = vmatmul.mubr.f32.gmra.mrb[0].mxu0 %v3318
    %v4028 = vpop.f32.mrb[0].mxu0
    %v4029 = vadd.f32 %v3345, %v4028
    %v4030 = vpop.f32.mrb[0].mxu0
    %4031 = vmatprep.mubr.f32.mxu0 0.0
    %4032 = vmatmul.mubr.f32.gmra.mrb[0].mxu0 %v3319
    %v4033 = vpop.f32.mrb[0].mxu0
    %v4034 = vadd.f32 %v3345, %v4033
    %v4035 = vpop.f32.mrb[0].mxu0
    %4036 = vmatprep.mubr.f32.mxu0 0.0
    %4037 = vmatmul.mubr.f32.gmra.mrb[0].mxu0 %v3320
    %v4038 = vpop.f32.mrb[0].mxu0
    %v4039 = vadd.f32 %v3345, %v4038
    %v4040 = vpop.f32.mrb[0].mxu0
    %4041 = vmatprep.mubr.f32.mxu0 0.0
    %4042 = vmatmul.mubr.f32.gmra.mrb[0].mxu0 %v3321
    %v4043 = vpop.f32.mrb[0].mxu0
    %v4044 = vadd.f32 %v3345, %v4043
    %v4045 = vpop.f32.mrb[0].mxu0
    %4046 = vmatprep.mubr.f32.mxu0 0.0
    %4047 = vmatmul.mubr.f32.gmra.mrb[0].mxu0 %v3322
    %v4048 = vpop.f32.mrb[0].mxu0
    %v4049 = vadd.f32 %v3345, %v4048
    %v4050 = vpop.f32.mrb[0].mxu0
    %4051 = vdwg.mxu0
    %s4052 = scalar_lea.vmem %s4, 1
    %v4053 = vld [vmem:[%s4052] sm:$0x1]
    %s4054 = scalar_lea.vmem %s5, 1
    %v4055 = vld [vmem:[%s4054] sm:$0x1]
    %4056 = vadd.xlane.f32.xlu0 %v3414
    %v4057 = vpop.xlane.xlu0 %4056
    %4058 = vadd.xlane.f32.xlu0 %v3419
    %v4059 = vpop.xlane.xlu0 %4058
    %4060 = vadd.xlane.f32.xlu0 %v3424
    %v4061 = vpop.xlane.xlu0 %4060
    %4062 = vadd.xlane.f32.xlu0 %v3429
    %v4063 = vpop.xlane.xlu0 %4062
    %4064 = vadd.xlane.f32.xlu0 %v3434
    %v4065 = vpop.xlane.xlu0 %4064
    %4066 = vadd.xlane.f32.xlu0 %v3439
    %v4067 = vpop.xlane.xlu0 %4066
    %4068 = vadd.xlane.f32.xlu0 %v3444
    %v4069 = vpop.xlane.xlu0 %4068
    %4070 = vadd.xlane.f32.xlu0 %v3449
    %v4071 = vpop.xlane.xlu0 %4070
    %4072 = vadd.xlane.f32.xlu0 %v3454
    %v4073 = vpop.xlane.xlu0 %4072
    %4074 = vadd.xlane.f32.xlu0 %v3459
    %v4075 = vpop.xlane.xlu0 %4074
    %4076 = vadd.xlane.f32.xlu0 %v3464
    %v4077 = vpop.xlane.xlu0 %4076
    %4078 = vadd.xlane.f32.xlu0 %v3469
    %v4079 = vpop.xlane.xlu0 %4078
    %4080 = vadd.xlane.f32.xlu0 %v3474
    %v4081 = vpop.xlane.xlu0 %4080
    %4082 = vadd.xlane.f32.xlu0 %v3479
    %v4083 = vpop.xlane.xlu0 %4082
    %4084 = vadd.xlane.f32.xlu0 %v3484
    %v4085 = vpop.xlane.xlu0 %4084
    %4086 = vadd.xlane.f32.xlu0 %v3489
    %v4087 = vpop.xlane.xlu0 %4086
    %4088 = vadd.xlane.f32.xlu0 %v3494
    %v4089 = vpop.xlane.xlu0 %4088
    %4090 = vadd.xlane.f32.xlu0 %v3499
    %v4091 = vpop.xlane.xlu0 %4090
    %4092 = vadd.xlane.f32.xlu0 %v3504
    %v4093 = vpop.xlane.xlu0 %4092
    %4094 = vadd.xlane.f32.xlu0 %v3509
    %v4095 = vpop.xlane.xlu0 %4094
    %4096 = vadd.xlane.f32.xlu0 %v3514
    %v4097 = vpop.xlane.xlu0 %4096
    %4098 = vadd.xlane.f32.xlu0 %v3519
    %v4099 = vpop.xlane.xlu0 %4098
    %4100 = vadd.xlane.f32.xlu0 %v3524
    %v4101 = vpop.xlane.xlu0 %4100
    %4102 = vadd.xlane.f32.xlu0 %v3529
    %v4103 = vpop.xlane.xlu0 %4102
    %4104 = vadd.xlane.f32.xlu0 %v3534
    %v4105 = vpop.xlane.xlu0 %4104
    %4106 = vadd.xlane.f32.xlu0 %v3539
    %v4107 = vpop.xlane.xlu0 %4106
    %4108 = vadd.xlane.f32.xlu0 %v3544
    %v4109 = vpop.xlane.xlu0 %4108
    %4110 = vadd.xlane.f32.xlu0 %v3549
    %v4111 = vpop.xlane.xlu0 %4110
    %4112 = vadd.xlane.f32.xlu0 %v3554
    %v4113 = vpop.xlane.xlu0 %4112
    %4114 = vadd.xlane.f32.xlu0 %v3559
    %v4115 = vpop.xlane.xlu0 %4114
    %4116 = vadd.xlane.f32.xlu0 %v3564
    %v4117 = vpop.xlane.xlu0 %4116
    %4118 = vadd.xlane.f32.xlu0 %v3569
    %v4119 = vpop.xlane.xlu0 %4118
    %4120 = vadd.xlane.f32.xlu0 %v3574
    %v4121 = vpop.xlane.xlu0 %4120
    %4122 = vadd.xlane.f32.xlu0 %v3579
    %v4123 = vpop.xlane.xlu0 %4122
    %4124 = vadd.xlane.f32.xlu0 %v3584
    %v4125 = vpop.xlane.xlu0 %4124
    %4126 = vadd.xlane.f32.xlu0 %v3589
    %v4127 = vpop.xlane.xlu0 %4126
    %4128 = vadd.xlane.f32.xlu0 %v3594
    %v4129 = vpop.xlane.xlu0 %4128
    %4130 = vadd.xlane.f32.xlu0 %v3599
    %v4131 = vpop.xlane.xlu0 %4130
    %4132 = vadd.xlane.f32.xlu0 %v3604
    %v4133 = vpop.xlane.xlu0 %4132
    %4134 = vadd.xlane.f32.xlu0 %v3609
    %v4135 = vpop.xlane.xlu0 %4134
    %4136 = vadd.xlane.f32.xlu0 %v3614
    %v4137 = vpop.xlane.xlu0 %4136
    %4138 = vadd.xlane.f32.xlu0 %v3619
    %v4139 = vpop.xlane.xlu0 %4138
    %4140 = vadd.xlane.f32.xlu0 %v3624
    %v4141 = vpop.xlane.xlu0 %4140
    %4142 = vadd.xlane.f32.xlu0 %v3629
    %v4143 = vpop.xlane.xlu0 %4142
    %4144 = vadd.xlane.f32.xlu0 %v3634
    %v4145 = vpop.xlane.xlu0 %4144
    %4146 = vadd.xlane.f32.xlu0 %v3639
    %v4147 = vpop.xlane.xlu0 %4146
    %4148 = vadd.xlane.f32.xlu0 %v3644
    %v4149 = vpop.xlane.xlu0 %4148
    %4150 = vadd.xlane.f32.xlu0 %v3649
    %v4151 = vpop.xlane.xlu0 %4150
    %4152 = vadd.xlane.f32.xlu0 %v3654
    %v4153 = vpop.xlane.xlu0 %4152
    %4154 = vadd.xlane.f32.xlu0 %v3659
    %v4155 = vpop.xlane.xlu0 %4154
    %4156 = vadd.xlane.f32.xlu0 %v3664
    %v4157 = vpop.xlane.xlu0 %4156
    %4158 = vadd.xlane.f32.xlu0 %v3669
    %v4159 = vpop.xlane.xlu0 %4158
    %4160 = vadd.xlane.f32.xlu0 %v3674
    %v4161 = vpop.xlane.xlu0 %4160
    %4162 = vadd.xlane.f32.xlu0 %v3679
    %v4163 = vpop.xlane.xlu0 %4162
    %4164 = vadd.xlane.f32.xlu0 %v3684
    %v4165 = vpop.xlane.xlu0 %4164
    %4166 = vadd.xlane.f32.xlu0 %v3689
    %v4167 = vpop.xlane.xlu0 %4166
    %4168 = vadd.xlane.f32.xlu0 %v3694
    %v4169 = vpop.xlane.xlu0 %4168
    %4170 = vadd.xlane.f32.xlu0 %v3699
    %v4171 = vpop.xlane.xlu0 %4170
    %4172 = vadd.xlane.f32.xlu0 %v3704
    %v4173 = vpop.xlane.xlu0 %4172
    %4174 = vadd.xlane.f32.xlu0 %v3709
    %v4175 = vpop.xlane.xlu0 %4174
    %4176 = vadd.xlane.f32.xlu0 %v3714
    %v4177 = vpop.xlane.xlu0 %4176
    %4178 = vadd.xlane.f32.xlu0 %v3719
    %v4179 = vpop.xlane.xlu0 %4178
    %4180 = vadd.xlane.f32.xlu0 %v3724
    %v4181 = vpop.xlane.xlu0 %4180
    %4182 = vadd.xlane.f32.xlu0 %v3729
    %v4183 = vpop.xlane.xlu0 %4182
    %4184 = vadd.xlane.f32.xlu0 %v3734
    %v4185 = vpop.xlane.xlu0 %4184
    %4186 = vadd.xlane.f32.xlu0 %v3739
    %v4187 = vpop.xlane.xlu0 %4186
    %4188 = vadd.xlane.f32.xlu0 %v3744
    %v4189 = vpop.xlane.xlu0 %4188
    %4190 = vadd.xlane.f32.xlu0 %v3749
    %v4191 = vpop.xlane.xlu0 %4190
    %4192 = vadd.xlane.f32.xlu0 %v3754
    %v4193 = vpop.xlane.xlu0 %4192
    %4194 = vadd.xlane.f32.xlu0 %v3759
    %v4195 = vpop.xlane.xlu0 %4194
    %4196 = vadd.xlane.f32.xlu0 %v3764
    %v4197 = vpop.xlane.xlu0 %4196
    %4198 = vadd.xlane.f32.xlu0 %v3769
    %v4199 = vpop.xlane.xlu0 %4198
    %4200 = vadd.xlane.f32.xlu0 %v3774
    %v4201 = vpop.xlane.xlu0 %4200
    %4202 = vadd.xlane.f32.xlu0 %v3779
    %v4203 = vpop.xlane.xlu0 %4202
    %4204 = vadd.xlane.f32.xlu0 %v3784
    %v4205 = vpop.xlane.xlu0 %4204
    %4206 = vadd.xlane.f32.xlu0 %v3789
    %v4207 = vpop.xlane.xlu0 %4206
    %4208 = vadd.xlane.f32.xlu0 %v3794
    %v4209 = vpop.xlane.xlu0 %4208
    %4210 = vadd.xlane.f32.xlu0 %v3799
    %v4211 = vpop.xlane.xlu0 %4210
    %4212 = vadd.xlane.f32.xlu0 %v3804
    %v4213 = vpop.xlane.xlu0 %4212
    %4214 = vadd.xlane.f32.xlu0 %v3809
    %v4215 = vpop.xlane.xlu0 %4214
    %4216 = vadd.xlane.f32.xlu0 %v3814
    %v4217 = vpop.xlane.xlu0 %4216
    %4218 = vadd.xlane.f32.xlu0 %v3819
    %v4219 = vpop.xlane.xlu0 %4218
    %4220 = vadd.xlane.f32.xlu0 %v3824
    %v4221 = vpop.xlane.xlu0 %4220
    %4222 = vadd.xlane.f32.xlu0 %v3829
    %v4223 = vpop.xlane.xlu0 %4222
    %4224 = vadd.xlane.f32.xlu0 %v3834
    %v4225 = vpop.xlane.xlu0 %4224
    %4226 = vadd.xlane.f32.xlu0 %v3839
    %v4227 = vpop.xlane.xlu0 %4226
    %4228 = vadd.xlane.f32.xlu0 %v3844
    %v4229 = vpop.xlane.xlu0 %4228
    %4230 = vadd.xlane.f32.xlu0 %v3849
    %v4231 = vpop.xlane.xlu0 %4230
    %4232 = vadd.xlane.f32.xlu0 %v3854
    %v4233 = vpop.xlane.xlu0 %4232
    %4234 = vadd.xlane.f32.xlu0 %v3859
    %v4235 = vpop.xlane.xlu0 %4234
    %4236 = vadd.xlane.f32.xlu0 %v3864
    %v4237 = vpop.xlane.xlu0 %4236
    %4238 = vadd.xlane.f32.xlu0 %v3869
    %v4239 = vpop.xlane.xlu0 %4238
    %4240 = vadd.xlane.f32.xlu0 %v3874
    %v4241 = vpop.xlane.xlu0 %4240
    %4242 = vadd.xlane.f32.xlu0 %v3879
    %v4243 = vpop.xlane.xlu0 %4242
    %4244 = vadd.xlane.f32.xlu0 %v3884
    %v4245 = vpop.xlane.xlu0 %4244
    %4246 = vadd.xlane.f32.xlu0 %v3889
    %v4247 = vpop.xlane.xlu0 %4246
    %4248 = vadd.xlane.f32.xlu0 %v3894
    %v4249 = vpop.xlane.xlu0 %4248
    %4250 = vadd.xlane.f32.xlu0 %v3899
    %v4251 = vpop.xlane.xlu0 %4250
    %4252 = vadd.xlane.f32.xlu0 %v3904
    %v4253 = vpop.xlane.xlu0 %4252
    %4254 = vadd.xlane.f32.xlu0 %v3909
    %v4255 = vpop.xlane.xlu0 %4254
    %4256 = vadd.xlane.f32.xlu0 %v3914
    %v4257 = vpop.xlane.xlu0 %4256
    %4258 = vadd.xlane.f32.xlu0 %v3919
    %v4259 = vpop.xlane.xlu0 %4258
    %4260 = vadd.xlane.f32.xlu0 %v3924
    %v4261 = vpop.xlane.xlu0 %4260
    %4262 = vadd.xlane.f32.xlu0 %v3929
    %v4263 = vpop.xlane.xlu0 %4262
    %4264 = vadd.xlane.f32.xlu0 %v3934
    %v4265 = vpop.xlane.xlu0 %4264
    %4266 = vadd.xlane.f32.xlu0 %v3939
    %v4267 = vpop.xlane.xlu0 %4266
    %4268 = vadd.xlane.f32.xlu0 %v3944
    %v4269 = vpop.xlane.xlu0 %4268
    %4270 = vadd.xlane.f32.xlu0 %v3949
    %v4271 = vpop.xlane.xlu0 %4270
    %4272 = vadd.xlane.f32.xlu0 %v3954
    %v4273 = vpop.xlane.xlu0 %4272
    %4274 = vadd.xlane.f32.xlu0 %v3959
    %v4275 = vpop.xlane.xlu0 %4274
    %4276 = vadd.xlane.f32.xlu0 %v3964
    %v4277 = vpop.xlane.xlu0 %4276
    %4278 = vadd.xlane.f32.xlu0 %v3969
    %v4279 = vpop.xlane.xlu0 %4278
    %4280 = vadd.xlane.f32.xlu0 %v3974
    %v4281 = vpop.xlane.xlu0 %4280
    %4282 = vadd.xlane.f32.xlu0 %v3979
    %v4283 = vpop.xlane.xlu0 %4282
    %4284 = vadd.xlane.f32.xlu0 %v3984
    %v4285 = vpop.xlane.xlu0 %4284
    %4286 = vadd.xlane.f32.xlu0 %v3989
    %v4287 = vpop.xlane.xlu0 %4286
    %4288 = vadd.xlane.f32.xlu0 %v3994
    %v4289 = vpop.xlane.xlu0 %4288
    %4290 = vadd.xlane.f32.xlu0 %v3999
    %v4291 = vpop.xlane.xlu0 %4290
    %4292 = vadd.xlane.f32.xlu0 %v4004
    %v4293 = vpop.xlane.xlu0 %4292
    %4294 = vadd.xlane.f32.xlu0 %v4009
    %v4295 = vpop.xlane.xlu0 %4294
    %4296 = vadd.xlane.f32.xlu0 %v4014
    %v4297 = vpop.xlane.xlu0 %4296
    %4298 = vadd.xlane.f32.xlu0 %v4019
    %v4299 = vpop.xlane.xlu0 %4298
    %4300 = vadd.xlane.f32.xlu0 %v4024
    %v4301 = vpop.xlane.xlu0 %4300
    %4302 = vadd.xlane.f32.xlu0 %v4029
    %v4303 = vpop.xlane.xlu0 %4302
    %4304 = vadd.xlane.f32.xlu0 %v4034
    %v4305 = vpop.xlane.xlu0 %4304
    %4306 = vadd.xlane.f32.xlu0 %v4039
    %v4307 = vpop.xlane.xlu0 %4306
    %4308 = vadd.xlane.f32.xlu0 %v4044
    %v4309 = vpop.xlane.xlu0 %4308
    %4310 = vadd.xlane.f32.xlu0 %v4049
    %v4311 = vpop.xlane.xlu0 %4310
    %v4312 = vmul.f32 %v4057, 0.03125
    %v4313 = vmul.f32 %v4059, 0.03125
    %v4314 = vmul.f32 %v4061, 0.03125
    %v4315 = vmul.f32 %v4063, 0.03125
    %v4316 = vmul.f32 %v4065, 0.03125
    %v4317 = vmul.f32 %v4067, 0.03125
    %v4318 = vmul.f32 %v4069, 0.03125
    %v4319 = vmul.f32 %v4071, 0.03125
    %v4320 = vmul.f32 %v4073, 0.03125
    %v4321 = vmul.f32 %v4075, 0.03125
    %v4322 = vmul.f32 %v4077, 0.03125
    %v4323 = vmul.f32 %v4079, 0.03125
    %v4324 = vmul.f32 %v4081, 0.03125
    %v4325 = vmul.f32 %v4083, 0.03125
    %v4326 = vmul.f32 %v4085, 0.03125
    %v4327 = vmul.f32 %v4087, 0.03125
    %v4328 = vmul.f32 %v4089, 0.03125
    %v4329 = vmul.f32 %v4091, 0.03125
    %v4330 = vmul.f32 %v4093, 0.03125
    %v4331 = vmul.f32 %v4095, 0.03125
    %v4332 = vmul.f32 %v4097, 0.03125
    %v4333 = vmul.f32 %v4099, 0.03125
    %v4334 = vmul.f32 %v4101, 0.03125
    %v4335 = vmul.f32 %v4103, 0.03125
    %v4336 = vmul.f32 %v4105, 0.03125
    %v4337 = vmul.f32 %v4107, 0.03125
    %v4338 = vmul.f32 %v4109, 0.03125
    %v4339 = vmul.f32 %v4111, 0.03125
    %v4340 = vmul.f32 %v4113, 0.03125
    %v4341 = vmul.f32 %v4115, 0.03125
    %v4342 = vmul.f32 %v4117, 0.03125
    %v4343 = vmul.f32 %v4119, 0.03125
    %v4344 = vmul.f32 %v4121, 0.03125
    %v4345 = vmul.f32 %v4123, 0.03125
    %v4346 = vmul.f32 %v4125, 0.03125
    %v4347 = vmul.f32 %v4127, 0.03125
    %v4348 = vmul.f32 %v4129, 0.03125
    %v4349 = vmul.f32 %v4131, 0.03125
    %v4350 = vmul.f32 %v4133, 0.03125
    %v4351 = vmul.f32 %v4135, 0.03125
    %v4352 = vmul.f32 %v4137, 0.03125
    %v4353 = vmul.f32 %v4139, 0.03125
    %v4354 = vmul.f32 %v4141, 0.03125
    %v4355 = vmul.f32 %v4143, 0.03125
    %v4356 = vmul.f32 %v4145, 0.03125
    %v4357 = vmul.f32 %v4147, 0.03125
    %v4358 = vmul.f32 %v4149, 0.03125
    %v4359 = vmul.f32 %v4151, 0.03125
    %v4360 = vmul.f32 %v4153, 0.03125
    %v4361 = vmul.f32 %v4155, 0.03125
    %v4362 = vmul.f32 %v4157, 0.03125
    %v4363 = vmul.f32 %v4159, 0.03125
    %v4364 = vmul.f32 %v4161, 0.03125
    %v4365 = vmul.f32 %v4163, 0.03125
    %v4366 = vmul.f32 %v4165, 0.03125
    %v4367 = vmul.f32 %v4167, 0.03125
    %v4368 = vmul.f32 %v4169, 0.03125
    %v4369 = vmul.f32 %v4171, 0.03125
    %v4370 = vmul.f32 %v4173, 0.03125
    %v4371 = vmul.f32 %v4175, 0.03125
    %v4372 = vmul.f32 %v4177, 0.03125
    %v4373 = vmul.f32 %v4179, 0.03125
    %v4374 = vmul.f32 %v4181, 0.03125
    %v4375 = vmul.f32 %v4183, 0.03125
    %v4376 = vmul.f32 %v4185, 0.03125
    %v4377 = vmul.f32 %v4187, 0.03125
    %v4378 = vmul.f32 %v4189, 0.03125
    %v4379 = vmul.f32 %v4191, 0.03125
    %v4380 = vmul.f32 %v4193, 0.03125
    %v4381 = vmul.f32 %v4195, 0.03125
    %v4382 = vmul.f32 %v4197, 0.03125
    %v4383 = vmul.f32 %v4199, 0.03125
    %v4384 = vmul.f32 %v4201, 0.03125
    %v4385 = vmul.f32 %v4203, 0.03125
    %v4386 = vmul.f32 %v4205, 0.03125
    %v4387 = vmul.f32 %v4207, 0.03125
    %v4388 = vmul.f32 %v4209, 0.03125
    %v4389 = vmul.f32 %v4211, 0.03125
    %v4390 = vmul.f32 %v4213, 0.03125
    %v4391 = vmul.f32 %v4215, 0.03125
    %v4392 = vmul.f32 %v4217, 0.03125
    %v4393 = vmul.f32 %v4219, 0.03125
    %v4394 = vmul.f32 %v4221, 0.03125
    %v4395 = vmul.f32 %v4223, 0.03125
    %v4396 = vmul.f32 %v4225, 0.03125
    %v4397 = vmul.f32 %v4227, 0.03125
    %v4398 = vmul.f32 %v4229, 0.03125
    %v4399 = vmul.f32 %v4231, 0.03125
    %v4400 = vmul.f32 %v4233, 0.03125
    %v4401 = vmul.f32 %v4235, 0.03125
    %v4402 = vmul.f32 %v4237, 0.03125
    %v4403 = vmul.f32 %v4239, 0.03125
    %v4404 = vmul.f32 %v4241, 0.03125
    %v4405 = vmul.f32 %v4243, 0.03125
    %v4406 = vmul.f32 %v4245, 0.03125
    %v4407 = vmul.f32 %v4247, 0.03125
    %v4408 = vmul.f32 %v4249, 0.03125
    %v4409 = vmul.f32 %v4251, 0.03125
    %v4410 = vmul.f32 %v4253, 0.03125
    %v4411 = vmul.f32 %v4255, 0.03125
    %v4412 = vmul.f32 %v4257, 0.03125
    %v4413 = vmul.f32 %v4259, 0.03125
    %v4414 = vmul.f32 %v4261, 0.03125
    %v4415 = vmul.f32 %v4263, 0.03125
    %v4416 = vmul.f32 %v4265, 0.03125
    %v4417 = vmul.f32 %v4267, 0.03125
    %v4418 = vmul.f32 %v4269, 0.03125
    %v4419 = vmul.f32 %v4271, 0.03125
    %v4420 = vmul.f32 %v4273, 0.03125
    %v4421 = vmul.f32 %v4275, 0.03125
    %v4422 = vmul.f32 %v4277, 0.03125
    %v4423 = vmul.f32 %v4279, 0.03125
    %v4424 = vmul.f32 %v4281, 0.03125
    %v4425 = vmul.f32 %v4283, 0.03125
    %v4426 = vmul.f32 %v4285, 0.03125
    %v4427 = vmul.f32 %v4287, 0.03125
    %v4428 = vmul.f32 %v4289, 0.03125
    %v4429 = vmul.f32 %v4291, 0.03125
    %v4430 = vmul.f32 %v4293, 0.03125
    %v4431 = vmul.f32 %v4295, 0.03125
    %v4432 = vmul.f32 %v4297, 0.03125
    %v4433 = vmul.f32 %v4299, 0.03125
    %v4434 = vmul.f32 %v4301, 0.03125
    %v4435 = vmul.f32 %v4303, 0.03125
    %v4436 = vmul.f32 %v4305, 0.03125
    %v4437 = vmul.f32 %v4307, 0.03125
    %v4438 = vmul.f32 %v4309, 0.03125
    %v4439 = vmul.f32 %v4311, 0.03125
    %v4440 = vmul.f32 %v3414, %v3414
    %v4441 = vmul.f32 %v3419, %v3419
    %v4442 = vmul.f32 %v3424, %v3424
    %v4443 = vmul.f32 %v3429, %v3429
    %v4444 = vmul.f32 %v3434, %v3434
    %v4445 = vmul.f32 %v3439, %v3439
    %v4446 = vmul.f32 %v3444, %v3444
    %v4447 = vmul.f32 %v3449, %v3449
    %v4448 = vmul.f32 %v3454, %v3454
    %v4449 = vmul.f32 %v3459, %v3459
    %v4450 = vmul.f32 %v3464, %v3464
    %v4451 = vmul.f32 %v3469, %v3469
    %v4452 = vmul.f32 %v3474, %v3474
    %v4453 = vmul.f32 %v3479, %v3479
    %v4454 = vmul.f32 %v3484, %v3484
    %v4455 = vmul.f32 %v3489, %v3489
    %v4456 = vmul.f32 %v3494, %v3494
    %v4457 = vmul.f32 %v3499, %v3499
    %v4458 = vmul.f32 %v3504, %v3504
    %v4459 = vmul.f32 %v3509, %v3509
    %v4460 = vmul.f32 %v3514, %v3514
    %v4461 = vmul.f32 %v3519, %v3519
    %v4462 = vmul.f32 %v3524, %v3524
    %v4463 = vmul.f32 %v3529, %v3529
    %v4464 = vmul.f32 %v3534, %v3534
    %v4465 = vmul.f32 %v3539, %v3539
    %v4466 = vmul.f32 %v3544, %v3544
    %v4467 = vmul.f32 %v3549, %v3549
    %v4468 = vmul.f32 %v3554, %v3554
    %v4469 = vmul.f32 %v3559, %v3559
    %v4470 = vmul.f32 %v3564, %v3564
    %v4471 = vmul.f32 %v3569, %v3569
    %v4472 = vmul.f32 %v3574, %v3574
    %v4473 = vmul.f32 %v3579, %v3579
    %v4474 = vmul.f32 %v3584, %v3584
    %v4475 = vmul.f32 %v3589, %v3589
    %v4476 = vmul.f32 %v3594, %v3594
    %v4477 = vmul.f32 %v3599, %v3599
    %v4478 = vmul.f32 %v3604, %v3604
    %v4479 = vmul.f32 %v3609, %v3609
    %v4480 = vmul.f32 %v3614, %v3614
    %v4481 = vmul.f32 %v3619, %v3619
    %v4482 = vmul.f32 %v3624, %v3624
    %v4483 = vmul.f32 %v3629, %v3629
    %v4484 = vmul.f32 %v3634, %v3634
    %v4485 = vmul.f32 %v3639, %v3639
    %v4486 = vmul.f32 %v3644, %v3644
    %v4487 = vmul.f32 %v3649, %v3649
    %v4488 = vmul.f32 %v3654, %v3654
    %v4489 = vmul.f32 %v3659, %v3659
    %v4490 = vmul.f32 %v3664, %v3664
    %v4491 = vmul.f32 %v3669, %v3669
    %v4492 = vmul.f32 %v3674, %v3674
    %v4493 = vmul.f32 %v3679, %v3679
    %v4494 = vmul.f32 %v3684, %v3684
    %v4495 = vmul.f32 %v3689, %v3689
    %v4496 = vmul.f32 %v3694, %v3694
    %v4497 = vmul.f32 %v3699, %v3699
    %v4498 = vmul.f32 %v3704, %v3704
    %v4499 = vmul.f32 %v3709, %v3709
    %v4500 = vmul.f32 %v3714, %v3714
    %v4501 = vmul.f32 %v3719, %v3719
    %v4502 = vmul.f32 %v3724, %v3724
    %v4503 = vmul.f32 %v3729, %v3729
    %v4504 = vmul.f32 %v3734, %v3734
    %v4505 = vmul.f32 %v3739, %v3739
    %v4506 = vmul.f32 %v3744, %v3744
    %v4507 = vmul.f32 %v3749, %v3749
    %v4508 = vmul.f32 %v3754, %v3754
    %v4509 = vmul.f32 %v3759, %v3759
    %v4510 = vmul.f32 %v3764, %v3764
    %v4511 = vmul.f32 %v3769, %v3769
    %v4512 = vmul.f32 %v3774, %v3774
    %v4513 = vmul.f32 %v3779, %v3779
    %v4514 = vmul.f32 %v3784, %v3784
    %v4515 = vmul.f32 %v3789, %v3789
    %v4516 = vmul.f32 %v3794, %v3794
    %v4517 = vmul.f32 %v3799, %v3799
    %v4518 = vmul.f32 %v3804, %v3804
    %v4519 = vmul.f32 %v3809, %v3809
    %v4520 = vmul.f32 %v3814, %v3814
    %v4521 = vmul.f32 %v3819, %v3819
    %v4522 = vmul.f32 %v3824, %v3824
    %v4523 = vmul.f32 %v3829, %v3829
    %v4524 = vmul.f32 %v3834, %v3834
    %v4525 = vmul.f32 %v3839, %v3839
    %v4526 = vmul.f32 %v3844, %v3844
    %v4527 = vmul.f32 %v3849, %v3849
    %v4528 = vmul.f32 %v3854, %v3854
    %v4529 = vmul.f32 %v3859, %v3859
    %v4530 = vmul.f32 %v3864, %v3864
    %v4531 = vmul.f32 %v3869, %v3869
    %v4532 = vmul.f32 %v3874, %v3874
    %v4533 = vmul.f32 %v3879, %v3879
    %v4534 = vmul.f32 %v3884, %v3884
    %v4535 = vmul.f32 %v3889, %v3889
    %v4536 = vmul.f32 %v3894, %v3894
    %v4537 = vmul.f32 %v3899, %v3899
    %v4538 = vmul.f32 %v3904, %v3904
    %v4539 = vmul.f32 %v3909, %v3909
    %v4540 = vmul.f32 %v3914, %v3914
    %v4541 = vmul.f32 %v3919, %v3919
    %v4542 = vmul.f32 %v3924, %v3924
    %v4543 = vmul.f32 %v3929, %v3929
    %v4544 = vmul.f32 %v3934, %v3934
    %v4545 = vmul.f32 %v3939, %v3939
    %v4546 = vmul.f32 %v3944, %v3944
    %v4547 = vmul.f32 %v3949, %v3949
    %v4548 = vmul.f32 %v3954, %v3954
    %v4549 = vmul.f32 %v3959, %v3959
    %v4550 = vmul.f32 %v3964, %v3964
    %v4551 = vmul.f32 %v3969, %v3969
    %v4552 = vmul.f32 %v3974, %v3974
    %v4553 = vmul.f32 %v3979, %v3979
    %v4554 = vmul.f32 %v3984, %v3984
    %v4555 = vmul.f32 %v3989, %v3989
    %v4556 = vmul.f32 %v3994, %v3994
    %v4557 = vmul.f32 %v3999, %v3999
    %v4558 = vmul.f32 %v4004, %v4004
    %v4559 = vmul.f32 %v4009, %v4009
    %v4560 = vmul.f32 %v4014, %v4014
    %v4561 = vmul.f32 %v4019, %v4019
    %v4562 = vmul.f32 %v4024, %v4024
    %v4563 = vmul.f32 %v4029, %v4029
    %v4564 = vmul.f32 %v4034, %v4034
    %v4565 = vmul.f32 %v4039, %v4039
    %v4566 = vmul.f32 %v4044, %v4044
    %v4567 = vmul.f32 %v4049, %v4049
    %4568 = vadd.xlane.f32.xlu0 %v4440
    %v4569 = vpop.xlane.xlu0 %4568
    %4570 = vadd.xlane.f32.xlu0 %v4441
    %v4571 = vpop.xlane.xlu0 %4570
    %4572 = vadd.xlane.f32.xlu0 %v4442
    %v4573 = vpop.xlane.xlu0 %4572
    %4574 = vadd.xlane.f32.xlu0 %v4443
    %v4575 = vpop.xlane.xlu0 %4574
    %4576 = vadd.xlane.f32.xlu0 %v4444
    %v4577 = vpop.xlane.xlu0 %4576
    %4578 = vadd.xlane.f32.xlu0 %v4445
    %v4579 = vpop.xlane.xlu0 %4578
    %4580 = vadd.xlane.f32.xlu0 %v4446
    %v4581 = vpop.xlane.xlu0 %4580
    %4582 = vadd.xlane.f32.xlu0 %v4447
    %v4583 = vpop.xlane.xlu0 %4582
    %4584 = vadd.xlane.f32.xlu0 %v4448
    %v4585 = vpop.xlane.xlu0 %4584
    %4586 = vadd.xlane.f32.xlu0 %v4449
    %v4587 = vpop.xlane.xlu0 %4586
    %4588 = vadd.xlane.f32.xlu0 %v4450
    %v4589 = vpop.xlane.xlu0 %4588
    %4590 = vadd.xlane.f32.xlu0 %v4451
    %v4591 = vpop.xlane.xlu0 %4590
    %4592 = vadd.xlane.f32.xlu0 %v4452
    %v4593 = vpop.xlane.xlu0 %4592
    %4594 = vadd.xlane.f32.xlu0 %v4453
    %v4595 = vpop.xlane.xlu0 %4594
    %4596 = vadd.xlane.f32.xlu0 %v4454
    %v4597 = vpop.xlane.xlu0 %4596
    %4598 = vadd.xlane.f32.xlu0 %v4455
    %v4599 = vpop.xlane.xlu0 %4598
    %4600 = vadd.xlane.f32.xlu0 %v4456
    %v4601 = vpop.xlane.xlu0 %4600
    %4602 = vadd.xlane.f32.xlu0 %v4457
    %v4603 = vpop.xlane.xlu0 %4602
    %4604 = vadd.xlane.f32.xlu0 %v4458
    %v4605 = vpop.xlane.xlu0 %4604
    %4606 = vadd.xlane.f32.xlu0 %v4459
    %v4607 = vpop.xlane.xlu0 %4606
    %4608 = vadd.xlane.f32.xlu0 %v4460
    %v4609 = vpop.xlane.xlu0 %4608
    %4610 = vadd.xlane.f32.xlu0 %v4461
    %v4611 = vpop.xlane.xlu0 %4610
    %4612 = vadd.xlane.f32.xlu0 %v4462
    %v4613 = vpop.xlane.xlu0 %4612
    %4614 = vadd.xlane.f32.xlu0 %v4463
    %v4615 = vpop.xlane.xlu0 %4614
    %4616 = vadd.xlane.f32.xlu0 %v4464
    %v4617 = vpop.xlane.xlu0 %4616
    %4618 = vadd.xlane.f32.xlu0 %v4465
    %v4619 = vpop.xlane.xlu0 %4618
    %4620 = vadd.xlane.f32.xlu0 %v4466
    %v4621 = vpop.xlane.xlu0 %4620
    %4622 = vadd.xlane.f32.xlu0 %v4467
    %v4623 = vpop.xlane.xlu0 %4622
    %4624 = vadd.xlane.f32.xlu0 %v4468
    %v4625 = vpop.xlane.xlu0 %4624
    %4626 = vadd.xlane.f32.xlu0 %v4469
    %v4627 = vpop.xlane.xlu0 %4626
    %4628 = vadd.xlane.f32.xlu0 %v4470
    %v4629 = vpop.xlane.xlu0 %4628
    %4630 = vadd.xlane.f32.xlu0 %v4471
    %v4631 = vpop.xlane.xlu0 %4630
    %4632 = vadd.xlane.f32.xlu0 %v4472
    %v4633 = vpop.xlane.xlu0 %4632
    %4634 = vadd.xlane.f32.xlu0 %v4473
    %v4635 = vpop.xlane.xlu0 %4634
    %4636 = vadd.xlane.f32.xlu0 %v4474
    %v4637 = vpop.xlane.xlu0 %4636
    %4638 = vadd.xlane.f32.xlu0 %v4475
    %v4639 = vpop.xlane.xlu0 %4638
    %4640 = vadd.xlane.f32.xlu0 %v4476
    %v4641 = vpop.xlane.xlu0 %4640
    %4642 = vadd.xlane.f32.xlu0 %v4477
    %v4643 = vpop.xlane.xlu0 %4642
    %4644 = vadd.xlane.f32.xlu0 %v4478
    %v4645 = vpop.xlane.xlu0 %4644
    %4646 = vadd.xlane.f32.xlu0 %v4479
    %v4647 = vpop.xlane.xlu0 %4646
    %4648 = vadd.xlane.f32.xlu0 %v4480
    %v4649 = vpop.xlane.xlu0 %4648
    %4650 = vadd.xlane.f32.xlu0 %v4481
    %v4651 = vpop.xlane.xlu0 %4650
    %4652 = vadd.xlane.f32.xlu0 %v4482
    %v4653 = vpop.xlane.xlu0 %4652
    %4654 = vadd.xlane.f32.xlu0 %v4483
    %v4655 = vpop.xlane.xlu0 %4654
    %4656 = vadd.xlane.f32.xlu0 %v4484
    %v4657 = vpop.xlane.xlu0 %4656
    %4658 = vadd.xlane.f32.xlu0 %v4485
    %v4659 = vpop.xlane.xlu0 %4658
    %4660 = vadd.xlane.f32.xlu0 %v4486
    %v4661 = vpop.xlane.xlu0 %4660
    %4662 = vadd.xlane.f32.xlu0 %v4487
    %v4663 = vpop.xlane.xlu0 %4662
    %4664 = vadd.xlane.f32.xlu0 %v4488
    %v4665 = vpop.xlane.xlu0 %4664
    %4666 = vadd.xlane.f32.xlu0 %v4489
    %v4667 = vpop.xlane.xlu0 %4666
    %4668 = vadd.xlane.f32.xlu0 %v4490
    %v4669 = vpop.xlane.xlu0 %4668
    %4670 = vadd.xlane.f32.xlu0 %v4491
    %v4671 = vpop.xlane.xlu0 %4670
    %4672 = vadd.xlane.f32.xlu0 %v4492
    %v4673 = vpop.xlane.xlu0 %4672
    %4674 = vadd.xlane.f32.xlu0 %v4493
    %v4675 = vpop.xlane.xlu0 %4674
    %4676 = vadd.xlane.f32.xlu0 %v4494
    %v4677 = vpop.xlane.xlu0 %4676
    %4678 = vadd.xlane.f32.xlu0 %v4495
    %v4679 = vpop.xlane.xlu0 %4678
    %4680 = vadd.xlane.f32.xlu0 %v4496
    %v4681 = vpop.xlane.xlu0 %4680
    %4682 = vadd.xlane.f32.xlu0 %v4497
    %v4683 = vpop.xlane.xlu0 %4682
    %4684 = vadd.xlane.f32.xlu0 %v4498
    %v4685 = vpop.xlane.xlu0 %4684
    %4686 = vadd.xlane.f32.xlu0 %v4499
    %v4687 = vpop.xlane.xlu0 %4686
    %4688 = vadd.xlane.f32.xlu0 %v4500
    %v4689 = vpop.xlane.xlu0 %4688
    %4690 = vadd.xlane.f32.xlu0 %v4501
    %v4691 = vpop.xlane.xlu0 %4690
    %4692 = vadd.xlane.f32.xlu0 %v4502
    %v4693 = vpop.xlane.xlu0 %4692
    %4694 = vadd.xlane.f32.xlu0 %v4503
    %v4695 = vpop.xlane.xlu0 %4694
    %4696 = vadd.xlane.f32.xlu0 %v4504
    %v4697 = vpop.xlane.xlu0 %4696
    %4698 = vadd.xlane.f32.xlu0 %v4505
    %v4699 = vpop.xlane.xlu0 %4698
    %4700 = vadd.xlane.f32.xlu0 %v4506
    %v4701 = vpop.xlane.xlu0 %4700
    %4702 = vadd.xlane.f32.xlu0 %v4507
    %v4703 = vpop.xlane.xlu0 %4702
    %4704 = vadd.xlane.f32.xlu0 %v4508
    %v4705 = vpop.xlane.xlu0 %4704
    %4706 = vadd.xlane.f32.xlu0 %v4509
    %v4707 = vpop.xlane.xlu0 %4706
    %4708 = vadd.xlane.f32.xlu0 %v4510
    %v4709 = vpop.xlane.xlu0 %4708
    %4710 = vadd.xlane.f32.xlu0 %v4511
    %v4711 = vpop.xlane.xlu0 %4710
    %4712 = vadd.xlane.f32.xlu0 %v4512
    %v4713 = vpop.xlane.xlu0 %4712
    %4714 = vadd.xlane.f32.xlu0 %v4513
    %v4715 = vpop.xlane.xlu0 %4714
    %4716 = vadd.xlane.f32.xlu0 %v4514
    %v4717 = vpop.xlane.xlu0 %4716
    %4718 = vadd.xlane.f32.xlu0 %v4515
    %v4719 = vpop.xlane.xlu0 %4718
    %4720 = vadd.xlane.f32.xlu0 %v4516
    %v4721 = vpop.xlane.xlu0 %4720
    %4722 = vadd.xlane.f32.xlu0 %v4517
    %v4723 = vpop.xlane.xlu0 %4722
    %4724 = vadd.xlane.f32.xlu0 %v4518
    %v4725 = vpop.xlane.xlu0 %4724
    %4726 = vadd.xlane.f32.xlu0 %v4519
    %v4727 = vpop.xlane.xlu0 %4726
    %4728 = vadd.xlane.f32.xlu0 %v4520
    %v4729 = vpop.xlane.xlu0 %4728
    %4730 = vadd.xlane.f32.xlu0 %v4521
    %v4731 = vpop.xlane.xlu0 %4730
    %4732 = vadd.xlane.f32.xlu0 %v4522
    %v4733 = vpop.xlane.xlu0 %4732
    %4734 = vadd.xlane.f32.xlu0 %v4523
    %v4735 = vpop.xlane.xlu0 %4734
    %4736 = vadd.xlane.f32.xlu0 %v4524
    %v4737 = vpop.xlane.xlu0 %4736
    %4738 = vadd.xlane.f32.xlu0 %v4525
    %v4739 = vpop.xlane.xlu0 %4738
    %4740 = vadd.xlane.f32.xlu0 %v4526
    %v4741 = vpop.xlane.xlu0 %4740
    %4742 = vadd.xlane.f32.xlu0 %v4527
    %v4743 = vpop.xlane.xlu0 %4742
    %4744 = vadd.xlane.f32.xlu0 %v4528
    %v4745 = vpop.xlane.xlu0 %4744
    %4746 = vadd.xlane.f32.xlu0 %v4529
    %v4747 = vpop.xlane.xlu0 %4746
    %4748 = vadd.xlane.f32.xlu0 %v4530
    %v4749 = vpop.xlane.xlu0 %4748
    %4750 = vadd.xlane.f32.xlu0 %v4531
    %v4751 = vpop.xlane.xlu0 %4750
    %4752 = vadd.xlane.f32.xlu0 %v4532
    %v4753 = vpop.xlane.xlu0 %4752
    %4754 = vadd.xlane.f32.xlu0 %v4533
    %v4755 = vpop.xlane.xlu0 %4754
    %4756 = vadd.xlane.f32.xlu0 %v4534
    %v4757 = vpop.xlane.xlu0 %4756
    %4758 = vadd.xlane.f32.xlu0 %v4535
    %v4759 = vpop.xlane.xlu0 %4758
    %4760 = vadd.xlane.f32.xlu0 %v4536
    %v4761 = vpop.xlane.xlu0 %4760
    %4762 = vadd.xlane.f32.xlu0 %v4537
    %v4763 = vpop.xlane.xlu0 %4762
    %4764 = vadd.xlane.f32.xlu0 %v4538
    %v4765 = vpop.xlane.xlu0 %4764
    %4766 = vadd.xlane.f32.xlu0 %v4539
    %v4767 = vpop.xlane.xlu0 %4766
    %4768 = vadd.xlane.f32.xlu0 %v4540
    %v4769 = vpop.xlane.xlu0 %4768
    %4770 = vadd.xlane.f32.xlu0 %v4541
    %v4771 = vpop.xlane.xlu0 %4770
    %4772 = vadd.xlane.f32.xlu0 %v4542
    %v4773 = vpop.xlane.xlu0 %4772
    %4774 = vadd.xlane.f32.xlu0 %v4543
    %v4775 = vpop.xlane.xlu0 %4774
    %4776 = vadd.xlane.f32.xlu0 %v4544
    %v4777 = vpop.xlane.xlu0 %4776
    %4778 = vadd.xlane.f32.xlu0 %v4545
    %v4779 = vpop.xlane.xlu0 %4778
    %4780 = vadd.xlane.f32.xlu0 %v4546
    %v4781 = vpop.xlane.xlu0 %4780
    %4782 = vadd.xlane.f32.xlu0 %v4547
    %v4783 = vpop.xlane.xlu0 %4782
    %4784 = vadd.xlane.f32.xlu0 %v4548
    %v4785 = vpop.xlane.xlu0 %4784
    %4786 = vadd.xlane.f32.xlu0 %v4549
    %v4787 = vpop.xlane.xlu0 %4786
    %4788 = vadd.xlane.f32.xlu0 %v4550
    %v4789 = vpop.xlane.xlu0 %4788
    %4790 = vadd.xlane.f32.xlu0 %v4551
    %v4791 = vpop.xlane.xlu0 %4790
    %4792 = vadd.xlane.f32.xlu0 %v4552
    %v4793 = vpop.xlane.xlu0 %4792
    %4794 = vadd.xlane.f32.xlu0 %v4553
    %v4795 = vpop.xlane.xlu0 %4794
    %4796 = vadd.xlane.f32.xlu0 %v4554
    %v4797 = vpop.xlane.xlu0 %4796
    %4798 = vadd.xlane.f32.xlu0 %v4555
    %v4799 = vpop.xlane.xlu0 %4798
    %4800 = vadd.xlane.f32.xlu0 %v4556
    %v4801 = vpop.xlane.xlu0 %4800
    %4802 = vadd.xlane.f32.xlu0 %v4557
    %v4803 = vpop.xlane.xlu0 %4802
    %4804 = vadd.xlane.f32.xlu0 %v4558
    %v4805 = vpop.xlane.xlu0 %4804
    %4806 = vadd.xlane.f32.xlu0 %v4559
    %v4807 = vpop.xlane.xlu0 %4806
    %4808 = vadd.xlane.f32.xlu0 %v4560
    %v4809 = vpop.xlane.xlu0 %4808
    %4810 = vadd.xlane.f32.xlu0 %v4561
    %v4811 = vpop.xlane.xlu0 %4810
    %4812 = vadd.xlane.f32.xlu0 %v4562
    %v4813 = vpop.xlane.xlu0 %4812
    %4814 = vadd.xlane.f32.xlu0 %v4563
    %v4815 = vpop.xlane.xlu0 %4814
    %4816 = vadd.xlane.f32.xlu0 %v4564
    %v4817 = vpop.xlane.xlu0 %4816
    %4818 = vadd.xlane.f32.xlu0 %v4565
    %v4819 = vpop.xlane.xlu0 %4818
    %4820 = vadd.xlane.f32.xlu0 %v4566
    %v4821 = vpop.xlane.xlu0 %4820
    %4822 = vadd.xlane.f32.xlu0 %v4567
    %v4823 = vpop.xlane.xlu0 %4822
    %v4824 = vmul.f32 %v4569, 0.03125
    %v4825 = vmul.f32 %v4571, 0.03125
    %v4826 = vmul.f32 %v4573, 0.03125
    %v4827 = vmul.f32 %v4575, 0.03125
    %v4828 = vmul.f32 %v4577, 0.03125
    %v4829 = vmul.f32 %v4579, 0.03125
    %v4830 = vmul.f32 %v4581, 0.03125
    %v4831 = vmul.f32 %v4583, 0.03125
    %v4832 = vmul.f32 %v4585, 0.03125
    %v4833 = vmul.f32 %v4587, 0.03125
    %v4834 = vmul.f32 %v4589, 0.03125
    %v4835 = vmul.f32 %v4591, 0.03125
    %v4836 = vmul.f32 %v4593, 0.03125
    %v4837 = vmul.f32 %v4595, 0.03125
    %v4838 = vmul.f32 %v4597, 0.03125
    %v4839 = vmul.f32 %v4599, 0.03125
    %v4840 = vmul.f32 %v4601, 0.03125
    %v4841 = vmul.f32 %v4603, 0.03125
    %v4842 = vmul.f32 %v4605, 0.03125
    %v4843 = vmul.f32 %v4607, 0.03125
    %v4844 = vmul.f32 %v4609, 0.03125
    %v4845 = vmul.f32 %v4611, 0.03125
    %v4846 = vmul.f32 %v4613, 0.03125
    %v4847 = vmul.f32 %v4615, 0.03125
    %v4848 = vmul.f32 %v4617, 0.03125
    %v4849 = vmul.f32 %v4619, 0.03125
    %v4850 = vmul.f32 %v4621, 0.03125
    %v4851 = vmul.f32 %v4623, 0.03125
    %v4852 = vmul.f32 %v4625, 0.03125
    %v4853 = vmul.f32 %v4627, 0.03125
    %v4854 = vmul.f32 %v4629, 0.03125
    %v4855 = vmul.f32 %v4631, 0.03125
    %v4856 = vmul.f32 %v4633, 0.03125
    %v4857 = vmul.f32 %v4635, 0.03125
    %v4858 = vmul.f32 %v4637, 0.03125
    %v4859 = vmul.f32 %v4639, 0.03125
    %v4860 = vmul.f32 %v4641, 0.03125
    %v4861 = vmul.f32 %v4643, 0.03125
    %v4862 = vmul.f32 %v4645, 0.03125
    %v4863 = vmul.f32 %v4647, 0.03125
    %v4864 = vmul.f32 %v4649, 0.03125
    %v4865 = vmul.f32 %v4651, 0.03125
    %v4866 = vmul.f32 %v4653, 0.03125
    %v4867 = vmul.f32 %v4655, 0.03125
    %v4868 = vmul.f32 %v4657, 0.03125
    %v4869 = vmul.f32 %v4659, 0.03125
    %v4870 = vmul.f32 %v4661, 0.03125
    %v4871 = vmul.f32 %v4663, 0.03125
    %v4872 = vmul.f32 %v4665, 0.03125
    %v4873 = vmul.f32 %v4667, 0.03125
    %v4874 = vmul.f32 %v4669, 0.03125
    %v4875 = vmul.f32 %v4671, 0.03125
    %v4876 = vmul.f32 %v4673, 0.03125
    %v4877 = vmul.f32 %v4675, 0.03125
    %v4878 = vmul.f32 %v4677, 0.03125
    %v4879 = vmul.f32 %v4679, 0.03125
    %v4880 = vmul.f32 %v4681, 0.03125
    %v4881 = vmul.f32 %v4683, 0.03125
    %v4882 = vmul.f32 %v4685, 0.03125
    %v4883 = vmul.f32 %v4687, 0.03125
    %v4884 = vmul.f32 %v4689, 0.03125
    %v4885 = vmul.f32 %v4691, 0.03125
    %v4886 = vmul.f32 %v4693, 0.03125
    %v4887 = vmul.f32 %v4695, 0.03125
    %v4888 = vmul.f32 %v4697, 0.03125
    %v4889 = vmul.f32 %v4699, 0.03125
    %v4890 = vmul.f32 %v4701, 0.03125
    %v4891 = vmul.f32 %v4703, 0.03125
    %v4892 = vmul.f32 %v4705, 0.03125
    %v4893 = vmul.f32 %v4707, 0.03125
    %v4894 = vmul.f32 %v4709, 0.03125
    %v4895 = vmul.f32 %v4711, 0.03125
    %v4896 = vmul.f32 %v4713, 0.03125
    %v4897 = vmul.f32 %v4715, 0.03125
    %v4898 = vmul.f32 %v4717, 0.03125
    %v4899 = vmul.f32 %v4719, 0.03125
    %v4900 = vmul.f32 %v4721, 0.03125
    %v4901 = vmul.f32 %v4723, 0.03125
    %v4902 = vmul.f32 %v4725, 0.03125
    %v4903 = vmul.f32 %v4727, 0.03125
    %v4904 = vmul.f32 %v4729, 0.03125
    %v4905 = vmul.f32 %v4731, 0.03125
    %v4906 = vmul.f32 %v4733, 0.03125
    %v4907 = vmul.f32 %v4735, 0.03125
    %v4908 = vmul.f32 %v4737, 0.03125
    %v4909 = vmul.f32 %v4739, 0.03125
    %v4910 = vmul.f32 %v4741, 0.03125
    %v4911 = vmul.f32 %v4743, 0.03125
    %v4912 = vmul.f32 %v4745, 0.03125
    %v4913 = vmul.f32 %v4747, 0.03125
    %v4914 = vmul.f32 %v4749, 0.03125
    %v4915 = vmul.f32 %v4751, 0.03125
    %v4916 = vmul.f32 %v4753, 0.03125
    %v4917 = vmul.f32 %v4755, 0.03125
    %v4918 = vmul.f32 %v4757, 0.03125
    %v4919 = vmul.f32 %v4759, 0.03125
    %v4920 = vmul.f32 %v4761, 0.03125
    %v4921 = vmul.f32 %v4763, 0.03125
    %v4922 = vmul.f32 %v4765, 0.03125
    %v4923 = vmul.f32 %v4767, 0.03125
    %v4924 = vmul.f32 %v4769, 0.03125
    %v4925 = vmul.f32 %v4771, 0.03125
    %v4926 = vmul.f32 %v4773, 0.03125
    %v4927 = vmul.f32 %v4775, 0.03125
    %v4928 = vmul.f32 %v4777, 0.03125
    %v4929 = vmul.f32 %v4779, 0.03125
    %v4930 = vmul.f32 %v4781, 0.03125
    %v4931 = vmul.f32 %v4783, 0.03125
    %v4932 = vmul.f32 %v4785, 0.03125
    %v4933 = vmul.f32 %v4787, 0.03125
    %v4934 = vmul.f32 %v4789, 0.03125
    %v4935 = vmul.f32 %v4791, 0.03125
    %v4936 = vmul.f32 %v4793, 0.03125
    %v4937 = vmul.f32 %v4795, 0.03125
    %v4938 = vmul.f32 %v4797, 0.03125
    %v4939 = vmul.f32 %v4799, 0.03125
    %v4940 = vmul.f32 %v4801, 0.03125
    %v4941 = vmul.f32 %v4803, 0.03125
    %v4942 = vmul.f32 %v4805, 0.03125
    %v4943 = vmul.f32 %v4807, 0.03125
    %v4944 = vmul.f32 %v4809, 0.03125
    %v4945 = vmul.f32 %v4811, 0.03125
    %v4946 = vmul.f32 %v4813, 0.03125
    %v4947 = vmul.f32 %v4815, 0.03125
    %v4948 = vmul.f32 %v4817, 0.03125
    %v4949 = vmul.f32 %v4819, 0.03125
    %v4950 = vmul.f32 %v4821, 0.03125
    %v4951 = vmul.f32 %v4823, 0.03125
    %v4952 = vmul.f32 %v4312, %v4312
    %v4953 = vmul.f32 %v4313, %v4313
    %v4954 = vmul.f32 %v4314, %v4314
    %v4955 = vmul.f32 %v4315, %v4315
    %v4956 = vmul.f32 %v4316, %v4316
    %v4957 = vmul.f32 %v4317, %v4317
    %v4958 = vmul.f32 %v4318, %v4318
    %v4959 = vmul.f32 %v4319, %v4319
    %v4960 = vmul.f32 %v4320, %v4320
    %v4961 = vmul.f32 %v4321, %v4321
    %v4962 = vmul.f32 %v4322, %v4322
    %v4963 = vmul.f32 %v4323, %v4323
    %v4964 = vmul.f32 %v4324, %v4324
    %v4965 = vmul.f32 %v4325, %v4325
    %v4966 = vmul.f32 %v4326, %v4326
    %v4967 = vmul.f32 %v4327, %v4327
    %v4968 = vmul.f32 %v4328, %v4328
    %v4969 = vmul.f32 %v4329, %v4329
    %v4970 = vmul.f32 %v4330, %v4330
    %v4971 = vmul.f32 %v4331, %v4331
    %v4972 = vmul.f32 %v4332, %v4332
    %v4973 = vmul.f32 %v4333, %v4333
    %v4974 = vmul.f32 %v4334, %v4334
    %v4975 = vmul.f32 %v4335, %v4335
    %v4976 = vmul.f32 %v4336, %v4336
    %v4977 = vmul.f32 %v4337, %v4337
    %v4978 = vmul.f32 %v4338, %v4338
    %v4979 = vmul.f32 %v4339, %v4339
    %v4980 = vmul.f32 %v4340, %v4340
    %v4981 = vmul.f32 %v4341, %v4341
    %v4982 = vmul.f32 %v4342, %v4342
    %v4983 = vmul.f32 %v4343, %v4343
    %v4984 = vmul.f32 %v4344, %v4344
    %v4985 = vmul.f32 %v4345, %v4345
    %v4986 = vmul.f32 %v4346, %v4346
    %v4987 = vmul.f32 %v4347, %v4347
    %v4988 = vmul.f32 %v4348, %v4348
    %v4989 = vmul.f32 %v4349, %v4349
    %v4990 = vmul.f32 %v4350, %v4350
    %v4991 = vmul.f32 %v4351, %v4351
    %v4992 = vmul.f32 %v4352, %v4352
    %v4993 = vmul.f32 %v4353, %v4353
    %v4994 = vmul.f32 %v4354, %v4354
    %v4995 = vmul.f32 %v4355, %v4355
    %v4996 = vmul.f32 %v4356, %v4356
    %v4997 = vmul.f32 %v4357, %v4357
    %v4998 = vmul.f32 %v4358, %v4358
    %v4999 = vmul.f32 %v4359, %v4359
    %v5000 = vmul.f32 %v4360, %v4360
    %v5001 = vmul.f32 %v4361, %v4361
    %v5002 = vmul.f32 %v4362, %v4362
    %v5003 = vmul.f32 %v4363, %v4363
    %v5004 = vmul.f32 %v4364, %v4364
    %v5005 = vmul.f32 %v4365, %v4365
    %v5006 = vmul.f32 %v4366, %v4366
    %v5007 = vmul.f32 %v4367, %v4367
    %v5008 = vmul.f32 %v4368, %v4368
    %v5009 = vmul.f32 %v4369, %v4369
    %v5010 = vmul.f32 %v4370, %v4370
    %v5011 = vmul.f32 %v4371, %v4371
    %v5012 = vmul.f32 %v4372, %v4372
    %v5013 = vmul.f32 %v4373, %v4373
    %v5014 = vmul.f32 %v4374, %v4374
    %v5015 = vmul.f32 %v4375, %v4375
    %v5016 = vmul.f32 %v4376, %v4376
    %v5017 = vmul.f32 %v4377, %v4377
    %v5018 = vmul.f32 %v4378, %v4378
    %v5019 = vmul.f32 %v4379, %v4379
    %v5020 = vmul.f32 %v4380, %v4380
    %v5021 = vmul.f32 %v4381, %v4381
    %v5022 = vmul.f32 %v4382, %v4382
    %v5023 = vmul.f32 %v4383, %v4383
    %v5024 = vmul.f32 %v4384, %v4384
    %v5025 = vmul.f32 %v4385, %v4385
    %v5026 = vmul.f32 %v4386, %v4386
    %v5027 = vmul.f32 %v4387, %v4387
    %v5028 = vmul.f32 %v4388, %v4388
    %v5029 = vmul.f32 %v4389, %v4389
    %v5030 = vmul.f32 %v4390, %v4390
    %v5031 = vmul.f32 %v4391, %v4391
    %v5032 = vmul.f32 %v4392, %v4392
    %v5033 = vmul.f32 %v4393, %v4393
    %v5034 = vmul.f32 %v4394, %v4394
    %v5035 = vmul.f32 %v4395, %v4395
    %v5036 = vmul.f32 %v4396, %v4396
    %v5037 = vmul.f32 %v4397, %v4397
    %v5038 = vmul.f32 %v4398, %v4398
    %v5039 = vmul.f32 %v4399, %v4399
    %v5040 = vmul.f32 %v4400, %v4400
    %v5041 = vmul.f32 %v4401, %v4401
    %v5042 = vmul.f32 %v4402, %v4402
    %v5043 = vmul.f32 %v4403, %v4403
    %v5044 = vmul.f32 %v4404, %v4404
    %v5045 = vmul.f32 %v4405, %v4405
    %v5046 = vmul.f32 %v4406, %v4406
    %v5047 = vmul.f32 %v4407, %v4407
    %v5048 = vmul.f32 %v4408, %v4408
    %v5049 = vmul.f32 %v4409, %v4409
    %v5050 = vmul.f32 %v4410, %v4410
    %v5051 = vmul.f32 %v4411, %v4411
    %v5052 = vmul.f32 %v4412, %v4412
    %v5053 = vmul.f32 %v4413, %v4413
    %v5054 = vmul.f32 %v4414, %v4414
    %v5055 = vmul.f32 %v4415, %v4415
    %v5056 = vmul.f32 %v4416, %v4416
    %v5057 = vmul.f32 %v4417, %v4417
    %v5058 = vmul.f32 %v4418, %v4418
    %v5059 = vmul.f32 %v4419, %v4419
    %v5060 = vmul.f32 %v4420, %v4420
    %v5061 = vmul.f32 %v4421, %v4421
    %v5062 = vmul.f32 %v4422, %v4422
    %v5063 = vmul.f32 %v4423, %v4423
    %v5064 = vmul.f32 %v4424, %v4424
    %v5065 = vmul.f32 %v4425, %v4425
    %v5066 = vmul.f32 %v4426, %v4426
    %v5067 = vmul.f32 %v4427, %v4427
    %v5068 = vmul.f32 %v4428, %v4428
    %v5069 = vmul.f32 %v4429, %v4429
    %v5070 = vmul.f32 %v4430, %v4430
    %v5071 = vmul.f32 %v4431, %v4431
    %v5072 = vmul.f32 %v4432, %v4432
    %v5073 = vmul.f32 %v4433, %v4433
    %v5074 = vmul.f32 %v4434, %v4434
    %v5075 = vmul.f32 %v4435, %v4435
    %v5076 = vmul.f32 %v4436, %v4436
    %v5077 = vmul.f32 %v4437, %v4437
    %v5078 = vmul.f32 %v4438, %v4438
    %v5079 = vmul.f32 %v4439, %v4439
    %v5080 = vsub.f32 %v4824, %v4952
    %v5081 = vsub.f32 %v4825, %v4953
    %v5082 = vsub.f32 %v4826, %v4954
    %v5083 = vsub.f32 %v4827, %v4955
    %v5084 = vsub.f32 %v4828, %v4956
    %v5085 = vsub.f32 %v4829, %v4957
    %v5086 = vsub.f32 %v4830, %v4958
    %v5087 = vsub.f32 %v4831, %v4959
    %v5088 = vsub.f32 %v4832, %v4960
    %v5089 = vsub.f32 %v4833, %v4961
    %v5090 = vsub.f32 %v4834, %v4962
    %v5091 = vsub.f32 %v4835, %v4963
    %v5092 = vsub.f32 %v4836, %v4964
    %v5093 = vsub.f32 %v4837, %v4965
    %v5094 = vsub.f32 %v4838, %v4966
    %v5095 = vsub.f32 %v4839, %v4967
    %v5096 = vsub.f32 %v4840, %v4968
    %v5097 = vsub.f32 %v4841, %v4969
    %v5098 = vsub.f32 %v4842, %v4970
    %v5099 = vsub.f32 %v4843, %v4971
    %v5100 = vsub.f32 %v4844, %v4972
    %v5101 = vsub.f32 %v4845, %v4973
    %v5102 = vsub.f32 %v4846, %v4974
    %v5103 = vsub.f32 %v4847, %v4975
    %v5104 = vsub.f32 %v4848, %v4976
    %v5105 = vsub.f32 %v4849, %v4977
    %v5106 = vsub.f32 %v4850, %v4978
    %v5107 = vsub.f32 %v4851, %v4979
    %v5108 = vsub.f32 %v4852, %v4980
    %v5109 = vsub.f32 %v4853, %v4981
    %v5110 = vsub.f32 %v4854, %v4982
    %v5111 = vsub.f32 %v4855, %v4983
    %v5112 = vsub.f32 %v4856, %v4984
    %v5113 = vsub.f32 %v4857, %v4985
    %v5114 = vsub.f32 %v4858, %v4986
    %v5115 = vsub.f32 %v4859, %v4987
    %v5116 = vsub.f32 %v4860, %v4988
    %v5117 = vsub.f32 %v4861, %v4989
    %v5118 = vsub.f32 %v4862, %v4990
    %v5119 = vsub.f32 %v4863, %v4991
    %v5120 = vsub.f32 %v4864, %v4992
    %v5121 = vsub.f32 %v4865, %v4993
    %v5122 = vsub.f32 %v4866, %v4994
    %v5123 = vsub.f32 %v4867, %v4995
    %v5124 = vsub.f32 %v4868, %v4996
    %v5125 = vsub.f32 %v4869, %v4997
    %v5126 = vsub.f32 %v4870, %v4998
    %v5127 = vsub.f32 %v4871, %v4999
    %v5128 = vsub.f32 %v4872, %v5000
    %v5129 = vsub.f32 %v4873, %v5001
    %v5130 = vsub.f32 %v4874, %v5002
    %v5131 = vsub.f32 %v4875, %v5003
    %v5132 = vsub.f32 %v4876, %v5004
    %v5133 = vsub.f32 %v4877, %v5005
    %v5134 = vsub.f32 %v4878, %v5006
    %v5135 = vsub.f32 %v4879, %v5007
    %v5136 = vsub.f32 %v4880, %v5008
    %v5137 = vsub.f32 %v4881, %v5009
    %v5138 = vsub.f32 %v4882, %v5010
    %v5139 = vsub.f32 %v4883, %v5011
    %v5140 = vsub.f32 %v4884, %v5012
    %v5141 = vsub.f32 %v4885, %v5013
    %v5142 = vsub.f32 %v4886, %v5014
    %v5143 = vsub.f32 %v4887, %v5015
    %v5144 = vsub.f32 %v4888, %v5016
    %v5145 = vsub.f32 %v4889, %v5017
    %v5146 = vsub.f32 %v4890, %v5018
    %v5147 = vsub.f32 %v4891, %v5019
    %v5148 = vsub.f32 %v4892, %v5020
    %v5149 = vsub.f32 %v4893, %v5021
    %v5150 = vsub.f32 %v4894, %v5022
    %v5151 = vsub.f32 %v4895, %v5023
    %v5152 = vsub.f32 %v4896, %v5024
    %v5153 = vsub.f32 %v4897, %v5025
    %v5154 = vsub.f32 %v4898, %v5026
    %v5155 = vsub.f32 %v4899, %v5027
    %v5156 = vsub.f32 %v4900, %v5028
    %v5157 = vsub.f32 %v4901, %v5029
    %v5158 = vsub.f32 %v4902, %v5030
    %v5159 = vsub.f32 %v4903, %v5031
    %v5160 = vsub.f32 %v4904, %v5032
    %v5161 = vsub.f32 %v4905, %v5033
    %v5162 = vsub.f32 %v4906, %v5034
    %v5163 = vsub.f32 %v4907, %v5035
    %v5164 = vsub.f32 %v4908, %v5036
    %v5165 = vsub.f32 %v4909, %v5037
    %v5166 = vsub.f32 %v4910, %v5038
    %v5167 = vsub.f32 %v4911, %v5039
    %v5168 = vsub.f32 %v4912, %v5040
    %v5169 = vsub.f32 %v4913, %v5041
    %v5170 = vsub.f32 %v4914, %v5042
    %v5171 = vsub.f32 %v4915, %v5043
    %v5172 = vsub.f32 %v4916, %v5044
    %v5173 = vsub.f32 %v4917, %v5045
    %v5174 = vsub.f32 %v4918, %v5046
    %v5175 = vsub.f32 %v4919, %v5047
    %v5176 = vsub.f32 %v4920, %v5048
    %v5177 = vsub.f32 %v4921, %v5049
    %v5178 = vsub.f32 %v4922, %v5050
    %v5179 = vsub.f32 %v4923, %v5051
    %v5180 = vsub.f32 %v4924, %v5052
    %v5181 = vsub.f32 %v4925, %v5053
    %v5182 = vsub.f32 %v4926, %v5054
    %v5183 = vsub.f32 %v4927, %v5055
    %v5184 = vsub.f32 %v4928, %v5056
    %v5185 = vsub.f32 %v4929, %v5057
    %v5186 = vsub.f32 %v4930, %v5058
    %v5187 = vsub.f32 %v4931, %v5059
    %v5188 = vsub.f32 %v4932, %v5060
    %v5189 = vsub.f32 %v4933, %v5061
    %v5190 = vsub.f32 %v4934, %v5062
    %v5191 = vsub.f32 %v4935, %v5063
    %v5192 = vsub.f32 %v4936, %v5064
    %v5193 = vsub.f32 %v4937, %v5065
    %v5194 = vsub.f32 %v4938, %v5066
    %v5195 = vsub.f32 %v4939, %v5067
    %v5196 = vsub.f32 %v4940, %v5068
    %v5197 = vsub.f32 %v4941, %v5069
    %v5198 = vsub.f32 %v4942, %v5070
    %v5199 = vsub.f32 %v4943, %v5071
    %v5200 = vsub.f32 %v4944, %v5072
    %v5201 = vsub.f32 %v4945, %v5073
    %v5202 = vsub.f32 %v4946, %v5074
    %v5203 = vsub.f32 %v4947, %v5075
    %v5204 = vsub.f32 %v4948, %v5076
    %v5205 = vsub.f32 %v4949, %v5077
    %v5206 = vsub.f32 %v4950, %v5078
    %v5207 = vsub.f32 %v4951, %v5079
    %v5208 = vsub.f32 %v3414, %v4312
    %v5209 = vsub.f32 %v3419, %v4313
    %v5210 = vsub.f32 %v3424, %v4314
    %v5211 = vsub.f32 %v3429, %v4315
    %v5212 = vsub.f32 %v3434, %v4316
    %v5213 = vsub.f32 %v3439, %v4317
    %v5214 = vsub.f32 %v3444, %v4318
    %v5215 = vsub.f32 %v3449, %v4319
    %v5216 = vsub.f32 %v3454, %v4320
    %v5217 = vsub.f32 %v3459, %v4321
    %v5218 = vsub.f32 %v3464, %v4322
    %v5219 = vsub.f32 %v3469, %v4323
    %v5220 = vsub.f32 %v3474, %v4324
    %v5221 = vsub.f32 %v3479, %v4325
    %v5222 = vsub.f32 %v3484, %v4326
    %v5223 = vsub.f32 %v3489, %v4327
    %v5224 = vsub.f32 %v3494, %v4328
    %v5225 = vsub.f32 %v3499, %v4329
    %v5226 = vsub.f32 %v3504, %v4330
    %v5227 = vsub.f32 %v3509, %v4331
    %v5228 = vsub.f32 %v3514, %v4332
    %v5229 = vsub.f32 %v3519, %v4333
    %v5230 = vsub.f32 %v3524, %v4334
    %v5231 = vsub.f32 %v3529, %v4335
    %v5232 = vsub.f32 %v3534, %v4336
    %v5233 = vsub.f32 %v3539, %v4337
    %v5234 = vsub.f32 %v3544, %v4338
    %v5235 = vsub.f32 %v3549, %v4339
    %v5236 = vsub.f32 %v3554, %v4340
    %v5237 = vsub.f32 %v3559, %v4341
    %v5238 = vsub.f32 %v3564, %v4342
    %v5239 = vsub.f32 %v3569, %v4343
    %v5240 = vsub.f32 %v3574, %v4344
    %v5241 = vsub.f32 %v3579, %v4345
    %v5242 = vsub.f32 %v3584, %v4346
    %v5243 = vsub.f32 %v3589, %v4347
    %v5244 = vsub.f32 %v3594, %v4348
    %v5245 = vsub.f32 %v3599, %v4349
    %v5246 = vsub.f32 %v3604, %v4350
    %v5247 = vsub.f32 %v3609, %v4351
    %v5248 = vsub.f32 %v3614, %v4352
    %v5249 = vsub.f32 %v3619, %v4353
    %v5250 = vsub.f32 %v3624, %v4354
    %v5251 = vsub.f32 %v3629, %v4355
    %v5252 = vsub.f32 %v3634, %v4356
    %v5253 = vsub.f32 %v3639, %v4357
    %v5254 = vsub.f32 %v3644, %v4358
    %v5255 = vsub.f32 %v3649, %v4359
    %v5256 = vsub.f32 %v3654, %v4360
    %v5257 = vsub.f32 %v3659, %v4361
    %v5258 = vsub.f32 %v3664, %v4362
    %v5259 = vsub.f32 %v3669, %v4363
    %v5260 = vsub.f32 %v3674, %v4364
    %v5261 = vsub.f32 %v3679, %v4365
    %v5262 = vsub.f32 %v3684, %v4366
    %v5263 = vsub.f32 %v3689, %v4367
    %v5264 = vsub.f32 %v3694, %v4368
    %v5265 = vsub.f32 %v3699, %v4369
    %v5266 = vsub.f32 %v3704, %v4370
    %v5267 = vsub.f32 %v3709, %v4371
    %v5268 = vsub.f32 %v3714, %v4372
    %v5269 = vsub.f32 %v3719, %v4373
    %v5270 = vsub.f32 %v3724, %v4374
    %v5271 = vsub.f32 %v3729, %v4375
    %v5272 = vsub.f32 %v3734, %v4376
    %v5273 = vsub.f32 %v3739, %v4377
    %v5274 = vsub.f32 %v3744, %v4378
    %v5275 = vsub.f32 %v3749, %v4379
    %v5276 = vsub.f32 %v3754, %v4380
    %v5277 = vsub.f32 %v3759, %v4381
    %v5278 = vsub.f32 %v3764, %v4382
    %v5279 = vsub.f32 %v3769, %v4383
    %v5280 = vsub.f32 %v3774, %v4384
    %v5281 = vsub.f32 %v3779, %v4385
    %v5282 = vsub.f32 %v3784, %v4386
    %v5283 = vsub.f32 %v3789, %v4387
    %v5284 = vsub.f32 %v3794, %v4388
    %v5285 = vsub.f32 %v3799, %v4389
    %v5286 = vsub.f32 %v3804, %v4390
    %v5287 = vsub.f32 %v3809, %v4391
    %v5288 = vsub.f32 %v3814, %v4392
    %v5289 = vsub.f32 %v3819, %v4393
    %v5290 = vsub.f32 %v3824, %v4394
    %v5291 = vsub.f32 %v3829, %v4395
    %v5292 = vsub.f32 %v3834, %v4396
    %v5293 = vsub.f32 %v3839, %v4397
    %v5294 = vsub.f32 %v3844, %v4398
    %v5295 = vsub.f32 %v3849, %v4399
    %v5296 = vsub.f32 %v3854, %v4400
    %v5297 = vsub.f32 %v3859, %v4401
    %v5298 = vsub.f32 %v3864, %v4402
    %v5299 = vsub.f32 %v3869, %v4403
    %v5300 = vsub.f32 %v3874, %v4404
    %v5301 = vsub.f32 %v3879, %v4405
    %v5302 = vsub.f32 %v3884, %v4406
    %v5303 = vsub.f32 %v3889, %v4407
    %v5304 = vsub.f32 %v3894, %v4408
    %v5305 = vsub.f32 %v3899, %v4409
    %v5306 = vsub.f32 %v3904, %v4410
    %v5307 = vsub.f32 %v3909, %v4411
    %v5308 = vsub.f32 %v3914, %v4412
    %v5309 = vsub.f32 %v3919, %v4413
    %v5310 = vsub.f32 %v3924, %v4414
    %v5311 = vsub.f32 %v3929, %v4415
    %v5312 = vsub.f32 %v3934, %v4416
    %v5313 = vsub.f32 %v3939, %v4417
    %v5314 = vsub.f32 %v3944, %v4418
    %v5315 = vsub.f32 %v3949, %v4419
    %v5316 = vsub.f32 %v3954, %v4420
    %v5317 = vsub.f32 %v3959, %v4421
    %v5318 = vsub.f32 %v3964, %v4422
    %v5319 = vsub.f32 %v3969, %v4423
    %v5320 = vsub.f32 %v3974, %v4424
    %v5321 = vsub.f32 %v3979, %v4425
    %v5322 = vsub.f32 %v3984, %v4426
    %v5323 = vsub.f32 %v3989, %v4427
    %v5324 = vsub.f32 %v3994, %v4428
    %v5325 = vsub.f32 %v3999, %v4429
    %v5326 = vsub.f32 %v4004, %v4430
    %v5327 = vsub.f32 %v4009, %v4431
    %v5328 = vsub.f32 %v4014, %v4432
    %v5329 = vsub.f32 %v4019, %v4433
    %v5330 = vsub.f32 %v4024, %v4434
    %v5331 = vsub.f32 %v4029, %v4435
    %v5332 = vsub.f32 %v4034, %v4436
    %v5333 = vsub.f32 %v4039, %v4437
    %v5334 = vsub.f32 %v4044, %v4438
    %v5335 = vsub.f32 %v4049, %v4439
    %v5336 = vadd.f32 %v5080, 1e-05
    %v5337 = vadd.f32 %v5081, 1e-05
    %v5338 = vadd.f32 %v5082, 1e-05
    %v5339 = vadd.f32 %v5083, 1e-05
    %v5340 = vadd.f32 %v5084, 1e-05
    %v5341 = vadd.f32 %v5085, 1e-05
    %v5342 = vadd.f32 %v5086, 1e-05
    %v5343 = vadd.f32 %v5087, 1e-05
    %v5344 = vadd.f32 %v5088, 1e-05
    %v5345 = vadd.f32 %v5089, 1e-05
    %v5346 = vadd.f32 %v5090, 1e-05
    %v5347 = vadd.f32 %v5091, 1e-05
    %v5348 = vadd.f32 %v5092, 1e-05
    %v5349 = vadd.f32 %v5093, 1e-05
    %v5350 = vadd.f32 %v5094, 1e-05
    %v5351 = vadd.f32 %v5095, 1e-05
    %v5352 = vadd.f32 %v5096, 1e-05
    %v5353 = vadd.f32 %v5097, 1e-05
    %v5354 = vadd.f32 %v5098, 1e-05
    %v5355 = vadd.f32 %v5099, 1e-05
    %v5356 = vadd.f32 %v5100, 1e-05
    %v5357 = vadd.f32 %v5101, 1e-05
    %v5358 = vadd.f32 %v5102, 1e-05
    %v5359 = vadd.f32 %v5103, 1e-05
    %v5360 = vadd.f32 %v5104, 1e-05
    %v5361 = vadd.f32 %v5105, 1e-05
    %v5362 = vadd.f32 %v5106, 1e-05
    %v5363 = vadd.f32 %v5107, 1e-05
    %v5364 = vadd.f32 %v5108, 1e-05
    %v5365 = vadd.f32 %v5109, 1e-05
    %v5366 = vadd.f32 %v5110, 1e-05
    %v5367 = vadd.f32 %v5111, 1e-05
    %v5368 = vadd.f32 %v5112, 1e-05
    %v5369 = vadd.f32 %v5113, 1e-05
    %v5370 = vadd.f32 %v5114, 1e-05
    %v5371 = vadd.f32 %v5115, 1e-05
    %v5372 = vadd.f32 %v5116, 1e-05
    %v5373 = vadd.f32 %v5117, 1e-05
    %v5374 = vadd.f32 %v5118, 1e-05
    %v5375 = vadd.f32 %v5119, 1e-05
    %v5376 = vadd.f32 %v5120, 1e-05
    %v5377 = vadd.f32 %v5121, 1e-05
    %v5378 = vadd.f32 %v5122, 1e-05
    %v5379 = vadd.f32 %v5123, 1e-05
    %v5380 = vadd.f32 %v5124, 1e-05
    %v5381 = vadd.f32 %v5125, 1e-05
    %v5382 = vadd.f32 %v5126, 1e-05
    %v5383 = vadd.f32 %v5127, 1e-05
    %v5384 = vadd.f32 %v5128, 1e-05
    %v5385 = vadd.f32 %v5129, 1e-05
    %v5386 = vadd.f32 %v5130, 1e-05
    %v5387 = vadd.f32 %v5131, 1e-05
    %v5388 = vadd.f32 %v5132, 1e-05
    %v5389 = vadd.f32 %v5133, 1e-05
    %v5390 = vadd.f32 %v5134, 1e-05
    %v5391 = vadd.f32 %v5135, 1e-05
    %v5392 = vadd.f32 %v5136, 1e-05
    %v5393 = vadd.f32 %v5137, 1e-05
    %v5394 = vadd.f32 %v5138, 1e-05
    %v5395 = vadd.f32 %v5139, 1e-05
    %v5396 = vadd.f32 %v5140, 1e-05
    %v5397 = vadd.f32 %v5141, 1e-05
    %v5398 = vadd.f32 %v5142, 1e-05
    %v5399 = vadd.f32 %v5143, 1e-05
    %v5400 = vadd.f32 %v5144, 1e-05
    %v5401 = vadd.f32 %v5145, 1e-05
    %v5402 = vadd.f32 %v5146, 1e-05
    %v5403 = vadd.f32 %v5147, 1e-05
    %v5404 = vadd.f32 %v5148, 1e-05
    %v5405 = vadd.f32 %v5149, 1e-05
    %v5406 = vadd.f32 %v5150, 1e-05
    %v5407 = vadd.f32 %v5151, 1e-05
    %v5408 = vadd.f32 %v5152, 1e-05
    %v5409 = vadd.f32 %v5153, 1e-05
    %v5410 = vadd.f32 %v5154, 1e-05
    %v5411 = vadd.f32 %v5155, 1e-05
    %v5412 = vadd.f32 %v5156, 1e-05
    %v5413 = vadd.f32 %v5157, 1e-05
    %v5414 = vadd.f32 %v5158, 1e-05
    %v5415 = vadd.f32 %v5159, 1e-05
    %v5416 = vadd.f32 %v5160, 1e-05
    %v5417 = vadd.f32 %v5161, 1e-05
    %v5418 = vadd.f32 %v5162, 1e-05
    %v5419 = vadd.f32 %v5163, 1e-05
    %v5420 = vadd.f32 %v5164, 1e-05
    %v5421 = vadd.f32 %v5165, 1e-05
    %v5422 = vadd.f32 %v5166, 1e-05
    %v5423 = vadd.f32 %v5167, 1e-05
    %v5424 = vadd.f32 %v5168, 1e-05
    %v5425 = vadd.f32 %v5169, 1e-05
    %v5426 = vadd.f32 %v5170, 1e-05
    %v5427 = vadd.f32 %v5171, 1e-05
    %v5428 = vadd.f32 %v5172, 1e-05
    %v5429 = vadd.f32 %v5173, 1e-05
    %v5430 = vadd.f32 %v5174, 1e-05
    %v5431 = vadd.f32 %v5175, 1e-05
    %v5432 = vadd.f32 %v5176, 1e-05
    %v5433 = vadd.f32 %v5177, 1e-05
    %v5434 = vadd.f32 %v5178, 1e-05
    %v5435 = vadd.f32 %v5179, 1e-05
    %v5436 = vadd.f32 %v5180, 1e-05
    %v5437 = vadd.f32 %v5181, 1e-05
    %v5438 = vadd.f32 %v5182, 1e-05
    %v5439 = vadd.f32 %v5183, 1e-05
    %v5440 = vadd.f32 %v5184, 1e-05
    %v5441 = vadd.f32 %v5185, 1e-05
    %v5442 = vadd.f32 %v5186, 1e-05
    %v5443 = vadd.f32 %v5187, 1e-05
    %v5444 = vadd.f32 %v5188, 1e-05
    %v5445 = vadd.f32 %v5189, 1e-05
    %v5446 = vadd.f32 %v5190, 1e-05
    %v5447 = vadd.f32 %v5191, 1e-05
    %v5448 = vadd.f32 %v5192, 1e-05
    %v5449 = vadd.f32 %v5193, 1e-05
    %v5450 = vadd.f32 %v5194, 1e-05
    %v5451 = vadd.f32 %v5195, 1e-05
    %v5452 = vadd.f32 %v5196, 1e-05
    %v5453 = vadd.f32 %v5197, 1e-05
    %v5454 = vadd.f32 %v5198, 1e-05
    %v5455 = vadd.f32 %v5199, 1e-05
    %v5456 = vadd.f32 %v5200, 1e-05
    %v5457 = vadd.f32 %v5201, 1e-05
    %v5458 = vadd.f32 %v5202, 1e-05
    %v5459 = vadd.f32 %v5203, 1e-05
    %v5460 = vadd.f32 %v5204, 1e-05
    %v5461 = vadd.f32 %v5205, 1e-05
    %v5462 = vadd.f32 %v5206, 1e-05
    %v5463 = vadd.f32 %v5207, 1e-05
    %v5464 = vrsqrt.pop %v5336
    %v5465 = vrsqrt.pop %v5337
    %v5466 = vrsqrt.pop %v5338
    %v5467 = vrsqrt.pop %v5339
    %v5468 = vrsqrt.pop %v5340
    %v5469 = vrsqrt.pop %v5341
    %v5470 = vrsqrt.pop %v5342
    %v5471 = vrsqrt.pop %v5343
    %v5472 = vrsqrt.pop %v5344
    %v5473 = vrsqrt.pop %v5345
    %v5474 = vrsqrt.pop %v5346
    %v5475 = vrsqrt.pop %v5347
    %v5476 = vrsqrt.pop %v5348
    %v5477 = vrsqrt.pop %v5349
    %v5478 = vrsqrt.pop %v5350
    %v5479 = vrsqrt.pop %v5351
    %v5480 = vrsqrt.pop %v5352
    %v5481 = vrsqrt.pop %v5353
    %v5482 = vrsqrt.pop %v5354
    %v5483 = vrsqrt.pop %v5355
    %v5484 = vrsqrt.pop %v5356
    %v5485 = vrsqrt.pop %v5357
    %v5486 = vrsqrt.pop %v5358
    %v5487 = vrsqrt.pop %v5359
    %v5488 = vrsqrt.pop %v5360
    %v5489 = vrsqrt.pop %v5361
    %v5490 = vrsqrt.pop %v5362
    %v5491 = vrsqrt.pop %v5363
    %v5492 = vrsqrt.pop %v5364
    %v5493 = vrsqrt.pop %v5365
    %v5494 = vrsqrt.pop %v5366
    %v5495 = vrsqrt.pop %v5367
    %v5496 = vrsqrt.pop %v5368
    %v5497 = vrsqrt.pop %v5369
    %v5498 = vrsqrt.pop %v5370
    %v5499 = vrsqrt.pop %v5371
    %v5500 = vrsqrt.pop %v5372
    %v5501 = vrsqrt.pop %v5373
    %v5502 = vrsqrt.pop %v5374
    %v5503 = vrsqrt.pop %v5375
    %v5504 = vrsqrt.pop %v5376
    %v5505 = vrsqrt.pop %v5377
    %v5506 = vrsqrt.pop %v5378
    %v5507 = vrsqrt.pop %v5379
    %v5508 = vrsqrt.pop %v5380
    %v5509 = vrsqrt.pop %v5381
    %v5510 = vrsqrt.pop %v5382
    %v5511 = vrsqrt.pop %v5383
    %v5512 = vrsqrt.pop %v5384
    %v5513 = vrsqrt.pop %v5385
    %v5514 = vrsqrt.pop %v5386
    %v5515 = vrsqrt.pop %v5387
    %v5516 = vrsqrt.pop %v5388
    %v5517 = vrsqrt.pop %v5389
    %v5518 = vrsqrt.pop %v5390
    %v5519 = vrsqrt.pop %v5391
    %v5520 = vrsqrt.pop %v5392
    %v5521 = vrsqrt.pop %v5393
    %v5522 = vrsqrt.pop %v5394
    %v5523 = vrsqrt.pop %v5395
    %v5524 = vrsqrt.pop %v5396
    %v5525 = vrsqrt.pop %v5397
    %v5526 = vrsqrt.pop %v5398
    %v5527 = vrsqrt.pop %v5399
    %v5528 = vrsqrt.pop %v5400
    %v5529 = vrsqrt.pop %v5401
    %v5530 = vrsqrt.pop %v5402
    %v5531 = vrsqrt.pop %v5403
    %v5532 = vrsqrt.pop %v5404
    %v5533 = vrsqrt.pop %v5405
    %v5534 = vrsqrt.pop %v5406
    %v5535 = vrsqrt.pop %v5407
    %v5536 = vrsqrt.pop %v5408
    %v5537 = vrsqrt.pop %v5409
    %v5538 = vrsqrt.pop %v5410
    %v5539 = vrsqrt.pop %v5411
    %v5540 = vrsqrt.pop %v5412
    %v5541 = vrsqrt.pop %v5413
    %v5542 = vrsqrt.pop %v5414
    %v5543 = vrsqrt.pop %v5415
    %v5544 = vrsqrt.pop %v5416
    %v5545 = vrsqrt.pop %v5417
    %v5546 = vrsqrt.pop %v5418
    %v5547 = vrsqrt.pop %v5419
    %v5548 = vrsqrt.pop %v5420
    %v5549 = vrsqrt.pop %v5421
    %v5550 = vrsqrt.pop %v5422
    %v5551 = vrsqrt.pop %v5423
    %v5552 = vrsqrt.pop %v5424
    %v5553 = vrsqrt.pop %v5425
    %v5554 = vrsqrt.pop %v5426
    %v5555 = vrsqrt.pop %v5427
    %v5556 = vrsqrt.pop %v5428
    %v5557 = vrsqrt.pop %v5429
    %v5558 = vrsqrt.pop %v5430
    %v5559 = vrsqrt.pop %v5431
    %v5560 = vrsqrt.pop %v5432
    %v5561 = vrsqrt.pop %v5433
    %v5562 = vrsqrt.pop %v5434
    %v5563 = vrsqrt.pop %v5435
    %v5564 = vrsqrt.pop %v5436
    %v5565 = vrsqrt.pop %v5437
    %v5566 = vrsqrt.pop %v5438
    %v5567 = vrsqrt.pop %v5439
    %v5568 = vrsqrt.pop %v5440
    %v5569 = vrsqrt.pop %v5441
    %v5570 = vrsqrt.pop %v5442
    %v5571 = vrsqrt.pop %v5443
    %v5572 = vrsqrt.pop %v5444
    %v5573 = vrsqrt.pop %v5445
    %v5574 = vrsqrt.pop %v5446
    %v5575 = vrsqrt.pop %v5447
    %v5576 = vrsqrt.pop %v5448
    %v5577 = vrsqrt.pop %v5449
    %v5578 = vrsqrt.pop %v5450
    %v5579 = vrsqrt.pop %v5451
    %v5580 = vrsqrt.pop %v5452
    %v5581 = vrsqrt.pop %v5453
    %v5582 = vrsqrt.pop %v5454
    %v5583 = vrsqrt.pop %v5455
    %v5584 = vrsqrt.pop %v5456
    %v5585 = vrsqrt.pop %v5457
    %v5586 = vrsqrt.pop %v5458
    %v5587 = vrsqrt.pop %v5459
    %v5588 = vrsqrt.pop %v5460
    %v5589 = vrsqrt.pop %v5461
    %v5590 = vrsqrt.pop %v5462
    %v5591 = vrsqrt.pop %v5463
    %v5592 = vmul.f32 %v5208, %v5464
    %v5593 = vmul.f32 %v5209, %v5465
    %v5594 = vmul.f32 %v5210, %v5466
    %v5595 = vmul.f32 %v5211, %v5467
    %v5596 = vmul.f32 %v5212, %v5468
    %v5597 = vmul.f32 %v5213, %v5469
    %v5598 = vmul.f32 %v5214, %v5470
    %v5599 = vmul.f32 %v5215, %v5471
    %v5600 = vmul.f32 %v5216, %v5472
    %v5601 = vmul.f32 %v5217, %v5473
    %v5602 = vmul.f32 %v5218, %v5474
    %v5603 = vmul.f32 %v5219, %v5475
    %v5604 = vmul.f32 %v5220, %v5476
    %v5605 = vmul.f32 %v5221, %v5477
    %v5606 = vmul.f32 %v5222, %v5478
    %v5607 = vmul.f32 %v5223, %v5479
    %v5608 = vmul.f32 %v5224, %v5480
    %v5609 = vmul.f32 %v5225, %v5481
    %v5610 = vmul.f32 %v5226, %v5482
    %v5611 = vmul.f32 %v5227, %v5483
    %v5612 = vmul.f32 %v5228, %v5484
    %v5613 = vmul.f32 %v5229, %v5485
    %v5614 = vmul.f32 %v5230, %v5486
    %v5615 = vmul.f32 %v5231, %v5487
    %v5616 = vmul.f32 %v5232, %v5488
    %v5617 = vmul.f32 %v5233, %v5489
    %v5618 = vmul.f32 %v5234, %v5490
    %v5619 = vmul.f32 %v5235, %v5491
    %v5620 = vmul.f32 %v5236, %v5492
    %v5621 = vmul.f32 %v5237, %v5493
    %v5622 = vmul.f32 %v5238, %v5494
    %v5623 = vmul.f32 %v5239, %v5495
    %v5624 = vmul.f32 %v5240, %v5496
    %v5625 = vmul.f32 %v5241, %v5497
    %v5626 = vmul.f32 %v5242, %v5498
    %v5627 = vmul.f32 %v5243, %v5499
    %v5628 = vmul.f32 %v5244, %v5500
    %v5629 = vmul.f32 %v5245, %v5501
    %v5630 = vmul.f32 %v5246, %v5502
    %v5631 = vmul.f32 %v5247, %v5503
    %v5632 = vmul.f32 %v5248, %v5504
    %v5633 = vmul.f32 %v5249, %v5505
    %v5634 = vmul.f32 %v5250, %v5506
    %v5635 = vmul.f32 %v5251, %v5507
    %v5636 = vmul.f32 %v5252, %v5508
    %v5637 = vmul.f32 %v5253, %v5509
    %v5638 = vmul.f32 %v5254, %v5510
    %v5639 = vmul.f32 %v5255, %v5511
    %v5640 = vmul.f32 %v5256, %v5512
    %v5641 = vmul.f32 %v5257, %v5513
    %v5642 = vmul.f32 %v5258, %v5514
    %v5643 = vmul.f32 %v5259, %v5515
    %v5644 = vmul.f32 %v5260, %v5516
    %v5645 = vmul.f32 %v5261, %v5517
    %v5646 = vmul.f32 %v5262, %v5518
    %v5647 = vmul.f32 %v5263, %v5519
    %v5648 = vmul.f32 %v5264, %v5520
    %v5649 = vmul.f32 %v5265, %v5521
    %v5650 = vmul.f32 %v5266, %v5522
    %v5651 = vmul.f32 %v5267, %v5523
    %v5652 = vmul.f32 %v5268, %v5524
    %v5653 = vmul.f32 %v5269, %v5525
    %v5654 = vmul.f32 %v5270, %v5526
    %v5655 = vmul.f32 %v5271, %v5527
    %v5656 = vmul.f32 %v5272, %v5528
    %v5657 = vmul.f32 %v5273, %v5529
    %v5658 = vmul.f32 %v5274, %v5530
    %v5659 = vmul.f32 %v5275, %v5531
    %v5660 = vmul.f32 %v5276, %v5532
    %v5661 = vmul.f32 %v5277, %v5533
    %v5662 = vmul.f32 %v5278, %v5534
    %v5663 = vmul.f32 %v5279, %v5535
    %v5664 = vmul.f32 %v5280, %v5536
    %v5665 = vmul.f32 %v5281, %v5537
    %v5666 = vmul.f32 %v5282, %v5538
    %v5667 = vmul.f32 %v5283, %v5539
    %v5668 = vmul.f32 %v5284, %v5540
    %v5669 = vmul.f32 %v5285, %v5541
    %v5670 = vmul.f32 %v5286, %v5542
    %v5671 = vmul.f32 %v5287, %v5543
    %v5672 = vmul.f32 %v5288, %v5544
    %v5673 = vmul.f32 %v5289, %v5545
    %v5674 = vmul.f32 %v5290, %v5546
    %v5675 = vmul.f32 %v5291, %v5547
    %v5676 = vmul.f32 %v5292, %v5548
    %v5677 = vmul.f32 %v5293, %v5549
    %v5678 = vmul.f32 %v5294, %v5550
    %v5679 = vmul.f32 %v5295, %v5551
    %v5680 = vmul.f32 %v5296, %v5552
    %v5681 = vmul.f32 %v5297, %v5553
    %v5682 = vmul.f32 %v5298, %v5554
    %v5683 = vmul.f32 %v5299, %v5555
    %v5684 = vmul.f32 %v5300, %v5556
    %v5685 = vmul.f32 %v5301, %v5557
    %v5686 = vmul.f32 %v5302, %v5558
    %v5687 = vmul.f32 %v5303, %v5559
    %v5688 = vmul.f32 %v5304, %v5560
    %v5689 = vmul.f32 %v5305, %v5561
    %v5690 = vmul.f32 %v5306, %v5562
    %v5691 = vmul.f32 %v5307, %v5563
    %v5692 = vmul.f32 %v5308, %v5564
    %v5693 = vmul.f32 %v5309, %v5565
    %v5694 = vmul.f32 %v5310, %v5566
    %v5695 = vmul.f32 %v5311, %v5567
    %v5696 = vmul.f32 %v5312, %v5568
    %v5697 = vmul.f32 %v5313, %v5569
    %v5698 = vmul.f32 %v5314, %v5570
    %v5699 = vmul.f32 %v5315, %v5571
    %v5700 = vmul.f32 %v5316, %v5572
    %v5701 = vmul.f32 %v5317, %v5573
    %v5702 = vmul.f32 %v5318, %v5574
    %v5703 = vmul.f32 %v5319, %v5575
    %v5704 = vmul.f32 %v5320, %v5576
    %v5705 = vmul.f32 %v5321, %v5577
    %v5706 = vmul.f32 %v5322, %v5578
    %v5707 = vmul.f32 %v5323, %v5579
    %v5708 = vmul.f32 %v5324, %v5580
    %v5709 = vmul.f32 %v5325, %v5581
    %v5710 = vmul.f32 %v5326, %v5582
    %v5711 = vmul.f32 %v5327, %v5583
    %v5712 = vmul.f32 %v5328, %v5584
    %v5713 = vmul.f32 %v5329, %v5585
    %v5714 = vmul.f32 %v5330, %v5586
    %v5715 = vmul.f32 %v5331, %v5587
    %v5716 = vmul.f32 %v5332, %v5588
    %v5717 = vmul.f32 %v5333, %v5589
    %v5718 = vmul.f32 %v5334, %v5590
    %v5719 = vmul.f32 %v5335, %v5591
    %v5721 = vlaneseq
    %v5722 = vshrl.u32 %v5721, 7
    %v5723 = vsub.s32 0, %v5722
    %v5724 = vrot.slane %v4053, %v5723
    %v5726 = vmul.f32 %v5592, %v5724
    %v5727 = vmul.f32 %v5593, %v5724
    %v5728 = vmul.f32 %v5594, %v5724
    %v5729 = vmul.f32 %v5595, %v5724
    %v5730 = vmul.f32 %v5596, %v5724
    %v5731 = vmul.f32 %v5597, %v5724
    %v5732 = vmul.f32 %v5598, %v5724
    %v5733 = vmul.f32 %v5599, %v5724
    %v5734 = vmul.f32 %v5600, %v5724
    %v5735 = vmul.f32 %v5601, %v5724
    %v5736 = vmul.f32 %v5602, %v5724
    %v5737 = vmul.f32 %v5603, %v5724
    %v5738 = vmul.f32 %v5604, %v5724
    %v5739 = vmul.f32 %v5605, %v5724
    %v5740 = vmul.f32 %v5606, %v5724
    %v5741 = vmul.f32 %v5607, %v5724
    %v5742 = vmul.f32 %v5608, %v5724
    %v5743 = vmul.f32 %v5609, %v5724
    %v5744 = vmul.f32 %v5610, %v5724
    %v5745 = vmul.f32 %v5611, %v5724
    %v5746 = vmul.f32 %v5612, %v5724
    %v5747 = vmul.f32 %v5613, %v5724
    %v5748 = vmul.f32 %v5614, %v5724
    %v5749 = vmul.f32 %v5615, %v5724
    %v5750 = vmul.f32 %v5616, %v5724
    %v5751 = vmul.f32 %v5617, %v5724
    %v5752 = vmul.f32 %v5618, %v5724
    %v5753 = vmul.f32 %v5619, %v5724
    %v5754 = vmul.f32 %v5620, %v5724
    %v5755 = vmul.f32 %v5621, %v5724
    %v5756 = vmul.f32 %v5622, %v5724
    %v5757 = vmul.f32 %v5623, %v5724
    %v5758 = vmul.f32 %v5624, %v5724
    %v5759 = vmul.f32 %v5625, %v5724
    %v5760 = vmul.f32 %v5626, %v5724
    %v5761 = vmul.f32 %v5627, %v5724
    %v5762 = vmul.f32 %v5628, %v5724
    %v5763 = vmul.f32 %v5629, %v5724
    %v5764 = vmul.f32 %v5630, %v5724
    %v5765 = vmul.f32 %v5631, %v5724
    %v5766 = vmul.f32 %v5632, %v5724
    %v5767 = vmul.f32 %v5633, %v5724
    %v5768 = vmul.f32 %v5634, %v5724
    %v5769 = vmul.f32 %v5635, %v5724
    %v5770 = vmul.f32 %v5636, %v5724
    %v5771 = vmul.f32 %v5637, %v5724
    %v5772 = vmul.f32 %v5638, %v5724
    %v5773 = vmul.f32 %v5639, %v5724
    %v5774 = vmul.f32 %v5640, %v5724
    %v5775 = vmul.f32 %v5641, %v5724
    %v5776 = vmul.f32 %v5642, %v5724
    %v5777 = vmul.f32 %v5643, %v5724
    %v5778 = vmul.f32 %v5644, %v5724
    %v5779 = vmul.f32 %v5645, %v5724
    %v5780 = vmul.f32 %v5646, %v5724
    %v5781 = vmul.f32 %v5647, %v5724
    %v5782 = vmul.f32 %v5648, %v5724
    %v5783 = vmul.f32 %v5649, %v5724
    %v5784 = vmul.f32 %v5650, %v5724
    %v5785 = vmul.f32 %v5651, %v5724
    %v5786 = vmul.f32 %v5652, %v5724
    %v5787 = vmul.f32 %v5653, %v5724
    %v5788 = vmul.f32 %v5654, %v5724
    %v5789 = vmul.f32 %v5655, %v5724
    %v5790 = vmul.f32 %v5656, %v5724
    %v5791 = vmul.f32 %v5657, %v5724
    %v5792 = vmul.f32 %v5658, %v5724
    %v5793 = vmul.f32 %v5659, %v5724
    %v5794 = vmul.f32 %v5660, %v5724
    %v5795 = vmul.f32 %v5661, %v5724
    %v5796 = vmul.f32 %v5662, %v5724
    %v5797 = vmul.f32 %v5663, %v5724
    %v5798 = vmul.f32 %v5664, %v5724
    %v5799 = vmul.f32 %v5665, %v5724
    %v5800 = vmul.f32 %v5666, %v5724
    %v5801 = vmul.f32 %v5667, %v5724
    %v5802 = vmul.f32 %v5668, %v5724
    %v5803 = vmul.f32 %v5669, %v5724
    %v5804 = vmul.f32 %v5670, %v5724
    %v5805 = vmul.f32 %v5671, %v5724
    %v5806 = vmul.f32 %v5672, %v5724
    %v5807 = vmul.f32 %v5673, %v5724
    %v5808 = vmul.f32 %v5674, %v5724
    %v5809 = vmul.f32 %v5675, %v5724
    %v5810 = vmul.f32 %v5676, %v5724
    %v5811 = vmul.f32 %v5677, %v5724
    %v5812 = vmul.f32 %v5678, %v5724
    %v5813 = vmul.f32 %v5679, %v5724
    %v5814 = vmul.f32 %v5680, %v5724
    %v5815 = vmul.f32 %v5681, %v5724
    %v5816 = vmul.f32 %v5682, %v5724
    %v5817 = vmul.f32 %v5683, %v5724
    %v5818 = vmul.f32 %v5684, %v5724
    %v5819 = vmul.f32 %v5685, %v5724
    %v5820 = vmul.f32 %v5686, %v5724
    %v5821 = vmul.f32 %v5687, %v5724
    %v5822 = vmul.f32 %v5688, %v5724
    %v5823 = vmul.f32 %v5689, %v5724
    %v5824 = vmul.f32 %v5690, %v5724
    %v5825 = vmul.f32 %v5691, %v5724
    %v5826 = vmul.f32 %v5692, %v5724
    %v5827 = vmul.f32 %v5693, %v5724
    %v5828 = vmul.f32 %v5694, %v5724
    %v5829 = vmul.f32 %v5695, %v5724
    %v5830 = vmul.f32 %v5696, %v5724
    %v5831 = vmul.f32 %v5697, %v5724
    %v5832 = vmul.f32 %v5698, %v5724
    %v5833 = vmul.f32 %v5699, %v5724
    %v5834 = vmul.f32 %v5700, %v5724
    %v5835 = vmul.f32 %v5701, %v5724
    %v5836 = vmul.f32 %v5702, %v5724
    %v5837 = vmul.f32 %v5703, %v5724
    %v5838 = vmul.f32 %v5704, %v5724
    %v5839 = vmul.f32 %v5705, %v5724
    %v5840 = vmul.f32 %v5706, %v5724
    %v5841 = vmul.f32 %v5707, %v5724
    %v5842 = vmul.f32 %v5708, %v5724
    %v5843 = vmul.f32 %v5709, %v5724
    %v5844 = vmul.f32 %v5710, %v5724
    %v5845 = vmul.f32 %v5711, %v5724
    %v5846 = vmul.f32 %v5712, %v5724
    %v5847 = vmul.f32 %v5713, %v5724
    %v5848 = vmul.f32 %v5714, %v5724
    %v5849 = vmul.f32 %v5715, %v5724
    %v5850 = vmul.f32 %v5716, %v5724
    %v5851 = vmul.f32 %v5717, %v5724
    %v5852 = vmul.f32 %v5718, %v5724
    %v5853 = vmul.f32 %v5719, %v5724
    %v5855 = vlaneseq
    %v5856 = vshrl.u32 %v5855, 7
    %v5857 = vsub.s32 0, %v5856
    %v5858 = vrot.slane %v4055, %v5857
    %v5860 = vadd.f32 %v5726, %v5858
    %v5861 = vadd.f32 %v5727, %v5858
    %v5862 = vadd.f32 %v5728, %v5858
    %v5863 = vadd.f32 %v5729, %v5858
    %v5864 = vadd.f32 %v5730, %v5858
    %v5865 = vadd.f32 %v5731, %v5858
    %v5866 = vadd.f32 %v5732, %v5858
    %v5867 = vadd.f32 %v5733, %v5858
    %v5868 = vadd.f32 %v5734, %v5858
    %v5869 = vadd.f32 %v5735, %v5858
    %v5870 = vadd.f32 %v5736, %v5858
    %v5871 = vadd.f32 %v5737, %v5858
    %v5872 = vadd.f32 %v5738, %v5858
    %v5873 = vadd.f32 %v5739, %v5858
    %v5874 = vadd.f32 %v5740, %v5858
    %v5875 = vadd.f32 %v5741, %v5858
    %v5876 = vadd.f32 %v5742, %v5858
    %v5877 = vadd.f32 %v5743, %v5858
    %v5878 = vadd.f32 %v5744, %v5858
    %v5879 = vadd.f32 %v5745, %v5858
    %v5880 = vadd.f32 %v5746, %v5858
    %v5881 = vadd.f32 %v5747, %v5858
    %v5882 = vadd.f32 %v5748, %v5858
    %v5883 = vadd.f32 %v5749, %v5858
    %v5884 = vadd.f32 %v5750, %v5858
    %v5885 = vadd.f32 %v5751, %v5858
    %v5886 = vadd.f32 %v5752, %v5858
    %v5887 = vadd.f32 %v5753, %v5858
    %v5888 = vadd.f32 %v5754, %v5858
    %v5889 = vadd.f32 %v5755, %v5858
    %v5890 = vadd.f32 %v5756, %v5858
    %v5891 = vadd.f32 %v5757, %v5858
    %v5892 = vadd.f32 %v5758, %v5858
    %v5893 = vadd.f32 %v5759, %v5858
    %v5894 = vadd.f32 %v5760, %v5858
    %v5895 = vadd.f32 %v5761, %v5858
    %v5896 = vadd.f32 %v5762, %v5858
    %v5897 = vadd.f32 %v5763, %v5858
    %v5898 = vadd.f32 %v5764, %v5858
    %v5899 = vadd.f32 %v5765, %v5858
    %v5900 = vadd.f32 %v5766, %v5858
    %v5901 = vadd.f32 %v5767, %v5858
    %v5902 = vadd.f32 %v5768, %v5858
    %v5903 = vadd.f32 %v5769, %v5858
    %v5904 = vadd.f32 %v5770, %v5858
    %v5905 = vadd.f32 %v5771, %v5858
    %v5906 = vadd.f32 %v5772, %v5858
    %v5907 = vadd.f32 %v5773, %v5858
    %v5908 = vadd.f32 %v5774, %v5858
    %v5909 = vadd.f32 %v5775, %v5858
    %v5910 = vadd.f32 %v5776, %v5858
    %v5911 = vadd.f32 %v5777, %v5858
    %v5912 = vadd.f32 %v5778, %v5858
    %v5913 = vadd.f32 %v5779, %v5858
    %v5914 = vadd.f32 %v5780, %v5858
    %v5915 = vadd.f32 %v5781, %v5858
    %v5916 = vadd.f32 %v5782, %v5858
    %v5917 = vadd.f32 %v5783, %v5858
    %v5918 = vadd.f32 %v5784, %v5858
    %v5919 = vadd.f32 %v5785, %v5858
    %v5920 = vadd.f32 %v5786, %v5858
    %v5921 = vadd.f32 %v5787, %v5858
    %v5922 = vadd.f32 %v5788, %v5858
    %v5923 = vadd.f32 %v5789, %v5858
    %v5924 = vadd.f32 %v5790, %v5858
    %v5925 = vadd.f32 %v5791, %v5858
    %v5926 = vadd.f32 %v5792, %v5858
    %v5927 = vadd.f32 %v5793, %v5858
    %v5928 = vadd.f32 %v5794, %v5858
    %v5929 = vadd.f32 %v5795, %v5858
    %v5930 = vadd.f32 %v5796, %v5858
    %v5931 = vadd.f32 %v5797, %v5858
    %v5932 = vadd.f32 %v5798, %v5858
    %v5933 = vadd.f32 %v5799, %v5858
    %v5934 = vadd.f32 %v5800, %v5858
    %v5935 = vadd.f32 %v5801, %v5858
    %v5936 = vadd.f32 %v5802, %v5858
    %v5937 = vadd.f32 %v5803, %v5858
    %v5938 = vadd.f32 %v5804, %v5858
    %v5939 = vadd.f32 %v5805, %v5858
    %v5940 = vadd.f32 %v5806, %v5858
    %v5941 = vadd.f32 %v5807, %v5858
    %v5942 = vadd.f32 %v5808, %v5858
    %v5943 = vadd.f32 %v5809, %v5858
    %v5944 = vadd.f32 %v5810, %v5858
    %v5945 = vadd.f32 %v5811, %v5858
    %v5946 = vadd.f32 %v5812, %v5858
    %v5947 = vadd.f32 %v5813, %v5858
    %v5948 = vadd.f32 %v5814, %v5858
    %v5949 = vadd.f32 %v5815, %v5858
    %v5950 = vadd.f32 %v5816, %v5858
    %v5951 = vadd.f32 %v5817, %v5858
    %v5952 = vadd.f32 %v5818, %v5858
    %v5953 = vadd.f32 %v5819, %v5858
    %v5954 = vadd.f32 %v5820, %v5858
    %v5955 = vadd.f32 %v5821, %v5858
    %v5956 = vadd.f32 %v5822, %v5858
    %v5957 = vadd.f32 %v5823, %v5858
    %v5958 = vadd.f32 %v5824, %v5858
    %v5959 = vadd.f32 %v5825, %v5858
    %v5960 = vadd.f32 %v5826, %v5858
    %v5961 = vadd.f32 %v5827, %v5858
    %v5962 = vadd.f32 %v5828, %v5858
    %v5963 = vadd.f32 %v5829, %v5858
    %v5964 = vadd.f32 %v5830, %v5858
    %v5965 = vadd.f32 %v5831, %v5858
    %v5966 = vadd.f32 %v5832, %v5858
    %v5967 = vadd.f32 %v5833, %v5858
    %v5968 = vadd.f32 %v5834, %v5858
    %v5969 = vadd.f32 %v5835, %v5858
    %v5970 = vadd.f32 %v5836, %v5858
    %v5971 = vadd.f32 %v5837, %v5858
    %v5972 = vadd.f32 %v5838, %v5858
    %v5973 = vadd.f32 %v5839, %v5858
    %v5974 = vadd.f32 %v5840, %v5858
    %v5975 = vadd.f32 %v5841, %v5858
    %v5976 = vadd.f32 %v5842, %v5858
    %v5977 = vadd.f32 %v5843, %v5858
    %v5978 = vadd.f32 %v5844, %v5858
    %v5979 = vadd.f32 %v5845, %v5858
    %v5980 = vadd.f32 %v5846, %v5858
    %v5981 = vadd.f32 %v5847, %v5858
    %v5982 = vadd.f32 %v5848, %v5858
    %v5983 = vadd.f32 %v5849, %v5858
    %v5984 = vadd.f32 %v5850, %v5858
    %v5985 = vadd.f32 %v5851, %v5858
    %v5986 = vadd.f32 %v5852, %v5858
    %v5987 = vadd.f32 %v5853, %v5858
    %v5988 = vmax.f32 %v5860, 0.0
    %v5989 = vmax.f32 %v5861, 0.0
    %v5990 = vmax.f32 %v5862, 0.0
    %v5991 = vmax.f32 %v5863, 0.0
    %v5992 = vmax.f32 %v5864, 0.0
    %v5993 = vmax.f32 %v5865, 0.0
    %v5994 = vmax.f32 %v5866, 0.0
    %v5995 = vmax.f32 %v5867, 0.0
    %v5996 = vmax.f32 %v5868, 0.0
    %v5997 = vmax.f32 %v5869, 0.0
    %v5998 = vmax.f32 %v5870, 0.0
    %v5999 = vmax.f32 %v5871, 0.0
    %v6000 = vmax.f32 %v5872, 0.0
    %v6001 = vmax.f32 %v5873, 0.0
    %v6002 = vmax.f32 %v5874, 0.0
    %v6003 = vmax.f32 %v5875, 0.0
    %v6004 = vmax.f32 %v5876, 0.0
    %v6005 = vmax.f32 %v5877, 0.0
    %v6006 = vmax.f32 %v5878, 0.0
    %v6007 = vmax.f32 %v5879, 0.0
    %v6008 = vmax.f32 %v5880, 0.0
    %v6009 = vmax.f32 %v5881, 0.0
    %v6010 = vmax.f32 %v5882, 0.0
    %v6011 = vmax.f32 %v5883, 0.0
    %v6012 = vmax.f32 %v5884, 0.0
    %v6013 = vmax.f32 %v5885, 0.0
    %v6014 = vmax.f32 %v5886, 0.0
    %v6015 = vmax.f32 %v5887, 0.0
    %v6016 = vmax.f32 %v5888, 0.0
    %v6017 = vmax.f32 %v5889, 0.0
    %v6018 = vmax.f32 %v5890, 0.0
    %v6019 = vmax.f32 %v5891, 0.0
    %v6020 = vmax.f32 %v5892, 0.0
    %v6021 = vmax.f32 %v5893, 0.0
    %v6022 = vmax.f32 %v5894, 0.0
    %v6023 = vmax.f32 %v5895, 0.0
    %v6024 = vmax.f32 %v5896, 0.0
    %v6025 = vmax.f32 %v5897, 0.0
    %v6026 = vmax.f32 %v5898, 0.0
    %v6027 = vmax.f32 %v5899, 0.0
    %v6028 = vmax.f32 %v5900, 0.0
    %v6029 = vmax.f32 %v5901, 0.0
    %v6030 = vmax.f32 %v5902, 0.0
    %v6031 = vmax.f32 %v5903, 0.0
    %v6032 = vmax.f32 %v5904, 0.0
    %v6033 = vmax.f32 %v5905, 0.0
    %v6034 = vmax.f32 %v5906, 0.0
    %v6035 = vmax.f32 %v5907, 0.0
    %v6036 = vmax.f32 %v5908, 0.0
    %v6037 = vmax.f32 %v5909, 0.0
    %v6038 = vmax.f32 %v5910, 0.0
    %v6039 = vmax.f32 %v5911, 0.0
    %v6040 = vmax.f32 %v5912, 0.0
    %v6041 = vmax.f32 %v5913, 0.0
    %v6042 = vmax.f32 %v5914, 0.0
    %v6043 = vmax.f32 %v5915, 0.0
    %v6044 = vmax.f32 %v5916, 0.0
    %v6045 = vmax.f32 %v5917, 0.0
    %v6046 = vmax.f32 %v5918, 0.0
    %v6047 = vmax.f32 %v5919, 0.0
    %v6048 = vmax.f32 %v5920, 0.0
    %v6049 = vmax.f32 %v5921, 0.0
    %v6050 = vmax.f32 %v5922, 0.0
    %v6051 = vmax.f32 %v5923, 0.0
    %v6052 = vmax.f32 %v5924, 0.0
    %v6053 = vmax.f32 %v5925, 0.0
    %v6054 = vmax.f32 %v5926, 0.0
    %v6055 = vmax.f32 %v5927, 0.0
    %v6056 = vmax.f32 %v5928, 0.0
    %v6057 = vmax.f32 %v5929, 0.0
    %v6058 = vmax.f32 %v5930, 0.0
    %v6059 = vmax.f32 %v5931, 0.0
    %v6060 = vmax.f32 %v5932, 0.0
    %v6061 = vmax.f32 %v5933, 0.0
    %v6062 = vmax.f32 %v5934, 0.0
    %v6063 = vmax.f32 %v5935, 0.0
    %v6064 = vmax.f32 %v5936, 0.0
    %v6065 = vmax.f32 %v5937, 0.0
    %v6066 = vmax.f32 %v5938, 0.0
    %v6067 = vmax.f32 %v5939, 0.0
    %v6068 = vmax.f32 %v5940, 0.0
    %v6069 = vmax.f32 %v5941, 0.0
    %v6070 = vmax.f32 %v5942, 0.0
    %v6071 = vmax.f32 %v5943, 0.0
    %v6072 = vmax.f32 %v5944, 0.0
    %v6073 = vmax.f32 %v5945, 0.0
    %v6074 = vmax.f32 %v5946, 0.0
    %v6075 = vmax.f32 %v5947, 0.0
    %v6076 = vmax.f32 %v5948, 0.0
    %v6077 = vmax.f32 %v5949, 0.0
    %v6078 = vmax.f32 %v5950, 0.0
    %v6079 = vmax.f32 %v5951, 0.0
    %v6080 = vmax.f32 %v5952, 0.0
    %v6081 = vmax.f32 %v5953, 0.0
    %v6082 = vmax.f32 %v5954, 0.0
    %v6083 = vmax.f32 %v5955, 0.0
    %v6084 = vmax.f32 %v5956, 0.0
    %v6085 = vmax.f32 %v5957, 0.0
    %v6086 = vmax.f32 %v5958, 0.0
    %v6087 = vmax.f32 %v5959, 0.0
    %v6088 = vmax.f32 %v5960, 0.0
    %v6089 = vmax.f32 %v5961, 0.0
    %v6090 = vmax.f32 %v5962, 0.0
    %v6091 = vmax.f32 %v5963, 0.0
    %v6092 = vmax.f32 %v5964, 0.0
    %v6093 = vmax.f32 %v5965, 0.0
    %v6094 = vmax.f32 %v5966, 0.0
    %v6095 = vmax.f32 %v5967, 0.0
    %v6096 = vmax.f32 %v5968, 0.0
    %v6097 = vmax.f32 %v5969, 0.0
    %v6098 = vmax.f32 %v5970, 0.0
    %v6099 = vmax.f32 %v5971, 0.0
    %v6100 = vmax.f32 %v5972, 0.0
    %v6101 = vmax.f32 %v5973, 0.0
    %v6102 = vmax.f32 %v5974, 0.0
    %v6103 = vmax.f32 %v5975, 0.0
    %v6104 = vmax.f32 %v5976, 0.0
    %v6105 = vmax.f32 %v5977, 0.0
    %v6106 = vmax.f32 %v5978, 0.0
    %v6107 = vmax.f32 %v5979, 0.0
    %v6108 = vmax.f32 %v5980, 0.0
    %v6109 = vmax.f32 %v5981, 0.0
    %v6110 = vmax.f32 %v5982, 0.0
    %v6111 = vmax.f32 %v5983, 0.0
    %v6112 = vmax.f32 %v5984, 0.0
    %v6113 = vmax.f32 %v5985, 0.0
    %v6114 = vmax.f32 %v5986, 0.0
    %v6115 = vmax.f32 %v5987, 0.0
    %v6116 = vld [vmem:[%s6] sm:$0x1]
    %v6117 = vld [vmem:[#allocation2] sm:$0x1]
    %6119 = vset.pattern.permute.xlu0 0
    %6120 = vperm.xlu0 %6119, %v6117
    %v6121 = vpop.permute.xlu0 %6120
    %v6123 = vlaneseq
    %v6124 = vshrl.u32 %v6123, 7
    %v6125 = vsub.s32 0, %v6124
    %v6126 = vrot.slane %v6121, %v6125
    %6127 = vmatprep.subr.mxu0 0.0
    %6128 = vmatpush1.xpose.msra.mxu0 %v5988
    %6129 = vmatprep.subr.mxu0 0.0
    %6130 = vmatpush1.xpose.msra.mxu0 %v5989
    %6131 = vmatprep.subr.mxu0 0.0
    %6132 = vmatpush1.xpose.msra.mxu0 %v5990
    %6133 = vmatprep.subr.mxu0 0.0
    %6134 = vmatpush1.xpose.msra.mxu0 %v5991
    %6135 = vmatprep.subr.mxu0 0.0
    %6136 = vmatpush1.xpose.msra.mxu0 %v5992
    %6137 = vmatprep.subr.mxu0 0.0
    %6138 = vmatpush1.xpose.msra.mxu0 %v5993
    %6139 = vmatprep.subr.mxu0 0.0
    %6140 = vmatpush1.xpose.msra.mxu0 %v5994
    %6141 = vmatprep.subr.mxu0 0.0
    %6142 = vmatpush1.xpose.msra.mxu0 %v5995
    %6143 = vmatprep.subr.mxu0 0.0
    %6144 = vmatpush1.xpose.msra.mxu0 %v5996
    %6145 = vmatprep.subr.mxu0 0.0
    %6146 = vmatpush1.xpose.msra.mxu0 %v5997
    %6147 = vmatprep.subr.mxu0 0.0
    %6148 = vmatpush1.xpose.msra.mxu0 %v5998
    %6149 = vmatprep.subr.mxu0 0.0
    %6150 = vmatpush1.xpose.msra.mxu0 %v5999
    %6151 = vmatprep.subr.mxu0 0.0
    %6152 = vmatpush1.xpose.msra.mxu0 %v6000
    %6153 = vmatprep.subr.mxu0 0.0
    %6154 = vmatpush1.xpose.msra.mxu0 %v6001
    %6155 = vmatprep.subr.mxu0 0.0
    %6156 = vmatpush1.xpose.msra.mxu0 %v6002
    %6157 = vmatprep.subr.mxu0 0.0
    %6158 = vmatpush1.xpose.msra.mxu0 %v6003
    %6159 = vmatprep.subr.mxu0 0.0
    %6160 = vmatpush1.xpose.msra.mxu0 %v6004
    %6161 = vmatprep.subr.mxu0 0.0
    %6162 = vmatpush1.xpose.msra.mxu0 %v6005
    %6163 = vmatprep.subr.mxu0 0.0
    %6164 = vmatpush1.xpose.msra.mxu0 %v6006
    %6165 = vmatprep.subr.mxu0 0.0
    %6166 = vmatpush1.xpose.msra.mxu0 %v6007
    %6167 = vmatprep.subr.mxu0 0.0
    %6168 = vmatpush1.xpose.msra.mxu0 %v6008
    %6169 = vmatprep.subr.mxu0 0.0
    %6170 = vmatpush1.xpose.msra.mxu0 %v6009
    %6171 = vmatprep.subr.mxu0 0.0
    %6172 = vmatpush1.xpose.msra.mxu0 %v6010
    %6173 = vmatprep.subr.mxu0 0.0
    %6174 = vmatpush1.xpose.msra.mxu0 %v6011
    %6175 = vmatprep.subr.mxu0 0.0
    %6176 = vmatpush1.xpose.msra.mxu0 %v6012
    %6177 = vmatprep.subr.mxu0 0.0
    %6178 = vmatpush1.xpose.msra.mxu0 %v6013
    %6179 = vmatprep.subr.mxu0 0.0
    %6180 = vmatpush1.xpose.msra.mxu0 %v6014
    %6181 = vmatprep.subr.mxu0 0.0
    %6182 = vmatpush1.xpose.msra.mxu0 %v6015
    %6183 = vmatprep.subr.mxu0 0.0
    %6184 = vmatpush1.xpose.msra.mxu0 %v6016
    %6185 = vmatprep.subr.mxu0 0.0
    %6186 = vmatpush1.xpose.msra.mxu0 %v6017
    %6187 = vmatprep.subr.mxu0 0.0
    %6188 = vmatpush1.xpose.msra.mxu0 %v6018
    %6189 = vmatprep.subr.mxu0 0.0
    %6190 = vmatpush1.xpose.msra.mxu0 %v6019
    %6191 = vmatprep.mubr.f32.mxu0 0.0
    %6192 = vmatmul.mubr.f32.gmra.mrb[0].mxu0 %v6116
    %v6193 = vpop.f32.mrb[0].mxu0
    %v6194 = vadd.f32 %v6126, %v6193
    %v6195 = vpop.f32.mrb[0].mxu0
    %v6196 = vadd.f32 %v6126, %v6195
    %6197 = vdwg.mxu0
    %6198 = vmatprep.subr.mxu0 0.0
    %6199 = vmatpush1.xpose.msra.mxu0 %v6020
    %6200 = vmatprep.subr.mxu0 0.0
    %6201 = vmatpush1.xpose.msra.mxu0 %v6021
    %6202 = vmatprep.subr.mxu0 0.0
    %6203 = vmatpush1.xpose.msra.mxu0 %v6022
    %6204 = vmatprep.subr.mxu0 0.0
    %6205 = vmatpush1.xpose.msra.mxu0 %v6023
    %6206 = vmatprep.subr.mxu0 0.0
    %6207 = vmatpush1.xpose.msra.mxu0 %v6024
    %6208 = vmatprep.subr.mxu0 0.0
    %6209 = vmatpush1.xpose.msra.mxu0 %v6025
    %6210 = vmatprep.subr.mxu0 0.0
    %6211 = vmatpush1.xpose.msra.mxu0 %v6026
    %6212 = vmatprep.subr.mxu0 0.0
    %6213 = vmatpush1.xpose.msra.mxu0 %v6027
    %6214 = vmatprep.subr.mxu0 0.0
    %6215 = vmatpush1.xpose.msra.mxu0 %v6028
    %6216 = vmatprep.subr.mxu0 0.0
    %6217 = vmatpush1.xpose.msra.mxu0 %v6029
    %6218 = vmatprep.subr.mxu0 0.0
    %6219 = vmatpush1.xpose.msra.mxu0 %v6030
    %6220 = vmatprep.subr.mxu0 0.0
    %6221 = vmatpush1.xpose.msra.mxu0 %v6031
    %6222 = vmatprep.subr.mxu0 0.0
    %6223 = vmatpush1.xpose.msra.mxu0 %v6032
    %6224 = vmatprep.subr.mxu0 0.0
    %6225 = vmatpush1.xpose.msra.mxu0 %v6033
    %6226 = vmatprep.subr.mxu0 0.0
    %6227 = vmatpush1.xpose.msra.mxu0 %v6034
    %6228 = vmatprep.subr.mxu0 0.0
    %6229 = vmatpush1.xpose.msra.mxu0 %v6035
    %6230 = vmatprep.subr.mxu0 0.0
    %6231 = vmatpush1.xpose.msra.mxu0 %v6036
    %6232 = vmatprep.subr.mxu0 0.0
    %6233 = vmatpush1.xpose.msra.mxu0 %v6037
    %6234 = vmatprep.subr.mxu0 0.0
    %6235 = vmatpush1.xpose.msra.mxu0 %v6038
    %6236 = vmatprep.subr.mxu0 0.0
    %6237 = vmatpush1.xpose.msra.mxu0 %v6039
    %6238 = vmatprep.subr.mxu0 0.0
    %6239 = vmatpush1.xpose.msra.mxu0 %v6040
    %6240 = vmatprep.subr.mxu0 0.0
    %6241 = vmatpush1.xpose.msra.mxu0 %v6041
    %6242 = vmatprep.subr.mxu0 0.0
    %6243 = vmatpush1.xpose.msra.mxu0 %v6042
    %6244 = vmatprep.subr.mxu0 0.0
    %6245 = vmatpush1.xpose.msra.mxu0 %v6043
    %6246 = vmatprep.subr.mxu0 0.0
    %6247 = vmatpush1.xpose.msra.mxu0 %v6044
    %6248 = vmatprep.subr.mxu0 0.0
    %6249 = vmatpush1.xpose.msra.mxu0 %v6045
    %6250 = vmatprep.subr.mxu0 0.0
    %6251 = vmatpush1.xpose.msra.mxu0 %v6046
    %6252 = vmatprep.subr.mxu0 0.0
    %6253 = vmatpush1.xpose.msra.mxu0 %v6047
    %6254 = vmatprep.subr.mxu0 0.0
    %6255 = vmatpush1.xpose.msra.mxu0 %v6048
    %6256 = vmatprep.subr.mxu0 0.0
    %6257 = vmatpush1.xpose.msra.mxu0 %v6049
    %6258 = vmatprep.subr.mxu0 0.0
    %6259 = vmatpush1.xpose.msra.mxu0 %v6050
    %6260 = vmatprep.subr.mxu0 0.0
    %6261 = vmatpush1.xpose.msra.mxu0 %v6051
    %6262 = vmatprep.mubr.f32.mxu0 0.0
    %6263 = vmatmul.mubr.f32.gmra.mrb[0].mxu0 %v6116
    %v6264 = vpop.f32.mrb[0].mxu0
    %v6265 = vadd.f32 %v6126, %v6264
    %v6266 = vpop.f32.mrb[0].mxu0
    %v6267 = vadd.f32 %v6126, %v6266
    %6268 = vdwg.mxu0
    %6269 = vmatprep.subr.mxu0 0.0
    %6270 = vmatpush1.xpose.msra.mxu0 %v6052
    %6271 = vmatprep.subr.mxu0 0.0
    %6272 = vmatpush1.xpose.msra.mxu0 %v6053
    %6273 = vmatprep.subr.mxu0 0.0
    %6274 = vmatpush1.xpose.msra.mxu0 %v6054
    %6275 = vmatprep.subr.mxu0 0.0
    %6276 = vmatpush1.xpose.msra.mxu0 %v6055
    %6277 = vmatprep.subr.mxu0 0.0
    %6278 = vmatpush1.xpose.msra.mxu0 %v6056
    %6279 = vmatprep.subr.mxu0 0.0
    %6280 = vmatpush1.xpose.msra.mxu0 %v6057
    %6281 = vmatprep.subr.mxu0 0.0
    %6282 = vmatpush1.xpose.msra.mxu0 %v6058
    %6283 = vmatprep.subr.mxu0 0.0
    %6284 = vmatpush1.xpose.msra.mxu0 %v6059
    %6285 = vmatprep.subr.mxu0 0.0
    %6286 = vmatpush1.xpose.msra.mxu0 %v6060
    %6287 = vmatprep.subr.mxu0 0.0
    %6288 = vmatpush1.xpose.msra.mxu0 %v6061
    %6289 = vmatprep.subr.mxu0 0.0
    %6290 = vmatpush1.xpose.msra.mxu0 %v6062
    %6291 = vmatprep.subr.mxu0 0.0
    %6292 = vmatpush1.xpose.msra.mxu0 %v6063
    %6293 = vmatprep.subr.mxu0 0.0
    %6294 = vmatpush1.xpose.msra.mxu0 %v6064
    %6295 = vmatprep.subr.mxu0 0.0
    %6296 = vmatpush1.xpose.msra.mxu0 %v6065
    %6297 = vmatprep.subr.mxu0 0.0
    %6298 = vmatpush1.xpose.msra.mxu0 %v6066
    %6299 = vmatprep.subr.mxu0 0.0
    %6300 = vmatpush1.xpose.msra.mxu0 %v6067
    %6301 = vmatprep.subr.mxu0 0.0
    %6302 = vmatpush1.xpose.msra.mxu0 %v6068
    %6303 = vmatprep.subr.mxu0 0.0
    %6304 = vmatpush1.xpose.msra.mxu0 %v6069
    %6305 = vmatprep.subr.mxu0 0.0
    %6306 = vmatpush1.xpose.msra.mxu0 %v6070
    %6307 = vmatprep.subr.mxu0 0.0
    %6308 = vmatpush1.xpose.msra.mxu0 %v6071
    %6309 = vmatprep.subr.mxu0 0.0
    %6310 = vmatpush1.xpose.msra.mxu0 %v6072
    %6311 = vmatprep.subr.mxu0 0.0
    %6312 = vmatpush1.xpose.msra.mxu0 %v6073
    %6313 = vmatprep.subr.mxu0 0.0
    %6314 = vmatpush1.xpose.msra.mxu0 %v6074
    %6315 = vmatprep.subr.mxu0 0.0
    %6316 = vmatpush1.xpose.msra.mxu0 %v6075
    %6317 = vmatprep.subr.mxu0 0.0
    %6318 = vmatpush1.xpose.msra.mxu0 %v6076
    %6319 = vmatprep.subr.mxu0 0.0
    %6320 = vmatpush1.xpose.msra.mxu0 %v6077
    %6321 = vmatprep.subr.mxu0 0.0
    %6322 = vmatpush1.xpose.msra.mxu0 %v6078
    %6323 = vmatprep.subr.mxu0 0.0
    %6324 = vmatpush1.xpose.msra.mxu0 %v6079
    %6325 = vmatprep.subr.mxu0 0.0
    %6326 = vmatpush1.xpose.msra.mxu0 %v6080
    %6327 = vmatprep.subr.mxu0 0.0
    %6328 = vmatpush1.xpose.msra.mxu0 %v6081
    %6329 = vmatprep.subr.mxu0 0.0
    %6330 = vmatpush1.xpose.msra.mxu0 %v6082
    %6331 = vmatprep.subr.mxu0 0.0
    %6332 = vmatpush1.xpose.msra.mxu0 %v6083
    %6333 = vmatprep.mubr.f32.mxu0 0.0
    %6334 = vmatmul.mubr.f32.gmra.mrb[0].mxu0 %v6116
    %v6335 = vpop.f32.mrb[0].mxu0
    %v6336 = vadd.f32 %v6126, %v6335
    %v6337 = vpop.f32.mrb[0].mxu0
    %v6338 = vadd.f32 %v6126, %v6337
    %6339 = vdwg.mxu0
    %6340 = vmatprep.subr.mxu0 0.0
    %6341 = vmatpush1.xpose.msra.mxu0 %v6084
    %6342 = vmatprep.subr.mxu0 0.0
    %6343 = vmatpush1.xpose.msra.mxu0 %v6085
    %6344 = vmatprep.subr.mxu0 0.0
    %6345 = vmatpush1.xpose.msra.mxu0 %v6086
    %6346 = vmatprep.subr.mxu0 0.0
    %6347 = vmatpush1.xpose.msra.mxu0 %v6087
    %6348 = vmatprep.subr.mxu0 0.0
    %6349 = vmatpush1.xpose.msra.mxu0 %v6088
    %6350 = vmatprep.subr.mxu0 0.0
    %6351 = vmatpush1.xpose.msra.mxu0 %v6089
    %6352 = vmatprep.subr.mxu0 0.0
    %6353 = vmatpush1.xpose.msra.mxu0 %v6090
    %6354 = vmatprep.subr.mxu0 0.0
    %6355 = vmatpush1.xpose.msra.mxu0 %v6091
    %6356 = vmatprep.subr.mxu0 0.0
    %6357 = vmatpush1.xpose.msra.mxu0 %v6092
    %6358 = vmatprep.subr.mxu0 0.0
    %6359 = vmatpush1.xpose.msra.mxu0 %v6093
    %6360 = vmatprep.subr.mxu0 0.0
    %6361 = vmatpush1.xpose.msra.mxu0 %v6094
    %6362 = vmatprep.subr.mxu0 0.0
    %6363 = vmatpush1.xpose.msra.mxu0 %v6095
    %6364 = vmatprep.subr.mxu0 0.0
    %6365 = vmatpush1.xpose.msra.mxu0 %v6096
    %6366 = vmatprep.subr.mxu0 0.0
    %6367 = vmatpush1.xpose.msra.mxu0 %v6097
    %6368 = vmatprep.subr.mxu0 0.0
    %6369 = vmatpush1.xpose.msra.mxu0 %v6098
    %6370 = vmatprep.subr.mxu0 0.0
    %6371 = vmatpush1.xpose.msra.mxu0 %v6099
    %6372 = vmatprep.subr.mxu0 0.0
    %6373 = vmatpush1.xpose.msra.mxu0 %v6100
    %6374 = vmatprep.subr.mxu0 0.0
    %6375 = vmatpush1.xpose.msra.mxu0 %v6101
    %6376 = vmatprep.subr.mxu0 0.0
    %6377 = vmatpush1.xpose.msra.mxu0 %v6102
    %6378 = vmatprep.subr.mxu0 0.0
    %6379 = vmatpush1.xpose.msra.mxu0 %v6103
    %6380 = vmatprep.subr.mxu0 0.0
    %6381 = vmatpush1.xpose.msra.mxu0 %v6104
    %6382 = vmatprep.subr.mxu0 0.0
    %6383 = vmatpush1.xpose.msra.mxu0 %v6105
    %6384 = vmatprep.subr.mxu0 0.0
    %6385 = vmatpush1.xpose.msra.mxu0 %v6106
    %6386 = vmatprep.subr.mxu0 0.0
    %6387 = vmatpush1.xpose.msra.mxu0 %v6107
    %6388 = vmatprep.subr.mxu0 0.0
    %6389 = vmatpush1.xpose.msra.mxu0 %v6108
    %6390 = vmatprep.subr.mxu0 0.0
    %6391 = vmatpush1.xpose.msra.mxu0 %v6109
    %6392 = vmatprep.subr.mxu0 0.0
    %6393 = vmatpush1.xpose.msra.mxu0 %v6110
    %6394 = vmatprep.subr.mxu0 0.0
    %6395 = vmatpush1.xpose.msra.mxu0 %v6111
    %6396 = vmatprep.subr.mxu0 0.0
    %6397 = vmatpush1.xpose.msra.mxu0 %v6112
    %6398 = vmatprep.subr.mxu0 0.0
    %6399 = vmatpush1.xpose.msra.mxu0 %v6113
    %6400 = vmatprep.subr.mxu0 0.0
    %6401 = vmatpush1.xpose.msra.mxu0 %v6114
    %6402 = vmatprep.subr.mxu0 0.0
    %6403 = vmatpush1.xpose.msra.mxu0 %v6115
    %6404 = vmatprep.mubr.f32.mxu0 0.0
    %6405 = vmatmul.mubr.f32.gmra.mrb[0].mxu0 %v6116
    %v6406 = vpop.f32.mrb[0].mxu0
    %v6407 = vadd.f32 %v6126, %v6406
    %v6408 = vpop.f32.mrb[0].mxu0
    %v6409 = vadd.f32 %v6126, %v6408
    %6410 = vdwg.mxu0
    %v6411 = vsub.f32 0.0, %v6194
    %v6412 = vsub.f32 0.0, %v6196
    %v6413 = vsub.f32 0.0, %v6265
    %v6414 = vsub.f32 0.0, %v6267
    %v6415 = vsub.f32 0.0, %v6336
    %v6416 = vsub.f32 0.0, %v6338
    %v6417 = vsub.f32 0.0, %v6407
    %v6418 = vsub.f32 0.0, %v6409
    %v6419 = vmul.f32 %v6411, 1.442695
    %v6420 = vpow.pop %v6419
    %v6421 = vmul.f32 %v6412, 1.442695
    %v6422 = vpow.pop %v6421
    %v6423 = vmul.f32 %v6413, 1.442695
    %v6424 = vpow.pop %v6423
    %v6425 = vmul.f32 %v6414, 1.442695
    %v6426 = vpow.pop %v6425
    %v6427 = vmul.f32 %v6415, 1.442695
    %v6428 = vpow.pop %v6427
    %v6429 = vmul.f32 %v6416, 1.442695
    %v6430 = vpow.pop %v6429
    %v6431 = vmul.f32 %v6417, 1.442695
    %v6432 = vpow.pop %v6431
    %v6433 = vmul.f32 %v6418, 1.442695
    %v6434 = vpow.pop %v6433
    %v6435 = vadd.f32 %v6420, 1.0
    %v6436 = vadd.f32 %v6422, 1.0
    %v6437 = vadd.f32 %v6424, 1.0
    %v6438 = vadd.f32 %v6426, 1.0
    %v6439 = vadd.f32 %v6428, 1.0
    %v6440 = vadd.f32 %v6430, 1.0
    %v6441 = vadd.f32 %v6432, 1.0
    %v6442 = vadd.f32 %v6434, 1.0
    %v6443 = vrcp.pop %v6435
    %v6444 = vrcp.pop %v6436
    %v6445 = vrcp.pop %v6437
    %v6446 = vrcp.pop %v6438
    %v6447 = vrcp.pop %v6439
    %v6448 = vrcp.pop %v6440
    %v6449 = vrcp.pop %v6441
    %v6450 = vrcp.pop %v6442
    %v6459 = vcombine.low %v6443, %v6444
    %v6460 = vcombine.low %v6445, %v6446
    %v6461 = vcombine.low %v6447, %v6448
    %v6462 = vcombine.low %v6449, %v6450
    %v6464 = vunpack.c.l.s4 1966171168
    %v6465 = vunpack.c.0.s8 %v6464
    %v6466 = vlaneseq
    %v6467 = vshrl.u32 %v6466, 7
    %v6468 = vsub.s32 %v6465, %v6467
    %v6469 = vrot.slane %v6459, %v6468
    %v6471 = vunpack.c.l.s4 1966171168
    %v6472 = vunpack.c.0.s8 %v6471
    %v6473 = vlaneseq
    %v6474 = vshrl.u32 %v6473, 7
    %v6475 = vsub.s32 %v6472, %v6474
    %v6476 = vrot.slane %v6460, %v6475
    %v6478 = vunpack.c.l.s4 1966171168
    %v6479 = vunpack.c.0.s8 %v6478
    %v6480 = vlaneseq
    %v6481 = vshrl.u32 %v6480, 7
    %v6482 = vsub.s32 %v6479, %v6481
    %v6483 = vrot.slane %v6461, %v6482
    %v6485 = vunpack.c.l.s4 1966171168
    %v6486 = vunpack.c.0.s8 %v6485
    %v6487 = vlaneseq
    %v6488 = vshrl.u32 %v6487, 7
    %v6489 = vsub.s32 %v6486, %v6488
    %v6490 = vrot.slane %v6462, %v6489
    %v6491 = vcombine.low %v6469, %v6476
    %v6492 = vcombine.low %v6483, %v6490
    %v6494 = vunpack.c.l.s4 1966171168
    %v6495 = vunpack.c.0.s8 %v6494
    %v6496 = vlaneseq
    %v6497 = vshrl.u32 %v6496, 7
    %v6498 = vsub.s32 %v6495, %v6497
    %v6499 = vrot.slane %v6491, %v6498
    %v6501 = vunpack.c.l.s4 1966171168
    %v6502 = vunpack.c.0.s8 %v6501
    %v6503 = vlaneseq
    %v6504 = vshrl.u32 %v6503, 7
    %v6505 = vsub.s32 %v6502, %v6504
    %v6506 = vrot.slane %v6492, %v6505
    %v6507 = vcombine.low %v6499, %v6506
    %6509 = vst [vmem:[#allocation3] sm:$0xff] %v6507
    // Predicated region
    $region34: #{tpu_custom_call.1} parent=1 // pred_check
      _
    $region35: #{tpu_custom_call.1} parent=1 // pred_check_branch
      %6511 = sbr.rel (0) target = $region37
    $region36: #{tpu_custom_call.1} parent=1 // pred_region
      %s6513 = ssub.s32 128, 128
      %6514 = vsyncadd [#allocation4], %s6513
      %s6516 = sshll.u32 [#allocation3], 4
      %s6517 = int_to_ptr.vmem [resolvable:$true] %s6516
      %6519 = dma.vmem_to_hbm [thread:$0]  %s6517, 128, %s8, [#allocation4]
    $region37: #{tpu_custom_call.1} parent=1 // pred_fallthru
      _
    // Predicated region
    $region38: #{tpu_custom_call.1} parent=1 // pred_check
      _
    $region39: #{tpu_custom_call.1} parent=1 // pred_check_branch
      %6521 = sbr.rel (0) target = $region41
    $region40: #{tpu_custom_call.1} parent=1 // pred_region
      %6522 = dma.done [#allocation4], 128
    $region41: #{tpu_custom_call.1} parent=1 // pred_fallthru
      _
    %6523 = vsyncpa [#allocation4], 1

</llo_original>
